<compile_context>
chip_gen: v7x
topology: tpu7x:2x2x1
jax: 0.10.0
libtpu: 0.0.40
codegen_flags: <defaults>
</compile_context>

<pallas_src>
import functools

import jax
import jax.numpy as jnp
from jax.experimental import pallas as pl
from jax.experimental.pallas import tpu as pltpu

D_IN = 1025      # true feature dim of the module
D_K1 = 1024      # MXU-aligned prefix of the input features (8 * 128)
D_PAD = 1152     # 9 * 128, lane-aligned padding of the 1025 hidden dims


def _round_up(n, m):
    return ((n + m - 1) // m) * m


def _mlp_kernel(x_ref, w1a_ref, w1b_ref, b1_ref, w2_ref, b2_ref, w3_ref,
                b3_ref, o_ref):
    # ---- Layer 1: relu(x @ W1 + b1) -----------------------------------------
    # x is the raw f32 [tb, 1025] tile.  Columns [0:1024] go through the MXU
    # (bf16 in / f32 acc); the last feature is a rank-1 VPU update, avoiding any
    # unaligned activation padding.
    xa = x_ref[:, :D_K1].astype(jnp.bfloat16)              # (tb, 1024) bf16
    x_last = x_ref[:, D_K1:D_IN]                           # (tb, 1)    f32
    h1 = jnp.dot(xa, w1a_ref[...], preferred_element_type=jnp.float32)
    h1 = h1 + x_last * w1b_ref[...] + b1_ref[...]
    h1 = jnp.maximum(h1, 0.0)                              # (tb, 1152) f32

    # ---- Layer 2: relu(h1 @ W2 + b2) ----------------------------------------
    h2 = jnp.dot(h1.astype(jnp.bfloat16), w2_ref[...],
                 preferred_element_type=jnp.float32)
    h2 = jnp.maximum(h2 + b2_ref[...], 0.0)                # (tb, 1152) f32

    # ---- Layer 3 (output width 1): VPU multiply + lane reduction ------------
    z = jnp.sum(h2 * w3_ref[...], axis=-1, keepdims=True) + b3_ref[0]
    o_ref[...] = jax.nn.sigmoid(z)                         # (tb, 1) f32


def prepare_params(params, weight_dtype=jnp.bfloat16):
    """One-time pad + cast of the module parameters to TPU-aligned shapes.

    Weights use the (in_features, out_features) convention (y = x @ W + b).
    """
    w1, b1, w2, b2, w3, b3 = params
    w1a = jnp.zeros((D_K1, D_PAD), weight_dtype).at[:, :D_IN].set(
        w1[:D_K1].astype(weight_dtype))                       # rows 0..1023
    w1b = jnp.zeros((1, D_PAD), jnp.float32).at[0, :D_IN].set(
        w1[D_K1].astype(jnp.float32))                         # row 1024 (f32)
    b1_p = jnp.zeros((1, D_PAD), jnp.float32).at[0, :D_IN].set(
        b1.astype(jnp.float32))
    w2_p = jnp.zeros((D_PAD, D_PAD), weight_dtype).at[:D_IN, :D_IN].set(
        w2.astype(weight_dtype))
    b2_p = jnp.zeros((1, D_PAD), jnp.float32).at[0, :D_IN].set(
        b2.astype(jnp.float32))
    # Final layer weight kept as a single f32 row vector (no 128-column pad).
    w3_p = jnp.zeros((1, D_PAD), jnp.float32).at[0, :D_IN].set(
        w3[:, 0].astype(jnp.float32))
    b3_p = jnp.asarray(b3, jnp.float32).reshape(1,)
    return (w1a, w1b, b1_p, w2_p, b2_p, w3_p, b3_p)


@functools.partial(jax.jit, static_argnames=("block_b",))
def invincea_forward(x, padded_params, *, block_b=1024):
    """x: [B, 1025] float32 -> [B, 1] float32. padded_params from prepare_params."""
    w1a, w1b, b1, w2, b2, w3, b3 = padded_params
    B = x.shape[0]

    # Batch tile: multiple of 16 (bf16 sublane packing), capped at block_b.
    tb = min(block_b, _round_up(B, 16))
    # Give the "parallel" batch axis >= 2 steps for larger batches so it can be
    # sharded across the two TensorCores on v7x (negligible cost elsewhere).
    if B >= 256:
        tb = min(tb, _round_up((B + 1) // 2, 16))
    tb = max(tb, 16)
    nb = (B + tb - 1) // tb
    Bp = nb * tb

    # Only pad batch rows when B is not a multiple of the tile.  In the common
    # aligned case x goes to the kernel untouched (no extra HBM pass).
    x_in = x if Bp == B else jnp.pad(x, ((0, Bp - B), (0, 0)))

    # VMEM-resident blocks (constant index map -> fetched once, stay resident).
    # If VMEM gets tight on v7x at very large tiles, pipeline_mode=pl.Buffered(1)
    # on these specs drops their double-buffering.
    resident = lambda shape: pl.BlockSpec(shape, lambda i: (0, 0))

    out = pl.pallas_call(
        _mlp_kernel,
        out_shape=jax.ShapeDtypeStruct((Bp, 1), jnp.float32),
        grid=(nb,),
        in_specs=[
            pl.BlockSpec((tb, D_IN), lambda i: (i, 0)),        # x tile (f32, pipelined)
            resident((D_K1, D_PAD)),                           # W1 rows 0..1023 (bf16)
            resident((1, D_PAD)),                              # W1 row 1024     (f32)
            resident((1, D_PAD)),                              # b1              (f32)
            resident((D_PAD, D_PAD)),                          # W2              (bf16)
            resident((1, D_PAD)),                              # b2              (f32)
            resident((1, D_PAD)),                              # w3 row          (f32)
            pl.BlockSpec(memory_space=pltpu.MemorySpace.SMEM), # b3 scalar
        ],
        out_specs=pl.BlockSpec((tb, 1), lambda i: (i, 0)),
        compiler_params=pltpu.CompilerParams(
            dimension_semantics=(pltpu.PARALLEL,),
            vmem_limit_bytes=48 << 20),
    )(x_in, w1a, w1b, b1, w2, b2, w3, b3)

    return out[:B]


def init_params(key):
    """Deterministic init mimicking nn.Linear (uniform(-1/sqrt(fan_in), +))."""
    ks = jax.random.split(key, 6)

    def lin(kw, kb, fan_in, fan_out):
        bound = 1.0 / jnp.sqrt(fan_in)
        w = jax.random.uniform(kw, (fan_in, fan_out), jnp.float32, -bound, bound)
        b = jax.random.uniform(kb, (fan_out,), jnp.float32, -bound, bound)
        return w, b

    w1, b1 = lin(ks[0], ks[1], D_IN, D_IN)
    w2, b2 = lin(ks[2], ks[3], D_IN, D_IN)
    w3, b3 = lin(ks[4], ks[5], D_IN, 1)
    return (w1, b1, w2, b2, w3, b3)


def reference_forward(x, params):
    w1, b1, w2, b2, w3, b3 = params
    h = jnp.maximum(x @ w1 + b1, 0.0)
    h = jnp.maximum(h @ w2 + b2, 0.0)
    return jax.nn.sigmoid(h @ w3 + b3)


if __name__ == "__main__":
    key = jax.random.PRNGKey(0)
    kx, kp = jax.random.split(key)

    B = 8
    x = jax.random.normal(kx, (B, D_IN), jnp.float32)
    params = init_params(kp)
    padded = prepare_params(params)           # one-time pad + bf16 cast

    out = invincea_forward(x, padded)
    out = jax.block_until_ready(out)

    ref = reference_forward(x, params)        # f32 reference
    assert out.shape == (B, 1), out.shape
    # bf16 weights/activations loosen the tolerance vs. the f32 reference.
    assert jnp.allclose(out, ref, atol=2e-2, rtol=2e-2), (
        f"max err {jnp.max(jnp.abs(out - ref))}")

    print("KERNEL_OK")
</pallas_src>

<mosaic_0001>
module attributes {stable_mosaic.version = 11 : i64} {
  func.func @_mlp_kernel(%arg0: i32, %arg1: memref<16x1025xf32, #tpu.memory_space<vmem>>, %arg2: memref<1024x1152xbf16, #tpu.memory_space<vmem>>, %arg3: memref<1x1152xf32, #tpu.memory_space<vmem>>, %arg4: memref<1x1152xf32, #tpu.memory_space<vmem>>, %arg5: memref<1152x1152xbf16, #tpu.memory_space<vmem>>, %arg6: memref<1x1152xf32, #tpu.memory_space<vmem>>, %arg7: memref<1x1152xf32, #tpu.memory_space<vmem>>, %arg8: memref<1xf32, #tpu.memory_space<smem>>, %arg9: memref<16x1xf32, #tpu.memory_space<vmem>>) attributes {dimension_semantics = [#tpu.dimension_semantics<parallel>], iteration_bounds = array<i64: 1>, scalar_prefetch = 0 : i64, scratch_operands = 0 : i64, tpu.core_type = #tpu.core_type<tc>, window_params = [{transform_indices = @transform_0, window_bounds = array<i64: 16, 1025>}, {pipeline_mode = #tpu.pipeline_mode<synchronous>, transform_indices = @transform_1, window_bounds = array<i64: 1024, 1152>}, {pipeline_mode = #tpu.pipeline_mode<synchronous>, transform_indices = @transform_2, window_bounds = array<i64: 1, 1152>}, {pipeline_mode = #tpu.pipeline_mode<synchronous>, transform_indices = @transform_3, window_bounds = array<i64: 1, 1152>}, {pipeline_mode = #tpu.pipeline_mode<synchronous>, transform_indices = @transform_4, window_bounds = array<i64: 1152, 1152>}, {pipeline_mode = #tpu.pipeline_mode<synchronous>, transform_indices = @transform_5, window_bounds = array<i64: 1, 1152>}, {pipeline_mode = #tpu.pipeline_mode<synchronous>, transform_indices = @transform_6, window_bounds = array<i64: 1, 1152>}, {transform_indices = @transform_7, window_bounds = array<i64: 1>}, {transform_indices = @transform_8, window_bounds = array<i64: 16, 1>}]} {
    %c0 = arith.constant 0 : index
    %c0_0 = arith.constant 0 : index
    %0 = vector.load %arg1[%c0, %c0_0] : memref<16x1025xf32, #tpu.memory_space<vmem>>, vector<16x1024xf32>
    %1 = arith.truncf %0 : vector<16x1024xf32> to vector<16x1024xbf16>
    %c0_1 = arith.constant 0 : index
    %c1024 = arith.constant 1024 : index
    %2 = vector.load %arg1[%c0_1, %c1024] : memref<16x1025xf32, #tpu.memory_space<vmem>>, vector<16x1xf32>
    %c0_2 = arith.constant 0 : index
    %c0_3 = arith.constant 0 : index
    %3 = vector.load %arg2[%c0_2, %c0_3] : memref<1024x1152xbf16, #tpu.memory_space<vmem>>, vector<1024x1152xbf16>
    %cst = arith.constant dense<0.000000e+00> : vector<16x1152xf32>
    %4 = tpu.matmul %1, %3, %cst {dimension_numbers = #tpu.dot_dimension_numbers<[1], [0], [0], [1], [0, 0, 1, 1], [], []>} : vector<16x1024xbf16>, vector<1024x1152xbf16>, vector<16x1152xf32> -> vector<16x1152xf32>
    %c0_4 = arith.constant 0 : index
    %c0_5 = arith.constant 0 : index
    %5 = vector.load %arg3[%c0_4, %c0_5] : memref<1x1152xf32, #tpu.memory_space<vmem>>, vector<1x1152xf32>
    %6 = vector.broadcast %2 : vector<16x1xf32> to vector<16x1152xf32>
    %7 = vector.broadcast %5 : vector<1x1152xf32> to vector<16x1152xf32>
    %8 = arith.mulf %6, %7 : vector<16x1152xf32>
    %9 = arith.addf %4, %8 : vector<16x1152xf32>
    %c0_6 = arith.constant 0 : index
    %c0_7 = arith.constant 0 : index
    %10 = vector.load %arg4[%c0_6, %c0_7] : memref<1x1152xf32, #tpu.memory_space<vmem>>, vector<1x1152xf32>
    %11 = vector.broadcast %10 : vector<1x1152xf32> to vector<16x1152xf32>
    %12 = arith.addf %9, %11 : vector<16x1152xf32>
    %cst_8 = arith.constant 0.000000e+00 : f32
    %13 = vector.broadcast %cst_8 : f32 to vector<16x1152xf32>
    %14 = arith.maximumf %12, %13 : vector<16x1152xf32>
    %15 = arith.truncf %14 : vector<16x1152xf32> to vector<16x1152xbf16>
    %c0_9 = arith.constant 0 : index
    %c0_10 = arith.constant 0 : index
    %16 = vector.load %arg5[%c0_9, %c0_10] : memref<1152x1152xbf16, #tpu.memory_space<vmem>>, vector<1152x1152xbf16>
    %cst_11 = arith.constant dense<0.000000e+00> : vector<16x1152xf32>
    %17 = tpu.matmul %15, %16, %cst_11 {dimension_numbers = #tpu.dot_dimension_numbers<[1], [0], [0], [1], [0, 0, 1, 1], [], []>} : vector<16x1152xbf16>, vector<1152x1152xbf16>, vector<16x1152xf32> -> vector<16x1152xf32>
    %c0_12 = arith.constant 0 : index
    %c0_13 = arith.constant 0 : index
    %18 = vector.load %arg6[%c0_12, %c0_13] : memref<1x1152xf32, #tpu.memory_space<vmem>>, vector<1x1152xf32>
    %19 = vector.broadcast %18 : vector<1x1152xf32> to vector<16x1152xf32>
    %20 = arith.addf %17, %19 : vector<16x1152xf32>
    %cst_14 = arith.constant 0.000000e+00 : f32
    %21 = vector.broadcast %cst_14 : f32 to vector<16x1152xf32>
    %22 = arith.maximumf %20, %21 : vector<16x1152xf32>
    %c0_15 = arith.constant 0 : index
    %c0_16 = arith.constant 0 : index
    %23 = vector.load %arg7[%c0_15, %c0_16] : memref<1x1152xf32, #tpu.memory_space<vmem>>, vector<1x1152xf32>
    %24 = vector.broadcast %23 : vector<1x1152xf32> to vector<16x1152xf32>
    %25 = arith.mulf %22, %24 : vector<16x1152xf32>
    %cst_17 = arith.constant dense<0.000000e+00> : vector<16xf32>
    %26 = vector.multi_reduction <add>, %25, %cst_17 [1] : vector<16x1152xf32> to vector<16xf32>
    %27 = vector.shape_cast %26 : vector<16xf32> to vector<16x1xf32>
    %c0_18 = arith.constant 0 : index
    %28 = memref.load %arg8[%c0_18] : memref<1xf32, #tpu.memory_space<smem>>
    %29 = vector.broadcast %28 : f32 to vector<16x1xf32>
    %30 = arith.addf %27, %29 : vector<16x1xf32>
    %31 = arith.negf %30 : vector<16x1xf32>
    %32 = math.exp %31 : vector<16x1xf32>
    %cst_19 = arith.constant 1.000000e+00 : f32
    %33 = vector.broadcast %cst_19 : f32 to vector<16x1xf32>
    %34 = arith.addf %33, %32 : vector<16x1xf32>
    %35 = arith.divf %33, %34 : vector<16x1xf32>
    %c0_20 = arith.constant 0 : index
    %c0_21 = arith.constant 0 : index
    %36 = vector.load %arg9[%c0_20, %c0_21] : memref<16x1xf32, #tpu.memory_space<vmem>>, vector<16x1xf32>
    tpu.vector_store %arg9[%c0_20, %c0_21], %35 {strides = array<i32>} : memref<16x1xf32, #tpu.memory_space<vmem>>, vector<16x1xf32>,
    return
  }
  func.func @transform_0(%arg0: i32) -> (i32, i32) {
    %c0_i32 = arith.constant 0 : i32
    %c0_i32_0 = arith.constant 0 : i32
    return %arg0, %c0_i32 : i32, i32
  }
  func.func @transform_1(%arg0: i32) -> (i32, i32) {
    %c0_i32 = arith.constant 0 : i32
    %c0_i32_0 = arith.constant 0 : i32
    %c0_i32_1 = arith.constant 0 : i32
    return %c0_i32, %c0_i32_0 : i32, i32
  }
  func.func @transform_2(%arg0: i32) -> (i32, i32) {
    %c0_i32 = arith.constant 0 : i32
    %c0_i32_0 = arith.constant 0 : i32
    %c0_i32_1 = arith.constant 0 : i32
    return %c0_i32, %c0_i32_0 : i32, i32
  }
  func.func @transform_3(%arg0: i32) -> (i32, i32) {
    %c0_i32 = arith.constant 0 : i32
    %c0_i32_0 = arith.constant 0 : i32
    %c0_i32_1 = arith.constant 0 : i32
    return %c0_i32, %c0_i32_0 : i32, i32
  }
  func.func @transform_4(%arg0: i32) -> (i32, i32) {
    %c0_i32 = arith.constant 0 : i32
    %c0_i32_0 = arith.constant 0 : i32
    %c0_i32_1 = arith.constant 0 : i32
    return %c0_i32, %c0_i32_0 : i32, i32
  }
  func.func @transform_5(%arg0: i32) -> (i32, i32) {
    %c0_i32 = arith.constant 0 : i32
    %c0_i32_0 = arith.constant 0 : i32
    %c0_i32_1 = arith.constant 0 : i32
    return %c0_i32, %c0_i32_0 : i32, i32
  }
  func.func @transform_6(%arg0: i32) -> (i32, i32) {
    %c0_i32 = arith.constant 0 : i32
    %c0_i32_0 = arith.constant 0 : i32
    %c0_i32_1 = arith.constant 0 : i32
    return %c0_i32, %c0_i32_0 : i32, i32
  }
  func.func @transform_7(%arg0: i32) -> i32 {
    %c0_i32 = arith.constant 0 : i32
    %c0_i32_0 = arith.constant 0 : i32
    return %c0_i32 : i32
  }
  func.func @transform_8(%arg0: i32) -> (i32, i32) {
    %c0_i32 = arith.constant 0 : i32
    %c0_i32_0 = arith.constant 0 : i32
    return %arg0, %c0_i32 : i32, i32
  }
}

</mosaic_0001>

<llo_original>
// kernel: invincea_forward.1
$region0: #{invincea_forward.1}
  #allocation0 [shape = 'u32[]', space=smem, size = 0x4, offset = 0x4, fixed_abs, tag = 'smem constant byte address 0x4 - core index']
  #allocation1 [shape = 'u32[144,128]{1,0:T(1,128)}', space=vmem, size = 0x12000, scoped, tag = 'internal scratch']
  #allocation2 [shape = 'f32[1]{0:T(128)S(6)}', space=smem, size = 0x200, scoped, tag = 'scoped memory for invincea_forward.1']
  %s0 = inlined_call_operand.vmem [shape: f32[16,1025], index: 0, kind: input, shape index: {}]
  %s1 = inlined_call_operand.hbm [shape: bf16[1024,1152], index: 1, kind: input, shape index: {}]
  %s2 = inlined_call_operand.hbm [shape: f32[1,1152], index: 2, kind: input, shape index: {}]
  %s3 = inlined_call_operand.hbm [shape: f32[1,1152], index: 3, kind: input, shape index: {}]
  %s4 = inlined_call_operand.hbm [shape: bf16[1152,1152], index: 4, kind: input, shape index: {}]
  %s5 = inlined_call_operand.hbm [shape: f32[1,1152], index: 5, kind: input, shape index: {}]
  %s6 = inlined_call_operand.hbm [shape: f32[1,1152], index: 6, kind: input, shape index: {}]
  %s7 = inlined_call_operand.<no memory space> [shape: f32[1], index: 7, kind: input, shape index: {}]
  %s8 = inlined_call_operand.vmem [shape: f32[16,1], index: 8, kind: output, shape index: {}]
  %s9 = sld [smem:[#allocation0]]
  $region66: #{invincea_forward.1} parent=0
    _
  %s11 = ssub.s32 1, %s9
  %s12 = scalar_select 0, %s11, %s9
  %13 = sst [smem:[#allocation2]] %s7
  $region1: #{invincea_forward.1} parent=0
    #allocation3 [shape = 'u8[2359296]{0}', space=vmem, size = 0x240000, scoped, tag = 'input window, operand 1, single buffered']
    #allocation4 [shape = 's32[1]{0}', space=sflag, size = 0x4, scoped, tag = 'scoped memory for invincea_forward.1']
    #allocation5 [shape = 'u8[4608]{0}', space=vmem, size = 0x1400, scoped, tag = 'input window, operand 2, single buffered']
    #allocation6 [shape = 's32[1]{0}', space=sflag, size = 0x4, scoped, tag = 'scoped memory for invincea_forward.1']
    #allocation7 [shape = 'u8[4608]{0}', space=vmem, size = 0x1400, scoped, tag = 'input window, operand 3, single buffered']
    #allocation8 [shape = 'u8[2654208]{0}', space=vmem, size = 0x288000, scoped, tag = 'input window, operand 4, single buffered']
    #allocation9 [shape = 's32[1]{0}', space=sflag, size = 0x4, scoped, tag = 'scoped memory for invincea_forward.1']
    #allocation10 [shape = 'u8[4608]{0}', space=vmem, size = 0x1400, scoped, tag = 'input window, operand 5, single buffered']
    #allocation11 [shape = 'u8[4608]{0}', space=vmem, size = 0x1400, scoped, tag = 'input window, operand 6, single buffered']
    #allocation12 [shape = 's32[1]{0}', space=sflag, size = 0x4, scoped, tag = 'scoped memory for invincea_forward.1']
    %14 = vsyncpa [#allocation4], 0
    %15 = vsyncpa [#allocation6], 0
    %16 = vsyncpa [#allocation9], 0
    %17 = vsyncpa [#allocation12], 0
    // Predicated region
    $region2: #{invincea_forward.1} parent=1 // pred_check
      _
    $region3: #{invincea_forward.1} parent=1 // pred_check_branch
      %19 = sbr.rel (0) target = $region5
    $region4: #{invincea_forward.1} parent=1 // pred_region
      _
    $region5: #{invincea_forward.1} parent=1 // pred_fallthru
      _
    // Predicated region
    $region6: #{invincea_forward.1} parent=1 // pred_check
      _
    $region7: #{invincea_forward.1} parent=1 // pred_check_branch
      %21 = sbr.rel (0) target = $region9
    $region8: #{invincea_forward.1} parent=1 // pred_region
      %s23 = ssub.s32 73728, 73728
      %24 = vsyncadd [#allocation4], %s23
      %s25 = sshll.u32 [#allocation3], 4
      %s26 = int_to_ptr.vmem [resolvable:$true] %s25
      %31 = dma.hbm_to_vmem [thread:$0]  %s1, 73728, %s26, [#allocation4], 576, 576, 36
    $region9: #{invincea_forward.1} parent=1 // pred_fallthru
      _
    // Predicated region
    $region10: #{invincea_forward.1} parent=1 // pred_check
      _
    $region11: #{invincea_forward.1} parent=1 // pred_check_branch
      %33 = sbr.rel (0) target = $region13
    $region12: #{invincea_forward.1} parent=1 // pred_region
      %s35 = ssub.s32 144, 144
      %36 = vsyncadd [#allocation6], %s35
      %s38 = sshll.u32 [#allocation5], 4
      %s39 = int_to_ptr.vmem [resolvable:$true] %s38
      %41 = dma.hbm_to_vmem [thread:$0]  %s2, 144, %s39, [#allocation6]
    $region13: #{invincea_forward.1} parent=1 // pred_fallthru
      _
    // Predicated region
    $region14: #{invincea_forward.1} parent=1 // pred_check
      _
    $region15: #{invincea_forward.1} parent=1 // pred_check_branch
      %43 = sbr.rel (0) target = $region17
    $region16: #{invincea_forward.1} parent=1 // pred_region
      %s45 = ssub.s32 144, 144
      %46 = vsyncadd [#allocation6], %s45
      %s48 = sshll.u32 [#allocation7], 4
      %s49 = int_to_ptr.vmem [resolvable:$true] %s48
      %51 = dma.hbm_to_vmem [thread:$0]  %s3, 144, %s49, [#allocation6]
    $region17: #{invincea_forward.1} parent=1 // pred_fallthru
      _
    // Predicated region
    $region18: #{invincea_forward.1} parent=1 // pred_check
      _
    $region19: #{invincea_forward.1} parent=1 // pred_check_branch
      %53 = sbr.rel (0) target = $region21
    $region20: #{invincea_forward.1} parent=1 // pred_region
      %s55 = ssub.s32 82944, 82944
      %56 = vsyncadd [#allocation9], %s55
      %s57 = sshll.u32 [#allocation8], 4
      %s58 = int_to_ptr.vmem [resolvable:$true] %s57
      %63 = dma.hbm_to_vmem [thread:$0]  %s4, 82944, %s58, [#allocation9], 576, 576, 36
    $region21: #{invincea_forward.1} parent=1 // pred_fallthru
      _
    // Predicated region
    $region22: #{invincea_forward.1} parent=1 // pred_check
      _
    $region23: #{invincea_forward.1} parent=1 // pred_check_branch
      %65 = sbr.rel (0) target = $region25
    $region24: #{invincea_forward.1} parent=1 // pred_region
      %s67 = ssub.s32 144, 144
      %68 = vsyncadd [#allocation9], %s67
      %s70 = sshll.u32 [#allocation10], 4
      %s71 = int_to_ptr.vmem [resolvable:$true] %s70
      %73 = dma.hbm_to_vmem [thread:$0]  %s5, 144, %s71, [#allocation9]
    $region25: #{invincea_forward.1} parent=1 // pred_fallthru
      _
    // Predicated region
    $region26: #{invincea_forward.1} parent=1 // pred_check
      _
    $region27: #{invincea_forward.1} parent=1 // pred_check_branch
      %75 = sbr.rel (0) target = $region29
    $region28: #{invincea_forward.1} parent=1 // pred_region
      %s77 = ssub.s32 144, 144
      %78 = vsyncadd [#allocation12], %s77
      %s80 = sshll.u32 [#allocation11], 4
      %s81 = int_to_ptr.vmem [resolvable:$true] %s80
      %83 = dma.hbm_to_vmem [thread:$0]  %s6, 144, %s81, [#allocation12]
    $region29: #{invincea_forward.1} parent=1 // pred_fallthru
      _
    // Predicated region
    $region30: #{invincea_forward.1} parent=1 // pred_check
      _
    $region31: #{invincea_forward.1} parent=1 // pred_check_branch
      %85 = sbr.rel (0) target = $region33
    $region32: #{invincea_forward.1} parent=1 // pred_region
      _
    $region33: #{invincea_forward.1} parent=1 // pred_fallthru
      _
    // Predicated region
    $region34: #{invincea_forward.1} parent=1 // pred_check
      _
    $region35: #{invincea_forward.1} parent=1 // pred_check_branch
      %87 = sbr.rel (0) target = $region37
    $region36: #{invincea_forward.1} parent=1 // pred_region
      %88 = dma.done [#allocation4], 73728
    $region37: #{invincea_forward.1} parent=1 // pred_fallthru
      _
    // Predicated region
    $region38: #{invincea_forward.1} parent=1 // pred_check
      _
    $region39: #{invincea_forward.1} parent=1 // pred_check_branch
      %90 = sbr.rel (0) target = $region41
    $region40: #{invincea_forward.1} parent=1 // pred_region
      %91 = dma.done [#allocation6], 144
    $region41: #{invincea_forward.1} parent=1 // pred_fallthru
      _
    // Predicated region
    $region42: #{invincea_forward.1} parent=1 // pred_check
      _
    $region43: #{invincea_forward.1} parent=1 // pred_check_branch
      %93 = sbr.rel (0) target = $region45
    $region44: #{invincea_forward.1} parent=1 // pred_region
      %94 = dma.done [#allocation6], 144
    $region45: #{invincea_forward.1} parent=1 // pred_fallthru
      _
    // Predicated region
    $region46: #{invincea_forward.1} parent=1 // pred_check
      _
    $region47: #{invincea_forward.1} parent=1 // pred_check_branch
      %96 = sbr.rel (0) target = $region49
    $region48: #{invincea_forward.1} parent=1 // pred_region
      %97 = dma.done [#allocation9], 82944
    $region49: #{invincea_forward.1} parent=1 // pred_fallthru
      _
    // Predicated region
    $region50: #{invincea_forward.1} parent=1 // pred_check
      _
    $region51: #{invincea_forward.1} parent=1 // pred_check_branch
      %99 = sbr.rel (0) target = $region53
    $region52: #{invincea_forward.1} parent=1 // pred_region
      %100 = dma.done [#allocation9], 144
    $region53: #{invincea_forward.1} parent=1 // pred_fallthru
      _
    // Predicated region
    $region54: #{invincea_forward.1} parent=1 // pred_check
      _
    $region55: #{invincea_forward.1} parent=1 // pred_check_branch
      %102 = sbr.rel (0) target = $region57
    $region56: #{invincea_forward.1} parent=1 // pred_region
      %103 = dma.done [#allocation12], 144
    $region57: #{invincea_forward.1} parent=1 // pred_fallthru
      _
    %v105 = vld [vmem:[%s0] sm:$0xff]
    %v106 = vld [vmem:[%s0 + $0x8] sm:$0xff]
    %v107 = vld [vmem:[%s0 + $0x10] sm:$0xff]
    %v108 = vld [vmem:[%s0 + $0x18] sm:$0xff]
    %v109 = vld [vmem:[%s0 + $0x20] sm:$0xff]
    %v110 = vld [vmem:[%s0 + $0x28] sm:$0xff]
    %v111 = vld [vmem:[%s0 + $0x30] sm:$0xff]
    %v112 = vld [vmem:[%s0 + $0x38] sm:$0xff]
    %v113 = vld [vmem:[%s0 + $0x48] sm:$0xff]
    %v114 = vld [vmem:[%s0 + $0x50] sm:$0xff]
    %v115 = vld [vmem:[%s0 + $0x58] sm:$0xff]
    %v116 = vld [vmem:[%s0 + $0x60] sm:$0xff]
    %v117 = vld [vmem:[%s0 + $0x68] sm:$0xff]
    %v118 = vld [vmem:[%s0 + $0x70] sm:$0xff]
    %v119 = vld [vmem:[%s0 + $0x78] sm:$0xff]
    %v120 = vld [vmem:[%s0 + $0x80] sm:$0xff]
    %v121 = vpack.c.bf16 %v113, %v105
    %v122 = vpack.c.bf16 %v114, %v106
    %v123 = vpack.c.bf16 %v115, %v107
    %v124 = vpack.c.bf16 %v116, %v108
    %v125 = vpack.c.bf16 %v117, %v109
    %v126 = vpack.c.bf16 %v118, %v110
    %v127 = vpack.c.bf16 %v119, %v111
    %v128 = vpack.c.bf16 %v120, %v112
    %v129 = vld [vmem:[%s0 + $0x40] sm:$0xff]
    %v130 = vld [vmem:[%s0 + $0x88] sm:$0xff]
    %v131 = vld [vmem:[#allocation3] sm:$0xff]
    %v132 = vld [vmem:[#allocation3 + $0x8] sm:$0xff]
    %v133 = vld [vmem:[#allocation3 + $0x10] sm:$0xff]
    %v134 = vld [vmem:[#allocation3 + $0x18] sm:$0xff]
    %v135 = vld [vmem:[#allocation3 + $0x20] sm:$0xf]
    %v136 = vld [vmem:[#allocation3 + $0x24] sm:$0xff]
    %v137 = vld [vmem:[#allocation3 + $0x2c] sm:$0xff]
    %v138 = vld [vmem:[#allocation3 + $0x34] sm:$0xff]
    %v139 = vld [vmem:[#allocation3 + $0x3c] sm:$0xff]
    %v140 = vld [vmem:[#allocation3 + $0x44] sm:$0xf]
    %v141 = vld [vmem:[#allocation3 + $0x48] sm:$0xff]
    %v142 = vld [vmem:[#allocation3 + $0x50] sm:$0xff]
    %v143 = vld [vmem:[#allocation3 + $0x58] sm:$0xff]
    %v144 = vld [vmem:[#allocation3 + $0x60] sm:$0xff]
    %v145 = vld [vmem:[#allocation3 + $0x68] sm:$0xf]
    %v146 = vld [vmem:[#allocation3 + $0x6c] sm:$0xff]
    %v147 = vld [vmem:[#allocation3 + $0x74] sm:$0xff]
    %v148 = vld [vmem:[#allocation3 + $0x7c] sm:$0xff]
    %v149 = vld [vmem:[#allocation3 + $0x84] sm:$0xff]
    %v150 = vld [vmem:[#allocation3 + $0x8c] sm:$0xf]
    %v151 = vld [vmem:[#allocation3 + $0x90] sm:$0xff]
    %v152 = vld [vmem:[#allocation3 + $0x98] sm:$0xff]
    %v153 = vld [vmem:[#allocation3 + $0xa0] sm:$0xff]
    %v154 = vld [vmem:[#allocation3 + $0xa8] sm:$0xff]
    %v155 = vld [vmem:[#allocation3 + $0xb0] sm:$0xf]
    %v156 = vld [vmem:[#allocation3 + $0xb4] sm:$0xff]
    %v157 = vld [vmem:[#allocation3 + $0xbc] sm:$0xff]
    %v158 = vld [vmem:[#allocation3 + $0xc4] sm:$0xff]
    %v159 = vld [vmem:[#allocation3 + $0xcc] sm:$0xff]
    %v160 = vld [vmem:[#allocation3 + $0xd4] sm:$0xf]
    %v161 = vld [vmem:[#allocation3 + $0xd8] sm:$0xff]
    %v162 = vld [vmem:[#allocation3 + $0xe0] sm:$0xff]
    %v163 = vld [vmem:[#allocation3 + $0xe8] sm:$0xff]
    %v164 = vld [vmem:[#allocation3 + $0xf0] sm:$0xff]
    %v165 = vld [vmem:[#allocation3 + $0xf8] sm:$0xf]
    %v166 = vld [vmem:[#allocation3 + $0xfc] sm:$0xff]
    %v167 = vld [vmem:[#allocation3 + $0x104] sm:$0xff]
    %v168 = vld [vmem:[#allocation3 + $0x10c] sm:$0xff]
    %v169 = vld [vmem:[#allocation3 + $0x114] sm:$0xff]
    %v170 = vld [vmem:[#allocation3 + $0x11c] sm:$0xf]
    %v171 = vld [vmem:[#allocation3 + $0x120] sm:$0xff]
    %v172 = vld [vmem:[#allocation3 + $0x128] sm:$0xff]
    %v173 = vld [vmem:[#allocation3 + $0x130] sm:$0xff]
    %v174 = vld [vmem:[#allocation3 + $0x138] sm:$0xff]
    %v175 = vld [vmem:[#allocation3 + $0x140] sm:$0xf]
    %v176 = vld [vmem:[#allocation3 + $0x144] sm:$0xff]
    %v177 = vld [vmem:[#allocation3 + $0x14c] sm:$0xff]
    %v178 = vld [vmem:[#allocation3 + $0x154] sm:$0xff]
    %v179 = vld [vmem:[#allocation3 + $0x15c] sm:$0xff]
    %v180 = vld [vmem:[#allocation3 + $0x164] sm:$0xf]
    %v181 = vld [vmem:[#allocation3 + $0x168] sm:$0xff]
    %v182 = vld [vmem:[#allocation3 + $0x170] sm:$0xff]
    %v183 = vld [vmem:[#allocation3 + $0x178] sm:$0xff]
    %v184 = vld [vmem:[#allocation3 + $0x180] sm:$0xff]
    %v185 = vld [vmem:[#allocation3 + $0x188] sm:$0xf]
    %v186 = vld [vmem:[#allocation3 + $0x18c] sm:$0xff]
    %v187 = vld [vmem:[#allocation3 + $0x194] sm:$0xff]
    %v188 = vld [vmem:[#allocation3 + $0x19c] sm:$0xff]
    %v189 = vld [vmem:[#allocation3 + $0x1a4] sm:$0xff]
    %v190 = vld [vmem:[#allocation3 + $0x1ac] sm:$0xf]
    %v191 = vld [vmem:[#allocation3 + $0x1b0] sm:$0xff]
    %v192 = vld [vmem:[#allocation3 + $0x1b8] sm:$0xff]
    %v193 = vld [vmem:[#allocation3 + $0x1c0] sm:$0xff]
    %v194 = vld [vmem:[#allocation3 + $0x1c8] sm:$0xff]
    %v195 = vld [vmem:[#allocation3 + $0x1d0] sm:$0xf]
    %v196 = vld [vmem:[#allocation3 + $0x1d4] sm:$0xff]
    %v197 = vld [vmem:[#allocation3 + $0x1dc] sm:$0xff]
    %v198 = vld [vmem:[#allocation3 + $0x1e4] sm:$0xff]
    %v199 = vld [vmem:[#allocation3 + $0x1ec] sm:$0xff]
    %v200 = vld [vmem:[#allocation3 + $0x1f4] sm:$0xf]
    %v201 = vld [vmem:[#allocation3 + $0x1f8] sm:$0xff]
    %v202 = vld [vmem:[#allocation3 + $0x200] sm:$0xff]
    %v203 = vld [vmem:[#allocation3 + $0x208] sm:$0xff]
    %v204 = vld [vmem:[#allocation3 + $0x210] sm:$0xff]
    %v205 = vld [vmem:[#allocation3 + $0x218] sm:$0xf]
    %v206 = vld [vmem:[#allocation3 + $0x21c] sm:$0xff]
    %v207 = vld [vmem:[#allocation3 + $0x224] sm:$0xff]
    %v208 = vld [vmem:[#allocation3 + $0x22c] sm:$0xff]
    %v209 = vld [vmem:[#allocation3 + $0x234] sm:$0xff]
    %v210 = vld [vmem:[#allocation3 + $0x23c] sm:$0xf]
    %v211 = vld [vmem:[#allocation3 + $0x240] sm:$0xff]
    %v212 = vld [vmem:[#allocation3 + $0x248] sm:$0xff]
    %v213 = vld [vmem:[#allocation3 + $0x250] sm:$0xff]
    %v214 = vld [vmem:[#allocation3 + $0x258] sm:$0xff]
    %v215 = vld [vmem:[#allocation3 + $0x260] sm:$0xf]
    %v216 = vld [vmem:[#allocation3 + $0x264] sm:$0xff]
    %v217 = vld [vmem:[#allocation3 + $0x26c] sm:$0xff]
    %v218 = vld [vmem:[#allocation3 + $0x274] sm:$0xff]
    %v219 = vld [vmem:[#allocation3 + $0x27c] sm:$0xff]
    %v220 = vld [vmem:[#allocation3 + $0x284] sm:$0xf]
    %v221 = vld [vmem:[#allocation3 + $0x288] sm:$0xff]
    %v222 = vld [vmem:[#allocation3 + $0x290] sm:$0xff]
    %v223 = vld [vmem:[#allocation3 + $0x298] sm:$0xff]
    %v224 = vld [vmem:[#allocation3 + $0x2a0] sm:$0xff]
    %v225 = vld [vmem:[#allocation3 + $0x2a8] sm:$0xf]
    %v226 = vld [vmem:[#allocation3 + $0x2ac] sm:$0xff]
    %v227 = vld [vmem:[#allocation3 + $0x2b4] sm:$0xff]
    %v228 = vld [vmem:[#allocation3 + $0x2bc] sm:$0xff]
    %v229 = vld [vmem:[#allocation3 + $0x2c4] sm:$0xff]
    %v230 = vld [vmem:[#allocation3 + $0x2cc] sm:$0xf]
    %v231 = vld [vmem:[#allocation3 + $0x2d0] sm:$0xff]
    %v232 = vld [vmem:[#allocation3 + $0x2d8] sm:$0xff]
    %v233 = vld [vmem:[#allocation3 + $0x2e0] sm:$0xff]
    %v234 = vld [vmem:[#allocation3 + $0x2e8] sm:$0xff]
    %v235 = vld [vmem:[#allocation3 + $0x2f0] sm:$0xf]
    %v236 = vld [vmem:[#allocation3 + $0x2f4] sm:$0xff]
    %v237 = vld [vmem:[#allocation3 + $0x2fc] sm:$0xff]
    %v238 = vld [vmem:[#allocation3 + $0x304] sm:$0xff]
    %v239 = vld [vmem:[#allocation3 + $0x30c] sm:$0xff]
    %v240 = vld [vmem:[#allocation3 + $0x314] sm:$0xf]
    %v241 = vld [vmem:[#allocation3 + $0x318] sm:$0xff]
    %v242 = vld [vmem:[#allocation3 + $0x320] sm:$0xff]
    %v243 = vld [vmem:[#allocation3 + $0x328] sm:$0xff]
    %v244 = vld [vmem:[#allocation3 + $0x330] sm:$0xff]
    %v245 = vld [vmem:[#allocation3 + $0x338] sm:$0xf]
    %v246 = vld [vmem:[#allocation3 + $0x33c] sm:$0xff]
    %v247 = vld [vmem:[#allocation3 + $0x344] sm:$0xff]
    %v248 = vld [vmem:[#allocation3 + $0x34c] sm:$0xff]
    %v249 = vld [vmem:[#allocation3 + $0x354] sm:$0xff]
    %v250 = vld [vmem:[#allocation3 + $0x35c] sm:$0xf]
    %v251 = vld [vmem:[#allocation3 + $0x360] sm:$0xff]
    %v252 = vld [vmem:[#allocation3 + $0x368] sm:$0xff]
    %v253 = vld [vmem:[#allocation3 + $0x370] sm:$0xff]
    %v254 = vld [vmem:[#allocation3 + $0x378] sm:$0xff]
    %v255 = vld [vmem:[#allocation3 + $0x380] sm:$0xf]
    %v256 = vld [vmem:[#allocation3 + $0x384] sm:$0xff]
    %v257 = vld [vmem:[#allocation3 + $0x38c] sm:$0xff]
    %v258 = vld [vmem:[#allocation3 + $0x394] sm:$0xff]
    %v259 = vld [vmem:[#allocation3 + $0x39c] sm:$0xff]
    %v260 = vld [vmem:[#allocation3 + $0x3a4] sm:$0xf]
    %v261 = vld [vmem:[#allocation3 + $0x3a8] sm:$0xff]
    %v262 = vld [vmem:[#allocation3 + $0x3b0] sm:$0xff]
    %v263 = vld [vmem:[#allocation3 + $0x3b8] sm:$0xff]
    %v264 = vld [vmem:[#allocation3 + $0x3c0] sm:$0xff]
    %v265 = vld [vmem:[#allocation3 + $0x3c8] sm:$0xf]
    %v266 = vld [vmem:[#allocation3 + $0x3cc] sm:$0xff]
    %v267 = vld [vmem:[#allocation3 + $0x3d4] sm:$0xff]
    %v268 = vld [vmem:[#allocation3 + $0x3dc] sm:$0xff]
    %v269 = vld [vmem:[#allocation3 + $0x3e4] sm:$0xff]
    %v270 = vld [vmem:[#allocation3 + $0x3ec] sm:$0xf]
    %v271 = vld [vmem:[#allocation3 + $0x3f0] sm:$0xff]
    %v272 = vld [vmem:[#allocation3 + $0x3f8] sm:$0xff]
    %v273 = vld [vmem:[#allocation3 + $0x400] sm:$0xff]
    %v274 = vld [vmem:[#allocation3 + $0x408] sm:$0xff]
    %v275 = vld [vmem:[#allocation3 + $0x410] sm:$0xf]
    %v276 = vld [vmem:[#allocation3 + $0x414] sm:$0xff]
    %v277 = vld [vmem:[#allocation3 + $0x41c] sm:$0xff]
    %v278 = vld [vmem:[#allocation3 + $0x424] sm:$0xff]
    %v279 = vld [vmem:[#allocation3 + $0x42c] sm:$0xff]
    %v280 = vld [vmem:[#allocation3 + $0x434] sm:$0xf]
    %v281 = vld [vmem:[#allocation3 + $0x438] sm:$0xff]
    %v282 = vld [vmem:[#allocation3 + $0x440] sm:$0xff]
    %v283 = vld [vmem:[#allocation3 + $0x448] sm:$0xff]
    %v284 = vld [vmem:[#allocation3 + $0x450] sm:$0xff]
    %v285 = vld [vmem:[#allocation3 + $0x458] sm:$0xf]
    %v286 = vld [vmem:[#allocation3 + $0x45c] sm:$0xff]
    %v287 = vld [vmem:[#allocation3 + $0x464] sm:$0xff]
    %v288 = vld [vmem:[#allocation3 + $0x46c] sm:$0xff]
    %v289 = vld [vmem:[#allocation3 + $0x474] sm:$0xff]
    %v290 = vld [vmem:[#allocation3 + $0x47c] sm:$0xf]
    %v291 = vld [vmem:[#allocation3 + $0x480] sm:$0xff]
    %v292 = vld [vmem:[#allocation3 + $0x488] sm:$0xff]
    %v293 = vld [vmem:[#allocation3 + $0x490] sm:$0xff]
    %v294 = vld [vmem:[#allocation3 + $0x498] sm:$0xff]
    %v295 = vld [vmem:[#allocation3 + $0x4a0] sm:$0xf]
    %v296 = vld [vmem:[#allocation3 + $0x4a4] sm:$0xff]
    %v297 = vld [vmem:[#allocation3 + $0x4ac] sm:$0xff]
    %v298 = vld [vmem:[#allocation3 + $0x4b4] sm:$0xff]
    %v299 = vld [vmem:[#allocation3 + $0x4bc] sm:$0xff]
    %v300 = vld [vmem:[#allocation3 + $0x4c4] sm:$0xf]
    %v301 = vld [vmem:[#allocation3 + $0x4c8] sm:$0xff]
    %v302 = vld [vmem:[#allocation3 + $0x4d0] sm:$0xff]
    %v303 = vld [vmem:[#allocation3 + $0x4d8] sm:$0xff]
    %v304 = vld [vmem:[#allocation3 + $0x4e0] sm:$0xff]
    %v305 = vld [vmem:[#allocation3 + $0x4e8] sm:$0xf]
    %v306 = vld [vmem:[#allocation3 + $0x4ec] sm:$0xff]
    %v307 = vld [vmem:[#allocation3 + $0x4f4] sm:$0xff]
    %v308 = vld [vmem:[#allocation3 + $0x4fc] sm:$0xff]
    %v309 = vld [vmem:[#allocation3 + $0x504] sm:$0xff]
    %v310 = vld [vmem:[#allocation3 + $0x50c] sm:$0xf]
    %v311 = vld [vmem:[#allocation3 + $0x510] sm:$0xff]
    %v312 = vld [vmem:[#allocation3 + $0x518] sm:$0xff]
    %v313 = vld [vmem:[#allocation3 + $0x520] sm:$0xff]
    %v314 = vld [vmem:[#allocation3 + $0x528] sm:$0xff]
    %v315 = vld [vmem:[#allocation3 + $0x530] sm:$0xf]
    %v316 = vld [vmem:[#allocation3 + $0x534] sm:$0xff]
    %v317 = vld [vmem:[#allocation3 + $0x53c] sm:$0xff]
    %v318 = vld [vmem:[#allocation3 + $0x544] sm:$0xff]
    %v319 = vld [vmem:[#allocation3 + $0x54c] sm:$0xff]
    %v320 = vld [vmem:[#allocation3 + $0x554] sm:$0xf]
    %v321 = vld [vmem:[#allocation3 + $0x558] sm:$0xff]
    %v322 = vld [vmem:[#allocation3 + $0x560] sm:$0xff]
    %v323 = vld [vmem:[#allocation3 + $0x568] sm:$0xff]
    %v324 = vld [vmem:[#allocation3 + $0x570] sm:$0xff]
    %v325 = vld [vmem:[#allocation3 + $0x578] sm:$0xf]
    %v326 = vld [vmem:[#allocation3 + $0x57c] sm:$0xff]
    %v327 = vld [vmem:[#allocation3 + $0x584] sm:$0xff]
    %v328 = vld [vmem:[#allocation3 + $0x58c] sm:$0xff]
    %v329 = vld [vmem:[#allocation3 + $0x594] sm:$0xff]
    %v330 = vld [vmem:[#allocation3 + $0x59c] sm:$0xf]
    %v331 = vld [vmem:[#allocation3 + $0x5a0] sm:$0xff]
    %v332 = vld [vmem:[#allocation3 + $0x5a8] sm:$0xff]
    %v333 = vld [vmem:[#allocation3 + $0x5b0] sm:$0xff]
    %v334 = vld [vmem:[#allocation3 + $0x5b8] sm:$0xff]
    %v335 = vld [vmem:[#allocation3 + $0x5c0] sm:$0xf]
    %v336 = vld [vmem:[#allocation3 + $0x5c4] sm:$0xff]
    %v337 = vld [vmem:[#allocation3 + $0x5cc] sm:$0xff]
    %v338 = vld [vmem:[#allocation3 + $0x5d4] sm:$0xff]
    %v339 = vld [vmem:[#allocation3 + $0x5dc] sm:$0xff]
    %v340 = vld [vmem:[#allocation3 + $0x5e4] sm:$0xf]
    %v341 = vld [vmem:[#allocation3 + $0x5e8] sm:$0xff]
    %v342 = vld [vmem:[#allocation3 + $0x5f0] sm:$0xff]
    %v343 = vld [vmem:[#allocation3 + $0x5f8] sm:$0xff]
    %v344 = vld [vmem:[#allocation3 + $0x600] sm:$0xff]
    %v345 = vld [vmem:[#allocation3 + $0x608] sm:$0xf]
    %v346 = vld [vmem:[#allocation3 + $0x60c] sm:$0xff]
    %v347 = vld [vmem:[#allocation3 + $0x614] sm:$0xff]
    %v348 = vld [vmem:[#allocation3 + $0x61c] sm:$0xff]
    %v349 = vld [vmem:[#allocation3 + $0x624] sm:$0xff]
    %v350 = vld [vmem:[#allocation3 + $0x62c] sm:$0xf]
    %v351 = vld [vmem:[#allocation3 + $0x630] sm:$0xff]
    %v352 = vld [vmem:[#allocation3 + $0x638] sm:$0xff]
    %v353 = vld [vmem:[#allocation3 + $0x640] sm:$0xff]
    %v354 = vld [vmem:[#allocation3 + $0x648] sm:$0xff]
    %v355 = vld [vmem:[#allocation3 + $0x650] sm:$0xf]
    %v356 = vld [vmem:[#allocation3 + $0x654] sm:$0xff]
    %v357 = vld [vmem:[#allocation3 + $0x65c] sm:$0xff]
    %v358 = vld [vmem:[#allocation3 + $0x664] sm:$0xff]
    %v359 = vld [vmem:[#allocation3 + $0x66c] sm:$0xff]
    %v360 = vld [vmem:[#allocation3 + $0x674] sm:$0xf]
    %v361 = vld [vmem:[#allocation3 + $0x678] sm:$0xff]
    %v362 = vld [vmem:[#allocation3 + $0x680] sm:$0xff]
    %v363 = vld [vmem:[#allocation3 + $0x688] sm:$0xff]
    %v364 = vld [vmem:[#allocation3 + $0x690] sm:$0xff]
    %v365 = vld [vmem:[#allocation3 + $0x698] sm:$0xf]
    %v366 = vld [vmem:[#allocation3 + $0x69c] sm:$0xff]
    %v367 = vld [vmem:[#allocation3 + $0x6a4] sm:$0xff]
    %v368 = vld [vmem:[#allocation3 + $0x6ac] sm:$0xff]
    %v369 = vld [vmem:[#allocation3 + $0x6b4] sm:$0xff]
    %v370 = vld [vmem:[#allocation3 + $0x6bc] sm:$0xf]
    %v371 = vld [vmem:[#allocation3 + $0x6c0] sm:$0xff]
    %v372 = vld [vmem:[#allocation3 + $0x6c8] sm:$0xff]
    %v373 = vld [vmem:[#allocation3 + $0x6d0] sm:$0xff]
    %v374 = vld [vmem:[#allocation3 + $0x6d8] sm:$0xff]
    %v375 = vld [vmem:[#allocation3 + $0x6e0] sm:$0xf]
    %v376 = vld [vmem:[#allocation3 + $0x6e4] sm:$0xff]
    %v377 = vld [vmem:[#allocation3 + $0x6ec] sm:$0xff]
    %v378 = vld [vmem:[#allocation3 + $0x6f4] sm:$0xff]
    %v379 = vld [vmem:[#allocation3 + $0x6fc] sm:$0xff]
    %v380 = vld [vmem:[#allocation3 + $0x704] sm:$0xf]
    %v381 = vld [vmem:[#allocation3 + $0x708] sm:$0xff]
    %v382 = vld [vmem:[#allocation3 + $0x710] sm:$0xff]
    %v383 = vld [vmem:[#allocation3 + $0x718] sm:$0xff]
    %v384 = vld [vmem:[#allocation3 + $0x720] sm:$0xff]
    %v385 = vld [vmem:[#allocation3 + $0x728] sm:$0xf]
    %v386 = vld [vmem:[#allocation3 + $0x72c] sm:$0xff]
    %v387 = vld [vmem:[#allocation3 + $0x734] sm:$0xff]
    %v388 = vld [vmem:[#allocation3 + $0x73c] sm:$0xff]
    %v389 = vld [vmem:[#allocation3 + $0x744] sm:$0xff]
    %v390 = vld [vmem:[#allocation3 + $0x74c] sm:$0xf]
    %v391 = vld [vmem:[#allocation3 + $0x750] sm:$0xff]
    %v392 = vld [vmem:[#allocation3 + $0x758] sm:$0xff]
    %v393 = vld [vmem:[#allocation3 + $0x760] sm:$0xff]
    %v394 = vld [vmem:[#allocation3 + $0x768] sm:$0xff]
    %v395 = vld [vmem:[#allocation3 + $0x770] sm:$0xf]
    %v396 = vld [vmem:[#allocation3 + $0x774] sm:$0xff]
    %v397 = vld [vmem:[#allocation3 + $0x77c] sm:$0xff]
    %v398 = vld [vmem:[#allocation3 + $0x784] sm:$0xff]
    %v399 = vld [vmem:[#allocation3 + $0x78c] sm:$0xff]
    %v400 = vld [vmem:[#allocation3 + $0x794] sm:$0xf]
    %v401 = vld [vmem:[#allocation3 + $0x798] sm:$0xff]
    %v402 = vld [vmem:[#allocation3 + $0x7a0] sm:$0xff]
    %v403 = vld [vmem:[#allocation3 + $0x7a8] sm:$0xff]
    %v404 = vld [vmem:[#allocation3 + $0x7b0] sm:$0xff]
    %v405 = vld [vmem:[#allocation3 + $0x7b8] sm:$0xf]
    %v406 = vld [vmem:[#allocation3 + $0x7bc] sm:$0xff]
    %v407 = vld [vmem:[#allocation3 + $0x7c4] sm:$0xff]
    %v408 = vld [vmem:[#allocation3 + $0x7cc] sm:$0xff]
    %v409 = vld [vmem:[#allocation3 + $0x7d4] sm:$0xff]
    %v410 = vld [vmem:[#allocation3 + $0x7dc] sm:$0xf]
    %v411 = vld [vmem:[#allocation3 + $0x7e0] sm:$0xff]
    %v412 = vld [vmem:[#allocation3 + $0x7e8] sm:$0xff]
    %v413 = vld [vmem:[#allocation3 + $0x7f0] sm:$0xff]
    %v414 = vld [vmem:[#allocation3 + $0x7f8] sm:$0xff]
    %v415 = vld [vmem:[#allocation3 + $0x800] sm:$0xf]
    %v416 = vld [vmem:[#allocation3 + $0x804] sm:$0xff]
    %v417 = vld [vmem:[#allocation3 + $0x80c] sm:$0xff]
    %v418 = vld [vmem:[#allocation3 + $0x814] sm:$0xff]
    %v419 = vld [vmem:[#allocation3 + $0x81c] sm:$0xff]
    %v420 = vld [vmem:[#allocation3 + $0x824] sm:$0xf]
    %v421 = vld [vmem:[#allocation3 + $0x828] sm:$0xff]
    %v422 = vld [vmem:[#allocation3 + $0x830] sm:$0xff]
    %v423 = vld [vmem:[#allocation3 + $0x838] sm:$0xff]
    %v424 = vld [vmem:[#allocation3 + $0x840] sm:$0xff]
    %v425 = vld [vmem:[#allocation3 + $0x848] sm:$0xf]
    %v426 = vld [vmem:[#allocation3 + $0x84c] sm:$0xff]
    %v427 = vld [vmem:[#allocation3 + $0x854] sm:$0xff]
    %v428 = vld [vmem:[#allocation3 + $0x85c] sm:$0xff]
    %v429 = vld [vmem:[#allocation3 + $0x864] sm:$0xff]
    %v430 = vld [vmem:[#allocation3 + $0x86c] sm:$0xf]
    %v431 = vld [vmem:[#allocation3 + $0x870] sm:$0xff]
    %v432 = vld [vmem:[#allocation3 + $0x878] sm:$0xff]
    %v433 = vld [vmem:[#allocation3 + $0x880] sm:$0xff]
    %v434 = vld [vmem:[#allocation3 + $0x888] sm:$0xff]
    %v435 = vld [vmem:[#allocation3 + $0x890] sm:$0xf]
    %v436 = vld [vmem:[#allocation3 + $0x894] sm:$0xff]
    %v437 = vld [vmem:[#allocation3 + $0x89c] sm:$0xff]
    %v438 = vld [vmem:[#allocation3 + $0x8a4] sm:$0xff]
    %v439 = vld [vmem:[#allocation3 + $0x8ac] sm:$0xff]
    %v440 = vld [vmem:[#allocation3 + $0x8b4] sm:$0xf]
    %v441 = vld [vmem:[#allocation3 + $0x8b8] sm:$0xff]
    %v442 = vld [vmem:[#allocation3 + $0x8c0] sm:$0xff]
    %v443 = vld [vmem:[#allocation3 + $0x8c8] sm:$0xff]
    %v444 = vld [vmem:[#allocation3 + $0x8d0] sm:$0xff]
    %v445 = vld [vmem:[#allocation3 + $0x8d8] sm:$0xf]
    %v446 = vld [vmem:[#allocation3 + $0x8dc] sm:$0xff]
    %v447 = vld [vmem:[#allocation3 + $0x8e4] sm:$0xff]
    %v448 = vld [vmem:[#allocation3 + $0x8ec] sm:$0xff]
    %v449 = vld [vmem:[#allocation3 + $0x8f4] sm:$0xff]
    %v450 = vld [vmem:[#allocation3 + $0x8fc] sm:$0xf]
    %v451 = vld [vmem:[#allocation3 + $0x900] sm:$0xff]
    %v452 = vld [vmem:[#allocation3 + $0x908] sm:$0xff]
    %v453 = vld [vmem:[#allocation3 + $0x910] sm:$0xff]
    %v454 = vld [vmem:[#allocation3 + $0x918] sm:$0xff]
    %v455 = vld [vmem:[#allocation3 + $0x920] sm:$0xf]
    %v456 = vld [vmem:[#allocation3 + $0x924] sm:$0xff]
    %v457 = vld [vmem:[#allocation3 + $0x92c] sm:$0xff]
    %v458 = vld [vmem:[#allocation3 + $0x934] sm:$0xff]
    %v459 = vld [vmem:[#allocation3 + $0x93c] sm:$0xff]
    %v460 = vld [vmem:[#allocation3 + $0x944] sm:$0xf]
    %v461 = vld [vmem:[#allocation3 + $0x948] sm:$0xff]
    %v462 = vld [vmem:[#allocation3 + $0x950] sm:$0xff]
    %v463 = vld [vmem:[#allocation3 + $0x958] sm:$0xff]
    %v464 = vld [vmem:[#allocation3 + $0x960] sm:$0xff]
    %v465 = vld [vmem:[#allocation3 + $0x968] sm:$0xf]
    %v466 = vld [vmem:[#allocation3 + $0x96c] sm:$0xff]
    %v467 = vld [vmem:[#allocation3 + $0x974] sm:$0xff]
    %v468 = vld [vmem:[#allocation3 + $0x97c] sm:$0xff]
    %v469 = vld [vmem:[#allocation3 + $0x984] sm:$0xff]
    %v470 = vld [vmem:[#allocation3 + $0x98c] sm:$0xf]
    %v471 = vld [vmem:[#allocation3 + $0x990] sm:$0xff]
    %v472 = vld [vmem:[#allocation3 + $0x998] sm:$0xff]
    %v473 = vld [vmem:[#allocation3 + $0x9a0] sm:$0xff]
    %v474 = vld [vmem:[#allocation3 + $0x9a8] sm:$0xff]
    %v475 = vld [vmem:[#allocation3 + $0x9b0] sm:$0xf]
    %v476 = vld [vmem:[#allocation3 + $0x9b4] sm:$0xff]
    %v477 = vld [vmem:[#allocation3 + $0x9bc] sm:$0xff]
    %v478 = vld [vmem:[#allocation3 + $0x9c4] sm:$0xff]
    %v479 = vld [vmem:[#allocation3 + $0x9cc] sm:$0xff]
    %v480 = vld [vmem:[#allocation3 + $0x9d4] sm:$0xf]
    %v481 = vld [vmem:[#allocation3 + $0x9d8] sm:$0xff]
    %v482 = vld [vmem:[#allocation3 + $0x9e0] sm:$0xff]
    %v483 = vld [vmem:[#allocation3 + $0x9e8] sm:$0xff]
    %v484 = vld [vmem:[#allocation3 + $0x9f0] sm:$0xff]
    %v485 = vld [vmem:[#allocation3 + $0x9f8] sm:$0xf]
    %v486 = vld [vmem:[#allocation3 + $0x9fc] sm:$0xff]
    %v487 = vld [vmem:[#allocation3 + $0xa04] sm:$0xff]
    %v488 = vld [vmem:[#allocation3 + $0xa0c] sm:$0xff]
    %v489 = vld [vmem:[#allocation3 + $0xa14] sm:$0xff]
    %v490 = vld [vmem:[#allocation3 + $0xa1c] sm:$0xf]
    %v491 = vld [vmem:[#allocation3 + $0xa20] sm:$0xff]
    %v492 = vld [vmem:[#allocation3 + $0xa28] sm:$0xff]
    %v493 = vld [vmem:[#allocation3 + $0xa30] sm:$0xff]
    %v494 = vld [vmem:[#allocation3 + $0xa38] sm:$0xff]
    %v495 = vld [vmem:[#allocation3 + $0xa40] sm:$0xf]
    %v496 = vld [vmem:[#allocation3 + $0xa44] sm:$0xff]
    %v497 = vld [vmem:[#allocation3 + $0xa4c] sm:$0xff]
    %v498 = vld [vmem:[#allocation3 + $0xa54] sm:$0xff]
    %v499 = vld [vmem:[#allocation3 + $0xa5c] sm:$0xff]
    %v500 = vld [vmem:[#allocation3 + $0xa64] sm:$0xf]
    %v501 = vld [vmem:[#allocation3 + $0xa68] sm:$0xff]
    %v502 = vld [vmem:[#allocation3 + $0xa70] sm:$0xff]
    %v503 = vld [vmem:[#allocation3 + $0xa78] sm:$0xff]
    %v504 = vld [vmem:[#allocation3 + $0xa80] sm:$0xff]
    %v505 = vld [vmem:[#allocation3 + $0xa88] sm:$0xf]
    %v506 = vld [vmem:[#allocation3 + $0xa8c] sm:$0xff]
    %v507 = vld [vmem:[#allocation3 + $0xa94] sm:$0xff]
    %v508 = vld [vmem:[#allocation3 + $0xa9c] sm:$0xff]
    %v509 = vld [vmem:[#allocation3 + $0xaa4] sm:$0xff]
    %v510 = vld [vmem:[#allocation3 + $0xaac] sm:$0xf]
    %v511 = vld [vmem:[#allocation3 + $0xab0] sm:$0xff]
    %v512 = vld [vmem:[#allocation3 + $0xab8] sm:$0xff]
    %v513 = vld [vmem:[#allocation3 + $0xac0] sm:$0xff]
    %v514 = vld [vmem:[#allocation3 + $0xac8] sm:$0xff]
    %v515 = vld [vmem:[#allocation3 + $0xad0] sm:$0xf]
    %v516 = vld [vmem:[#allocation3 + $0xad4] sm:$0xff]
    %v517 = vld [vmem:[#allocation3 + $0xadc] sm:$0xff]
    %v518 = vld [vmem:[#allocation3 + $0xae4] sm:$0xff]
    %v519 = vld [vmem:[#allocation3 + $0xaec] sm:$0xff]
    %v520 = vld [vmem:[#allocation3 + $0xaf4] sm:$0xf]
    %v521 = vld [vmem:[#allocation3 + $0xaf8] sm:$0xff]
    %v522 = vld [vmem:[#allocation3 + $0xb00] sm:$0xff]
    %v523 = vld [vmem:[#allocation3 + $0xb08] sm:$0xff]
    %v524 = vld [vmem:[#allocation3 + $0xb10] sm:$0xff]
    %v525 = vld [vmem:[#allocation3 + $0xb18] sm:$0xf]
    %v526 = vld [vmem:[#allocation3 + $0xb1c] sm:$0xff]
    %v527 = vld [vmem:[#allocation3 + $0xb24] sm:$0xff]
    %v528 = vld [vmem:[#allocation3 + $0xb2c] sm:$0xff]
    %v529 = vld [vmem:[#allocation3 + $0xb34] sm:$0xff]
    %v530 = vld [vmem:[#allocation3 + $0xb3c] sm:$0xf]
    %v531 = vld [vmem:[#allocation3 + $0xb40] sm:$0xff]
    %v532 = vld [vmem:[#allocation3 + $0xb48] sm:$0xff]
    %v533 = vld [vmem:[#allocation3 + $0xb50] sm:$0xff]
    %v534 = vld [vmem:[#allocation3 + $0xb58] sm:$0xff]
    %v535 = vld [vmem:[#allocation3 + $0xb60] sm:$0xf]
    %v536 = vld [vmem:[#allocation3 + $0xb64] sm:$0xff]
    %v537 = vld [vmem:[#allocation3 + $0xb6c] sm:$0xff]
    %v538 = vld [vmem:[#allocation3 + $0xb74] sm:$0xff]
    %v539 = vld [vmem:[#allocation3 + $0xb7c] sm:$0xff]
    %v540 = vld [vmem:[#allocation3 + $0xb84] sm:$0xf]
    %v541 = vld [vmem:[#allocation3 + $0xb88] sm:$0xff]
    %v542 = vld [vmem:[#allocation3 + $0xb90] sm:$0xff]
    %v543 = vld [vmem:[#allocation3 + $0xb98] sm:$0xff]
    %v544 = vld [vmem:[#allocation3 + $0xba0] sm:$0xff]
    %v545 = vld [vmem:[#allocation3 + $0xba8] sm:$0xf]
    %v546 = vld [vmem:[#allocation3 + $0xbac] sm:$0xff]
    %v547 = vld [vmem:[#allocation3 + $0xbb4] sm:$0xff]
    %v548 = vld [vmem:[#allocation3 + $0xbbc] sm:$0xff]
    %v549 = vld [vmem:[#allocation3 + $0xbc4] sm:$0xff]
    %v550 = vld [vmem:[#allocation3 + $0xbcc] sm:$0xf]
    %v551 = vld [vmem:[#allocation3 + $0xbd0] sm:$0xff]
    %v552 = vld [vmem:[#allocation3 + $0xbd8] sm:$0xff]
    %v553 = vld [vmem:[#allocation3 + $0xbe0] sm:$0xff]
    %v554 = vld [vmem:[#allocation3 + $0xbe8] sm:$0xff]
    %v555 = vld [vmem:[#allocation3 + $0xbf0] sm:$0xf]
    %v556 = vld [vmem:[#allocation3 + $0xbf4] sm:$0xff]
    %v557 = vld [vmem:[#allocation3 + $0xbfc] sm:$0xff]
    %v558 = vld [vmem:[#allocation3 + $0xc04] sm:$0xff]
    %v559 = vld [vmem:[#allocation3 + $0xc0c] sm:$0xff]
    %v560 = vld [vmem:[#allocation3 + $0xc14] sm:$0xf]
    %v561 = vld [vmem:[#allocation3 + $0xc18] sm:$0xff]
    %v562 = vld [vmem:[#allocation3 + $0xc20] sm:$0xff]
    %v563 = vld [vmem:[#allocation3 + $0xc28] sm:$0xff]
    %v564 = vld [vmem:[#allocation3 + $0xc30] sm:$0xff]
    %v565 = vld [vmem:[#allocation3 + $0xc38] sm:$0xf]
    %v566 = vld [vmem:[#allocation3 + $0xc3c] sm:$0xff]
    %v567 = vld [vmem:[#allocation3 + $0xc44] sm:$0xff]
    %v568 = vld [vmem:[#allocation3 + $0xc4c] sm:$0xff]
    %v569 = vld [vmem:[#allocation3 + $0xc54] sm:$0xff]
    %v570 = vld [vmem:[#allocation3 + $0xc5c] sm:$0xf]
    %v571 = vld [vmem:[#allocation3 + $0xc60] sm:$0xff]
    %v572 = vld [vmem:[#allocation3 + $0xc68] sm:$0xff]
    %v573 = vld [vmem:[#allocation3 + $0xc70] sm:$0xff]
    %v574 = vld [vmem:[#allocation3 + $0xc78] sm:$0xff]
    %v575 = vld [vmem:[#allocation3 + $0xc80] sm:$0xf]
    %v576 = vld [vmem:[#allocation3 + $0xc84] sm:$0xff]
    %v577 = vld [vmem:[#allocation3 + $0xc8c] sm:$0xff]
    %v578 = vld [vmem:[#allocation3 + $0xc94] sm:$0xff]
    %v579 = vld [vmem:[#allocation3 + $0xc9c] sm:$0xff]
    %v580 = vld [vmem:[#allocation3 + $0xca4] sm:$0xf]
    %v581 = vld [vmem:[#allocation3 + $0xca8] sm:$0xff]
    %v582 = vld [vmem:[#allocation3 + $0xcb0] sm:$0xff]
    %v583 = vld [vmem:[#allocation3 + $0xcb8] sm:$0xff]
    %v584 = vld [vmem:[#allocation3 + $0xcc0] sm:$0xff]
    %v585 = vld [vmem:[#allocation3 + $0xcc8] sm:$0xf]
    %v586 = vld [vmem:[#allocation3 + $0xccc] sm:$0xff]
    %v587 = vld [vmem:[#allocation3 + $0xcd4] sm:$0xff]
    %v588 = vld [vmem:[#allocation3 + $0xcdc] sm:$0xff]
    %v589 = vld [vmem:[#allocation3 + $0xce4] sm:$0xff]
    %v590 = vld [vmem:[#allocation3 + $0xcec] sm:$0xf]
    %v591 = vld [vmem:[#allocation3 + $0xcf0] sm:$0xff]
    %v592 = vld [vmem:[#allocation3 + $0xcf8] sm:$0xff]
    %v593 = vld [vmem:[#allocation3 + $0xd00] sm:$0xff]
    %v594 = vld [vmem:[#allocation3 + $0xd08] sm:$0xff]
    %v595 = vld [vmem:[#allocation3 + $0xd10] sm:$0xf]
    %v596 = vld [vmem:[#allocation3 + $0xd14] sm:$0xff]
    %v597 = vld [vmem:[#allocation3 + $0xd1c] sm:$0xff]
    %v598 = vld [vmem:[#allocation3 + $0xd24] sm:$0xff]
    %v599 = vld [vmem:[#allocation3 + $0xd2c] sm:$0xff]
    %v600 = vld [vmem:[#allocation3 + $0xd34] sm:$0xf]
    %v601 = vld [vmem:[#allocation3 + $0xd38] sm:$0xff]
    %v602 = vld [vmem:[#allocation3 + $0xd40] sm:$0xff]
    %v603 = vld [vmem:[#allocation3 + $0xd48] sm:$0xff]
    %v604 = vld [vmem:[#allocation3 + $0xd50] sm:$0xff]
    %v605 = vld [vmem:[#allocation3 + $0xd58] sm:$0xf]
    %v606 = vld [vmem:[#allocation3 + $0xd5c] sm:$0xff]
    %v607 = vld [vmem:[#allocation3 + $0xd64] sm:$0xff]
    %v608 = vld [vmem:[#allocation3 + $0xd6c] sm:$0xff]
    %v609 = vld [vmem:[#allocation3 + $0xd74] sm:$0xff]
    %v610 = vld [vmem:[#allocation3 + $0xd7c] sm:$0xf]
    %v611 = vld [vmem:[#allocation3 + $0xd80] sm:$0xff]
    %v612 = vld [vmem:[#allocation3 + $0xd88] sm:$0xff]
    %v613 = vld [vmem:[#allocation3 + $0xd90] sm:$0xff]
    %v614 = vld [vmem:[#allocation3 + $0xd98] sm:$0xff]
    %v615 = vld [vmem:[#allocation3 + $0xda0] sm:$0xf]
    %v616 = vld [vmem:[#allocation3 + $0xda4] sm:$0xff]
    %v617 = vld [vmem:[#allocation3 + $0xdac] sm:$0xff]
    %v618 = vld [vmem:[#allocation3 + $0xdb4] sm:$0xff]
    %v619 = vld [vmem:[#allocation3 + $0xdbc] sm:$0xff]
    %v620 = vld [vmem:[#allocation3 + $0xdc4] sm:$0xf]
    %v621 = vld [vmem:[#allocation3 + $0xdc8] sm:$0xff]
    %v622 = vld [vmem:[#allocation3 + $0xdd0] sm:$0xff]
    %v623 = vld [vmem:[#allocation3 + $0xdd8] sm:$0xff]
    %v624 = vld [vmem:[#allocation3 + $0xde0] sm:$0xff]
    %v625 = vld [vmem:[#allocation3 + $0xde8] sm:$0xf]
    %v626 = vld [vmem:[#allocation3 + $0xdec] sm:$0xff]
    %v627 = vld [vmem:[#allocation3 + $0xdf4] sm:$0xff]
    %v628 = vld [vmem:[#allocation3 + $0xdfc] sm:$0xff]
    %v629 = vld [vmem:[#allocation3 + $0xe04] sm:$0xff]
    %v630 = vld [vmem:[#allocation3 + $0xe0c] sm:$0xf]
    %v631 = vld [vmem:[#allocation3 + $0xe10] sm:$0xff]
    %v632 = vld [vmem:[#allocation3 + $0xe18] sm:$0xff]
    %v633 = vld [vmem:[#allocation3 + $0xe20] sm:$0xff]
    %v634 = vld [vmem:[#allocation3 + $0xe28] sm:$0xff]
    %v635 = vld [vmem:[#allocation3 + $0xe30] sm:$0xf]
    %v636 = vld [vmem:[#allocation3 + $0xe34] sm:$0xff]
    %v637 = vld [vmem:[#allocation3 + $0xe3c] sm:$0xff]
    %v638 = vld [vmem:[#allocation3 + $0xe44] sm:$0xff]
    %v639 = vld [vmem:[#allocation3 + $0xe4c] sm:$0xff]
    %v640 = vld [vmem:[#allocation3 + $0xe54] sm:$0xf]
    %v641 = vld [vmem:[#allocation3 + $0xe58] sm:$0xff]
    %v642 = vld [vmem:[#allocation3 + $0xe60] sm:$0xff]
    %v643 = vld [vmem:[#allocation3 + $0xe68] sm:$0xff]
    %v644 = vld [vmem:[#allocation3 + $0xe70] sm:$0xff]
    %v645 = vld [vmem:[#allocation3 + $0xe78] sm:$0xf]
    %v646 = vld [vmem:[#allocation3 + $0xe7c] sm:$0xff]
    %v647 = vld [vmem:[#allocation3 + $0xe84] sm:$0xff]
    %v648 = vld [vmem:[#allocation3 + $0xe8c] sm:$0xff]
    %v649 = vld [vmem:[#allocation3 + $0xe94] sm:$0xff]
    %v650 = vld [vmem:[#allocation3 + $0xe9c] sm:$0xf]
    %v651 = vld [vmem:[#allocation3 + $0xea0] sm:$0xff]
    %v652 = vld [vmem:[#allocation3 + $0xea8] sm:$0xff]
    %v653 = vld [vmem:[#allocation3 + $0xeb0] sm:$0xff]
    %v654 = vld [vmem:[#allocation3 + $0xeb8] sm:$0xff]
    %v655 = vld [vmem:[#allocation3 + $0xec0] sm:$0xf]
    %v656 = vld [vmem:[#allocation3 + $0xec4] sm:$0xff]
    %v657 = vld [vmem:[#allocation3 + $0xecc] sm:$0xff]
    %v658 = vld [vmem:[#allocation3 + $0xed4] sm:$0xff]
    %v659 = vld [vmem:[#allocation3 + $0xedc] sm:$0xff]
    %v660 = vld [vmem:[#allocation3 + $0xee4] sm:$0xf]
    %v661 = vld [vmem:[#allocation3 + $0xee8] sm:$0xff]
    %v662 = vld [vmem:[#allocation3 + $0xef0] sm:$0xff]
    %v663 = vld [vmem:[#allocation3 + $0xef8] sm:$0xff]
    %v664 = vld [vmem:[#allocation3 + $0xf00] sm:$0xff]
    %v665 = vld [vmem:[#allocation3 + $0xf08] sm:$0xf]
    %v666 = vld [vmem:[#allocation3 + $0xf0c] sm:$0xff]
    %v667 = vld [vmem:[#allocation3 + $0xf14] sm:$0xff]
    %v668 = vld [vmem:[#allocation3 + $0xf1c] sm:$0xff]
    %v669 = vld [vmem:[#allocation3 + $0xf24] sm:$0xff]
    %v670 = vld [vmem:[#allocation3 + $0xf2c] sm:$0xf]
    %v671 = vld [vmem:[#allocation3 + $0xf30] sm:$0xff]
    %v672 = vld [vmem:[#allocation3 + $0xf38] sm:$0xff]
    %v673 = vld [vmem:[#allocation3 + $0xf40] sm:$0xff]
    %v674 = vld [vmem:[#allocation3 + $0xf48] sm:$0xff]
    %v675 = vld [vmem:[#allocation3 + $0xf50] sm:$0xf]
    %v676 = vld [vmem:[#allocation3 + $0xf54] sm:$0xff]
    %v677 = vld [vmem:[#allocation3 + $0xf5c] sm:$0xff]
    %v678 = vld [vmem:[#allocation3 + $0xf64] sm:$0xff]
    %v679 = vld [vmem:[#allocation3 + $0xf6c] sm:$0xff]
    %v680 = vld [vmem:[#allocation3 + $0xf74] sm:$0xf]
    %v681 = vld [vmem:[#allocation3 + $0xf78] sm:$0xff]
    %v682 = vld [vmem:[#allocation3 + $0xf80] sm:$0xff]
    %v683 = vld [vmem:[#allocation3 + $0xf88] sm:$0xff]
    %v684 = vld [vmem:[#allocation3 + $0xf90] sm:$0xff]
    %v685 = vld [vmem:[#allocation3 + $0xf98] sm:$0xf]
    %v686 = vld [vmem:[#allocation3 + $0xf9c] sm:$0xff]
    %v687 = vld [vmem:[#allocation3 + $0xfa4] sm:$0xff]
    %v688 = vld [vmem:[#allocation3 + $0xfac] sm:$0xff]
    %v689 = vld [vmem:[#allocation3 + $0xfb4] sm:$0xff]
    %v690 = vld [vmem:[#allocation3 + $0xfbc] sm:$0xf]
    %v691 = vld [vmem:[#allocation3 + $0xfc0] sm:$0xff]
    %v692 = vld [vmem:[#allocation3 + $0xfc8] sm:$0xff]
    %v693 = vld [vmem:[#allocation3 + $0xfd0] sm:$0xff]
    %v694 = vld [vmem:[#allocation3 + $0xfd8] sm:$0xff]
    %v695 = vld [vmem:[#allocation3 + $0xfe0] sm:$0xf]
    %v696 = vld [vmem:[#allocation3 + $0xfe4] sm:$0xff]
    %v697 = vld [vmem:[#allocation3 + $0xfec] sm:$0xff]
    %v698 = vld [vmem:[#allocation3 + $0xff4] sm:$0xff]
    %v699 = vld [vmem:[#allocation3 + $0xffc] sm:$0xff]
    %v700 = vld [vmem:[#allocation3 + $0x1004] sm:$0xf]
    %v701 = vld [vmem:[#allocation3 + $0x1008] sm:$0xff]
    %v702 = vld [vmem:[#allocation3 + $0x1010] sm:$0xff]
    %v703 = vld [vmem:[#allocation3 + $0x1018] sm:$0xff]
    %v704 = vld [vmem:[#allocation3 + $0x1020] sm:$0xff]
    %v705 = vld [vmem:[#allocation3 + $0x1028] sm:$0xf]
    %v706 = vld [vmem:[#allocation3 + $0x102c] sm:$0xff]
    %v707 = vld [vmem:[#allocation3 + $0x1034] sm:$0xff]
    %v708 = vld [vmem:[#allocation3 + $0x103c] sm:$0xff]
    %v709 = vld [vmem:[#allocation3 + $0x1044] sm:$0xff]
    %v710 = vld [vmem:[#allocation3 + $0x104c] sm:$0xf]
    %v711 = vld [vmem:[#allocation3 + $0x1050] sm:$0xff]
    %v712 = vld [vmem:[#allocation3 + $0x1058] sm:$0xff]
    %v713 = vld [vmem:[#allocation3 + $0x1060] sm:$0xff]
    %v714 = vld [vmem:[#allocation3 + $0x1068] sm:$0xff]
    %v715 = vld [vmem:[#allocation3 + $0x1070] sm:$0xf]
    %v716 = vld [vmem:[#allocation3 + $0x1074] sm:$0xff]
    %v717 = vld [vmem:[#allocation3 + $0x107c] sm:$0xff]
    %v718 = vld [vmem:[#allocation3 + $0x1084] sm:$0xff]
    %v719 = vld [vmem:[#allocation3 + $0x108c] sm:$0xff]
    %v720 = vld [vmem:[#allocation3 + $0x1094] sm:$0xf]
    %v721 = vld [vmem:[#allocation3 + $0x1098] sm:$0xff]
    %v722 = vld [vmem:[#allocation3 + $0x10a0] sm:$0xff]
    %v723 = vld [vmem:[#allocation3 + $0x10a8] sm:$0xff]
    %v724 = vld [vmem:[#allocation3 + $0x10b0] sm:$0xff]
    %v725 = vld [vmem:[#allocation3 + $0x10b8] sm:$0xf]
    %v726 = vld [vmem:[#allocation3 + $0x10bc] sm:$0xff]
    %v727 = vld [vmem:[#allocation3 + $0x10c4] sm:$0xff]
    %v728 = vld [vmem:[#allocation3 + $0x10cc] sm:$0xff]
    %v729 = vld [vmem:[#allocation3 + $0x10d4] sm:$0xff]
    %v730 = vld [vmem:[#allocation3 + $0x10dc] sm:$0xf]
    %v731 = vld [vmem:[#allocation3 + $0x10e0] sm:$0xff]
    %v732 = vld [vmem:[#allocation3 + $0x10e8] sm:$0xff]
    %v733 = vld [vmem:[#allocation3 + $0x10f0] sm:$0xff]
    %v734 = vld [vmem:[#allocation3 + $0x10f8] sm:$0xff]
    %v735 = vld [vmem:[#allocation3 + $0x1100] sm:$0xf]
    %v736 = vld [vmem:[#allocation3 + $0x1104] sm:$0xff]
    %v737 = vld [vmem:[#allocation3 + $0x110c] sm:$0xff]
    %v738 = vld [vmem:[#allocation3 + $0x1114] sm:$0xff]
    %v739 = vld [vmem:[#allocation3 + $0x111c] sm:$0xff]
    %v740 = vld [vmem:[#allocation3 + $0x1124] sm:$0xf]
    %v741 = vld [vmem:[#allocation3 + $0x1128] sm:$0xff]
    %v742 = vld [vmem:[#allocation3 + $0x1130] sm:$0xff]
    %v743 = vld [vmem:[#allocation3 + $0x1138] sm:$0xff]
    %v744 = vld [vmem:[#allocation3 + $0x1140] sm:$0xff]
    %v745 = vld [vmem:[#allocation3 + $0x1148] sm:$0xf]
    %v746 = vld [vmem:[#allocation3 + $0x114c] sm:$0xff]
    %v747 = vld [vmem:[#allocation3 + $0x1154] sm:$0xff]
    %v748 = vld [vmem:[#allocation3 + $0x115c] sm:$0xff]
    %v749 = vld [vmem:[#allocation3 + $0x1164] sm:$0xff]
    %v750 = vld [vmem:[#allocation3 + $0x116c] sm:$0xf]
    %v751 = vld [vmem:[#allocation3 + $0x1170] sm:$0xff]
    %v752 = vld [vmem:[#allocation3 + $0x1178] sm:$0xff]
    %v753 = vld [vmem:[#allocation3 + $0x1180] sm:$0xff]
    %v754 = vld [vmem:[#allocation3 + $0x1188] sm:$0xff]
    %v755 = vld [vmem:[#allocation3 + $0x1190] sm:$0xf]
    %v756 = vld [vmem:[#allocation3 + $0x1194] sm:$0xff]
    %v757 = vld [vmem:[#allocation3 + $0x119c] sm:$0xff]
    %v758 = vld [vmem:[#allocation3 + $0x11a4] sm:$0xff]
    %v759 = vld [vmem:[#allocation3 + $0x11ac] sm:$0xff]
    %v760 = vld [vmem:[#allocation3 + $0x11b4] sm:$0xf]
    %v761 = vld [vmem:[#allocation3 + $0x11b8] sm:$0xff]
    %v762 = vld [vmem:[#allocation3 + $0x11c0] sm:$0xff]
    %v763 = vld [vmem:[#allocation3 + $0x11c8] sm:$0xff]
    %v764 = vld [vmem:[#allocation3 + $0x11d0] sm:$0xff]
    %v765 = vld [vmem:[#allocation3 + $0x11d8] sm:$0xf]
    %v766 = vld [vmem:[#allocation3 + $0x11dc] sm:$0xff]
    %v767 = vld [vmem:[#allocation3 + $0x11e4] sm:$0xff]
    %v768 = vld [vmem:[#allocation3 + $0x11ec] sm:$0xff]
    %v769 = vld [vmem:[#allocation3 + $0x11f4] sm:$0xff]
    %v770 = vld [vmem:[#allocation3 + $0x11fc] sm:$0xf]
    %v771 = vld [vmem:[#allocation5] sm:$0xff]
    %v772 = vld [vmem:[#allocation5 + $0x8] sm:$0x1]
    %774 = vset.pattern.permute.xlu0 0
    %775 = vperm.xlu0 %774, %v129
    %v776 = vpop.permute.xlu0 %775
    %779 = vset.pattern.permute.xlu0 0
    %780 = vperm.xlu0 %779, %v130
    %v781 = vpop.permute.xlu0 %780
    %v785 = vlaneseq
    %v786 = vshrl.u32 %v785, 7
    %v787 = vsub.s32 0, %v786
    %v788 = vrot.slane %v771, %v787
    %v789 = vlaneseq
    %v790 = vshrl.u32 %v789, 7
    %v791 = vsub.s32 1, %v790
    %v792 = vrot.slane %v771, %v791
    %v793 = vlaneseq
    %v794 = vshrl.u32 %v793, 7
    %v795 = vsub.s32 2, %v794
    %v796 = vrot.slane %v771, %v795
    %v797 = vlaneseq
    %v798 = vshrl.u32 %v797, 7
    %v799 = vsub.s32 3, %v798
    %v800 = vrot.slane %v771, %v799
    %v801 = vlaneseq
    %v802 = vshrl.u32 %v801, 7
    %v803 = vsub.s32 4, %v802
    %v804 = vrot.slane %v771, %v803
    %v805 = vlaneseq
    %v806 = vshrl.u32 %v805, 7
    %v807 = vsub.s32 5, %v806
    %v808 = vrot.slane %v771, %v807
    %v809 = vlaneseq
    %v810 = vshrl.u32 %v809, 7
    %v811 = vsub.s32 6, %v810
    %v812 = vrot.slane %v771, %v811
    %v813 = vlaneseq
    %v814 = vshrl.u32 %v813, 7
    %v815 = vsub.s32 7, %v814
    %v816 = vrot.slane %v771, %v815
    %v817 = vlaneseq
    %v818 = vshrl.u32 %v817, 7
    %v819 = vsub.s32 0, %v818
    %v820 = vrot.slane %v772, %v819
    %v830 = vmul.f32 %v776, %v788
    %v831 = vmul.f32 %v776, %v792
    %v832 = vmul.f32 %v776, %v796
    %v833 = vmul.f32 %v776, %v800
    %v834 = vmul.f32 %v776, %v804
    %v835 = vmul.f32 %v776, %v808
    %v836 = vmul.f32 %v776, %v812
    %v837 = vmul.f32 %v776, %v816
    %v838 = vmul.f32 %v776, %v820
    %v839 = vmul.f32 %v781, %v788
    %v840 = vmul.f32 %v781, %v792
    %v841 = vmul.f32 %v781, %v796
    %v842 = vmul.f32 %v781, %v800
    %v843 = vmul.f32 %v781, %v804
    %v844 = vmul.f32 %v781, %v808
    %v845 = vmul.f32 %v781, %v812
    %v846 = vmul.f32 %v781, %v816
    %v847 = vmul.f32 %v781, %v820
    %v1488 = vunpack.c.l.b16 %v131
    %v1489 = vunpack.c.h.b16 %v131
    %v1490 = vunpack.c.l.b16 %v132
    %v1491 = vunpack.c.h.b16 %v132
    %v1492 = vunpack.c.l.b16 %v133
    %v1493 = vunpack.c.h.b16 %v133
    %v1494 = vunpack.c.l.b16 %v134
    %v1495 = vunpack.c.h.b16 %v134
    %v1496 = vunpack.c.l.b16 %v135
    %v1497 = vunpack.c.l.b16 %v136
    %v1498 = vunpack.c.h.b16 %v136
    %v1499 = vunpack.c.l.b16 %v137
    %v1500 = vunpack.c.h.b16 %v137
    %v1501 = vunpack.c.l.b16 %v138
    %v1502 = vunpack.c.h.b16 %v138
    %v1503 = vunpack.c.l.b16 %v139
    %v1504 = vunpack.c.h.b16 %v139
    %v1505 = vunpack.c.l.b16 %v140
    %v1506 = vunpack.c.l.b16 %v141
    %v1507 = vunpack.c.h.b16 %v141
    %v1508 = vunpack.c.l.b16 %v142
    %v1509 = vunpack.c.h.b16 %v142
    %v1510 = vunpack.c.l.b16 %v143
    %v1511 = vunpack.c.h.b16 %v143
    %v1512 = vunpack.c.l.b16 %v144
    %v1513 = vunpack.c.h.b16 %v144
    %v1514 = vunpack.c.l.b16 %v145
    %v1515 = vunpack.c.l.b16 %v146
    %v1516 = vunpack.c.h.b16 %v146
    %v1517 = vunpack.c.l.b16 %v147
    %v1518 = vunpack.c.h.b16 %v147
    %v1519 = vunpack.c.l.b16 %v148
    %v1520 = vunpack.c.h.b16 %v148
    %v1521 = vunpack.c.l.b16 %v149
    %v1522 = vunpack.c.h.b16 %v149
    %v1523 = vunpack.c.l.b16 %v150
    %v1524 = vunpack.c.l.b16 %v151
    %v1525 = vunpack.c.h.b16 %v151
    %v1526 = vunpack.c.l.b16 %v152
    %v1527 = vunpack.c.h.b16 %v152
    %v1528 = vunpack.c.l.b16 %v153
    %v1529 = vunpack.c.h.b16 %v153
    %v1530 = vunpack.c.l.b16 %v154
    %v1531 = vunpack.c.h.b16 %v154
    %v1532 = vunpack.c.l.b16 %v155
    %v1533 = vunpack.c.l.b16 %v156
    %v1534 = vunpack.c.h.b16 %v156
    %v1535 = vunpack.c.l.b16 %v157
    %v1536 = vunpack.c.h.b16 %v157
    %v1537 = vunpack.c.l.b16 %v158
    %v1538 = vunpack.c.h.b16 %v158
    %v1539 = vunpack.c.l.b16 %v159
    %v1540 = vunpack.c.h.b16 %v159
    %v1541 = vunpack.c.l.b16 %v160
    %v1542 = vunpack.c.l.b16 %v161
    %v1543 = vunpack.c.h.b16 %v161
    %v1544 = vunpack.c.l.b16 %v162
    %v1545 = vunpack.c.h.b16 %v162
    %v1546 = vunpack.c.l.b16 %v163
    %v1547 = vunpack.c.h.b16 %v163
    %v1548 = vunpack.c.l.b16 %v164
    %v1549 = vunpack.c.h.b16 %v164
    %v1550 = vunpack.c.l.b16 %v165
    %v1551 = vunpack.c.l.b16 %v166
    %v1552 = vunpack.c.h.b16 %v166
    %v1553 = vunpack.c.l.b16 %v167
    %v1554 = vunpack.c.h.b16 %v167
    %v1555 = vunpack.c.l.b16 %v168
    %v1556 = vunpack.c.h.b16 %v168
    %v1557 = vunpack.c.l.b16 %v169
    %v1558 = vunpack.c.h.b16 %v169
    %v1559 = vunpack.c.l.b16 %v170
    %v1560 = vunpack.c.l.b16 %v171
    %v1561 = vunpack.c.h.b16 %v171
    %v1562 = vunpack.c.l.b16 %v172
    %v1563 = vunpack.c.h.b16 %v172
    %v1564 = vunpack.c.l.b16 %v173
    %v1565 = vunpack.c.h.b16 %v173
    %v1566 = vunpack.c.l.b16 %v174
    %v1567 = vunpack.c.h.b16 %v174
    %v1568 = vunpack.c.l.b16 %v175
    %v1569 = vunpack.c.l.b16 %v176
    %v1570 = vunpack.c.h.b16 %v176
    %v1571 = vunpack.c.l.b16 %v177
    %v1572 = vunpack.c.h.b16 %v177
    %v1573 = vunpack.c.l.b16 %v178
    %v1574 = vunpack.c.h.b16 %v178
    %v1575 = vunpack.c.l.b16 %v179
    %v1576 = vunpack.c.h.b16 %v179
    %v1577 = vunpack.c.l.b16 %v180
    %v1578 = vunpack.c.l.b16 %v181
    %v1579 = vunpack.c.h.b16 %v181
    %v1580 = vunpack.c.l.b16 %v182
    %v1581 = vunpack.c.h.b16 %v182
    %v1582 = vunpack.c.l.b16 %v183
    %v1583 = vunpack.c.h.b16 %v183
    %v1584 = vunpack.c.l.b16 %v184
    %v1585 = vunpack.c.h.b16 %v184
    %v1586 = vunpack.c.l.b16 %v185
    %v1587 = vunpack.c.l.b16 %v186
    %v1588 = vunpack.c.h.b16 %v186
    %v1589 = vunpack.c.l.b16 %v187
    %v1590 = vunpack.c.h.b16 %v187
    %v1591 = vunpack.c.l.b16 %v188
    %v1592 = vunpack.c.h.b16 %v188
    %v1593 = vunpack.c.l.b16 %v189
    %v1594 = vunpack.c.h.b16 %v189
    %v1595 = vunpack.c.l.b16 %v190
    %v1596 = vunpack.c.l.b16 %v191
    %v1597 = vunpack.c.h.b16 %v191
    %v1598 = vunpack.c.l.b16 %v192
    %v1599 = vunpack.c.h.b16 %v192
    %v1600 = vunpack.c.l.b16 %v193
    %v1601 = vunpack.c.h.b16 %v193
    %v1602 = vunpack.c.l.b16 %v194
    %v1603 = vunpack.c.h.b16 %v194
    %v1604 = vunpack.c.l.b16 %v195
    %v1605 = vunpack.c.l.b16 %v196
    %v1606 = vunpack.c.h.b16 %v196
    %v1607 = vunpack.c.l.b16 %v197
    %v1608 = vunpack.c.h.b16 %v197
    %v1609 = vunpack.c.l.b16 %v198
    %v1610 = vunpack.c.h.b16 %v198
    %v1611 = vunpack.c.l.b16 %v199
    %v1612 = vunpack.c.h.b16 %v199
    %v1613 = vunpack.c.l.b16 %v200
    %v1614 = vunpack.c.l.b16 %v201
    %v1615 = vunpack.c.h.b16 %v201
    %v1616 = vunpack.c.l.b16 %v202
    %v1617 = vunpack.c.h.b16 %v202
    %v1618 = vunpack.c.l.b16 %v203
    %v1619 = vunpack.c.h.b16 %v203
    %v1620 = vunpack.c.l.b16 %v204
    %v1621 = vunpack.c.h.b16 %v204
    %v1622 = vunpack.c.l.b16 %v205
    %v1623 = vunpack.c.l.b16 %v206
    %v1624 = vunpack.c.h.b16 %v206
    %v1625 = vunpack.c.l.b16 %v207
    %v1626 = vunpack.c.h.b16 %v207
    %v1627 = vunpack.c.l.b16 %v208
    %v1628 = vunpack.c.h.b16 %v208
    %v1629 = vunpack.c.l.b16 %v209
    %v1630 = vunpack.c.h.b16 %v209
    %v1631 = vunpack.c.l.b16 %v210
    %v1632 = vunpack.c.l.b16 %v211
    %v1633 = vunpack.c.h.b16 %v211
    %v1634 = vunpack.c.l.b16 %v212
    %v1635 = vunpack.c.h.b16 %v212
    %v1636 = vunpack.c.l.b16 %v213
    %v1637 = vunpack.c.h.b16 %v213
    %v1638 = vunpack.c.l.b16 %v214
    %v1639 = vunpack.c.h.b16 %v214
    %v1640 = vunpack.c.l.b16 %v215
    %v1641 = vunpack.c.l.b16 %v216
    %v1642 = vunpack.c.h.b16 %v216
    %v1643 = vunpack.c.l.b16 %v217
    %v1644 = vunpack.c.h.b16 %v217
    %v1645 = vunpack.c.l.b16 %v218
    %v1646 = vunpack.c.h.b16 %v218
    %v1647 = vunpack.c.l.b16 %v219
    %v1648 = vunpack.c.h.b16 %v219
    %v1649 = vunpack.c.l.b16 %v220
    %v1650 = vunpack.c.l.b16 %v221
    %v1651 = vunpack.c.h.b16 %v221
    %v1652 = vunpack.c.l.b16 %v222
    %v1653 = vunpack.c.h.b16 %v222
    %v1654 = vunpack.c.l.b16 %v223
    %v1655 = vunpack.c.h.b16 %v223
    %v1656 = vunpack.c.l.b16 %v224
    %v1657 = vunpack.c.h.b16 %v224
    %v1658 = vunpack.c.l.b16 %v225
    %v1659 = vunpack.c.l.b16 %v226
    %v1660 = vunpack.c.h.b16 %v226
    %v1661 = vunpack.c.l.b16 %v227
    %v1662 = vunpack.c.h.b16 %v227
    %v1663 = vunpack.c.l.b16 %v228
    %v1664 = vunpack.c.h.b16 %v228
    %v1665 = vunpack.c.l.b16 %v229
    %v1666 = vunpack.c.h.b16 %v229
    %v1667 = vunpack.c.l.b16 %v230
    %v1668 = vunpack.c.l.b16 %v231
    %v1669 = vunpack.c.h.b16 %v231
    %v1670 = vunpack.c.l.b16 %v232
    %v1671 = vunpack.c.h.b16 %v232
    %v1672 = vunpack.c.l.b16 %v233
    %v1673 = vunpack.c.h.b16 %v233
    %v1674 = vunpack.c.l.b16 %v234
    %v1675 = vunpack.c.h.b16 %v234
    %v1676 = vunpack.c.l.b16 %v235
    %v1677 = vunpack.c.l.b16 %v236
    %v1678 = vunpack.c.h.b16 %v236
    %v1679 = vunpack.c.l.b16 %v237
    %v1680 = vunpack.c.h.b16 %v237
    %v1681 = vunpack.c.l.b16 %v238
    %v1682 = vunpack.c.h.b16 %v238
    %v1683 = vunpack.c.l.b16 %v239
    %v1684 = vunpack.c.h.b16 %v239
    %v1685 = vunpack.c.l.b16 %v240
    %v1686 = vunpack.c.l.b16 %v241
    %v1687 = vunpack.c.h.b16 %v241
    %v1688 = vunpack.c.l.b16 %v242
    %v1689 = vunpack.c.h.b16 %v242
    %v1690 = vunpack.c.l.b16 %v243
    %v1691 = vunpack.c.h.b16 %v243
    %v1692 = vunpack.c.l.b16 %v244
    %v1693 = vunpack.c.h.b16 %v244
    %v1694 = vunpack.c.l.b16 %v245
    %v1695 = vunpack.c.l.b16 %v246
    %v1696 = vunpack.c.h.b16 %v246
    %v1697 = vunpack.c.l.b16 %v247
    %v1698 = vunpack.c.h.b16 %v247
    %v1699 = vunpack.c.l.b16 %v248
    %v1700 = vunpack.c.h.b16 %v248
    %v1701 = vunpack.c.l.b16 %v249
    %v1702 = vunpack.c.h.b16 %v249
    %v1703 = vunpack.c.l.b16 %v250
    %v1704 = vunpack.c.l.b16 %v251
    %v1705 = vunpack.c.h.b16 %v251
    %v1706 = vunpack.c.l.b16 %v252
    %v1707 = vunpack.c.h.b16 %v252
    %v1708 = vunpack.c.l.b16 %v253
    %v1709 = vunpack.c.h.b16 %v253
    %v1710 = vunpack.c.l.b16 %v254
    %v1711 = vunpack.c.h.b16 %v254
    %v1712 = vunpack.c.l.b16 %v255
    %v1713 = vunpack.c.l.b16 %v256
    %v1714 = vunpack.c.h.b16 %v256
    %v1715 = vunpack.c.l.b16 %v257
    %v1716 = vunpack.c.h.b16 %v257
    %v1717 = vunpack.c.l.b16 %v258
    %v1718 = vunpack.c.h.b16 %v258
    %v1719 = vunpack.c.l.b16 %v259
    %v1720 = vunpack.c.h.b16 %v259
    %v1721 = vunpack.c.l.b16 %v260
    %v1722 = vunpack.c.l.b16 %v261
    %v1723 = vunpack.c.h.b16 %v261
    %v1724 = vunpack.c.l.b16 %v262
    %v1725 = vunpack.c.h.b16 %v262
    %v1726 = vunpack.c.l.b16 %v263
    %v1727 = vunpack.c.h.b16 %v263
    %v1728 = vunpack.c.l.b16 %v264
    %v1729 = vunpack.c.h.b16 %v264
    %v1730 = vunpack.c.l.b16 %v265
    %v1731 = vunpack.c.l.b16 %v266
    %v1732 = vunpack.c.h.b16 %v266
    %v1733 = vunpack.c.l.b16 %v267
    %v1734 = vunpack.c.h.b16 %v267
    %v1735 = vunpack.c.l.b16 %v268
    %v1736 = vunpack.c.h.b16 %v268
    %v1737 = vunpack.c.l.b16 %v269
    %v1738 = vunpack.c.h.b16 %v269
    %v1739 = vunpack.c.l.b16 %v270
    %v1740 = vunpack.c.l.b16 %v271
    %v1741 = vunpack.c.h.b16 %v271
    %v1742 = vunpack.c.l.b16 %v272
    %v1743 = vunpack.c.h.b16 %v272
    %v1744 = vunpack.c.l.b16 %v273
    %v1745 = vunpack.c.h.b16 %v273
    %v1746 = vunpack.c.l.b16 %v274
    %v1747 = vunpack.c.h.b16 %v274
    %v1748 = vunpack.c.l.b16 %v275
    %v1749 = vunpack.c.l.b16 %v276
    %v1750 = vunpack.c.h.b16 %v276
    %v1751 = vunpack.c.l.b16 %v277
    %v1752 = vunpack.c.h.b16 %v277
    %v1753 = vunpack.c.l.b16 %v278
    %v1754 = vunpack.c.h.b16 %v278
    %v1755 = vunpack.c.l.b16 %v279
    %v1756 = vunpack.c.h.b16 %v279
    %v1757 = vunpack.c.l.b16 %v280
    %v1758 = vunpack.c.l.b16 %v281
    %v1759 = vunpack.c.h.b16 %v281
    %v1760 = vunpack.c.l.b16 %v282
    %v1761 = vunpack.c.h.b16 %v282
    %v1762 = vunpack.c.l.b16 %v283
    %v1763 = vunpack.c.h.b16 %v283
    %v1764 = vunpack.c.l.b16 %v284
    %v1765 = vunpack.c.h.b16 %v284
    %v1766 = vunpack.c.l.b16 %v285
    %v1767 = vunpack.c.l.b16 %v286
    %v1768 = vunpack.c.h.b16 %v286
    %v1769 = vunpack.c.l.b16 %v287
    %v1770 = vunpack.c.h.b16 %v287
    %v1771 = vunpack.c.l.b16 %v288
    %v1772 = vunpack.c.h.b16 %v288
    %v1773 = vunpack.c.l.b16 %v289
    %v1774 = vunpack.c.h.b16 %v289
    %v1775 = vunpack.c.l.b16 %v290
    %v1776 = vunpack.c.l.b16 %v291
    %v1777 = vunpack.c.h.b16 %v291
    %v1778 = vunpack.c.l.b16 %v292
    %v1779 = vunpack.c.h.b16 %v292
    %v1780 = vunpack.c.l.b16 %v293
    %v1781 = vunpack.c.h.b16 %v293
    %v1782 = vunpack.c.l.b16 %v294
    %v1783 = vunpack.c.h.b16 %v294
    %v1784 = vunpack.c.l.b16 %v295
    %v1785 = vunpack.c.l.b16 %v296
    %v1786 = vunpack.c.h.b16 %v296
    %v1787 = vunpack.c.l.b16 %v297
    %v1788 = vunpack.c.h.b16 %v297
    %v1789 = vunpack.c.l.b16 %v298
    %v1790 = vunpack.c.h.b16 %v298
    %v1791 = vunpack.c.l.b16 %v299
    %v1792 = vunpack.c.h.b16 %v299
    %v1793 = vunpack.c.l.b16 %v300
    %v1794 = vunpack.c.l.b16 %v301
    %v1795 = vunpack.c.h.b16 %v301
    %v1796 = vunpack.c.l.b16 %v302
    %v1797 = vunpack.c.h.b16 %v302
    %v1798 = vunpack.c.l.b16 %v303
    %v1799 = vunpack.c.h.b16 %v303
    %v1800 = vunpack.c.l.b16 %v304
    %v1801 = vunpack.c.h.b16 %v304
    %v1802 = vunpack.c.l.b16 %v305
    %v1803 = vunpack.c.l.b16 %v306
    %v1804 = vunpack.c.h.b16 %v306
    %v1805 = vunpack.c.l.b16 %v307
    %v1806 = vunpack.c.h.b16 %v307
    %v1807 = vunpack.c.l.b16 %v308
    %v1808 = vunpack.c.h.b16 %v308
    %v1809 = vunpack.c.l.b16 %v309
    %v1810 = vunpack.c.h.b16 %v309
    %v1811 = vunpack.c.l.b16 %v310
    %v1812 = vunpack.c.l.b16 %v311
    %v1813 = vunpack.c.h.b16 %v311
    %v1814 = vunpack.c.l.b16 %v312
    %v1815 = vunpack.c.h.b16 %v312
    %v1816 = vunpack.c.l.b16 %v313
    %v1817 = vunpack.c.h.b16 %v313
    %v1818 = vunpack.c.l.b16 %v314
    %v1819 = vunpack.c.h.b16 %v314
    %v1820 = vunpack.c.l.b16 %v315
    %v1821 = vunpack.c.l.b16 %v316
    %v1822 = vunpack.c.h.b16 %v316
    %v1823 = vunpack.c.l.b16 %v317
    %v1824 = vunpack.c.h.b16 %v317
    %v1825 = vunpack.c.l.b16 %v318
    %v1826 = vunpack.c.h.b16 %v318
    %v1827 = vunpack.c.l.b16 %v319
    %v1828 = vunpack.c.h.b16 %v319
    %v1829 = vunpack.c.l.b16 %v320
    %v1830 = vunpack.c.l.b16 %v321
    %v1831 = vunpack.c.h.b16 %v321
    %v1832 = vunpack.c.l.b16 %v322
    %v1833 = vunpack.c.h.b16 %v322
    %v1834 = vunpack.c.l.b16 %v323
    %v1835 = vunpack.c.h.b16 %v323
    %v1836 = vunpack.c.l.b16 %v324
    %v1837 = vunpack.c.h.b16 %v324
    %v1838 = vunpack.c.l.b16 %v325
    %v1839 = vunpack.c.l.b16 %v326
    %v1840 = vunpack.c.h.b16 %v326
    %v1841 = vunpack.c.l.b16 %v327
    %v1842 = vunpack.c.h.b16 %v327
    %v1843 = vunpack.c.l.b16 %v328
    %v1844 = vunpack.c.h.b16 %v328
    %v1845 = vunpack.c.l.b16 %v329
    %v1846 = vunpack.c.h.b16 %v329
    %v1847 = vunpack.c.l.b16 %v330
    %v1848 = vunpack.c.l.b16 %v331
    %v1849 = vunpack.c.h.b16 %v331
    %v1850 = vunpack.c.l.b16 %v332
    %v1851 = vunpack.c.h.b16 %v332
    %v1852 = vunpack.c.l.b16 %v333
    %v1853 = vunpack.c.h.b16 %v333
    %v1854 = vunpack.c.l.b16 %v334
    %v1855 = vunpack.c.h.b16 %v334
    %v1856 = vunpack.c.l.b16 %v335
    %v1857 = vunpack.c.l.b16 %v336
    %v1858 = vunpack.c.h.b16 %v336
    %v1859 = vunpack.c.l.b16 %v337
    %v1860 = vunpack.c.h.b16 %v337
    %v1861 = vunpack.c.l.b16 %v338
    %v1862 = vunpack.c.h.b16 %v338
    %v1863 = vunpack.c.l.b16 %v339
    %v1864 = vunpack.c.h.b16 %v339
    %v1865 = vunpack.c.l.b16 %v340
    %v1866 = vunpack.c.l.b16 %v341
    %v1867 = vunpack.c.h.b16 %v341
    %v1868 = vunpack.c.l.b16 %v342
    %v1869 = vunpack.c.h.b16 %v342
    %v1870 = vunpack.c.l.b16 %v343
    %v1871 = vunpack.c.h.b16 %v343
    %v1872 = vunpack.c.l.b16 %v344
    %v1873 = vunpack.c.h.b16 %v344
    %v1874 = vunpack.c.l.b16 %v345
    %v1875 = vunpack.c.l.b16 %v346
    %v1876 = vunpack.c.h.b16 %v346
    %v1877 = vunpack.c.l.b16 %v347
    %v1878 = vunpack.c.h.b16 %v347
    %v1879 = vunpack.c.l.b16 %v348
    %v1880 = vunpack.c.h.b16 %v348
    %v1881 = vunpack.c.l.b16 %v349
    %v1882 = vunpack.c.h.b16 %v349
    %v1883 = vunpack.c.l.b16 %v350
    %v1884 = vunpack.c.l.b16 %v351
    %v1885 = vunpack.c.h.b16 %v351
    %v1886 = vunpack.c.l.b16 %v352
    %v1887 = vunpack.c.h.b16 %v352
    %v1888 = vunpack.c.l.b16 %v353
    %v1889 = vunpack.c.h.b16 %v353
    %v1890 = vunpack.c.l.b16 %v354
    %v1891 = vunpack.c.h.b16 %v354
    %v1892 = vunpack.c.l.b16 %v355
    %v1893 = vunpack.c.l.b16 %v356
    %v1894 = vunpack.c.h.b16 %v356
    %v1895 = vunpack.c.l.b16 %v357
    %v1896 = vunpack.c.h.b16 %v357
    %v1897 = vunpack.c.l.b16 %v358
    %v1898 = vunpack.c.h.b16 %v358
    %v1899 = vunpack.c.l.b16 %v359
    %v1900 = vunpack.c.h.b16 %v359
    %v1901 = vunpack.c.l.b16 %v360
    %v1902 = vunpack.c.l.b16 %v361
    %v1903 = vunpack.c.h.b16 %v361
    %v1904 = vunpack.c.l.b16 %v362
    %v1905 = vunpack.c.h.b16 %v362
    %v1906 = vunpack.c.l.b16 %v363
    %v1907 = vunpack.c.h.b16 %v363
    %v1908 = vunpack.c.l.b16 %v364
    %v1909 = vunpack.c.h.b16 %v364
    %v1910 = vunpack.c.l.b16 %v365
    %v1911 = vunpack.c.l.b16 %v366
    %v1912 = vunpack.c.h.b16 %v366
    %v1913 = vunpack.c.l.b16 %v367
    %v1914 = vunpack.c.h.b16 %v367
    %v1915 = vunpack.c.l.b16 %v368
    %v1916 = vunpack.c.h.b16 %v368
    %v1917 = vunpack.c.l.b16 %v369
    %v1918 = vunpack.c.h.b16 %v369
    %v1919 = vunpack.c.l.b16 %v370
    %v1920 = vunpack.c.l.b16 %v371
    %v1921 = vunpack.c.h.b16 %v371
    %v1922 = vunpack.c.l.b16 %v372
    %v1923 = vunpack.c.h.b16 %v372
    %v1924 = vunpack.c.l.b16 %v373
    %v1925 = vunpack.c.h.b16 %v373
    %v1926 = vunpack.c.l.b16 %v374
    %v1927 = vunpack.c.h.b16 %v374
    %v1928 = vunpack.c.l.b16 %v375
    %v1929 = vunpack.c.l.b16 %v376
    %v1930 = vunpack.c.h.b16 %v376
    %v1931 = vunpack.c.l.b16 %v377
    %v1932 = vunpack.c.h.b16 %v377
    %v1933 = vunpack.c.l.b16 %v378
    %v1934 = vunpack.c.h.b16 %v378
    %v1935 = vunpack.c.l.b16 %v379
    %v1936 = vunpack.c.h.b16 %v379
    %v1937 = vunpack.c.l.b16 %v380
    %v1938 = vunpack.c.l.b16 %v381
    %v1939 = vunpack.c.h.b16 %v381
    %v1940 = vunpack.c.l.b16 %v382
    %v1941 = vunpack.c.h.b16 %v382
    %v1942 = vunpack.c.l.b16 %v383
    %v1943 = vunpack.c.h.b16 %v383
    %v1944 = vunpack.c.l.b16 %v384
    %v1945 = vunpack.c.h.b16 %v384
    %v1946 = vunpack.c.l.b16 %v385
    %v1947 = vunpack.c.l.b16 %v386
    %v1948 = vunpack.c.h.b16 %v386
    %v1949 = vunpack.c.l.b16 %v387
    %v1950 = vunpack.c.h.b16 %v387
    %v1951 = vunpack.c.l.b16 %v388
    %v1952 = vunpack.c.h.b16 %v388
    %v1953 = vunpack.c.l.b16 %v389
    %v1954 = vunpack.c.h.b16 %v389
    %v1955 = vunpack.c.l.b16 %v390
    %v1956 = vunpack.c.l.b16 %v391
    %v1957 = vunpack.c.h.b16 %v391
    %v1958 = vunpack.c.l.b16 %v392
    %v1959 = vunpack.c.h.b16 %v392
    %v1960 = vunpack.c.l.b16 %v393
    %v1961 = vunpack.c.h.b16 %v393
    %v1962 = vunpack.c.l.b16 %v394
    %v1963 = vunpack.c.h.b16 %v394
    %v1964 = vunpack.c.l.b16 %v395
    %v1965 = vunpack.c.l.b16 %v396
    %v1966 = vunpack.c.h.b16 %v396
    %v1967 = vunpack.c.l.b16 %v397
    %v1968 = vunpack.c.h.b16 %v397
    %v1969 = vunpack.c.l.b16 %v398
    %v1970 = vunpack.c.h.b16 %v398
    %v1971 = vunpack.c.l.b16 %v399
    %v1972 = vunpack.c.h.b16 %v399
    %v1973 = vunpack.c.l.b16 %v400
    %v1974 = vunpack.c.l.b16 %v401
    %v1975 = vunpack.c.h.b16 %v401
    %v1976 = vunpack.c.l.b16 %v402
    %v1977 = vunpack.c.h.b16 %v402
    %v1978 = vunpack.c.l.b16 %v403
    %v1979 = vunpack.c.h.b16 %v403
    %v1980 = vunpack.c.l.b16 %v404
    %v1981 = vunpack.c.h.b16 %v404
    %v1982 = vunpack.c.l.b16 %v405
    %v1983 = vunpack.c.l.b16 %v406
    %v1984 = vunpack.c.h.b16 %v406
    %v1985 = vunpack.c.l.b16 %v407
    %v1986 = vunpack.c.h.b16 %v407
    %v1987 = vunpack.c.l.b16 %v408
    %v1988 = vunpack.c.h.b16 %v408
    %v1989 = vunpack.c.l.b16 %v409
    %v1990 = vunpack.c.h.b16 %v409
    %v1991 = vunpack.c.l.b16 %v410
    %v1992 = vunpack.c.l.b16 %v411
    %v1993 = vunpack.c.h.b16 %v411
    %v1994 = vunpack.c.l.b16 %v412
    %v1995 = vunpack.c.h.b16 %v412
    %v1996 = vunpack.c.l.b16 %v413
    %v1997 = vunpack.c.h.b16 %v413
    %v1998 = vunpack.c.l.b16 %v414
    %v1999 = vunpack.c.h.b16 %v414
    %v2000 = vunpack.c.l.b16 %v415
    %v2001 = vunpack.c.l.b16 %v416
    %v2002 = vunpack.c.h.b16 %v416
    %v2003 = vunpack.c.l.b16 %v417
    %v2004 = vunpack.c.h.b16 %v417
    %v2005 = vunpack.c.l.b16 %v418
    %v2006 = vunpack.c.h.b16 %v418
    %v2007 = vunpack.c.l.b16 %v419
    %v2008 = vunpack.c.h.b16 %v419
    %v2009 = vunpack.c.l.b16 %v420
    %v2010 = vunpack.c.l.b16 %v421
    %v2011 = vunpack.c.h.b16 %v421
    %v2012 = vunpack.c.l.b16 %v422
    %v2013 = vunpack.c.h.b16 %v422
    %v2014 = vunpack.c.l.b16 %v423
    %v2015 = vunpack.c.h.b16 %v423
    %v2016 = vunpack.c.l.b16 %v424
    %v2017 = vunpack.c.h.b16 %v424
    %v2018 = vunpack.c.l.b16 %v425
    %v2019 = vunpack.c.l.b16 %v426
    %v2020 = vunpack.c.h.b16 %v426
    %v2021 = vunpack.c.l.b16 %v427
    %v2022 = vunpack.c.h.b16 %v427
    %v2023 = vunpack.c.l.b16 %v428
    %v2024 = vunpack.c.h.b16 %v428
    %v2025 = vunpack.c.l.b16 %v429
    %v2026 = vunpack.c.h.b16 %v429
    %v2027 = vunpack.c.l.b16 %v430
    %v2028 = vunpack.c.l.b16 %v431
    %v2029 = vunpack.c.h.b16 %v431
    %v2030 = vunpack.c.l.b16 %v432
    %v2031 = vunpack.c.h.b16 %v432
    %v2032 = vunpack.c.l.b16 %v433
    %v2033 = vunpack.c.h.b16 %v433
    %v2034 = vunpack.c.l.b16 %v434
    %v2035 = vunpack.c.h.b16 %v434
    %v2036 = vunpack.c.l.b16 %v435
    %v2037 = vunpack.c.l.b16 %v436
    %v2038 = vunpack.c.h.b16 %v436
    %v2039 = vunpack.c.l.b16 %v437
    %v2040 = vunpack.c.h.b16 %v437
    %v2041 = vunpack.c.l.b16 %v438
    %v2042 = vunpack.c.h.b16 %v438
    %v2043 = vunpack.c.l.b16 %v439
    %v2044 = vunpack.c.h.b16 %v439
    %v2045 = vunpack.c.l.b16 %v440
    %v2046 = vunpack.c.l.b16 %v441
    %v2047 = vunpack.c.h.b16 %v441
    %v2048 = vunpack.c.l.b16 %v442
    %v2049 = vunpack.c.h.b16 %v442
    %v2050 = vunpack.c.l.b16 %v443
    %v2051 = vunpack.c.h.b16 %v443
    %v2052 = vunpack.c.l.b16 %v444
    %v2053 = vunpack.c.h.b16 %v444
    %v2054 = vunpack.c.l.b16 %v445
    %v2055 = vunpack.c.l.b16 %v446
    %v2056 = vunpack.c.h.b16 %v446
    %v2057 = vunpack.c.l.b16 %v447
    %v2058 = vunpack.c.h.b16 %v447
    %v2059 = vunpack.c.l.b16 %v448
    %v2060 = vunpack.c.h.b16 %v448
    %v2061 = vunpack.c.l.b16 %v449
    %v2062 = vunpack.c.h.b16 %v449
    %v2063 = vunpack.c.l.b16 %v450
    %v2064 = vunpack.c.l.b16 %v451
    %v2065 = vunpack.c.h.b16 %v451
    %v2066 = vunpack.c.l.b16 %v452
    %v2067 = vunpack.c.h.b16 %v452
    %v2068 = vunpack.c.l.b16 %v453
    %v2069 = vunpack.c.h.b16 %v453
    %v2070 = vunpack.c.l.b16 %v454
    %v2071 = vunpack.c.h.b16 %v454
    %v2072 = vunpack.c.l.b16 %v455
    %v2073 = vunpack.c.l.b16 %v456
    %v2074 = vunpack.c.h.b16 %v456
    %v2075 = vunpack.c.l.b16 %v457
    %v2076 = vunpack.c.h.b16 %v457
    %v2077 = vunpack.c.l.b16 %v458
    %v2078 = vunpack.c.h.b16 %v458
    %v2079 = vunpack.c.l.b16 %v459
    %v2080 = vunpack.c.h.b16 %v459
    %v2081 = vunpack.c.l.b16 %v460
    %v2082 = vunpack.c.l.b16 %v461
    %v2083 = vunpack.c.h.b16 %v461
    %v2084 = vunpack.c.l.b16 %v462
    %v2085 = vunpack.c.h.b16 %v462
    %v2086 = vunpack.c.l.b16 %v463
    %v2087 = vunpack.c.h.b16 %v463
    %v2088 = vunpack.c.l.b16 %v464
    %v2089 = vunpack.c.h.b16 %v464
    %v2090 = vunpack.c.l.b16 %v465
    %v2091 = vunpack.c.l.b16 %v466
    %v2092 = vunpack.c.h.b16 %v466
    %v2093 = vunpack.c.l.b16 %v467
    %v2094 = vunpack.c.h.b16 %v467
    %v2095 = vunpack.c.l.b16 %v468
    %v2096 = vunpack.c.h.b16 %v468
    %v2097 = vunpack.c.l.b16 %v469
    %v2098 = vunpack.c.h.b16 %v469
    %v2099 = vunpack.c.l.b16 %v470
    %v2100 = vunpack.c.l.b16 %v471
    %v2101 = vunpack.c.h.b16 %v471
    %v2102 = vunpack.c.l.b16 %v472
    %v2103 = vunpack.c.h.b16 %v472
    %v2104 = vunpack.c.l.b16 %v473
    %v2105 = vunpack.c.h.b16 %v473
    %v2106 = vunpack.c.l.b16 %v474
    %v2107 = vunpack.c.h.b16 %v474
    %v2108 = vunpack.c.l.b16 %v475
    %v2109 = vunpack.c.l.b16 %v476
    %v2110 = vunpack.c.h.b16 %v476
    %v2111 = vunpack.c.l.b16 %v477
    %v2112 = vunpack.c.h.b16 %v477
    %v2113 = vunpack.c.l.b16 %v478
    %v2114 = vunpack.c.h.b16 %v478
    %v2115 = vunpack.c.l.b16 %v479
    %v2116 = vunpack.c.h.b16 %v479
    %v2117 = vunpack.c.l.b16 %v480
    %v2118 = vunpack.c.l.b16 %v481
    %v2119 = vunpack.c.h.b16 %v481
    %v2120 = vunpack.c.l.b16 %v482
    %v2121 = vunpack.c.h.b16 %v482
    %v2122 = vunpack.c.l.b16 %v483
    %v2123 = vunpack.c.h.b16 %v483
    %v2124 = vunpack.c.l.b16 %v484
    %v2125 = vunpack.c.h.b16 %v484
    %v2126 = vunpack.c.l.b16 %v485
    %v2127 = vunpack.c.l.b16 %v486
    %v2128 = vunpack.c.h.b16 %v486
    %v2129 = vunpack.c.l.b16 %v487
    %v2130 = vunpack.c.h.b16 %v487
    %v2131 = vunpack.c.l.b16 %v488
    %v2132 = vunpack.c.h.b16 %v488
    %v2133 = vunpack.c.l.b16 %v489
    %v2134 = vunpack.c.h.b16 %v489
    %v2135 = vunpack.c.l.b16 %v490
    %v2136 = vunpack.c.l.b16 %v491
    %v2137 = vunpack.c.h.b16 %v491
    %v2138 = vunpack.c.l.b16 %v492
    %v2139 = vunpack.c.h.b16 %v492
    %v2140 = vunpack.c.l.b16 %v493
    %v2141 = vunpack.c.h.b16 %v493
    %v2142 = vunpack.c.l.b16 %v494
    %v2143 = vunpack.c.h.b16 %v494
    %v2144 = vunpack.c.l.b16 %v495
    %v2145 = vunpack.c.l.b16 %v496
    %v2146 = vunpack.c.h.b16 %v496
    %v2147 = vunpack.c.l.b16 %v497
    %v2148 = vunpack.c.h.b16 %v497
    %v2149 = vunpack.c.l.b16 %v498
    %v2150 = vunpack.c.h.b16 %v498
    %v2151 = vunpack.c.l.b16 %v499
    %v2152 = vunpack.c.h.b16 %v499
    %v2153 = vunpack.c.l.b16 %v500
    %v2154 = vunpack.c.l.b16 %v501
    %v2155 = vunpack.c.h.b16 %v501
    %v2156 = vunpack.c.l.b16 %v502
    %v2157 = vunpack.c.h.b16 %v502
    %v2158 = vunpack.c.l.b16 %v503
    %v2159 = vunpack.c.h.b16 %v503
    %v2160 = vunpack.c.l.b16 %v504
    %v2161 = vunpack.c.h.b16 %v504
    %v2162 = vunpack.c.l.b16 %v505
    %v2163 = vunpack.c.l.b16 %v506
    %v2164 = vunpack.c.h.b16 %v506
    %v2165 = vunpack.c.l.b16 %v507
    %v2166 = vunpack.c.h.b16 %v507
    %v2167 = vunpack.c.l.b16 %v508
    %v2168 = vunpack.c.h.b16 %v508
    %v2169 = vunpack.c.l.b16 %v509
    %v2170 = vunpack.c.h.b16 %v509
    %v2171 = vunpack.c.l.b16 %v510
    %v2172 = vunpack.c.l.b16 %v511
    %v2173 = vunpack.c.h.b16 %v511
    %v2174 = vunpack.c.l.b16 %v512
    %v2175 = vunpack.c.h.b16 %v512
    %v2176 = vunpack.c.l.b16 %v513
    %v2177 = vunpack.c.h.b16 %v513
    %v2178 = vunpack.c.l.b16 %v514
    %v2179 = vunpack.c.h.b16 %v514
    %v2180 = vunpack.c.l.b16 %v515
    %v2181 = vunpack.c.l.b16 %v516
    %v2182 = vunpack.c.h.b16 %v516
    %v2183 = vunpack.c.l.b16 %v517
    %v2184 = vunpack.c.h.b16 %v517
    %v2185 = vunpack.c.l.b16 %v518
    %v2186 = vunpack.c.h.b16 %v518
    %v2187 = vunpack.c.l.b16 %v519
    %v2188 = vunpack.c.h.b16 %v519
    %v2189 = vunpack.c.l.b16 %v520
    %v2190 = vunpack.c.l.b16 %v521
    %v2191 = vunpack.c.h.b16 %v521
    %v2192 = vunpack.c.l.b16 %v522
    %v2193 = vunpack.c.h.b16 %v522
    %v2194 = vunpack.c.l.b16 %v523
    %v2195 = vunpack.c.h.b16 %v523
    %v2196 = vunpack.c.l.b16 %v524
    %v2197 = vunpack.c.h.b16 %v524
    %v2198 = vunpack.c.l.b16 %v525
    %v2199 = vunpack.c.l.b16 %v526
    %v2200 = vunpack.c.h.b16 %v526
    %v2201 = vunpack.c.l.b16 %v527
    %v2202 = vunpack.c.h.b16 %v527
    %v2203 = vunpack.c.l.b16 %v528
    %v2204 = vunpack.c.h.b16 %v528
    %v2205 = vunpack.c.l.b16 %v529
    %v2206 = vunpack.c.h.b16 %v529
    %v2207 = vunpack.c.l.b16 %v530
    %v2208 = vunpack.c.l.b16 %v531
    %v2209 = vunpack.c.h.b16 %v531
    %v2210 = vunpack.c.l.b16 %v532
    %v2211 = vunpack.c.h.b16 %v532
    %v2212 = vunpack.c.l.b16 %v533
    %v2213 = vunpack.c.h.b16 %v533
    %v2214 = vunpack.c.l.b16 %v534
    %v2215 = vunpack.c.h.b16 %v534
    %v2216 = vunpack.c.l.b16 %v535
    %v2217 = vunpack.c.l.b16 %v536
    %v2218 = vunpack.c.h.b16 %v536
    %v2219 = vunpack.c.l.b16 %v537
    %v2220 = vunpack.c.h.b16 %v537
    %v2221 = vunpack.c.l.b16 %v538
    %v2222 = vunpack.c.h.b16 %v538
    %v2223 = vunpack.c.l.b16 %v539
    %v2224 = vunpack.c.h.b16 %v539
    %v2225 = vunpack.c.l.b16 %v540
    %v2226 = vunpack.c.l.b16 %v541
    %v2227 = vunpack.c.h.b16 %v541
    %v2228 = vunpack.c.l.b16 %v542
    %v2229 = vunpack.c.h.b16 %v542
    %v2230 = vunpack.c.l.b16 %v543
    %v2231 = vunpack.c.h.b16 %v543
    %v2232 = vunpack.c.l.b16 %v544
    %v2233 = vunpack.c.h.b16 %v544
    %v2234 = vunpack.c.l.b16 %v545
    %v2235 = vunpack.c.l.b16 %v546
    %v2236 = vunpack.c.h.b16 %v546
    %v2237 = vunpack.c.l.b16 %v547
    %v2238 = vunpack.c.h.b16 %v547
    %v2239 = vunpack.c.l.b16 %v548
    %v2240 = vunpack.c.h.b16 %v548
    %v2241 = vunpack.c.l.b16 %v549
    %v2242 = vunpack.c.h.b16 %v549
    %v2243 = vunpack.c.l.b16 %v550
    %v2244 = vunpack.c.l.b16 %v551
    %v2245 = vunpack.c.h.b16 %v551
    %v2246 = vunpack.c.l.b16 %v552
    %v2247 = vunpack.c.h.b16 %v552
    %v2248 = vunpack.c.l.b16 %v553
    %v2249 = vunpack.c.h.b16 %v553
    %v2250 = vunpack.c.l.b16 %v554
    %v2251 = vunpack.c.h.b16 %v554
    %v2252 = vunpack.c.l.b16 %v555
    %v2253 = vunpack.c.l.b16 %v556
    %v2254 = vunpack.c.h.b16 %v556
    %v2255 = vunpack.c.l.b16 %v557
    %v2256 = vunpack.c.h.b16 %v557
    %v2257 = vunpack.c.l.b16 %v558
    %v2258 = vunpack.c.h.b16 %v558
    %v2259 = vunpack.c.l.b16 %v559
    %v2260 = vunpack.c.h.b16 %v559
    %v2261 = vunpack.c.l.b16 %v560
    %v2262 = vunpack.c.l.b16 %v561
    %v2263 = vunpack.c.h.b16 %v561
    %v2264 = vunpack.c.l.b16 %v562
    %v2265 = vunpack.c.h.b16 %v562
    %v2266 = vunpack.c.l.b16 %v563
    %v2267 = vunpack.c.h.b16 %v563
    %v2268 = vunpack.c.l.b16 %v564
    %v2269 = vunpack.c.h.b16 %v564
    %v2270 = vunpack.c.l.b16 %v565
    %v2271 = vunpack.c.l.b16 %v566
    %v2272 = vunpack.c.h.b16 %v566
    %v2273 = vunpack.c.l.b16 %v567
    %v2274 = vunpack.c.h.b16 %v567
    %v2275 = vunpack.c.l.b16 %v568
    %v2276 = vunpack.c.h.b16 %v568
    %v2277 = vunpack.c.l.b16 %v569
    %v2278 = vunpack.c.h.b16 %v569
    %v2279 = vunpack.c.l.b16 %v570
    %v2280 = vunpack.c.l.b16 %v571
    %v2281 = vunpack.c.h.b16 %v571
    %v2282 = vunpack.c.l.b16 %v572
    %v2283 = vunpack.c.h.b16 %v572
    %v2284 = vunpack.c.l.b16 %v573
    %v2285 = vunpack.c.h.b16 %v573
    %v2286 = vunpack.c.l.b16 %v574
    %v2287 = vunpack.c.h.b16 %v574
    %v2288 = vunpack.c.l.b16 %v575
    %v2289 = vunpack.c.l.b16 %v576
    %v2290 = vunpack.c.h.b16 %v576
    %v2291 = vunpack.c.l.b16 %v577
    %v2292 = vunpack.c.h.b16 %v577
    %v2293 = vunpack.c.l.b16 %v578
    %v2294 = vunpack.c.h.b16 %v578
    %v2295 = vunpack.c.l.b16 %v579
    %v2296 = vunpack.c.h.b16 %v579
    %v2297 = vunpack.c.l.b16 %v580
    %v2298 = vunpack.c.l.b16 %v581
    %v2299 = vunpack.c.h.b16 %v581
    %v2300 = vunpack.c.l.b16 %v582
    %v2301 = vunpack.c.h.b16 %v582
    %v2302 = vunpack.c.l.b16 %v583
    %v2303 = vunpack.c.h.b16 %v583
    %v2304 = vunpack.c.l.b16 %v584
    %v2305 = vunpack.c.h.b16 %v584
    %v2306 = vunpack.c.l.b16 %v585
    %v2307 = vunpack.c.l.b16 %v586
    %v2308 = vunpack.c.h.b16 %v586
    %v2309 = vunpack.c.l.b16 %v587
    %v2310 = vunpack.c.h.b16 %v587
    %v2311 = vunpack.c.l.b16 %v588
    %v2312 = vunpack.c.h.b16 %v588
    %v2313 = vunpack.c.l.b16 %v589
    %v2314 = vunpack.c.h.b16 %v589
    %v2315 = vunpack.c.l.b16 %v590
    %v2316 = vunpack.c.l.b16 %v591
    %v2317 = vunpack.c.h.b16 %v591
    %v2318 = vunpack.c.l.b16 %v592
    %v2319 = vunpack.c.h.b16 %v592
    %v2320 = vunpack.c.l.b16 %v593
    %v2321 = vunpack.c.h.b16 %v593
    %v2322 = vunpack.c.l.b16 %v594
    %v2323 = vunpack.c.h.b16 %v594
    %v2324 = vunpack.c.l.b16 %v595
    %v2325 = vunpack.c.l.b16 %v596
    %v2326 = vunpack.c.h.b16 %v596
    %v2327 = vunpack.c.l.b16 %v597
    %v2328 = vunpack.c.h.b16 %v597
    %v2329 = vunpack.c.l.b16 %v598
    %v2330 = vunpack.c.h.b16 %v598
    %v2331 = vunpack.c.l.b16 %v599
    %v2332 = vunpack.c.h.b16 %v599
    %v2333 = vunpack.c.l.b16 %v600
    %v2334 = vunpack.c.l.b16 %v601
    %v2335 = vunpack.c.h.b16 %v601
    %v2336 = vunpack.c.l.b16 %v602
    %v2337 = vunpack.c.h.b16 %v602
    %v2338 = vunpack.c.l.b16 %v603
    %v2339 = vunpack.c.h.b16 %v603
    %v2340 = vunpack.c.l.b16 %v604
    %v2341 = vunpack.c.h.b16 %v604
    %v2342 = vunpack.c.l.b16 %v605
    %v2343 = vunpack.c.l.b16 %v606
    %v2344 = vunpack.c.h.b16 %v606
    %v2345 = vunpack.c.l.b16 %v607
    %v2346 = vunpack.c.h.b16 %v607
    %v2347 = vunpack.c.l.b16 %v608
    %v2348 = vunpack.c.h.b16 %v608
    %v2349 = vunpack.c.l.b16 %v609
    %v2350 = vunpack.c.h.b16 %v609
    %v2351 = vunpack.c.l.b16 %v610
    %v2352 = vunpack.c.l.b16 %v611
    %v2353 = vunpack.c.h.b16 %v611
    %v2354 = vunpack.c.l.b16 %v612
    %v2355 = vunpack.c.h.b16 %v612
    %v2356 = vunpack.c.l.b16 %v613
    %v2357 = vunpack.c.h.b16 %v613
    %v2358 = vunpack.c.l.b16 %v614
    %v2359 = vunpack.c.h.b16 %v614
    %v2360 = vunpack.c.l.b16 %v615
    %v2361 = vunpack.c.l.b16 %v616
    %v2362 = vunpack.c.h.b16 %v616
    %v2363 = vunpack.c.l.b16 %v617
    %v2364 = vunpack.c.h.b16 %v617
    %v2365 = vunpack.c.l.b16 %v618
    %v2366 = vunpack.c.h.b16 %v618
    %v2367 = vunpack.c.l.b16 %v619
    %v2368 = vunpack.c.h.b16 %v619
    %v2369 = vunpack.c.l.b16 %v620
    %v2370 = vunpack.c.l.b16 %v621
    %v2371 = vunpack.c.h.b16 %v621
    %v2372 = vunpack.c.l.b16 %v622
    %v2373 = vunpack.c.h.b16 %v622
    %v2374 = vunpack.c.l.b16 %v623
    %v2375 = vunpack.c.h.b16 %v623
    %v2376 = vunpack.c.l.b16 %v624
    %v2377 = vunpack.c.h.b16 %v624
    %v2378 = vunpack.c.l.b16 %v625
    %v2379 = vunpack.c.l.b16 %v626
    %v2380 = vunpack.c.h.b16 %v626
    %v2381 = vunpack.c.l.b16 %v627
    %v2382 = vunpack.c.h.b16 %v627
    %v2383 = vunpack.c.l.b16 %v628
    %v2384 = vunpack.c.h.b16 %v628
    %v2385 = vunpack.c.l.b16 %v629
    %v2386 = vunpack.c.h.b16 %v629
    %v2387 = vunpack.c.l.b16 %v630
    %v2388 = vunpack.c.l.b16 %v631
    %v2389 = vunpack.c.h.b16 %v631
    %v2390 = vunpack.c.l.b16 %v632
    %v2391 = vunpack.c.h.b16 %v632
    %v2392 = vunpack.c.l.b16 %v633
    %v2393 = vunpack.c.h.b16 %v633
    %v2394 = vunpack.c.l.b16 %v634
    %v2395 = vunpack.c.h.b16 %v634
    %v2396 = vunpack.c.l.b16 %v635
    %v2397 = vunpack.c.l.b16 %v636
    %v2398 = vunpack.c.h.b16 %v636
    %v2399 = vunpack.c.l.b16 %v637
    %v2400 = vunpack.c.h.b16 %v637
    %v2401 = vunpack.c.l.b16 %v638
    %v2402 = vunpack.c.h.b16 %v638
    %v2403 = vunpack.c.l.b16 %v639
    %v2404 = vunpack.c.h.b16 %v639
    %v2405 = vunpack.c.l.b16 %v640
    %v2406 = vunpack.c.l.b16 %v641
    %v2407 = vunpack.c.h.b16 %v641
    %v2408 = vunpack.c.l.b16 %v642
    %v2409 = vunpack.c.h.b16 %v642
    %v2410 = vunpack.c.l.b16 %v643
    %v2411 = vunpack.c.h.b16 %v643
    %v2412 = vunpack.c.l.b16 %v644
    %v2413 = vunpack.c.h.b16 %v644
    %v2414 = vunpack.c.l.b16 %v645
    %v2415 = vunpack.c.l.b16 %v646
    %v2416 = vunpack.c.h.b16 %v646
    %v2417 = vunpack.c.l.b16 %v647
    %v2418 = vunpack.c.h.b16 %v647
    %v2419 = vunpack.c.l.b16 %v648
    %v2420 = vunpack.c.h.b16 %v648
    %v2421 = vunpack.c.l.b16 %v649
    %v2422 = vunpack.c.h.b16 %v649
    %v2423 = vunpack.c.l.b16 %v650
    %v2424 = vunpack.c.l.b16 %v651
    %v2425 = vunpack.c.h.b16 %v651
    %v2426 = vunpack.c.l.b16 %v652
    %v2427 = vunpack.c.h.b16 %v652
    %v2428 = vunpack.c.l.b16 %v653
    %v2429 = vunpack.c.h.b16 %v653
    %v2430 = vunpack.c.l.b16 %v654
    %v2431 = vunpack.c.h.b16 %v654
    %v2432 = vunpack.c.l.b16 %v655
    %v2433 = vunpack.c.l.b16 %v656
    %v2434 = vunpack.c.h.b16 %v656
    %v2435 = vunpack.c.l.b16 %v657
    %v2436 = vunpack.c.h.b16 %v657
    %v2437 = vunpack.c.l.b16 %v658
    %v2438 = vunpack.c.h.b16 %v658
    %v2439 = vunpack.c.l.b16 %v659
    %v2440 = vunpack.c.h.b16 %v659
    %v2441 = vunpack.c.l.b16 %v660
    %v2442 = vunpack.c.l.b16 %v661
    %v2443 = vunpack.c.h.b16 %v661
    %v2444 = vunpack.c.l.b16 %v662
    %v2445 = vunpack.c.h.b16 %v662
    %v2446 = vunpack.c.l.b16 %v663
    %v2447 = vunpack.c.h.b16 %v663
    %v2448 = vunpack.c.l.b16 %v664
    %v2449 = vunpack.c.h.b16 %v664
    %v2450 = vunpack.c.l.b16 %v665
    %v2451 = vunpack.c.l.b16 %v666
    %v2452 = vunpack.c.h.b16 %v666
    %v2453 = vunpack.c.l.b16 %v667
    %v2454 = vunpack.c.h.b16 %v667
    %v2455 = vunpack.c.l.b16 %v668
    %v2456 = vunpack.c.h.b16 %v668
    %v2457 = vunpack.c.l.b16 %v669
    %v2458 = vunpack.c.h.b16 %v669
    %v2459 = vunpack.c.l.b16 %v670
    %v2460 = vunpack.c.l.b16 %v671
    %v2461 = vunpack.c.h.b16 %v671
    %v2462 = vunpack.c.l.b16 %v672
    %v2463 = vunpack.c.h.b16 %v672
    %v2464 = vunpack.c.l.b16 %v673
    %v2465 = vunpack.c.h.b16 %v673
    %v2466 = vunpack.c.l.b16 %v674
    %v2467 = vunpack.c.h.b16 %v674
    %v2468 = vunpack.c.l.b16 %v675
    %v2469 = vunpack.c.l.b16 %v676
    %v2470 = vunpack.c.h.b16 %v676
    %v2471 = vunpack.c.l.b16 %v677
    %v2472 = vunpack.c.h.b16 %v677
    %v2473 = vunpack.c.l.b16 %v678
    %v2474 = vunpack.c.h.b16 %v678
    %v2475 = vunpack.c.l.b16 %v679
    %v2476 = vunpack.c.h.b16 %v679
    %v2477 = vunpack.c.l.b16 %v680
    %v2478 = vunpack.c.l.b16 %v681
    %v2479 = vunpack.c.h.b16 %v681
    %v2480 = vunpack.c.l.b16 %v682
    %v2481 = vunpack.c.h.b16 %v682
    %v2482 = vunpack.c.l.b16 %v683
    %v2483 = vunpack.c.h.b16 %v683
    %v2484 = vunpack.c.l.b16 %v684
    %v2485 = vunpack.c.h.b16 %v684
    %v2486 = vunpack.c.l.b16 %v685
    %v2487 = vunpack.c.l.b16 %v686
    %v2488 = vunpack.c.h.b16 %v686
    %v2489 = vunpack.c.l.b16 %v687
    %v2490 = vunpack.c.h.b16 %v687
    %v2491 = vunpack.c.l.b16 %v688
    %v2492 = vunpack.c.h.b16 %v688
    %v2493 = vunpack.c.l.b16 %v689
    %v2494 = vunpack.c.h.b16 %v689
    %v2495 = vunpack.c.l.b16 %v690
    %v2496 = vunpack.c.l.b16 %v691
    %v2497 = vunpack.c.h.b16 %v691
    %v2498 = vunpack.c.l.b16 %v692
    %v2499 = vunpack.c.h.b16 %v692
    %v2500 = vunpack.c.l.b16 %v693
    %v2501 = vunpack.c.h.b16 %v693
    %v2502 = vunpack.c.l.b16 %v694
    %v2503 = vunpack.c.h.b16 %v694
    %v2504 = vunpack.c.l.b16 %v695
    %v2505 = vunpack.c.l.b16 %v696
    %v2506 = vunpack.c.h.b16 %v696
    %v2507 = vunpack.c.l.b16 %v697
    %v2508 = vunpack.c.h.b16 %v697
    %v2509 = vunpack.c.l.b16 %v698
    %v2510 = vunpack.c.h.b16 %v698
    %v2511 = vunpack.c.l.b16 %v699
    %v2512 = vunpack.c.h.b16 %v699
    %v2513 = vunpack.c.l.b16 %v700
    %v2514 = vunpack.c.l.b16 %v701
    %v2515 = vunpack.c.h.b16 %v701
    %v2516 = vunpack.c.l.b16 %v702
    %v2517 = vunpack.c.h.b16 %v702
    %v2518 = vunpack.c.l.b16 %v703
    %v2519 = vunpack.c.h.b16 %v703
    %v2520 = vunpack.c.l.b16 %v704
    %v2521 = vunpack.c.h.b16 %v704
    %v2522 = vunpack.c.l.b16 %v705
    %v2523 = vunpack.c.l.b16 %v706
    %v2524 = vunpack.c.h.b16 %v706
    %v2525 = vunpack.c.l.b16 %v707
    %v2526 = vunpack.c.h.b16 %v707
    %v2527 = vunpack.c.l.b16 %v708
    %v2528 = vunpack.c.h.b16 %v708
    %v2529 = vunpack.c.l.b16 %v709
    %v2530 = vunpack.c.h.b16 %v709
    %v2531 = vunpack.c.l.b16 %v710
    %v2532 = vunpack.c.l.b16 %v711
    %v2533 = vunpack.c.h.b16 %v711
    %v2534 = vunpack.c.l.b16 %v712
    %v2535 = vunpack.c.h.b16 %v712
    %v2536 = vunpack.c.l.b16 %v713
    %v2537 = vunpack.c.h.b16 %v713
    %v2538 = vunpack.c.l.b16 %v714
    %v2539 = vunpack.c.h.b16 %v714
    %v2540 = vunpack.c.l.b16 %v715
    %v2541 = vunpack.c.l.b16 %v716
    %v2542 = vunpack.c.h.b16 %v716
    %v2543 = vunpack.c.l.b16 %v717
    %v2544 = vunpack.c.h.b16 %v717
    %v2545 = vunpack.c.l.b16 %v718
    %v2546 = vunpack.c.h.b16 %v718
    %v2547 = vunpack.c.l.b16 %v719
    %v2548 = vunpack.c.h.b16 %v719
    %v2549 = vunpack.c.l.b16 %v720
    %v2550 = vunpack.c.l.b16 %v721
    %v2551 = vunpack.c.h.b16 %v721
    %v2552 = vunpack.c.l.b16 %v722
    %v2553 = vunpack.c.h.b16 %v722
    %v2554 = vunpack.c.l.b16 %v723
    %v2555 = vunpack.c.h.b16 %v723
    %v2556 = vunpack.c.l.b16 %v724
    %v2557 = vunpack.c.h.b16 %v724
    %v2558 = vunpack.c.l.b16 %v725
    %v2559 = vunpack.c.l.b16 %v726
    %v2560 = vunpack.c.h.b16 %v726
    %v2561 = vunpack.c.l.b16 %v727
    %v2562 = vunpack.c.h.b16 %v727
    %v2563 = vunpack.c.l.b16 %v728
    %v2564 = vunpack.c.h.b16 %v728
    %v2565 = vunpack.c.l.b16 %v729
    %v2566 = vunpack.c.h.b16 %v729
    %v2567 = vunpack.c.l.b16 %v730
    %v2568 = vunpack.c.l.b16 %v731
    %v2569 = vunpack.c.h.b16 %v731
    %v2570 = vunpack.c.l.b16 %v732
    %v2571 = vunpack.c.h.b16 %v732
    %v2572 = vunpack.c.l.b16 %v733
    %v2573 = vunpack.c.h.b16 %v733
    %v2574 = vunpack.c.l.b16 %v734
    %v2575 = vunpack.c.h.b16 %v734
    %v2576 = vunpack.c.l.b16 %v735
    %v2577 = vunpack.c.l.b16 %v736
    %v2578 = vunpack.c.h.b16 %v736
    %v2579 = vunpack.c.l.b16 %v737
    %v2580 = vunpack.c.h.b16 %v737
    %v2581 = vunpack.c.l.b16 %v738
    %v2582 = vunpack.c.h.b16 %v738
    %v2583 = vunpack.c.l.b16 %v739
    %v2584 = vunpack.c.h.b16 %v739
    %v2585 = vunpack.c.l.b16 %v740
    %v2586 = vunpack.c.l.b16 %v741
    %v2587 = vunpack.c.h.b16 %v741
    %v2588 = vunpack.c.l.b16 %v742
    %v2589 = vunpack.c.h.b16 %v742
    %v2590 = vunpack.c.l.b16 %v743
    %v2591 = vunpack.c.h.b16 %v743
    %v2592 = vunpack.c.l.b16 %v744
    %v2593 = vunpack.c.h.b16 %v744
    %v2594 = vunpack.c.l.b16 %v745
    %v2595 = vunpack.c.l.b16 %v746
    %v2596 = vunpack.c.h.b16 %v746
    %v2597 = vunpack.c.l.b16 %v747
    %v2598 = vunpack.c.h.b16 %v747
    %v2599 = vunpack.c.l.b16 %v748
    %v2600 = vunpack.c.h.b16 %v748
    %v2601 = vunpack.c.l.b16 %v749
    %v2602 = vunpack.c.h.b16 %v749
    %v2603 = vunpack.c.l.b16 %v750
    %v2604 = vunpack.c.l.b16 %v751
    %v2605 = vunpack.c.h.b16 %v751
    %v2606 = vunpack.c.l.b16 %v752
    %v2607 = vunpack.c.h.b16 %v752
    %v2608 = vunpack.c.l.b16 %v753
    %v2609 = vunpack.c.h.b16 %v753
    %v2610 = vunpack.c.l.b16 %v754
    %v2611 = vunpack.c.h.b16 %v754
    %v2612 = vunpack.c.l.b16 %v755
    %v2613 = vunpack.c.l.b16 %v756
    %v2614 = vunpack.c.h.b16 %v756
    %v2615 = vunpack.c.l.b16 %v757
    %v2616 = vunpack.c.h.b16 %v757
    %v2617 = vunpack.c.l.b16 %v758
    %v2618 = vunpack.c.h.b16 %v758
    %v2619 = vunpack.c.l.b16 %v759
    %v2620 = vunpack.c.h.b16 %v759
    %v2621 = vunpack.c.l.b16 %v760
    %v2622 = vunpack.c.l.b16 %v761
    %v2623 = vunpack.c.h.b16 %v761
    %v2624 = vunpack.c.l.b16 %v762
    %v2625 = vunpack.c.h.b16 %v762
    %v2626 = vunpack.c.l.b16 %v763
    %v2627 = vunpack.c.h.b16 %v763
    %v2628 = vunpack.c.l.b16 %v764
    %v2629 = vunpack.c.h.b16 %v764
    %v2630 = vunpack.c.l.b16 %v765
    %v2631 = vunpack.c.l.b16 %v766
    %v2632 = vunpack.c.h.b16 %v766
    %v2633 = vunpack.c.l.b16 %v767
    %v2634 = vunpack.c.h.b16 %v767
    %v2635 = vunpack.c.l.b16 %v768
    %v2636 = vunpack.c.h.b16 %v768
    %v2637 = vunpack.c.l.b16 %v769
    %v2638 = vunpack.c.h.b16 %v769
    %v2639 = vunpack.c.l.b16 %v770
    %v2640 = vpack.c.b16 %v1497, %v1488
    %v2641 = vpack.c.b16 %v1498, %v1489
    %v2642 = vpack.c.b16 %v1499, %v1490
    %v2643 = vpack.c.b16 %v1500, %v1491
    %v2644 = vpack.c.b16 %v1501, %v1492
    %v2645 = vpack.c.b16 %v1502, %v1493
    %v2646 = vpack.c.b16 %v1503, %v1494
    %v2647 = vpack.c.b16 %v1504, %v1495
    %v2648 = vpack.c.b16 %v1505, %v1496
    %v2649 = vpack.c.b16 %v1515, %v1506
    %v2650 = vpack.c.b16 %v1516, %v1507
    %v2651 = vpack.c.b16 %v1517, %v1508
    %v2652 = vpack.c.b16 %v1518, %v1509
    %v2653 = vpack.c.b16 %v1519, %v1510
    %v2654 = vpack.c.b16 %v1520, %v1511
    %v2655 = vpack.c.b16 %v1521, %v1512
    %v2656 = vpack.c.b16 %v1522, %v1513
    %v2657 = vpack.c.b16 %v1523, %v1514
    %v2658 = vpack.c.b16 %v1533, %v1524
    %v2659 = vpack.c.b16 %v1534, %v1525
    %v2660 = vpack.c.b16 %v1535, %v1526
    %v2661 = vpack.c.b16 %v1536, %v1527
    %v2662 = vpack.c.b16 %v1537, %v1528
    %v2663 = vpack.c.b16 %v1538, %v1529
    %v2664 = vpack.c.b16 %v1539, %v1530
    %v2665 = vpack.c.b16 %v1540, %v1531
    %v2666 = vpack.c.b16 %v1541, %v1532
    %v2667 = vpack.c.b16 %v1551, %v1542
    %v2668 = vpack.c.b16 %v1552, %v1543
    %v2669 = vpack.c.b16 %v1553, %v1544
    %v2670 = vpack.c.b16 %v1554, %v1545
    %v2671 = vpack.c.b16 %v1555, %v1546
    %v2672 = vpack.c.b16 %v1556, %v1547
    %v2673 = vpack.c.b16 %v1557, %v1548
    %v2674 = vpack.c.b16 %v1558, %v1549
    %v2675 = vpack.c.b16 %v1559, %v1550
    %v2676 = vpack.c.b16 %v1569, %v1560
    %v2677 = vpack.c.b16 %v1570, %v1561
    %v2678 = vpack.c.b16 %v1571, %v1562
    %v2679 = vpack.c.b16 %v1572, %v1563
    %v2680 = vpack.c.b16 %v1573, %v1564
    %v2681 = vpack.c.b16 %v1574, %v1565
    %v2682 = vpack.c.b16 %v1575, %v1566
    %v2683 = vpack.c.b16 %v1576, %v1567
    %v2684 = vpack.c.b16 %v1577, %v1568
    %v2685 = vpack.c.b16 %v1587, %v1578
    %v2686 = vpack.c.b16 %v1588, %v1579
    %v2687 = vpack.c.b16 %v1589, %v1580
    %v2688 = vpack.c.b16 %v1590, %v1581
    %v2689 = vpack.c.b16 %v1591, %v1582
    %v2690 = vpack.c.b16 %v1592, %v1583
    %v2691 = vpack.c.b16 %v1593, %v1584
    %v2692 = vpack.c.b16 %v1594, %v1585
    %v2693 = vpack.c.b16 %v1595, %v1586
    %v2694 = vpack.c.b16 %v1605, %v1596
    %v2695 = vpack.c.b16 %v1606, %v1597
    %v2696 = vpack.c.b16 %v1607, %v1598
    %v2697 = vpack.c.b16 %v1608, %v1599
    %v2698 = vpack.c.b16 %v1609, %v1600
    %v2699 = vpack.c.b16 %v1610, %v1601
    %v2700 = vpack.c.b16 %v1611, %v1602
    %v2701 = vpack.c.b16 %v1612, %v1603
    %v2702 = vpack.c.b16 %v1613, %v1604
    %v2703 = vpack.c.b16 %v1623, %v1614
    %v2704 = vpack.c.b16 %v1624, %v1615
    %v2705 = vpack.c.b16 %v1625, %v1616
    %v2706 = vpack.c.b16 %v1626, %v1617
    %v2707 = vpack.c.b16 %v1627, %v1618
    %v2708 = vpack.c.b16 %v1628, %v1619
    %v2709 = vpack.c.b16 %v1629, %v1620
    %v2710 = vpack.c.b16 %v1630, %v1621
    %v2711 = vpack.c.b16 %v1631, %v1622
    %v2712 = vpack.c.b16 %v1641, %v1632
    %v2713 = vpack.c.b16 %v1642, %v1633
    %v2714 = vpack.c.b16 %v1643, %v1634
    %v2715 = vpack.c.b16 %v1644, %v1635
    %v2716 = vpack.c.b16 %v1645, %v1636
    %v2717 = vpack.c.b16 %v1646, %v1637
    %v2718 = vpack.c.b16 %v1647, %v1638
    %v2719 = vpack.c.b16 %v1648, %v1639
    %v2720 = vpack.c.b16 %v1649, %v1640
    %v2721 = vpack.c.b16 %v1659, %v1650
    %v2722 = vpack.c.b16 %v1660, %v1651
    %v2723 = vpack.c.b16 %v1661, %v1652
    %v2724 = vpack.c.b16 %v1662, %v1653
    %v2725 = vpack.c.b16 %v1663, %v1654
    %v2726 = vpack.c.b16 %v1664, %v1655
    %v2727 = vpack.c.b16 %v1665, %v1656
    %v2728 = vpack.c.b16 %v1666, %v1657
    %v2729 = vpack.c.b16 %v1667, %v1658
    %v2730 = vpack.c.b16 %v1677, %v1668
    %v2731 = vpack.c.b16 %v1678, %v1669
    %v2732 = vpack.c.b16 %v1679, %v1670
    %v2733 = vpack.c.b16 %v1680, %v1671
    %v2734 = vpack.c.b16 %v1681, %v1672
    %v2735 = vpack.c.b16 %v1682, %v1673
    %v2736 = vpack.c.b16 %v1683, %v1674
    %v2737 = vpack.c.b16 %v1684, %v1675
    %v2738 = vpack.c.b16 %v1685, %v1676
    %v2739 = vpack.c.b16 %v1695, %v1686
    %v2740 = vpack.c.b16 %v1696, %v1687
    %v2741 = vpack.c.b16 %v1697, %v1688
    %v2742 = vpack.c.b16 %v1698, %v1689
    %v2743 = vpack.c.b16 %v1699, %v1690
    %v2744 = vpack.c.b16 %v1700, %v1691
    %v2745 = vpack.c.b16 %v1701, %v1692
    %v2746 = vpack.c.b16 %v1702, %v1693
    %v2747 = vpack.c.b16 %v1703, %v1694
    %v2748 = vpack.c.b16 %v1713, %v1704
    %v2749 = vpack.c.b16 %v1714, %v1705
    %v2750 = vpack.c.b16 %v1715, %v1706
    %v2751 = vpack.c.b16 %v1716, %v1707
    %v2752 = vpack.c.b16 %v1717, %v1708
    %v2753 = vpack.c.b16 %v1718, %v1709
    %v2754 = vpack.c.b16 %v1719, %v1710
    %v2755 = vpack.c.b16 %v1720, %v1711
    %v2756 = vpack.c.b16 %v1721, %v1712
    %v2757 = vpack.c.b16 %v1731, %v1722
    %v2758 = vpack.c.b16 %v1732, %v1723
    %v2759 = vpack.c.b16 %v1733, %v1724
    %v2760 = vpack.c.b16 %v1734, %v1725
    %v2761 = vpack.c.b16 %v1735, %v1726
    %v2762 = vpack.c.b16 %v1736, %v1727
    %v2763 = vpack.c.b16 %v1737, %v1728
    %v2764 = vpack.c.b16 %v1738, %v1729
    %v2765 = vpack.c.b16 %v1739, %v1730
    %v2766 = vpack.c.b16 %v1749, %v1740
    %v2767 = vpack.c.b16 %v1750, %v1741
    %v2768 = vpack.c.b16 %v1751, %v1742
    %v2769 = vpack.c.b16 %v1752, %v1743
    %v2770 = vpack.c.b16 %v1753, %v1744
    %v2771 = vpack.c.b16 %v1754, %v1745
    %v2772 = vpack.c.b16 %v1755, %v1746
    %v2773 = vpack.c.b16 %v1756, %v1747
    %v2774 = vpack.c.b16 %v1757, %v1748
    %v2775 = vpack.c.b16 %v1767, %v1758
    %v2776 = vpack.c.b16 %v1768, %v1759
    %v2777 = vpack.c.b16 %v1769, %v1760
    %v2778 = vpack.c.b16 %v1770, %v1761
    %v2779 = vpack.c.b16 %v1771, %v1762
    %v2780 = vpack.c.b16 %v1772, %v1763
    %v2781 = vpack.c.b16 %v1773, %v1764
    %v2782 = vpack.c.b16 %v1774, %v1765
    %v2783 = vpack.c.b16 %v1775, %v1766
    %v2784 = vpack.c.b16 %v1785, %v1776
    %v2785 = vpack.c.b16 %v1786, %v1777
    %v2786 = vpack.c.b16 %v1787, %v1778
    %v2787 = vpack.c.b16 %v1788, %v1779
    %v2788 = vpack.c.b16 %v1789, %v1780
    %v2789 = vpack.c.b16 %v1790, %v1781
    %v2790 = vpack.c.b16 %v1791, %v1782
    %v2791 = vpack.c.b16 %v1792, %v1783
    %v2792 = vpack.c.b16 %v1793, %v1784
    %v2793 = vpack.c.b16 %v1803, %v1794
    %v2794 = vpack.c.b16 %v1804, %v1795
    %v2795 = vpack.c.b16 %v1805, %v1796
    %v2796 = vpack.c.b16 %v1806, %v1797
    %v2797 = vpack.c.b16 %v1807, %v1798
    %v2798 = vpack.c.b16 %v1808, %v1799
    %v2799 = vpack.c.b16 %v1809, %v1800
    %v2800 = vpack.c.b16 %v1810, %v1801
    %v2801 = vpack.c.b16 %v1811, %v1802
    %v2802 = vpack.c.b16 %v1821, %v1812
    %v2803 = vpack.c.b16 %v1822, %v1813
    %v2804 = vpack.c.b16 %v1823, %v1814
    %v2805 = vpack.c.b16 %v1824, %v1815
    %v2806 = vpack.c.b16 %v1825, %v1816
    %v2807 = vpack.c.b16 %v1826, %v1817
    %v2808 = vpack.c.b16 %v1827, %v1818
    %v2809 = vpack.c.b16 %v1828, %v1819
    %v2810 = vpack.c.b16 %v1829, %v1820
    %v2811 = vpack.c.b16 %v1839, %v1830
    %v2812 = vpack.c.b16 %v1840, %v1831
    %v2813 = vpack.c.b16 %v1841, %v1832
    %v2814 = vpack.c.b16 %v1842, %v1833
    %v2815 = vpack.c.b16 %v1843, %v1834
    %v2816 = vpack.c.b16 %v1844, %v1835
    %v2817 = vpack.c.b16 %v1845, %v1836
    %v2818 = vpack.c.b16 %v1846, %v1837
    %v2819 = vpack.c.b16 %v1847, %v1838
    %v2820 = vpack.c.b16 %v1857, %v1848
    %v2821 = vpack.c.b16 %v1858, %v1849
    %v2822 = vpack.c.b16 %v1859, %v1850
    %v2823 = vpack.c.b16 %v1860, %v1851
    %v2824 = vpack.c.b16 %v1861, %v1852
    %v2825 = vpack.c.b16 %v1862, %v1853
    %v2826 = vpack.c.b16 %v1863, %v1854
    %v2827 = vpack.c.b16 %v1864, %v1855
    %v2828 = vpack.c.b16 %v1865, %v1856
    %v2829 = vpack.c.b16 %v1875, %v1866
    %v2830 = vpack.c.b16 %v1876, %v1867
    %v2831 = vpack.c.b16 %v1877, %v1868
    %v2832 = vpack.c.b16 %v1878, %v1869
    %v2833 = vpack.c.b16 %v1879, %v1870
    %v2834 = vpack.c.b16 %v1880, %v1871
    %v2835 = vpack.c.b16 %v1881, %v1872
    %v2836 = vpack.c.b16 %v1882, %v1873
    %v2837 = vpack.c.b16 %v1883, %v1874
    %v2838 = vpack.c.b16 %v1893, %v1884
    %v2839 = vpack.c.b16 %v1894, %v1885
    %v2840 = vpack.c.b16 %v1895, %v1886
    %v2841 = vpack.c.b16 %v1896, %v1887
    %v2842 = vpack.c.b16 %v1897, %v1888
    %v2843 = vpack.c.b16 %v1898, %v1889
    %v2844 = vpack.c.b16 %v1899, %v1890
    %v2845 = vpack.c.b16 %v1900, %v1891
    %v2846 = vpack.c.b16 %v1901, %v1892
    %v2847 = vpack.c.b16 %v1911, %v1902
    %v2848 = vpack.c.b16 %v1912, %v1903
    %v2849 = vpack.c.b16 %v1913, %v1904
    %v2850 = vpack.c.b16 %v1914, %v1905
    %v2851 = vpack.c.b16 %v1915, %v1906
    %v2852 = vpack.c.b16 %v1916, %v1907
    %v2853 = vpack.c.b16 %v1917, %v1908
    %v2854 = vpack.c.b16 %v1918, %v1909
    %v2855 = vpack.c.b16 %v1919, %v1910
    %v2856 = vpack.c.b16 %v1929, %v1920
    %v2857 = vpack.c.b16 %v1930, %v1921
    %v2858 = vpack.c.b16 %v1931, %v1922
    %v2859 = vpack.c.b16 %v1932, %v1923
    %v2860 = vpack.c.b16 %v1933, %v1924
    %v2861 = vpack.c.b16 %v1934, %v1925
    %v2862 = vpack.c.b16 %v1935, %v1926
    %v2863 = vpack.c.b16 %v1936, %v1927
    %v2864 = vpack.c.b16 %v1937, %v1928
    %v2865 = vpack.c.b16 %v1947, %v1938
    %v2866 = vpack.c.b16 %v1948, %v1939
    %v2867 = vpack.c.b16 %v1949, %v1940
    %v2868 = vpack.c.b16 %v1950, %v1941
    %v2869 = vpack.c.b16 %v1951, %v1942
    %v2870 = vpack.c.b16 %v1952, %v1943
    %v2871 = vpack.c.b16 %v1953, %v1944
    %v2872 = vpack.c.b16 %v1954, %v1945
    %v2873 = vpack.c.b16 %v1955, %v1946
    %v2874 = vpack.c.b16 %v1965, %v1956
    %v2875 = vpack.c.b16 %v1966, %v1957
    %v2876 = vpack.c.b16 %v1967, %v1958
    %v2877 = vpack.c.b16 %v1968, %v1959
    %v2878 = vpack.c.b16 %v1969, %v1960
    %v2879 = vpack.c.b16 %v1970, %v1961
    %v2880 = vpack.c.b16 %v1971, %v1962
    %v2881 = vpack.c.b16 %v1972, %v1963
    %v2882 = vpack.c.b16 %v1973, %v1964
    %v2883 = vpack.c.b16 %v1983, %v1974
    %v2884 = vpack.c.b16 %v1984, %v1975
    %v2885 = vpack.c.b16 %v1985, %v1976
    %v2886 = vpack.c.b16 %v1986, %v1977
    %v2887 = vpack.c.b16 %v1987, %v1978
    %v2888 = vpack.c.b16 %v1988, %v1979
    %v2889 = vpack.c.b16 %v1989, %v1980
    %v2890 = vpack.c.b16 %v1990, %v1981
    %v2891 = vpack.c.b16 %v1991, %v1982
    %v2892 = vpack.c.b16 %v2001, %v1992
    %v2893 = vpack.c.b16 %v2002, %v1993
    %v2894 = vpack.c.b16 %v2003, %v1994
    %v2895 = vpack.c.b16 %v2004, %v1995
    %v2896 = vpack.c.b16 %v2005, %v1996
    %v2897 = vpack.c.b16 %v2006, %v1997
    %v2898 = vpack.c.b16 %v2007, %v1998
    %v2899 = vpack.c.b16 %v2008, %v1999
    %v2900 = vpack.c.b16 %v2009, %v2000
    %v2901 = vpack.c.b16 %v2019, %v2010
    %v2902 = vpack.c.b16 %v2020, %v2011
    %v2903 = vpack.c.b16 %v2021, %v2012
    %v2904 = vpack.c.b16 %v2022, %v2013
    %v2905 = vpack.c.b16 %v2023, %v2014
    %v2906 = vpack.c.b16 %v2024, %v2015
    %v2907 = vpack.c.b16 %v2025, %v2016
    %v2908 = vpack.c.b16 %v2026, %v2017
    %v2909 = vpack.c.b16 %v2027, %v2018
    %v2910 = vpack.c.b16 %v2037, %v2028
    %v2911 = vpack.c.b16 %v2038, %v2029
    %v2912 = vpack.c.b16 %v2039, %v2030
    %v2913 = vpack.c.b16 %v2040, %v2031
    %v2914 = vpack.c.b16 %v2041, %v2032
    %v2915 = vpack.c.b16 %v2042, %v2033
    %v2916 = vpack.c.b16 %v2043, %v2034
    %v2917 = vpack.c.b16 %v2044, %v2035
    %v2918 = vpack.c.b16 %v2045, %v2036
    %v2919 = vpack.c.b16 %v2055, %v2046
    %v2920 = vpack.c.b16 %v2056, %v2047
    %v2921 = vpack.c.b16 %v2057, %v2048
    %v2922 = vpack.c.b16 %v2058, %v2049
    %v2923 = vpack.c.b16 %v2059, %v2050
    %v2924 = vpack.c.b16 %v2060, %v2051
    %v2925 = vpack.c.b16 %v2061, %v2052
    %v2926 = vpack.c.b16 %v2062, %v2053
    %v2927 = vpack.c.b16 %v2063, %v2054
    %v2928 = vpack.c.b16 %v2073, %v2064
    %v2929 = vpack.c.b16 %v2074, %v2065
    %v2930 = vpack.c.b16 %v2075, %v2066
    %v2931 = vpack.c.b16 %v2076, %v2067
    %v2932 = vpack.c.b16 %v2077, %v2068
    %v2933 = vpack.c.b16 %v2078, %v2069
    %v2934 = vpack.c.b16 %v2079, %v2070
    %v2935 = vpack.c.b16 %v2080, %v2071
    %v2936 = vpack.c.b16 %v2081, %v2072
    %v2937 = vpack.c.b16 %v2091, %v2082
    %v2938 = vpack.c.b16 %v2092, %v2083
    %v2939 = vpack.c.b16 %v2093, %v2084
    %v2940 = vpack.c.b16 %v2094, %v2085
    %v2941 = vpack.c.b16 %v2095, %v2086
    %v2942 = vpack.c.b16 %v2096, %v2087
    %v2943 = vpack.c.b16 %v2097, %v2088
    %v2944 = vpack.c.b16 %v2098, %v2089
    %v2945 = vpack.c.b16 %v2099, %v2090
    %v2946 = vpack.c.b16 %v2109, %v2100
    %v2947 = vpack.c.b16 %v2110, %v2101
    %v2948 = vpack.c.b16 %v2111, %v2102
    %v2949 = vpack.c.b16 %v2112, %v2103
    %v2950 = vpack.c.b16 %v2113, %v2104
    %v2951 = vpack.c.b16 %v2114, %v2105
    %v2952 = vpack.c.b16 %v2115, %v2106
    %v2953 = vpack.c.b16 %v2116, %v2107
    %v2954 = vpack.c.b16 %v2117, %v2108
    %v2955 = vpack.c.b16 %v2127, %v2118
    %v2956 = vpack.c.b16 %v2128, %v2119
    %v2957 = vpack.c.b16 %v2129, %v2120
    %v2958 = vpack.c.b16 %v2130, %v2121
    %v2959 = vpack.c.b16 %v2131, %v2122
    %v2960 = vpack.c.b16 %v2132, %v2123
    %v2961 = vpack.c.b16 %v2133, %v2124
    %v2962 = vpack.c.b16 %v2134, %v2125
    %v2963 = vpack.c.b16 %v2135, %v2126
    %v2964 = vpack.c.b16 %v2145, %v2136
    %v2965 = vpack.c.b16 %v2146, %v2137
    %v2966 = vpack.c.b16 %v2147, %v2138
    %v2967 = vpack.c.b16 %v2148, %v2139
    %v2968 = vpack.c.b16 %v2149, %v2140
    %v2969 = vpack.c.b16 %v2150, %v2141
    %v2970 = vpack.c.b16 %v2151, %v2142
    %v2971 = vpack.c.b16 %v2152, %v2143
    %v2972 = vpack.c.b16 %v2153, %v2144
    %v2973 = vpack.c.b16 %v2163, %v2154
    %v2974 = vpack.c.b16 %v2164, %v2155
    %v2975 = vpack.c.b16 %v2165, %v2156
    %v2976 = vpack.c.b16 %v2166, %v2157
    %v2977 = vpack.c.b16 %v2167, %v2158
    %v2978 = vpack.c.b16 %v2168, %v2159
    %v2979 = vpack.c.b16 %v2169, %v2160
    %v2980 = vpack.c.b16 %v2170, %v2161
    %v2981 = vpack.c.b16 %v2171, %v2162
    %v2982 = vpack.c.b16 %v2181, %v2172
    %v2983 = vpack.c.b16 %v2182, %v2173
    %v2984 = vpack.c.b16 %v2183, %v2174
    %v2985 = vpack.c.b16 %v2184, %v2175
    %v2986 = vpack.c.b16 %v2185, %v2176
    %v2987 = vpack.c.b16 %v2186, %v2177
    %v2988 = vpack.c.b16 %v2187, %v2178
    %v2989 = vpack.c.b16 %v2188, %v2179
    %v2990 = vpack.c.b16 %v2189, %v2180
    %v2991 = vpack.c.b16 %v2199, %v2190
    %v2992 = vpack.c.b16 %v2200, %v2191
    %v2993 = vpack.c.b16 %v2201, %v2192
    %v2994 = vpack.c.b16 %v2202, %v2193
    %v2995 = vpack.c.b16 %v2203, %v2194
    %v2996 = vpack.c.b16 %v2204, %v2195
    %v2997 = vpack.c.b16 %v2205, %v2196
    %v2998 = vpack.c.b16 %v2206, %v2197
    %v2999 = vpack.c.b16 %v2207, %v2198
    %v3000 = vpack.c.b16 %v2217, %v2208
    %v3001 = vpack.c.b16 %v2218, %v2209
    %v3002 = vpack.c.b16 %v2219, %v2210
    %v3003 = vpack.c.b16 %v2220, %v2211
    %v3004 = vpack.c.b16 %v2221, %v2212
    %v3005 = vpack.c.b16 %v2222, %v2213
    %v3006 = vpack.c.b16 %v2223, %v2214
    %v3007 = vpack.c.b16 %v2224, %v2215
    %v3008 = vpack.c.b16 %v2225, %v2216
    %v3009 = vpack.c.b16 %v2235, %v2226
    %v3010 = vpack.c.b16 %v2236, %v2227
    %v3011 = vpack.c.b16 %v2237, %v2228
    %v3012 = vpack.c.b16 %v2238, %v2229
    %v3013 = vpack.c.b16 %v2239, %v2230
    %v3014 = vpack.c.b16 %v2240, %v2231
    %v3015 = vpack.c.b16 %v2241, %v2232
    %v3016 = vpack.c.b16 %v2242, %v2233
    %v3017 = vpack.c.b16 %v2243, %v2234
    %v3018 = vpack.c.b16 %v2253, %v2244
    %v3019 = vpack.c.b16 %v2254, %v2245
    %v3020 = vpack.c.b16 %v2255, %v2246
    %v3021 = vpack.c.b16 %v2256, %v2247
    %v3022 = vpack.c.b16 %v2257, %v2248
    %v3023 = vpack.c.b16 %v2258, %v2249
    %v3024 = vpack.c.b16 %v2259, %v2250
    %v3025 = vpack.c.b16 %v2260, %v2251
    %v3026 = vpack.c.b16 %v2261, %v2252
    %v3027 = vpack.c.b16 %v2271, %v2262
    %v3028 = vpack.c.b16 %v2272, %v2263
    %v3029 = vpack.c.b16 %v2273, %v2264
    %v3030 = vpack.c.b16 %v2274, %v2265
    %v3031 = vpack.c.b16 %v2275, %v2266
    %v3032 = vpack.c.b16 %v2276, %v2267
    %v3033 = vpack.c.b16 %v2277, %v2268
    %v3034 = vpack.c.b16 %v2278, %v2269
    %v3035 = vpack.c.b16 %v2279, %v2270
    %v3036 = vpack.c.b16 %v2289, %v2280
    %v3037 = vpack.c.b16 %v2290, %v2281
    %v3038 = vpack.c.b16 %v2291, %v2282
    %v3039 = vpack.c.b16 %v2292, %v2283
    %v3040 = vpack.c.b16 %v2293, %v2284
    %v3041 = vpack.c.b16 %v2294, %v2285
    %v3042 = vpack.c.b16 %v2295, %v2286
    %v3043 = vpack.c.b16 %v2296, %v2287
    %v3044 = vpack.c.b16 %v2297, %v2288
    %v3045 = vpack.c.b16 %v2307, %v2298
    %v3046 = vpack.c.b16 %v2308, %v2299
    %v3047 = vpack.c.b16 %v2309, %v2300
    %v3048 = vpack.c.b16 %v2310, %v2301
    %v3049 = vpack.c.b16 %v2311, %v2302
    %v3050 = vpack.c.b16 %v2312, %v2303
    %v3051 = vpack.c.b16 %v2313, %v2304
    %v3052 = vpack.c.b16 %v2314, %v2305
    %v3053 = vpack.c.b16 %v2315, %v2306
    %v3054 = vpack.c.b16 %v2325, %v2316
    %v3055 = vpack.c.b16 %v2326, %v2317
    %v3056 = vpack.c.b16 %v2327, %v2318
    %v3057 = vpack.c.b16 %v2328, %v2319
    %v3058 = vpack.c.b16 %v2329, %v2320
    %v3059 = vpack.c.b16 %v2330, %v2321
    %v3060 = vpack.c.b16 %v2331, %v2322
    %v3061 = vpack.c.b16 %v2332, %v2323
    %v3062 = vpack.c.b16 %v2333, %v2324
    %v3063 = vpack.c.b16 %v2343, %v2334
    %v3064 = vpack.c.b16 %v2344, %v2335
    %v3065 = vpack.c.b16 %v2345, %v2336
    %v3066 = vpack.c.b16 %v2346, %v2337
    %v3067 = vpack.c.b16 %v2347, %v2338
    %v3068 = vpack.c.b16 %v2348, %v2339
    %v3069 = vpack.c.b16 %v2349, %v2340
    %v3070 = vpack.c.b16 %v2350, %v2341
    %v3071 = vpack.c.b16 %v2351, %v2342
    %v3072 = vpack.c.b16 %v2361, %v2352
    %v3073 = vpack.c.b16 %v2362, %v2353
    %v3074 = vpack.c.b16 %v2363, %v2354
    %v3075 = vpack.c.b16 %v2364, %v2355
    %v3076 = vpack.c.b16 %v2365, %v2356
    %v3077 = vpack.c.b16 %v2366, %v2357
    %v3078 = vpack.c.b16 %v2367, %v2358
    %v3079 = vpack.c.b16 %v2368, %v2359
    %v3080 = vpack.c.b16 %v2369, %v2360
    %v3081 = vpack.c.b16 %v2379, %v2370
    %v3082 = vpack.c.b16 %v2380, %v2371
    %v3083 = vpack.c.b16 %v2381, %v2372
    %v3084 = vpack.c.b16 %v2382, %v2373
    %v3085 = vpack.c.b16 %v2383, %v2374
    %v3086 = vpack.c.b16 %v2384, %v2375
    %v3087 = vpack.c.b16 %v2385, %v2376
    %v3088 = vpack.c.b16 %v2386, %v2377
    %v3089 = vpack.c.b16 %v2387, %v2378
    %v3090 = vpack.c.b16 %v2397, %v2388
    %v3091 = vpack.c.b16 %v2398, %v2389
    %v3092 = vpack.c.b16 %v2399, %v2390
    %v3093 = vpack.c.b16 %v2400, %v2391
    %v3094 = vpack.c.b16 %v2401, %v2392
    %v3095 = vpack.c.b16 %v2402, %v2393
    %v3096 = vpack.c.b16 %v2403, %v2394
    %v3097 = vpack.c.b16 %v2404, %v2395
    %v3098 = vpack.c.b16 %v2405, %v2396
    %v3099 = vpack.c.b16 %v2415, %v2406
    %v3100 = vpack.c.b16 %v2416, %v2407
    %v3101 = vpack.c.b16 %v2417, %v2408
    %v3102 = vpack.c.b16 %v2418, %v2409
    %v3103 = vpack.c.b16 %v2419, %v2410
    %v3104 = vpack.c.b16 %v2420, %v2411
    %v3105 = vpack.c.b16 %v2421, %v2412
    %v3106 = vpack.c.b16 %v2422, %v2413
    %v3107 = vpack.c.b16 %v2423, %v2414
    %v3108 = vpack.c.b16 %v2433, %v2424
    %v3109 = vpack.c.b16 %v2434, %v2425
    %v3110 = vpack.c.b16 %v2435, %v2426
    %v3111 = vpack.c.b16 %v2436, %v2427
    %v3112 = vpack.c.b16 %v2437, %v2428
    %v3113 = vpack.c.b16 %v2438, %v2429
    %v3114 = vpack.c.b16 %v2439, %v2430
    %v3115 = vpack.c.b16 %v2440, %v2431
    %v3116 = vpack.c.b16 %v2441, %v2432
    %v3117 = vpack.c.b16 %v2451, %v2442
    %v3118 = vpack.c.b16 %v2452, %v2443
    %v3119 = vpack.c.b16 %v2453, %v2444
    %v3120 = vpack.c.b16 %v2454, %v2445
    %v3121 = vpack.c.b16 %v2455, %v2446
    %v3122 = vpack.c.b16 %v2456, %v2447
    %v3123 = vpack.c.b16 %v2457, %v2448
    %v3124 = vpack.c.b16 %v2458, %v2449
    %v3125 = vpack.c.b16 %v2459, %v2450
    %v3126 = vpack.c.b16 %v2469, %v2460
    %v3127 = vpack.c.b16 %v2470, %v2461
    %v3128 = vpack.c.b16 %v2471, %v2462
    %v3129 = vpack.c.b16 %v2472, %v2463
    %v3130 = vpack.c.b16 %v2473, %v2464
    %v3131 = vpack.c.b16 %v2474, %v2465
    %v3132 = vpack.c.b16 %v2475, %v2466
    %v3133 = vpack.c.b16 %v2476, %v2467
    %v3134 = vpack.c.b16 %v2477, %v2468
    %v3135 = vpack.c.b16 %v2487, %v2478
    %v3136 = vpack.c.b16 %v2488, %v2479
    %v3137 = vpack.c.b16 %v2489, %v2480
    %v3138 = vpack.c.b16 %v2490, %v2481
    %v3139 = vpack.c.b16 %v2491, %v2482
    %v3140 = vpack.c.b16 %v2492, %v2483
    %v3141 = vpack.c.b16 %v2493, %v2484
    %v3142 = vpack.c.b16 %v2494, %v2485
    %v3143 = vpack.c.b16 %v2495, %v2486
    %v3144 = vpack.c.b16 %v2505, %v2496
    %v3145 = vpack.c.b16 %v2506, %v2497
    %v3146 = vpack.c.b16 %v2507, %v2498
    %v3147 = vpack.c.b16 %v2508, %v2499
    %v3148 = vpack.c.b16 %v2509, %v2500
    %v3149 = vpack.c.b16 %v2510, %v2501
    %v3150 = vpack.c.b16 %v2511, %v2502
    %v3151 = vpack.c.b16 %v2512, %v2503
    %v3152 = vpack.c.b16 %v2513, %v2504
    %v3153 = vpack.c.b16 %v2523, %v2514
    %v3154 = vpack.c.b16 %v2524, %v2515
    %v3155 = vpack.c.b16 %v2525, %v2516
    %v3156 = vpack.c.b16 %v2526, %v2517
    %v3157 = vpack.c.b16 %v2527, %v2518
    %v3158 = vpack.c.b16 %v2528, %v2519
    %v3159 = vpack.c.b16 %v2529, %v2520
    %v3160 = vpack.c.b16 %v2530, %v2521
    %v3161 = vpack.c.b16 %v2531, %v2522
    %v3162 = vpack.c.b16 %v2541, %v2532
    %v3163 = vpack.c.b16 %v2542, %v2533
    %v3164 = vpack.c.b16 %v2543, %v2534
    %v3165 = vpack.c.b16 %v2544, %v2535
    %v3166 = vpack.c.b16 %v2545, %v2536
    %v3167 = vpack.c.b16 %v2546, %v2537
    %v3168 = vpack.c.b16 %v2547, %v2538
    %v3169 = vpack.c.b16 %v2548, %v2539
    %v3170 = vpack.c.b16 %v2549, %v2540
    %v3171 = vpack.c.b16 %v2559, %v2550
    %v3172 = vpack.c.b16 %v2560, %v2551
    %v3173 = vpack.c.b16 %v2561, %v2552
    %v3174 = vpack.c.b16 %v2562, %v2553
    %v3175 = vpack.c.b16 %v2563, %v2554
    %v3176 = vpack.c.b16 %v2564, %v2555
    %v3177 = vpack.c.b16 %v2565, %v2556
    %v3178 = vpack.c.b16 %v2566, %v2557
    %v3179 = vpack.c.b16 %v2567, %v2558
    %v3180 = vpack.c.b16 %v2577, %v2568
    %v3181 = vpack.c.b16 %v2578, %v2569
    %v3182 = vpack.c.b16 %v2579, %v2570
    %v3183 = vpack.c.b16 %v2580, %v2571
    %v3184 = vpack.c.b16 %v2581, %v2572
    %v3185 = vpack.c.b16 %v2582, %v2573
    %v3186 = vpack.c.b16 %v2583, %v2574
    %v3187 = vpack.c.b16 %v2584, %v2575
    %v3188 = vpack.c.b16 %v2585, %v2576
    %v3189 = vpack.c.b16 %v2595, %v2586
    %v3190 = vpack.c.b16 %v2596, %v2587
    %v3191 = vpack.c.b16 %v2597, %v2588
    %v3192 = vpack.c.b16 %v2598, %v2589
    %v3193 = vpack.c.b16 %v2599, %v2590
    %v3194 = vpack.c.b16 %v2600, %v2591
    %v3195 = vpack.c.b16 %v2601, %v2592
    %v3196 = vpack.c.b16 %v2602, %v2593
    %v3197 = vpack.c.b16 %v2603, %v2594
    %v3198 = vpack.c.b16 %v2613, %v2604
    %v3199 = vpack.c.b16 %v2614, %v2605
    %v3200 = vpack.c.b16 %v2615, %v2606
    %v3201 = vpack.c.b16 %v2616, %v2607
    %v3202 = vpack.c.b16 %v2617, %v2608
    %v3203 = vpack.c.b16 %v2618, %v2609
    %v3204 = vpack.c.b16 %v2619, %v2610
    %v3205 = vpack.c.b16 %v2620, %v2611
    %v3206 = vpack.c.b16 %v2621, %v2612
    %v3207 = vpack.c.b16 %v2631, %v2622
    %v3208 = vpack.c.b16 %v2632, %v2623
    %v3209 = vpack.c.b16 %v2633, %v2624
    %v3210 = vpack.c.b16 %v2634, %v2625
    %v3211 = vpack.c.b16 %v2635, %v2626
    %v3212 = vpack.c.b16 %v2636, %v2627
    %v3213 = vpack.c.b16 %v2637, %v2628
    %v3214 = vpack.c.b16 %v2638, %v2629
    %v3215 = vpack.c.b16 %v2639, %v2630
    %3792 = vmatprep.subr.bf16.mxu0 %v2641
    %3793 = vmatpush1.bf16.msra.mxu0 %v2640
    %3794 = vmatprep.subr.bf16.mxu0 %v2650
    %3795 = vmatpush1.bf16.msra.mxu0 %v2649
    %3796 = vmatprep.subr.bf16.mxu0 %v2659
    %3797 = vmatpush1.bf16.msra.mxu0 %v2658
    %3798 = vmatprep.subr.bf16.mxu0 %v2668
    %3799 = vmatpush1.bf16.msra.mxu0 %v2667
    %3800 = vmatprep.subr.bf16.mxu0 %v2677
    %3801 = vmatpush1.bf16.msra.mxu0 %v2676
    %3802 = vmatprep.subr.bf16.mxu0 %v2686
    %3803 = vmatpush1.bf16.msra.mxu0 %v2685
    %3804 = vmatprep.subr.bf16.mxu0 %v2695
    %3805 = vmatpush1.bf16.msra.mxu0 %v2694
    %3806 = vmatprep.subr.bf16.mxu0 %v2704
    %3807 = vmatpush1.bf16.msra.mxu0 %v2703
    %3808 = vmatprep.subr.bf16.mxu0 %v2713
    %3809 = vmatpush1.bf16.msra.mxu0 %v2712
    %3810 = vmatprep.subr.bf16.mxu0 %v2722
    %3811 = vmatpush1.bf16.msra.mxu0 %v2721
    %3812 = vmatprep.subr.bf16.mxu0 %v2731
    %3813 = vmatpush1.bf16.msra.mxu0 %v2730
    %3814 = vmatprep.subr.bf16.mxu0 %v2740
    %3815 = vmatpush1.bf16.msra.mxu0 %v2739
    %3816 = vmatprep.subr.bf16.mxu0 %v2749
    %3817 = vmatpush1.bf16.msra.mxu0 %v2748
    %3818 = vmatprep.subr.bf16.mxu0 %v2758
    %3819 = vmatpush1.bf16.msra.mxu0 %v2757
    %3820 = vmatprep.subr.bf16.mxu0 %v2767
    %3821 = vmatpush1.bf16.msra.mxu0 %v2766
    %3822 = vmatprep.subr.bf16.mxu0 %v2776
    %3823 = vmatpush1.bf16.msra.mxu0 %v2775
    %3824 = vmatprep.mubr.bf16.mxu0 %v122
    %3825 = vmatmul.mubr.bf16.gmra.mrb[0].mxu0 %v121
    %v3826 = vpop.f32.mrb[0].mxu0
    %v3827 = vadd.f32 %v830, %v3826
    %v3828 = vpop.f32.mrb[0].mxu0
    %v3829 = vadd.f32 %v831, %v3828
    %v3830 = vpop.f32.mrb[0].mxu0
    %v3831 = vadd.f32 %v839, %v3830
    %v3832 = vpop.f32.mrb[0].mxu0
    %v3833 = vadd.f32 %v840, %v3832
    %3834 = vdwg.mxu0
    %3835 = vmatprep.subr.bf16.mxu0 %v2785
    %3836 = vmatpush1.bf16.msra.mxu0 %v2784
    %3837 = vmatprep.subr.bf16.mxu0 %v2794
    %3838 = vmatpush1.bf16.msra.mxu0 %v2793
    %3839 = vmatprep.subr.bf16.mxu0 %v2803
    %3840 = vmatpush1.bf16.msra.mxu0 %v2802
    %3841 = vmatprep.subr.bf16.mxu0 %v2812
    %3842 = vmatpush1.bf16.msra.mxu0 %v2811
    %3843 = vmatprep.subr.bf16.mxu0 %v2821
    %3844 = vmatpush1.bf16.msra.mxu0 %v2820
    %3845 = vmatprep.subr.bf16.mxu0 %v2830
    %3846 = vmatpush1.bf16.msra.mxu0 %v2829
    %3847 = vmatprep.subr.bf16.mxu0 %v2839
    %3848 = vmatpush1.bf16.msra.mxu0 %v2838
    %3849 = vmatprep.subr.bf16.mxu0 %v2848
    %3850 = vmatpush1.bf16.msra.mxu0 %v2847
    %3851 = vmatprep.subr.bf16.mxu0 %v2857
    %3852 = vmatpush1.bf16.msra.mxu0 %v2856
    %3853 = vmatprep.subr.bf16.mxu0 %v2866
    %3854 = vmatpush1.bf16.msra.mxu0 %v2865
    %3855 = vmatprep.subr.bf16.mxu0 %v2875
    %3856 = vmatpush1.bf16.msra.mxu0 %v2874
    %3857 = vmatprep.subr.bf16.mxu0 %v2884
    %3858 = vmatpush1.bf16.msra.mxu0 %v2883
    %3859 = vmatprep.subr.bf16.mxu0 %v2893
    %3860 = vmatpush1.bf16.msra.mxu0 %v2892
    %3861 = vmatprep.subr.bf16.mxu0 %v2902
    %3862 = vmatpush1.bf16.msra.mxu0 %v2901
    %3863 = vmatprep.subr.bf16.mxu0 %v2911
    %3864 = vmatpush1.bf16.msra.mxu0 %v2910
    %3865 = vmatprep.subr.bf16.mxu0 %v2920
    %3866 = vmatpush1.bf16.msra.mxu0 %v2919
    %3867 = vmatprep.mubr.bf16.mxu0 %v124
    %3868 = vmatmul.mubr.bf16.gmra.mrb[0].mxu0 %v123
    %v3869 = vpop.f32.mrb[0].mxu0
    %v3870 = vadd.f32 %v3827, %v3869
    %v3871 = vpop.f32.mrb[0].mxu0
    %v3872 = vadd.f32 %v3829, %v3871
    %v3873 = vpop.f32.mrb[0].mxu0
    %v3874 = vadd.f32 %v3831, %v3873
    %v3875 = vpop.f32.mrb[0].mxu0
    %v3876 = vadd.f32 %v3833, %v3875
    %3877 = vdwg.mxu0
    %3878 = vmatprep.subr.bf16.mxu0 %v2929
    %3879 = vmatpush1.bf16.msra.mxu0 %v2928
    %3880 = vmatprep.subr.bf16.mxu0 %v2938
    %3881 = vmatpush1.bf16.msra.mxu0 %v2937
    %3882 = vmatprep.subr.bf16.mxu0 %v2947
    %3883 = vmatpush1.bf16.msra.mxu0 %v2946
    %3884 = vmatprep.subr.bf16.mxu0 %v2956
    %3885 = vmatpush1.bf16.msra.mxu0 %v2955
    %3886 = vmatprep.subr.bf16.mxu0 %v2965
    %3887 = vmatpush1.bf16.msra.mxu0 %v2964
    %3888 = vmatprep.subr.bf16.mxu0 %v2974
    %3889 = vmatpush1.bf16.msra.mxu0 %v2973
    %3890 = vmatprep.subr.bf16.mxu0 %v2983
    %3891 = vmatpush1.bf16.msra.mxu0 %v2982
    %3892 = vmatprep.subr.bf16.mxu0 %v2992
    %3893 = vmatpush1.bf16.msra.mxu0 %v2991
    %3894 = vmatprep.subr.bf16.mxu0 %v3001
    %3895 = vmatpush1.bf16.msra.mxu0 %v3000
    %3896 = vmatprep.subr.bf16.mxu0 %v3010
    %3897 = vmatpush1.bf16.msra.mxu0 %v3009
    %3898 = vmatprep.subr.bf16.mxu0 %v3019
    %3899 = vmatpush1.bf16.msra.mxu0 %v3018
    %3900 = vmatprep.subr.bf16.mxu0 %v3028
    %3901 = vmatpush1.bf16.msra.mxu0 %v3027
    %3902 = vmatprep.subr.bf16.mxu0 %v3037
    %3903 = vmatpush1.bf16.msra.mxu0 %v3036
    %3904 = vmatprep.subr.bf16.mxu0 %v3046
    %3905 = vmatpush1.bf16.msra.mxu0 %v3045
    %3906 = vmatprep.subr.bf16.mxu0 %v3055
    %3907 = vmatpush1.bf16.msra.mxu0 %v3054
    %3908 = vmatprep.subr.bf16.mxu0 %v3064
    %3909 = vmatpush1.bf16.msra.mxu0 %v3063
    %3910 = vmatprep.mubr.bf16.mxu0 %v126
    %3911 = vmatmul.mubr.bf16.gmra.mrb[0].mxu0 %v125
    %v3912 = vpop.f32.mrb[0].mxu0
    %v3913 = vadd.f32 %v3870, %v3912
    %v3914 = vpop.f32.mrb[0].mxu0
    %v3915 = vadd.f32 %v3872, %v3914
    %v3916 = vpop.f32.mrb[0].mxu0
    %v3917 = vadd.f32 %v3874, %v3916
    %v3918 = vpop.f32.mrb[0].mxu0
    %v3919 = vadd.f32 %v3876, %v3918
    %3920 = vdwg.mxu0
    %3921 = vmatprep.subr.bf16.mxu0 %v3073
    %3922 = vmatpush1.bf16.msra.mxu0 %v3072
    %3923 = vmatprep.subr.bf16.mxu0 %v3082
    %3924 = vmatpush1.bf16.msra.mxu0 %v3081
    %3925 = vmatprep.subr.bf16.mxu0 %v3091
    %3926 = vmatpush1.bf16.msra.mxu0 %v3090
    %3927 = vmatprep.subr.bf16.mxu0 %v3100
    %3928 = vmatpush1.bf16.msra.mxu0 %v3099
    %3929 = vmatprep.subr.bf16.mxu0 %v3109
    %3930 = vmatpush1.bf16.msra.mxu0 %v3108
    %3931 = vmatprep.subr.bf16.mxu0 %v3118
    %3932 = vmatpush1.bf16.msra.mxu0 %v3117
    %3933 = vmatprep.subr.bf16.mxu0 %v3127
    %3934 = vmatpush1.bf16.msra.mxu0 %v3126
    %3935 = vmatprep.subr.bf16.mxu0 %v3136
    %3936 = vmatpush1.bf16.msra.mxu0 %v3135
    %3937 = vmatprep.subr.bf16.mxu0 %v3145
    %3938 = vmatpush1.bf16.msra.mxu0 %v3144
    %3939 = vmatprep.subr.bf16.mxu0 %v3154
    %3940 = vmatpush1.bf16.msra.mxu0 %v3153
    %3941 = vmatprep.subr.bf16.mxu0 %v3163
    %3942 = vmatpush1.bf16.msra.mxu0 %v3162
    %3943 = vmatprep.subr.bf16.mxu0 %v3172
    %3944 = vmatpush1.bf16.msra.mxu0 %v3171
    %3945 = vmatprep.subr.bf16.mxu0 %v3181
    %3946 = vmatpush1.bf16.msra.mxu0 %v3180
    %3947 = vmatprep.subr.bf16.mxu0 %v3190
    %3948 = vmatpush1.bf16.msra.mxu0 %v3189
    %3949 = vmatprep.subr.bf16.mxu0 %v3199
    %3950 = vmatpush1.bf16.msra.mxu0 %v3198
    %3951 = vmatprep.subr.bf16.mxu0 %v3208
    %3952 = vmatpush1.bf16.msra.mxu0 %v3207
    %3953 = vmatprep.mubr.bf16.mxu0 %v128
    %3954 = vmatmul.mubr.bf16.gmra.mrb[0].mxu0 %v127
    %v3955 = vpop.f32.mrb[0].mxu0
    %v3956 = vadd.f32 %v3913, %v3955
    %v3957 = vpop.f32.mrb[0].mxu0
    %v3958 = vadd.f32 %v3915, %v3957
    %v3959 = vpop.f32.mrb[0].mxu0
    %v3960 = vadd.f32 %v3917, %v3959
    %v3961 = vpop.f32.mrb[0].mxu0
    %v3962 = vadd.f32 %v3919, %v3961
    %3963 = vdwg.mxu0
    %3964 = vmatprep.subr.bf16.mxu0 %v2643
    %3965 = vmatpush1.bf16.msra.mxu0 %v2642
    %3966 = vmatprep.subr.bf16.mxu0 %v2652
    %3967 = vmatpush1.bf16.msra.mxu0 %v2651
    %3968 = vmatprep.subr.bf16.mxu0 %v2661
    %3969 = vmatpush1.bf16.msra.mxu0 %v2660
    %3970 = vmatprep.subr.bf16.mxu0 %v2670
    %3971 = vmatpush1.bf16.msra.mxu0 %v2669
    %3972 = vmatprep.subr.bf16.mxu0 %v2679
    %3973 = vmatpush1.bf16.msra.mxu0 %v2678
    %3974 = vmatprep.subr.bf16.mxu0 %v2688
    %3975 = vmatpush1.bf16.msra.mxu0 %v2687
    %3976 = vmatprep.subr.bf16.mxu0 %v2697
    %3977 = vmatpush1.bf16.msra.mxu0 %v2696
    %3978 = vmatprep.subr.bf16.mxu0 %v2706
    %3979 = vmatpush1.bf16.msra.mxu0 %v2705
    %3980 = vmatprep.subr.bf16.mxu0 %v2715
    %3981 = vmatpush1.bf16.msra.mxu0 %v2714
    %3982 = vmatprep.subr.bf16.mxu0 %v2724
    %3983 = vmatpush1.bf16.msra.mxu0 %v2723
    %3984 = vmatprep.subr.bf16.mxu0 %v2733
    %3985 = vmatpush1.bf16.msra.mxu0 %v2732
    %3986 = vmatprep.subr.bf16.mxu0 %v2742
    %3987 = vmatpush1.bf16.msra.mxu0 %v2741
    %3988 = vmatprep.subr.bf16.mxu0 %v2751
    %3989 = vmatpush1.bf16.msra.mxu0 %v2750
    %3990 = vmatprep.subr.bf16.mxu0 %v2760
    %3991 = vmatpush1.bf16.msra.mxu0 %v2759
    %3992 = vmatprep.subr.bf16.mxu0 %v2769
    %3993 = vmatpush1.bf16.msra.mxu0 %v2768
    %3994 = vmatprep.subr.bf16.mxu0 %v2778
    %3995 = vmatpush1.bf16.msra.mxu0 %v2777
    %3996 = vmatprep.mubr.bf16.mxu0 %v122
    %3997 = vmatmul.mubr.bf16.gmra.mrb[0].mxu0 %v121
    %v3998 = vpop.f32.mrb[0].mxu0
    %v3999 = vadd.f32 %v832, %v3998
    %v4000 = vpop.f32.mrb[0].mxu0
    %v4001 = vadd.f32 %v833, %v4000
    %v4002 = vpop.f32.mrb[0].mxu0
    %v4003 = vadd.f32 %v841, %v4002
    %v4004 = vpop.f32.mrb[0].mxu0
    %v4005 = vadd.f32 %v842, %v4004
    %4006 = vdwg.mxu0
    %4007 = vmatprep.subr.bf16.mxu0 %v2787
    %4008 = vmatpush1.bf16.msra.mxu0 %v2786
    %4009 = vmatprep.subr.bf16.mxu0 %v2796
    %4010 = vmatpush1.bf16.msra.mxu0 %v2795
    %4011 = vmatprep.subr.bf16.mxu0 %v2805
    %4012 = vmatpush1.bf16.msra.mxu0 %v2804
    %4013 = vmatprep.subr.bf16.mxu0 %v2814
    %4014 = vmatpush1.bf16.msra.mxu0 %v2813
    %4015 = vmatprep.subr.bf16.mxu0 %v2823
    %4016 = vmatpush1.bf16.msra.mxu0 %v2822
    %4017 = vmatprep.subr.bf16.mxu0 %v2832
    %4018 = vmatpush1.bf16.msra.mxu0 %v2831
    %4019 = vmatprep.subr.bf16.mxu0 %v2841
    %4020 = vmatpush1.bf16.msra.mxu0 %v2840
    %4021 = vmatprep.subr.bf16.mxu0 %v2850
    %4022 = vmatpush1.bf16.msra.mxu0 %v2849
    %4023 = vmatprep.subr.bf16.mxu0 %v2859
    %4024 = vmatpush1.bf16.msra.mxu0 %v2858
    %4025 = vmatprep.subr.bf16.mxu0 %v2868
    %4026 = vmatpush1.bf16.msra.mxu0 %v2867
    %4027 = vmatprep.subr.bf16.mxu0 %v2877
    %4028 = vmatpush1.bf16.msra.mxu0 %v2876
    %4029 = vmatprep.subr.bf16.mxu0 %v2886
    %4030 = vmatpush1.bf16.msra.mxu0 %v2885
    %4031 = vmatprep.subr.bf16.mxu0 %v2895
    %4032 = vmatpush1.bf16.msra.mxu0 %v2894
    %4033 = vmatprep.subr.bf16.mxu0 %v2904
    %4034 = vmatpush1.bf16.msra.mxu0 %v2903
    %4035 = vmatprep.subr.bf16.mxu0 %v2913
    %4036 = vmatpush1.bf16.msra.mxu0 %v2912
    %4037 = vmatprep.subr.bf16.mxu0 %v2922
    %4038 = vmatpush1.bf16.msra.mxu0 %v2921
    %4039 = vmatprep.mubr.bf16.mxu0 %v124
    %4040 = vmatmul.mubr.bf16.gmra.mrb[0].mxu0 %v123
    %v4041 = vpop.f32.mrb[0].mxu0
    %v4042 = vadd.f32 %v3999, %v4041
    %v4043 = vpop.f32.mrb[0].mxu0
    %v4044 = vadd.f32 %v4001, %v4043
    %v4045 = vpop.f32.mrb[0].mxu0
    %v4046 = vadd.f32 %v4003, %v4045
    %v4047 = vpop.f32.mrb[0].mxu0
    %v4048 = vadd.f32 %v4005, %v4047
    %4049 = vdwg.mxu0
    %4050 = vmatprep.subr.bf16.mxu0 %v2931
    %4051 = vmatpush1.bf16.msra.mxu0 %v2930
    %4052 = vmatprep.subr.bf16.mxu0 %v2940
    %4053 = vmatpush1.bf16.msra.mxu0 %v2939
    %4054 = vmatprep.subr.bf16.mxu0 %v2949
    %4055 = vmatpush1.bf16.msra.mxu0 %v2948
    %4056 = vmatprep.subr.bf16.mxu0 %v2958
    %4057 = vmatpush1.bf16.msra.mxu0 %v2957
    %4058 = vmatprep.subr.bf16.mxu0 %v2967
    %4059 = vmatpush1.bf16.msra.mxu0 %v2966
    %4060 = vmatprep.subr.bf16.mxu0 %v2976
    %4061 = vmatpush1.bf16.msra.mxu0 %v2975
    %4062 = vmatprep.subr.bf16.mxu0 %v2985
    %4063 = vmatpush1.bf16.msra.mxu0 %v2984
    %4064 = vmatprep.subr.bf16.mxu0 %v2994
    %4065 = vmatpush1.bf16.msra.mxu0 %v2993
    %4066 = vmatprep.subr.bf16.mxu0 %v3003
    %4067 = vmatpush1.bf16.msra.mxu0 %v3002
    %4068 = vmatprep.subr.bf16.mxu0 %v3012
    %4069 = vmatpush1.bf16.msra.mxu0 %v3011
    %4070 = vmatprep.subr.bf16.mxu0 %v3021
    %4071 = vmatpush1.bf16.msra.mxu0 %v3020
    %4072 = vmatprep.subr.bf16.mxu0 %v3030
    %4073 = vmatpush1.bf16.msra.mxu0 %v3029
    %4074 = vmatprep.subr.bf16.mxu0 %v3039
    %4075 = vmatpush1.bf16.msra.mxu0 %v3038
    %4076 = vmatprep.subr.bf16.mxu0 %v3048
    %4077 = vmatpush1.bf16.msra.mxu0 %v3047
    %4078 = vmatprep.subr.bf16.mxu0 %v3057
    %4079 = vmatpush1.bf16.msra.mxu0 %v3056
    %4080 = vmatprep.subr.bf16.mxu0 %v3066
    %4081 = vmatpush1.bf16.msra.mxu0 %v3065
    %4082 = vmatprep.mubr.bf16.mxu0 %v126
    %4083 = vmatmul.mubr.bf16.gmra.mrb[0].mxu0 %v125
    %v4084 = vpop.f32.mrb[0].mxu0
    %v4085 = vadd.f32 %v4042, %v4084
    %v4086 = vpop.f32.mrb[0].mxu0
    %v4087 = vadd.f32 %v4044, %v4086
    %v4088 = vpop.f32.mrb[0].mxu0
    %v4089 = vadd.f32 %v4046, %v4088
    %v4090 = vpop.f32.mrb[0].mxu0
    %v4091 = vadd.f32 %v4048, %v4090
    %4092 = vdwg.mxu0
    %4093 = vmatprep.subr.bf16.mxu0 %v3075
    %4094 = vmatpush1.bf16.msra.mxu0 %v3074
    %4095 = vmatprep.subr.bf16.mxu0 %v3084
    %4096 = vmatpush1.bf16.msra.mxu0 %v3083
    %4097 = vmatprep.subr.bf16.mxu0 %v3093
    %4098 = vmatpush1.bf16.msra.mxu0 %v3092
    %4099 = vmatprep.subr.bf16.mxu0 %v3102
    %4100 = vmatpush1.bf16.msra.mxu0 %v3101
    %4101 = vmatprep.subr.bf16.mxu0 %v3111
    %4102 = vmatpush1.bf16.msra.mxu0 %v3110
    %4103 = vmatprep.subr.bf16.mxu0 %v3120
    %4104 = vmatpush1.bf16.msra.mxu0 %v3119
    %4105 = vmatprep.subr.bf16.mxu0 %v3129
    %4106 = vmatpush1.bf16.msra.mxu0 %v3128
    %4107 = vmatprep.subr.bf16.mxu0 %v3138
    %4108 = vmatpush1.bf16.msra.mxu0 %v3137
    %4109 = vmatprep.subr.bf16.mxu0 %v3147
    %4110 = vmatpush1.bf16.msra.mxu0 %v3146
    %4111 = vmatprep.subr.bf16.mxu0 %v3156
    %4112 = vmatpush1.bf16.msra.mxu0 %v3155
    %4113 = vmatprep.subr.bf16.mxu0 %v3165
    %4114 = vmatpush1.bf16.msra.mxu0 %v3164
    %4115 = vmatprep.subr.bf16.mxu0 %v3174
    %4116 = vmatpush1.bf16.msra.mxu0 %v3173
    %4117 = vmatprep.subr.bf16.mxu0 %v3183
    %4118 = vmatpush1.bf16.msra.mxu0 %v3182
    %4119 = vmatprep.subr.bf16.mxu0 %v3192
    %4120 = vmatpush1.bf16.msra.mxu0 %v3191
    %4121 = vmatprep.subr.bf16.mxu0 %v3201
    %4122 = vmatpush1.bf16.msra.mxu0 %v3200
    %4123 = vmatprep.subr.bf16.mxu0 %v3210
    %4124 = vmatpush1.bf16.msra.mxu0 %v3209
    %4125 = vmatprep.mubr.bf16.mxu0 %v128
    %4126 = vmatmul.mubr.bf16.gmra.mrb[0].mxu0 %v127
    %v4127 = vpop.f32.mrb[0].mxu0
    %v4128 = vadd.f32 %v4085, %v4127
    %v4129 = vpop.f32.mrb[0].mxu0
    %v4130 = vadd.f32 %v4087, %v4129
    %v4131 = vpop.f32.mrb[0].mxu0
    %v4132 = vadd.f32 %v4089, %v4131
    %v4133 = vpop.f32.mrb[0].mxu0
    %v4134 = vadd.f32 %v4091, %v4133
    %4135 = vdwg.mxu0
    %4136 = vmatprep.subr.bf16.mxu0 %v2645
    %4137 = vmatpush1.bf16.msra.mxu0 %v2644
    %4138 = vmatprep.subr.bf16.mxu0 %v2654
    %4139 = vmatpush1.bf16.msra.mxu0 %v2653
    %4140 = vmatprep.subr.bf16.mxu0 %v2663
    %4141 = vmatpush1.bf16.msra.mxu0 %v2662
    %4142 = vmatprep.subr.bf16.mxu0 %v2672
    %4143 = vmatpush1.bf16.msra.mxu0 %v2671
    %4144 = vmatprep.subr.bf16.mxu0 %v2681
    %4145 = vmatpush1.bf16.msra.mxu0 %v2680
    %4146 = vmatprep.subr.bf16.mxu0 %v2690
    %4147 = vmatpush1.bf16.msra.mxu0 %v2689
    %4148 = vmatprep.subr.bf16.mxu0 %v2699
    %4149 = vmatpush1.bf16.msra.mxu0 %v2698
    %4150 = vmatprep.subr.bf16.mxu0 %v2708
    %4151 = vmatpush1.bf16.msra.mxu0 %v2707
    %4152 = vmatprep.subr.bf16.mxu0 %v2717
    %4153 = vmatpush1.bf16.msra.mxu0 %v2716
    %4154 = vmatprep.subr.bf16.mxu0 %v2726
    %4155 = vmatpush1.bf16.msra.mxu0 %v2725
    %4156 = vmatprep.subr.bf16.mxu0 %v2735
    %4157 = vmatpush1.bf16.msra.mxu0 %v2734
    %4158 = vmatprep.subr.bf16.mxu0 %v2744
    %4159 = vmatpush1.bf16.msra.mxu0 %v2743
    %4160 = vmatprep.subr.bf16.mxu0 %v2753
    %4161 = vmatpush1.bf16.msra.mxu0 %v2752
    %4162 = vmatprep.subr.bf16.mxu0 %v2762
    %4163 = vmatpush1.bf16.msra.mxu0 %v2761
    %4164 = vmatprep.subr.bf16.mxu0 %v2771
    %4165 = vmatpush1.bf16.msra.mxu0 %v2770
    %4166 = vmatprep.subr.bf16.mxu0 %v2780
    %4167 = vmatpush1.bf16.msra.mxu0 %v2779
    %4168 = vmatprep.mubr.bf16.mxu0 %v122
    %4169 = vmatmul.mubr.bf16.gmra.mrb[0].mxu0 %v121
    %v4170 = vpop.f32.mrb[0].mxu0
    %v4171 = vadd.f32 %v834, %v4170
    %v4172 = vpop.f32.mrb[0].mxu0
    %v4173 = vadd.f32 %v835, %v4172
    %v4174 = vpop.f32.mrb[0].mxu0
    %v4175 = vadd.f32 %v843, %v4174
    %v4176 = vpop.f32.mrb[0].mxu0
    %v4177 = vadd.f32 %v844, %v4176
    %4178 = vdwg.mxu0
    %4179 = vmatprep.subr.bf16.mxu0 %v2789
    %4180 = vmatpush1.bf16.msra.mxu0 %v2788
    %4181 = vmatprep.subr.bf16.mxu0 %v2798
    %4182 = vmatpush1.bf16.msra.mxu0 %v2797
    %4183 = vmatprep.subr.bf16.mxu0 %v2807
    %4184 = vmatpush1.bf16.msra.mxu0 %v2806
    %4185 = vmatprep.subr.bf16.mxu0 %v2816
    %4186 = vmatpush1.bf16.msra.mxu0 %v2815
    %4187 = vmatprep.subr.bf16.mxu0 %v2825
    %4188 = vmatpush1.bf16.msra.mxu0 %v2824
    %4189 = vmatprep.subr.bf16.mxu0 %v2834
    %4190 = vmatpush1.bf16.msra.mxu0 %v2833
    %4191 = vmatprep.subr.bf16.mxu0 %v2843
    %4192 = vmatpush1.bf16.msra.mxu0 %v2842
    %4193 = vmatprep.subr.bf16.mxu0 %v2852
    %4194 = vmatpush1.bf16.msra.mxu0 %v2851
    %4195 = vmatprep.subr.bf16.mxu0 %v2861
    %4196 = vmatpush1.bf16.msra.mxu0 %v2860
    %4197 = vmatprep.subr.bf16.mxu0 %v2870
    %4198 = vmatpush1.bf16.msra.mxu0 %v2869
    %4199 = vmatprep.subr.bf16.mxu0 %v2879
    %4200 = vmatpush1.bf16.msra.mxu0 %v2878
    %4201 = vmatprep.subr.bf16.mxu0 %v2888
    %4202 = vmatpush1.bf16.msra.mxu0 %v2887
    %4203 = vmatprep.subr.bf16.mxu0 %v2897
    %4204 = vmatpush1.bf16.msra.mxu0 %v2896
    %4205 = vmatprep.subr.bf16.mxu0 %v2906
    %4206 = vmatpush1.bf16.msra.mxu0 %v2905
    %4207 = vmatprep.subr.bf16.mxu0 %v2915
    %4208 = vmatpush1.bf16.msra.mxu0 %v2914
    %4209 = vmatprep.subr.bf16.mxu0 %v2924
    %4210 = vmatpush1.bf16.msra.mxu0 %v2923
    %4211 = vmatprep.mubr.bf16.mxu0 %v124
    %4212 = vmatmul.mubr.bf16.gmra.mrb[0].mxu0 %v123
    %v4213 = vpop.f32.mrb[0].mxu0
    %v4214 = vadd.f32 %v4171, %v4213
    %v4215 = vpop.f32.mrb[0].mxu0
    %v4216 = vadd.f32 %v4173, %v4215
    %v4217 = vpop.f32.mrb[0].mxu0
    %v4218 = vadd.f32 %v4175, %v4217
    %v4219 = vpop.f32.mrb[0].mxu0
    %v4220 = vadd.f32 %v4177, %v4219
    %4221 = vdwg.mxu0
    %4222 = vmatprep.subr.bf16.mxu0 %v2933
    %4223 = vmatpush1.bf16.msra.mxu0 %v2932
    %4224 = vmatprep.subr.bf16.mxu0 %v2942
    %4225 = vmatpush1.bf16.msra.mxu0 %v2941
    %4226 = vmatprep.subr.bf16.mxu0 %v2951
    %4227 = vmatpush1.bf16.msra.mxu0 %v2950
    %4228 = vmatprep.subr.bf16.mxu0 %v2960
    %4229 = vmatpush1.bf16.msra.mxu0 %v2959
    %4230 = vmatprep.subr.bf16.mxu0 %v2969
    %4231 = vmatpush1.bf16.msra.mxu0 %v2968
    %4232 = vmatprep.subr.bf16.mxu0 %v2978
    %4233 = vmatpush1.bf16.msra.mxu0 %v2977
    %4234 = vmatprep.subr.bf16.mxu0 %v2987
    %4235 = vmatpush1.bf16.msra.mxu0 %v2986
    %4236 = vmatprep.subr.bf16.mxu0 %v2996
    %4237 = vmatpush1.bf16.msra.mxu0 %v2995
    %4238 = vmatprep.subr.bf16.mxu0 %v3005
    %4239 = vmatpush1.bf16.msra.mxu0 %v3004
    %4240 = vmatprep.subr.bf16.mxu0 %v3014
    %4241 = vmatpush1.bf16.msra.mxu0 %v3013
    %4242 = vmatprep.subr.bf16.mxu0 %v3023
    %4243 = vmatpush1.bf16.msra.mxu0 %v3022
    %4244 = vmatprep.subr.bf16.mxu0 %v3032
    %4245 = vmatpush1.bf16.msra.mxu0 %v3031
    %4246 = vmatprep.subr.bf16.mxu0 %v3041
    %4247 = vmatpush1.bf16.msra.mxu0 %v3040
    %4248 = vmatprep.subr.bf16.mxu0 %v3050
    %4249 = vmatpush1.bf16.msra.mxu0 %v3049
    %4250 = vmatprep.subr.bf16.mxu0 %v3059
    %4251 = vmatpush1.bf16.msra.mxu0 %v3058
    %4252 = vmatprep.subr.bf16.mxu0 %v3068
    %4253 = vmatpush1.bf16.msra.mxu0 %v3067
    %4254 = vmatprep.mubr.bf16.mxu0 %v126
    %4255 = vmatmul.mubr.bf16.gmra.mrb[0].mxu0 %v125
    %v4256 = vpop.f32.mrb[0].mxu0
    %v4257 = vadd.f32 %v4214, %v4256
    %v4258 = vpop.f32.mrb[0].mxu0
    %v4259 = vadd.f32 %v4216, %v4258
    %v4260 = vpop.f32.mrb[0].mxu0
    %v4261 = vadd.f32 %v4218, %v4260
    %v4262 = vpop.f32.mrb[0].mxu0
    %v4263 = vadd.f32 %v4220, %v4262
    %4264 = vdwg.mxu0
    %4265 = vmatprep.subr.bf16.mxu0 %v3077
    %4266 = vmatpush1.bf16.msra.mxu0 %v3076
    %4267 = vmatprep.subr.bf16.mxu0 %v3086
    %4268 = vmatpush1.bf16.msra.mxu0 %v3085
    %4269 = vmatprep.subr.bf16.mxu0 %v3095
    %4270 = vmatpush1.bf16.msra.mxu0 %v3094
    %4271 = vmatprep.subr.bf16.mxu0 %v3104
    %4272 = vmatpush1.bf16.msra.mxu0 %v3103
    %4273 = vmatprep.subr.bf16.mxu0 %v3113
    %4274 = vmatpush1.bf16.msra.mxu0 %v3112
    %4275 = vmatprep.subr.bf16.mxu0 %v3122
    %4276 = vmatpush1.bf16.msra.mxu0 %v3121
    %4277 = vmatprep.subr.bf16.mxu0 %v3131
    %4278 = vmatpush1.bf16.msra.mxu0 %v3130
    %4279 = vmatprep.subr.bf16.mxu0 %v3140
    %4280 = vmatpush1.bf16.msra.mxu0 %v3139
    %4281 = vmatprep.subr.bf16.mxu0 %v3149
    %4282 = vmatpush1.bf16.msra.mxu0 %v3148
    %4283 = vmatprep.subr.bf16.mxu0 %v3158
    %4284 = vmatpush1.bf16.msra.mxu0 %v3157
    %4285 = vmatprep.subr.bf16.mxu0 %v3167
    %4286 = vmatpush1.bf16.msra.mxu0 %v3166
    %4287 = vmatprep.subr.bf16.mxu0 %v3176
    %4288 = vmatpush1.bf16.msra.mxu0 %v3175
    %4289 = vmatprep.subr.bf16.mxu0 %v3185
    %4290 = vmatpush1.bf16.msra.mxu0 %v3184
    %4291 = vmatprep.subr.bf16.mxu0 %v3194
    %4292 = vmatpush1.bf16.msra.mxu0 %v3193
    %4293 = vmatprep.subr.bf16.mxu0 %v3203
    %4294 = vmatpush1.bf16.msra.mxu0 %v3202
    %4295 = vmatprep.subr.bf16.mxu0 %v3212
    %4296 = vmatpush1.bf16.msra.mxu0 %v3211
    %4297 = vmatprep.mubr.bf16.mxu0 %v128
    %4298 = vmatmul.mubr.bf16.gmra.mrb[0].mxu0 %v127
    %v4299 = vpop.f32.mrb[0].mxu0
    %v4300 = vadd.f32 %v4257, %v4299
    %v4301 = vpop.f32.mrb[0].mxu0
    %v4302 = vadd.f32 %v4259, %v4301
    %v4303 = vpop.f32.mrb[0].mxu0
    %v4304 = vadd.f32 %v4261, %v4303
    %v4305 = vpop.f32.mrb[0].mxu0
    %v4306 = vadd.f32 %v4263, %v4305
    %4307 = vdwg.mxu0
    %4308 = vmatprep.subr.bf16.mxu0 %v2647
    %4309 = vmatpush1.bf16.msra.mxu0 %v2646
    %4310 = vmatprep.subr.bf16.mxu0 %v2656
    %4311 = vmatpush1.bf16.msra.mxu0 %v2655
    %4312 = vmatprep.subr.bf16.mxu0 %v2665
    %4313 = vmatpush1.bf16.msra.mxu0 %v2664
    %4314 = vmatprep.subr.bf16.mxu0 %v2674
    %4315 = vmatpush1.bf16.msra.mxu0 %v2673
    %4316 = vmatprep.subr.bf16.mxu0 %v2683
    %4317 = vmatpush1.bf16.msra.mxu0 %v2682
    %4318 = vmatprep.subr.bf16.mxu0 %v2692
    %4319 = vmatpush1.bf16.msra.mxu0 %v2691
    %4320 = vmatprep.subr.bf16.mxu0 %v2701
    %4321 = vmatpush1.bf16.msra.mxu0 %v2700
    %4322 = vmatprep.subr.bf16.mxu0 %v2710
    %4323 = vmatpush1.bf16.msra.mxu0 %v2709
    %4324 = vmatprep.subr.bf16.mxu0 %v2719
    %4325 = vmatpush1.bf16.msra.mxu0 %v2718
    %4326 = vmatprep.subr.bf16.mxu0 %v2728
    %4327 = vmatpush1.bf16.msra.mxu0 %v2727
    %4328 = vmatprep.subr.bf16.mxu0 %v2737
    %4329 = vmatpush1.bf16.msra.mxu0 %v2736
    %4330 = vmatprep.subr.bf16.mxu0 %v2746
    %4331 = vmatpush1.bf16.msra.mxu0 %v2745
    %4332 = vmatprep.subr.bf16.mxu0 %v2755
    %4333 = vmatpush1.bf16.msra.mxu0 %v2754
    %4334 = vmatprep.subr.bf16.mxu0 %v2764
    %4335 = vmatpush1.bf16.msra.mxu0 %v2763
    %4336 = vmatprep.subr.bf16.mxu0 %v2773
    %4337 = vmatpush1.bf16.msra.mxu0 %v2772
    %4338 = vmatprep.subr.bf16.mxu0 %v2782
    %4339 = vmatpush1.bf16.msra.mxu0 %v2781
    %4340 = vmatprep.mubr.bf16.mxu0 %v122
    %4341 = vmatmul.mubr.bf16.gmra.mrb[0].mxu0 %v121
    %v4342 = vpop.f32.mrb[0].mxu0
    %v4343 = vadd.f32 %v836, %v4342
    %v4344 = vpop.f32.mrb[0].mxu0
    %v4345 = vadd.f32 %v837, %v4344
    %v4346 = vpop.f32.mrb[0].mxu0
    %v4347 = vadd.f32 %v845, %v4346
    %v4348 = vpop.f32.mrb[0].mxu0
    %v4349 = vadd.f32 %v846, %v4348
    %4350 = vdwg.mxu0
    %4351 = vmatprep.subr.bf16.mxu0 %v2791
    %4352 = vmatpush1.bf16.msra.mxu0 %v2790
    %4353 = vmatprep.subr.bf16.mxu0 %v2800
    %4354 = vmatpush1.bf16.msra.mxu0 %v2799
    %4355 = vmatprep.subr.bf16.mxu0 %v2809
    %4356 = vmatpush1.bf16.msra.mxu0 %v2808
    %4357 = vmatprep.subr.bf16.mxu0 %v2818
    %4358 = vmatpush1.bf16.msra.mxu0 %v2817
    %4359 = vmatprep.subr.bf16.mxu0 %v2827
    %4360 = vmatpush1.bf16.msra.mxu0 %v2826
    %4361 = vmatprep.subr.bf16.mxu0 %v2836
    %4362 = vmatpush1.bf16.msra.mxu0 %v2835
    %4363 = vmatprep.subr.bf16.mxu0 %v2845
    %4364 = vmatpush1.bf16.msra.mxu0 %v2844
    %4365 = vmatprep.subr.bf16.mxu0 %v2854
    %4366 = vmatpush1.bf16.msra.mxu0 %v2853
    %4367 = vmatprep.subr.bf16.mxu0 %v2863
    %4368 = vmatpush1.bf16.msra.mxu0 %v2862
    %4369 = vmatprep.subr.bf16.mxu0 %v2872
    %4370 = vmatpush1.bf16.msra.mxu0 %v2871
    %4371 = vmatprep.subr.bf16.mxu0 %v2881
    %4372 = vmatpush1.bf16.msra.mxu0 %v2880
    %4373 = vmatprep.subr.bf16.mxu0 %v2890
    %4374 = vmatpush1.bf16.msra.mxu0 %v2889
    %4375 = vmatprep.subr.bf16.mxu0 %v2899
    %4376 = vmatpush1.bf16.msra.mxu0 %v2898
    %4377 = vmatprep.subr.bf16.mxu0 %v2908
    %4378 = vmatpush1.bf16.msra.mxu0 %v2907
    %4379 = vmatprep.subr.bf16.mxu0 %v2917
    %4380 = vmatpush1.bf16.msra.mxu0 %v2916
    %4381 = vmatprep.subr.bf16.mxu0 %v2926
    %4382 = vmatpush1.bf16.msra.mxu0 %v2925
    %4383 = vmatprep.mubr.bf16.mxu0 %v124
    %4384 = vmatmul.mubr.bf16.gmra.mrb[0].mxu0 %v123
    %v4385 = vpop.f32.mrb[0].mxu0
    %v4386 = vadd.f32 %v4343, %v4385
    %v4387 = vpop.f32.mrb[0].mxu0
    %v4388 = vadd.f32 %v4345, %v4387
    %v4389 = vpop.f32.mrb[0].mxu0
    %v4390 = vadd.f32 %v4347, %v4389
    %v4391 = vpop.f32.mrb[0].mxu0
    %v4392 = vadd.f32 %v4349, %v4391
    %4393 = vdwg.mxu0
    %4394 = vmatprep.subr.bf16.mxu0 %v2935
    %4395 = vmatpush1.bf16.msra.mxu0 %v2934
    %4396 = vmatprep.subr.bf16.mxu0 %v2944
    %4397 = vmatpush1.bf16.msra.mxu0 %v2943
    %4398 = vmatprep.subr.bf16.mxu0 %v2953
    %4399 = vmatpush1.bf16.msra.mxu0 %v2952
    %4400 = vmatprep.subr.bf16.mxu0 %v2962
    %4401 = vmatpush1.bf16.msra.mxu0 %v2961
    %4402 = vmatprep.subr.bf16.mxu0 %v2971
    %4403 = vmatpush1.bf16.msra.mxu0 %v2970
    %4404 = vmatprep.subr.bf16.mxu0 %v2980
    %4405 = vmatpush1.bf16.msra.mxu0 %v2979
    %4406 = vmatprep.subr.bf16.mxu0 %v2989
    %4407 = vmatpush1.bf16.msra.mxu0 %v2988
    %4408 = vmatprep.subr.bf16.mxu0 %v2998
    %4409 = vmatpush1.bf16.msra.mxu0 %v2997
    %4410 = vmatprep.subr.bf16.mxu0 %v3007
    %4411 = vmatpush1.bf16.msra.mxu0 %v3006
    %4412 = vmatprep.subr.bf16.mxu0 %v3016
    %4413 = vmatpush1.bf16.msra.mxu0 %v3015
    %4414 = vmatprep.subr.bf16.mxu0 %v3025
    %4415 = vmatpush1.bf16.msra.mxu0 %v3024
    %4416 = vmatprep.subr.bf16.mxu0 %v3034
    %4417 = vmatpush1.bf16.msra.mxu0 %v3033
    %4418 = vmatprep.subr.bf16.mxu0 %v3043
    %4419 = vmatpush1.bf16.msra.mxu0 %v3042
    %4420 = vmatprep.subr.bf16.mxu0 %v3052
    %4421 = vmatpush1.bf16.msra.mxu0 %v3051
    %4422 = vmatprep.subr.bf16.mxu0 %v3061
    %4423 = vmatpush1.bf16.msra.mxu0 %v3060
    %4424 = vmatprep.subr.bf16.mxu0 %v3070
    %4425 = vmatpush1.bf16.msra.mxu0 %v3069
    %4426 = vmatprep.mubr.bf16.mxu0 %v126
    %4427 = vmatmul.mubr.bf16.gmra.mrb[0].mxu0 %v125
    %v4428 = vpop.f32.mrb[0].mxu0
    %v4429 = vadd.f32 %v4386, %v4428
    %v4430 = vpop.f32.mrb[0].mxu0
    %v4431 = vadd.f32 %v4388, %v4430
    %v4432 = vpop.f32.mrb[0].mxu0
    %v4433 = vadd.f32 %v4390, %v4432
    %v4434 = vpop.f32.mrb[0].mxu0
    %v4435 = vadd.f32 %v4392, %v4434
    %4436 = vdwg.mxu0
    %4437 = vmatprep.subr.bf16.mxu0 %v3079
    %4438 = vmatpush1.bf16.msra.mxu0 %v3078
    %4439 = vmatprep.subr.bf16.mxu0 %v3088
    %4440 = vmatpush1.bf16.msra.mxu0 %v3087
    %4441 = vmatprep.subr.bf16.mxu0 %v3097
    %4442 = vmatpush1.bf16.msra.mxu0 %v3096
    %4443 = vmatprep.subr.bf16.mxu0 %v3106
    %4444 = vmatpush1.bf16.msra.mxu0 %v3105
    %4445 = vmatprep.subr.bf16.mxu0 %v3115
    %4446 = vmatpush1.bf16.msra.mxu0 %v3114
    %4447 = vmatprep.subr.bf16.mxu0 %v3124
    %4448 = vmatpush1.bf16.msra.mxu0 %v3123
    %4449 = vmatprep.subr.bf16.mxu0 %v3133
    %4450 = vmatpush1.bf16.msra.mxu0 %v3132
    %4451 = vmatprep.subr.bf16.mxu0 %v3142
    %4452 = vmatpush1.bf16.msra.mxu0 %v3141
    %4453 = vmatprep.subr.bf16.mxu0 %v3151
    %4454 = vmatpush1.bf16.msra.mxu0 %v3150
    %4455 = vmatprep.subr.bf16.mxu0 %v3160
    %4456 = vmatpush1.bf16.msra.mxu0 %v3159
    %4457 = vmatprep.subr.bf16.mxu0 %v3169
    %4458 = vmatpush1.bf16.msra.mxu0 %v3168
    %4459 = vmatprep.subr.bf16.mxu0 %v3178
    %4460 = vmatpush1.bf16.msra.mxu0 %v3177
    %4461 = vmatprep.subr.bf16.mxu0 %v3187
    %4462 = vmatpush1.bf16.msra.mxu0 %v3186
    %4463 = vmatprep.subr.bf16.mxu0 %v3196
    %4464 = vmatpush1.bf16.msra.mxu0 %v3195
    %4465 = vmatprep.subr.bf16.mxu0 %v3205
    %4466 = vmatpush1.bf16.msra.mxu0 %v3204
    %4467 = vmatprep.subr.bf16.mxu0 %v3214
    %4468 = vmatpush1.bf16.msra.mxu0 %v3213
    %4469 = vmatprep.mubr.bf16.mxu0 %v128
    %4470 = vmatmul.mubr.bf16.gmra.mrb[0].mxu0 %v127
    %v4471 = vpop.f32.mrb[0].mxu0
    %v4472 = vadd.f32 %v4429, %v4471
    %v4473 = vpop.f32.mrb[0].mxu0
    %v4474 = vadd.f32 %v4431, %v4473
    %v4475 = vpop.f32.mrb[0].mxu0
    %v4476 = vadd.f32 %v4433, %v4475
    %v4477 = vpop.f32.mrb[0].mxu0
    %v4478 = vadd.f32 %v4435, %v4477
    %4479 = vdwg.mxu0
    %4480 = vmatprep.subr.bf16.mxu0 0
    %4481 = vmatpush1.bf16.msra.mxu0 %v2648
    %4482 = vmatprep.subr.bf16.mxu0 0
    %4483 = vmatpush1.bf16.msra.mxu0 %v2657
    %4484 = vmatprep.subr.bf16.mxu0 0
    %4485 = vmatpush1.bf16.msra.mxu0 %v2666
    %4486 = vmatprep.subr.bf16.mxu0 0
    %4487 = vmatpush1.bf16.msra.mxu0 %v2675
    %4488 = vmatprep.subr.bf16.mxu0 0
    %4489 = vmatpush1.bf16.msra.mxu0 %v2684
    %4490 = vmatprep.subr.bf16.mxu0 0
    %4491 = vmatpush1.bf16.msra.mxu0 %v2693
    %4492 = vmatprep.subr.bf16.mxu0 0
    %4493 = vmatpush1.bf16.msra.mxu0 %v2702
    %4494 = vmatprep.subr.bf16.mxu0 0
    %4495 = vmatpush1.bf16.msra.mxu0 %v2711
    %4496 = vmatprep.subr.bf16.mxu0 0
    %4497 = vmatpush1.bf16.msra.mxu0 %v2720
    %4498 = vmatprep.subr.bf16.mxu0 0
    %4499 = vmatpush1.bf16.msra.mxu0 %v2729
    %4500 = vmatprep.subr.bf16.mxu0 0
    %4501 = vmatpush1.bf16.msra.mxu0 %v2738
    %4502 = vmatprep.subr.bf16.mxu0 0
    %4503 = vmatpush1.bf16.msra.mxu0 %v2747
    %4504 = vmatprep.subr.bf16.mxu0 0
    %4505 = vmatpush1.bf16.msra.mxu0 %v2756
    %4506 = vmatprep.subr.bf16.mxu0 0
    %4507 = vmatpush1.bf16.msra.mxu0 %v2765
    %4508 = vmatprep.subr.bf16.mxu0 0
    %4509 = vmatpush1.bf16.msra.mxu0 %v2774
    %4510 = vmatprep.subr.bf16.mxu0 0
    %4511 = vmatpush1.bf16.msra.mxu0 %v2783
    %4512 = vmatprep.mubr.bf16.mxu0 %v122
    %4513 = vmatmul.mubr.bf16.gmra.mrb[0].mxu0 %v121
    %v4514 = vpop.f32.mrb[0].mxu0
    %v4515 = vadd.f32 %v838, %v4514
    %v4516 = vpop.f32.mrb[0].mxu0
    %v4517 = vpop.f32.mrb[0].mxu0
    %v4518 = vadd.f32 %v847, %v4517
    %v4519 = vpop.f32.mrb[0].mxu0
    %4520 = vdwg.mxu0
    %4521 = vmatprep.subr.bf16.mxu0 0
    %4522 = vmatpush1.bf16.msra.mxu0 %v2792
    %4523 = vmatprep.subr.bf16.mxu0 0
    %4524 = vmatpush1.bf16.msra.mxu0 %v2801
    %4525 = vmatprep.subr.bf16.mxu0 0
    %4526 = vmatpush1.bf16.msra.mxu0 %v2810
    %4527 = vmatprep.subr.bf16.mxu0 0
    %4528 = vmatpush1.bf16.msra.mxu0 %v2819
    %4529 = vmatprep.subr.bf16.mxu0 0
    %4530 = vmatpush1.bf16.msra.mxu0 %v2828
    %4531 = vmatprep.subr.bf16.mxu0 0
    %4532 = vmatpush1.bf16.msra.mxu0 %v2837
    %4533 = vmatprep.subr.bf16.mxu0 0
    %4534 = vmatpush1.bf16.msra.mxu0 %v2846
    %4535 = vmatprep.subr.bf16.mxu0 0
    %4536 = vmatpush1.bf16.msra.mxu0 %v2855
    %4537 = vmatprep.subr.bf16.mxu0 0
    %4538 = vmatpush1.bf16.msra.mxu0 %v2864
    %4539 = vmatprep.subr.bf16.mxu0 0
    %4540 = vmatpush1.bf16.msra.mxu0 %v2873
    %4541 = vmatprep.subr.bf16.mxu0 0
    %4542 = vmatpush1.bf16.msra.mxu0 %v2882
    %4543 = vmatprep.subr.bf16.mxu0 0
    %4544 = vmatpush1.bf16.msra.mxu0 %v2891
    %4545 = vmatprep.subr.bf16.mxu0 0
    %4546 = vmatpush1.bf16.msra.mxu0 %v2900
    %4547 = vmatprep.subr.bf16.mxu0 0
    %4548 = vmatpush1.bf16.msra.mxu0 %v2909
    %4549 = vmatprep.subr.bf16.mxu0 0
    %4550 = vmatpush1.bf16.msra.mxu0 %v2918
    %4551 = vmatprep.subr.bf16.mxu0 0
    %4552 = vmatpush1.bf16.msra.mxu0 %v2927
    %4553 = vmatprep.mubr.bf16.mxu0 %v124
    %4554 = vmatmul.mubr.bf16.gmra.mrb[0].mxu0 %v123
    %v4555 = vpop.f32.mrb[0].mxu0
    %v4556 = vadd.f32 %v4515, %v4555
    %v4557 = vpop.f32.mrb[0].mxu0
    %v4558 = vpop.f32.mrb[0].mxu0
    %v4559 = vadd.f32 %v4518, %v4558
    %v4560 = vpop.f32.mrb[0].mxu0
    %4561 = vdwg.mxu0
    %4562 = vmatprep.subr.bf16.mxu0 0
    %4563 = vmatpush1.bf16.msra.mxu0 %v2936
    %4564 = vmatprep.subr.bf16.mxu0 0
    %4565 = vmatpush1.bf16.msra.mxu0 %v2945
    %4566 = vmatprep.subr.bf16.mxu0 0
    %4567 = vmatpush1.bf16.msra.mxu0 %v2954
    %4568 = vmatprep.subr.bf16.mxu0 0
    %4569 = vmatpush1.bf16.msra.mxu0 %v2963
    %4570 = vmatprep.subr.bf16.mxu0 0
    %4571 = vmatpush1.bf16.msra.mxu0 %v2972
    %4572 = vmatprep.subr.bf16.mxu0 0
    %4573 = vmatpush1.bf16.msra.mxu0 %v2981
    %4574 = vmatprep.subr.bf16.mxu0 0
    %4575 = vmatpush1.bf16.msra.mxu0 %v2990
    %4576 = vmatprep.subr.bf16.mxu0 0
    %4577 = vmatpush1.bf16.msra.mxu0 %v2999
    %4578 = vmatprep.subr.bf16.mxu0 0
    %4579 = vmatpush1.bf16.msra.mxu0 %v3008
    %4580 = vmatprep.subr.bf16.mxu0 0
    %4581 = vmatpush1.bf16.msra.mxu0 %v3017
    %4582 = vmatprep.subr.bf16.mxu0 0
    %4583 = vmatpush1.bf16.msra.mxu0 %v3026
    %4584 = vmatprep.subr.bf16.mxu0 0
    %4585 = vmatpush1.bf16.msra.mxu0 %v3035
    %4586 = vmatprep.subr.bf16.mxu0 0
    %4587 = vmatpush1.bf16.msra.mxu0 %v3044
    %4588 = vmatprep.subr.bf16.mxu0 0
    %4589 = vmatpush1.bf16.msra.mxu0 %v3053
    %4590 = vmatprep.subr.bf16.mxu0 0
    %4591 = vmatpush1.bf16.msra.mxu0 %v3062
    %4592 = vmatprep.subr.bf16.mxu0 0
    %4593 = vmatpush1.bf16.msra.mxu0 %v3071
    %4594 = vmatprep.mubr.bf16.mxu0 %v126
    %4595 = vmatmul.mubr.bf16.gmra.mrb[0].mxu0 %v125
    %v4596 = vpop.f32.mrb[0].mxu0
    %v4597 = vadd.f32 %v4556, %v4596
    %v4598 = vpop.f32.mrb[0].mxu0
    %v4599 = vpop.f32.mrb[0].mxu0
    %v4600 = vadd.f32 %v4559, %v4599
    %v4601 = vpop.f32.mrb[0].mxu0
    %4602 = vdwg.mxu0
    %4603 = vmatprep.subr.bf16.mxu0 0
    %4604 = vmatpush1.bf16.msra.mxu0 %v3080
    %4605 = vmatprep.subr.bf16.mxu0 0
    %4606 = vmatpush1.bf16.msra.mxu0 %v3089
    %4607 = vmatprep.subr.bf16.mxu0 0
    %4608 = vmatpush1.bf16.msra.mxu0 %v3098
    %4609 = vmatprep.subr.bf16.mxu0 0
    %4610 = vmatpush1.bf16.msra.mxu0 %v3107
    %4611 = vmatprep.subr.bf16.mxu0 0
    %4612 = vmatpush1.bf16.msra.mxu0 %v3116
    %4613 = vmatprep.subr.bf16.mxu0 0
    %4614 = vmatpush1.bf16.msra.mxu0 %v3125
    %4615 = vmatprep.subr.bf16.mxu0 0
    %4616 = vmatpush1.bf16.msra.mxu0 %v3134
    %4617 = vmatprep.subr.bf16.mxu0 0
    %4618 = vmatpush1.bf16.msra.mxu0 %v3143
    %4619 = vmatprep.subr.bf16.mxu0 0
    %4620 = vmatpush1.bf16.msra.mxu0 %v3152
    %4621 = vmatprep.subr.bf16.mxu0 0
    %4622 = vmatpush1.bf16.msra.mxu0 %v3161
    %4623 = vmatprep.subr.bf16.mxu0 0
    %4624 = vmatpush1.bf16.msra.mxu0 %v3170
    %4625 = vmatprep.subr.bf16.mxu0 0
    %4626 = vmatpush1.bf16.msra.mxu0 %v3179
    %4627 = vmatprep.subr.bf16.mxu0 0
    %4628 = vmatpush1.bf16.msra.mxu0 %v3188
    %4629 = vmatprep.subr.bf16.mxu0 0
    %4630 = vmatpush1.bf16.msra.mxu0 %v3197
    %4631 = vmatprep.subr.bf16.mxu0 0
    %4632 = vmatpush1.bf16.msra.mxu0 %v3206
    %4633 = vmatprep.subr.bf16.mxu0 0
    %4634 = vmatpush1.bf16.msra.mxu0 %v3215
    %4635 = vmatprep.mubr.bf16.mxu0 %v128
    %4636 = vmatmul.mubr.bf16.gmra.mrb[0].mxu0 %v127
    %v4637 = vpop.f32.mrb[0].mxu0
    %v4638 = vadd.f32 %v4597, %v4637
    %v4639 = vpop.f32.mrb[0].mxu0
    %v4640 = vpop.f32.mrb[0].mxu0
    %v4641 = vadd.f32 %v4600, %v4640
    %v4642 = vpop.f32.mrb[0].mxu0
    %4643 = vdwg.mxu0
    %v4644 = vld [vmem:[#allocation7] sm:$0xff]
    %v4645 = vld [vmem:[#allocation7 + $0x8] sm:$0x1]
    %v4648 = vlaneseq
    %v4649 = vshrl.u32 %v4648, 7
    %v4650 = vsub.s32 0, %v4649
    %v4651 = vrot.slane %v4644, %v4650
    %v4652 = vlaneseq
    %v4653 = vshrl.u32 %v4652, 7
    %v4654 = vsub.s32 1, %v4653
    %v4655 = vrot.slane %v4644, %v4654
    %v4656 = vlaneseq
    %v4657 = vshrl.u32 %v4656, 7
    %v4658 = vsub.s32 2, %v4657
    %v4659 = vrot.slane %v4644, %v4658
    %v4660 = vlaneseq
    %v4661 = vshrl.u32 %v4660, 7
    %v4662 = vsub.s32 3, %v4661
    %v4663 = vrot.slane %v4644, %v4662
    %v4664 = vlaneseq
    %v4665 = vshrl.u32 %v4664, 7
    %v4666 = vsub.s32 4, %v4665
    %v4667 = vrot.slane %v4644, %v4666
    %v4668 = vlaneseq
    %v4669 = vshrl.u32 %v4668, 7
    %v4670 = vsub.s32 5, %v4669
    %v4671 = vrot.slane %v4644, %v4670
    %v4672 = vlaneseq
    %v4673 = vshrl.u32 %v4672, 7
    %v4674 = vsub.s32 6, %v4673
    %v4675 = vrot.slane %v4644, %v4674
    %v4676 = vlaneseq
    %v4677 = vshrl.u32 %v4676, 7
    %v4678 = vsub.s32 7, %v4677
    %v4679 = vrot.slane %v4644, %v4678
    %v4680 = vlaneseq
    %v4681 = vshrl.u32 %v4680, 7
    %v4682 = vsub.s32 0, %v4681
    %v4683 = vrot.slane %v4645, %v4682
    %v4693 = vadd.f32 %v3956, %v4651
    %v4694 = vadd.f32 %v3958, %v4655
    %v4695 = vadd.f32 %v4128, %v4659
    %v4696 = vadd.f32 %v4130, %v4663
    %v4697 = vadd.f32 %v4300, %v4667
    %v4698 = vadd.f32 %v4302, %v4671
    %v4699 = vadd.f32 %v4472, %v4675
    %v4700 = vadd.f32 %v4474, %v4679
    %v4701 = vadd.f32 %v4638, %v4683
    %v4702 = vadd.f32 %v3960, %v4651
    %v4703 = vadd.f32 %v3962, %v4655
    %v4704 = vadd.f32 %v4132, %v4659
    %v4705 = vadd.f32 %v4134, %v4663
    %v4706 = vadd.f32 %v4304, %v4667
    %v4707 = vadd.f32 %v4306, %v4671
    %v4708 = vadd.f32 %v4476, %v4675
    %v4709 = vadd.f32 %v4478, %v4679
    %v4710 = vadd.f32 %v4641, %v4683
    %v4711 = vmax.f32 %v4693, 0.0
    %v4712 = vmax.f32 %v4694, 0.0
    %v4713 = vmax.f32 %v4695, 0.0
    %v4714 = vmax.f32 %v4696, 0.0
    %v4715 = vmax.f32 %v4697, 0.0
    %v4716 = vmax.f32 %v4698, 0.0
    %v4717 = vmax.f32 %v4699, 0.0
    %v4718 = vmax.f32 %v4700, 0.0
    %v4719 = vmax.f32 %v4701, 0.0
    %v4720 = vmax.f32 %v4702, 0.0
    %v4721 = vmax.f32 %v4703, 0.0
    %v4722 = vmax.f32 %v4704, 0.0
    %v4723 = vmax.f32 %v4705, 0.0
    %v4724 = vmax.f32 %v4706, 0.0
    %v4725 = vmax.f32 %v4707, 0.0
    %v4726 = vmax.f32 %v4708, 0.0
    %v4727 = vmax.f32 %v4709, 0.0
    %v4728 = vmax.f32 %v4710, 0.0
    %v4729 = vpack.c.bf16 %v4720, %v4711
    %v4730 = vpack.c.bf16 %v4721, %v4712
    %v4731 = vpack.c.bf16 %v4722, %v4713
    %v4732 = vpack.c.bf16 %v4723, %v4714
    %v4733 = vpack.c.bf16 %v4724, %v4715
    %v4734 = vpack.c.bf16 %v4725, %v4716
    %v4735 = vpack.c.bf16 %v4726, %v4717
    %v4736 = vpack.c.bf16 %v4727, %v4718
    %v4737 = vpack.c.bf16 %v4728, %v4719
    %v4738 = vld [vmem:[#allocation8] sm:$0xff]
    %v4739 = vld [vmem:[#allocation8 + $0x8] sm:$0xff]
    %v4740 = vld [vmem:[#allocation8 + $0x10] sm:$0xff]
    %v4741 = vld [vmem:[#allocation8 + $0x18] sm:$0xff]
    %v4742 = vld [vmem:[#allocation8 + $0x20] sm:$0xf]
    %v4743 = vld [vmem:[#allocation8 + $0x24] sm:$0xff]
    %v4744 = vld [vmem:[#allocation8 + $0x2c] sm:$0xff]
    %v4745 = vld [vmem:[#allocation8 + $0x34] sm:$0xff]
    %v4746 = vld [vmem:[#allocation8 + $0x3c] sm:$0xff]
    %v4747 = vld [vmem:[#allocation8 + $0x44] sm:$0xf]
    %v4748 = vld [vmem:[#allocation8 + $0x48] sm:$0xff]
    %v4749 = vld [vmem:[#allocation8 + $0x50] sm:$0xff]
    %v4750 = vld [vmem:[#allocation8 + $0x58] sm:$0xff]
    %v4751 = vld [vmem:[#allocation8 + $0x60] sm:$0xff]
    %v4752 = vld [vmem:[#allocation8 + $0x68] sm:$0xf]
    %v4753 = vld [vmem:[#allocation8 + $0x6c] sm:$0xff]
    %v4754 = vld [vmem:[#allocation8 + $0x74] sm:$0xff]
    %v4755 = vld [vmem:[#allocation8 + $0x7c] sm:$0xff]
    %v4756 = vld [vmem:[#allocation8 + $0x84] sm:$0xff]
    %v4757 = vld [vmem:[#allocation8 + $0x8c] sm:$0xf]
    %v4758 = vld [vmem:[#allocation8 + $0x90] sm:$0xff]
    %v4759 = vld [vmem:[#allocation8 + $0x98] sm:$0xff]
    %v4760 = vld [vmem:[#allocation8 + $0xa0] sm:$0xff]
    %v4761 = vld [vmem:[#allocation8 + $0xa8] sm:$0xff]
    %v4762 = vld [vmem:[#allocation8 + $0xb0] sm:$0xf]
    %v4763 = vld [vmem:[#allocation8 + $0xb4] sm:$0xff]
    %v4764 = vld [vmem:[#allocation8 + $0xbc] sm:$0xff]
    %v4765 = vld [vmem:[#allocation8 + $0xc4] sm:$0xff]
    %v4766 = vld [vmem:[#allocation8 + $0xcc] sm:$0xff]
    %v4767 = vld [vmem:[#allocation8 + $0xd4] sm:$0xf]
    %v4768 = vld [vmem:[#allocation8 + $0xd8] sm:$0xff]
    %v4769 = vld [vmem:[#allocation8 + $0xe0] sm:$0xff]
    %v4770 = vld [vmem:[#allocation8 + $0xe8] sm:$0xff]
    %v4771 = vld [vmem:[#allocation8 + $0xf0] sm:$0xff]
    %v4772 = vld [vmem:[#allocation8 + $0xf8] sm:$0xf]
    %v4773 = vld [vmem:[#allocation8 + $0xfc] sm:$0xff]
    %v4774 = vld [vmem:[#allocation8 + $0x104] sm:$0xff]
    %v4775 = vld [vmem:[#allocation8 + $0x10c] sm:$0xff]
    %v4776 = vld [vmem:[#allocation8 + $0x114] sm:$0xff]
    %v4777 = vld [vmem:[#allocation8 + $0x11c] sm:$0xf]
    %v4778 = vld [vmem:[#allocation8 + $0x120] sm:$0xff]
    %v4779 = vld [vmem:[#allocation8 + $0x128] sm:$0xff]
    %v4780 = vld [vmem:[#allocation8 + $0x130] sm:$0xff]
    %v4781 = vld [vmem:[#allocation8 + $0x138] sm:$0xff]
    %v4782 = vld [vmem:[#allocation8 + $0x140] sm:$0xf]
    %v4783 = vld [vmem:[#allocation8 + $0x144] sm:$0xff]
    %v4784 = vld [vmem:[#allocation8 + $0x14c] sm:$0xff]
    %v4785 = vld [vmem:[#allocation8 + $0x154] sm:$0xff]
    %v4786 = vld [vmem:[#allocation8 + $0x15c] sm:$0xff]
    %v4787 = vld [vmem:[#allocation8 + $0x164] sm:$0xf]
    %v4788 = vld [vmem:[#allocation8 + $0x168] sm:$0xff]
    %v4789 = vld [vmem:[#allocation8 + $0x170] sm:$0xff]
    %v4790 = vld [vmem:[#allocation8 + $0x178] sm:$0xff]
    %v4791 = vld [vmem:[#allocation8 + $0x180] sm:$0xff]
    %v4792 = vld [vmem:[#allocation8 + $0x188] sm:$0xf]
    %v4793 = vld [vmem:[#allocation8 + $0x18c] sm:$0xff]
    %v4794 = vld [vmem:[#allocation8 + $0x194] sm:$0xff]
    %v4795 = vld [vmem:[#allocation8 + $0x19c] sm:$0xff]
    %v4796 = vld [vmem:[#allocation8 + $0x1a4] sm:$0xff]
    %v4797 = vld [vmem:[#allocation8 + $0x1ac] sm:$0xf]
    %v4798 = vld [vmem:[#allocation8 + $0x1b0] sm:$0xff]
    %v4799 = vld [vmem:[#allocation8 + $0x1b8] sm:$0xff]
    %v4800 = vld [vmem:[#allocation8 + $0x1c0] sm:$0xff]
    %v4801 = vld [vmem:[#allocation8 + $0x1c8] sm:$0xff]
    %v4802 = vld [vmem:[#allocation8 + $0x1d0] sm:$0xf]
    %v4803 = vld [vmem:[#allocation8 + $0x1d4] sm:$0xff]
    %v4804 = vld [vmem:[#allocation8 + $0x1dc] sm:$0xff]
    %v4805 = vld [vmem:[#allocation8 + $0x1e4] sm:$0xff]
    %v4806 = vld [vmem:[#allocation8 + $0x1ec] sm:$0xff]
    %v4807 = vld [vmem:[#allocation8 + $0x1f4] sm:$0xf]
    %v4808 = vld [vmem:[#allocation8 + $0x1f8] sm:$0xff]
    %v4809 = vld [vmem:[#allocation8 + $0x200] sm:$0xff]
    %v4810 = vld [vmem:[#allocation8 + $0x208] sm:$0xff]
    %v4811 = vld [vmem:[#allocation8 + $0x210] sm:$0xff]
    %v4812 = vld [vmem:[#allocation8 + $0x218] sm:$0xf]
    %v4813 = vld [vmem:[#allocation8 + $0x21c] sm:$0xff]
    %v4814 = vld [vmem:[#allocation8 + $0x224] sm:$0xff]
    %v4815 = vld [vmem:[#allocation8 + $0x22c] sm:$0xff]
    %v4816 = vld [vmem:[#allocation8 + $0x234] sm:$0xff]
    %v4817 = vld [vmem:[#allocation8 + $0x23c] sm:$0xf]
    %v4818 = vld [vmem:[#allocation8 + $0x240] sm:$0xff]
    %v4819 = vld [vmem:[#allocation8 + $0x248] sm:$0xff]
    %v4820 = vld [vmem:[#allocation8 + $0x250] sm:$0xff]
    %v4821 = vld [vmem:[#allocation8 + $0x258] sm:$0xff]
    %v4822 = vld [vmem:[#allocation8 + $0x260] sm:$0xf]
    %v4823 = vld [vmem:[#allocation8 + $0x264] sm:$0xff]
    %v4824 = vld [vmem:[#allocation8 + $0x26c] sm:$0xff]
    %v4825 = vld [vmem:[#allocation8 + $0x274] sm:$0xff]
    %v4826 = vld [vmem:[#allocation8 + $0x27c] sm:$0xff]
    %v4827 = vld [vmem:[#allocation8 + $0x284] sm:$0xf]
    %v4828 = vld [vmem:[#allocation8 + $0x288] sm:$0xff]
    %v4829 = vld [vmem:[#allocation8 + $0x290] sm:$0xff]
    %v4830 = vld [vmem:[#allocation8 + $0x298] sm:$0xff]
    %v4831 = vld [vmem:[#allocation8 + $0x2a0] sm:$0xff]
    %v4832 = vld [vmem:[#allocation8 + $0x2a8] sm:$0xf]
    %v4833 = vld [vmem:[#allocation8 + $0x2ac] sm:$0xff]
    %v4834 = vld [vmem:[#allocation8 + $0x2b4] sm:$0xff]
    %v4835 = vld [vmem:[#allocation8 + $0x2bc] sm:$0xff]
    %v4836 = vld [vmem:[#allocation8 + $0x2c4] sm:$0xff]
    %v4837 = vld [vmem:[#allocation8 + $0x2cc] sm:$0xf]
    %v4838 = vld [vmem:[#allocation8 + $0x2d0] sm:$0xff]
    %v4839 = vld [vmem:[#allocation8 + $0x2d8] sm:$0xff]
    %v4840 = vld [vmem:[#allocation8 + $0x2e0] sm:$0xff]
    %v4841 = vld [vmem:[#allocation8 + $0x2e8] sm:$0xff]
    %v4842 = vld [vmem:[#allocation8 + $0x2f0] sm:$0xf]
    %v4843 = vld [vmem:[#allocation8 + $0x2f4] sm:$0xff]
    %v4844 = vld [vmem:[#allocation8 + $0x2fc] sm:$0xff]
    %v4845 = vld [vmem:[#allocation8 + $0x304] sm:$0xff]
    %v4846 = vld [vmem:[#allocation8 + $0x30c] sm:$0xff]
    %v4847 = vld [vmem:[#allocation8 + $0x314] sm:$0xf]
    %v4848 = vld [vmem:[#allocation8 + $0x318] sm:$0xff]
    %v4849 = vld [vmem:[#allocation8 + $0x320] sm:$0xff]
    %v4850 = vld [vmem:[#allocation8 + $0x328] sm:$0xff]
    %v4851 = vld [vmem:[#allocation8 + $0x330] sm:$0xff]
    %v4852 = vld [vmem:[#allocation8 + $0x338] sm:$0xf]
    %v4853 = vld [vmem:[#allocation8 + $0x33c] sm:$0xff]
    %v4854 = vld [vmem:[#allocation8 + $0x344] sm:$0xff]
    %v4855 = vld [vmem:[#allocation8 + $0x34c] sm:$0xff]
    %v4856 = vld [vmem:[#allocation8 + $0x354] sm:$0xff]
    %v4857 = vld [vmem:[#allocation8 + $0x35c] sm:$0xf]
    %v4858 = vld [vmem:[#allocation8 + $0x360] sm:$0xff]
    %v4859 = vld [vmem:[#allocation8 + $0x368] sm:$0xff]
    %v4860 = vld [vmem:[#allocation8 + $0x370] sm:$0xff]
    %v4861 = vld [vmem:[#allocation8 + $0x378] sm:$0xff]
    %v4862 = vld [vmem:[#allocation8 + $0x380] sm:$0xf]
    %v4863 = vld [vmem:[#allocation8 + $0x384] sm:$0xff]
    %v4864 = vld [vmem:[#allocation8 + $0x38c] sm:$0xff]
    %v4865 = vld [vmem:[#allocation8 + $0x394] sm:$0xff]
    %v4866 = vld [vmem:[#allocation8 + $0x39c] sm:$0xff]
    %v4867 = vld [vmem:[#allocation8 + $0x3a4] sm:$0xf]
    %v4868 = vld [vmem:[#allocation8 + $0x3a8] sm:$0xff]
    %v4869 = vld [vmem:[#allocation8 + $0x3b0] sm:$0xff]
    %v4870 = vld [vmem:[#allocation8 + $0x3b8] sm:$0xff]
    %v4871 = vld [vmem:[#allocation8 + $0x3c0] sm:$0xff]
    %v4872 = vld [vmem:[#allocation8 + $0x3c8] sm:$0xf]
    %v4873 = vld [vmem:[#allocation8 + $0x3cc] sm:$0xff]
    %v4874 = vld [vmem:[#allocation8 + $0x3d4] sm:$0xff]
    %v4875 = vld [vmem:[#allocation8 + $0x3dc] sm:$0xff]
    %v4876 = vld [vmem:[#allocation8 + $0x3e4] sm:$0xff]
    %v4877 = vld [vmem:[#allocation8 + $0x3ec] sm:$0xf]
    %v4878 = vld [vmem:[#allocation8 + $0x3f0] sm:$0xff]
    %v4879 = vld [vmem:[#allocation8 + $0x3f8] sm:$0xff]
    %v4880 = vld [vmem:[#allocation8 + $0x400] sm:$0xff]
    %v4881 = vld [vmem:[#allocation8 + $0x408] sm:$0xff]
    %v4882 = vld [vmem:[#allocation8 + $0x410] sm:$0xf]
    %v4883 = vld [vmem:[#allocation8 + $0x414] sm:$0xff]
    %v4884 = vld [vmem:[#allocation8 + $0x41c] sm:$0xff]
    %v4885 = vld [vmem:[#allocation8 + $0x424] sm:$0xff]
    %v4886 = vld [vmem:[#allocation8 + $0x42c] sm:$0xff]
    %v4887 = vld [vmem:[#allocation8 + $0x434] sm:$0xf]
    %v4888 = vld [vmem:[#allocation8 + $0x438] sm:$0xff]
    %v4889 = vld [vmem:[#allocation8 + $0x440] sm:$0xff]
    %v4890 = vld [vmem:[#allocation8 + $0x448] sm:$0xff]
    %v4891 = vld [vmem:[#allocation8 + $0x450] sm:$0xff]
    %v4892 = vld [vmem:[#allocation8 + $0x458] sm:$0xf]
    %v4893 = vld [vmem:[#allocation8 + $0x45c] sm:$0xff]
    %v4894 = vld [vmem:[#allocation8 + $0x464] sm:$0xff]
    %v4895 = vld [vmem:[#allocation8 + $0x46c] sm:$0xff]
    %v4896 = vld [vmem:[#allocation8 + $0x474] sm:$0xff]
    %v4897 = vld [vmem:[#allocation8 + $0x47c] sm:$0xf]
    %v4898 = vld [vmem:[#allocation8 + $0x480] sm:$0xff]
    %v4899 = vld [vmem:[#allocation8 + $0x488] sm:$0xff]
    %v4900 = vld [vmem:[#allocation8 + $0x490] sm:$0xff]
    %v4901 = vld [vmem:[#allocation8 + $0x498] sm:$0xff]
    %v4902 = vld [vmem:[#allocation8 + $0x4a0] sm:$0xf]
    %v4903 = vld [vmem:[#allocation8 + $0x4a4] sm:$0xff]
    %v4904 = vld [vmem:[#allocation8 + $0x4ac] sm:$0xff]
    %v4905 = vld [vmem:[#allocation8 + $0x4b4] sm:$0xff]
    %v4906 = vld [vmem:[#allocation8 + $0x4bc] sm:$0xff]
    %v4907 = vld [vmem:[#allocation8 + $0x4c4] sm:$0xf]
    %v4908 = vld [vmem:[#allocation8 + $0x4c8] sm:$0xff]
    %v4909 = vld [vmem:[#allocation8 + $0x4d0] sm:$0xff]
    %v4910 = vld [vmem:[#allocation8 + $0x4d8] sm:$0xff]
    %v4911 = vld [vmem:[#allocation8 + $0x4e0] sm:$0xff]
    %v4912 = vld [vmem:[#allocation8 + $0x4e8] sm:$0xf]
    %v4913 = vld [vmem:[#allocation8 + $0x4ec] sm:$0xff]
    %v4914 = vld [vmem:[#allocation8 + $0x4f4] sm:$0xff]
    %v4915 = vld [vmem:[#allocation8 + $0x4fc] sm:$0xff]
    %v4916 = vld [vmem:[#allocation8 + $0x504] sm:$0xff]
    %v4917 = vld [vmem:[#allocation8 + $0x50c] sm:$0xf]
    %v4918 = vld [vmem:[#allocation8 + $0x510] sm:$0xff]
    %v4919 = vld [vmem:[#allocation8 + $0x518] sm:$0xff]
    %v4920 = vld [vmem:[#allocation8 + $0x520] sm:$0xff]
    %v4921 = vld [vmem:[#allocation8 + $0x528] sm:$0xff]
    %v4922 = vld [vmem:[#allocation8 + $0x530] sm:$0xf]
    %v4923 = vld [vmem:[#allocation8 + $0x534] sm:$0xff]
    %v4924 = vld [vmem:[#allocation8 + $0x53c] sm:$0xff]
    %v4925 = vld [vmem:[#allocation8 + $0x544] sm:$0xff]
    %v4926 = vld [vmem:[#allocation8 + $0x54c] sm:$0xff]
    %v4927 = vld [vmem:[#allocation8 + $0x554] sm:$0xf]
    %v4928 = vld [vmem:[#allocation8 + $0x558] sm:$0xff]
    %v4929 = vld [vmem:[#allocation8 + $0x560] sm:$0xff]
    %v4930 = vld [vmem:[#allocation8 + $0x568] sm:$0xff]
    %v4931 = vld [vmem:[#allocation8 + $0x570] sm:$0xff]
    %v4932 = vld [vmem:[#allocation8 + $0x578] sm:$0xf]
    %v4933 = vld [vmem:[#allocation8 + $0x57c] sm:$0xff]
    %v4934 = vld [vmem:[#allocation8 + $0x584] sm:$0xff]
    %v4935 = vld [vmem:[#allocation8 + $0x58c] sm:$0xff]
    %v4936 = vld [vmem:[#allocation8 + $0x594] sm:$0xff]
    %v4937 = vld [vmem:[#allocation8 + $0x59c] sm:$0xf]
    %v4938 = vld [vmem:[#allocation8 + $0x5a0] sm:$0xff]
    %v4939 = vld [vmem:[#allocation8 + $0x5a8] sm:$0xff]
    %v4940 = vld [vmem:[#allocation8 + $0x5b0] sm:$0xff]
    %v4941 = vld [vmem:[#allocation8 + $0x5b8] sm:$0xff]
    %v4942 = vld [vmem:[#allocation8 + $0x5c0] sm:$0xf]
    %v4943 = vld [vmem:[#allocation8 + $0x5c4] sm:$0xff]
    %v4944 = vld [vmem:[#allocation8 + $0x5cc] sm:$0xff]
    %v4945 = vld [vmem:[#allocation8 + $0x5d4] sm:$0xff]
    %v4946 = vld [vmem:[#allocation8 + $0x5dc] sm:$0xff]
    %v4947 = vld [vmem:[#allocation8 + $0x5e4] sm:$0xf]
    %v4948 = vld [vmem:[#allocation8 + $0x5e8] sm:$0xff]
    %v4949 = vld [vmem:[#allocation8 + $0x5f0] sm:$0xff]
    %v4950 = vld [vmem:[#allocation8 + $0x5f8] sm:$0xff]
    %v4951 = vld [vmem:[#allocation8 + $0x600] sm:$0xff]
    %v4952 = vld [vmem:[#allocation8 + $0x608] sm:$0xf]
    %v4953 = vld [vmem:[#allocation8 + $0x60c] sm:$0xff]
    %v4954 = vld [vmem:[#allocation8 + $0x614] sm:$0xff]
    %v4955 = vld [vmem:[#allocation8 + $0x61c] sm:$0xff]
    %v4956 = vld [vmem:[#allocation8 + $0x624] sm:$0xff]
    %v4957 = vld [vmem:[#allocation8 + $0x62c] sm:$0xf]
    %v4958 = vld [vmem:[#allocation8 + $0x630] sm:$0xff]
    %v4959 = vld [vmem:[#allocation8 + $0x638] sm:$0xff]
    %v4960 = vld [vmem:[#allocation8 + $0x640] sm:$0xff]
    %v4961 = vld [vmem:[#allocation8 + $0x648] sm:$0xff]
    %v4962 = vld [vmem:[#allocation8 + $0x650] sm:$0xf]
    %v4963 = vld [vmem:[#allocation8 + $0x654] sm:$0xff]
    %v4964 = vld [vmem:[#allocation8 + $0x65c] sm:$0xff]
    %v4965 = vld [vmem:[#allocation8 + $0x664] sm:$0xff]
    %v4966 = vld [vmem:[#allocation8 + $0x66c] sm:$0xff]
    %v4967 = vld [vmem:[#allocation8 + $0x674] sm:$0xf]
    %v4968 = vld [vmem:[#allocation8 + $0x678] sm:$0xff]
    %v4969 = vld [vmem:[#allocation8 + $0x680] sm:$0xff]
    %v4970 = vld [vmem:[#allocation8 + $0x688] sm:$0xff]
    %v4971 = vld [vmem:[#allocation8 + $0x690] sm:$0xff]
    %v4972 = vld [vmem:[#allocation8 + $0x698] sm:$0xf]
    %v4973 = vld [vmem:[#allocation8 + $0x69c] sm:$0xff]
    %v4974 = vld [vmem:[#allocation8 + $0x6a4] sm:$0xff]
    %v4975 = vld [vmem:[#allocation8 + $0x6ac] sm:$0xff]
    %v4976 = vld [vmem:[#allocation8 + $0x6b4] sm:$0xff]
    %v4977 = vld [vmem:[#allocation8 + $0x6bc] sm:$0xf]
    %v4978 = vld [vmem:[#allocation8 + $0x6c0] sm:$0xff]
    %v4979 = vld [vmem:[#allocation8 + $0x6c8] sm:$0xff]
    %v4980 = vld [vmem:[#allocation8 + $0x6d0] sm:$0xff]
    %v4981 = vld [vmem:[#allocation8 + $0x6d8] sm:$0xff]
    %v4982 = vld [vmem:[#allocation8 + $0x6e0] sm:$0xf]
    %v4983 = vld [vmem:[#allocation8 + $0x6e4] sm:$0xff]
    %v4984 = vld [vmem:[#allocation8 + $0x6ec] sm:$0xff]
    %v4985 = vld [vmem:[#allocation8 + $0x6f4] sm:$0xff]
    %v4986 = vld [vmem:[#allocation8 + $0x6fc] sm:$0xff]
    %v4987 = vld [vmem:[#allocation8 + $0x704] sm:$0xf]
    %v4988 = vld [vmem:[#allocation8 + $0x708] sm:$0xff]
    %v4989 = vld [vmem:[#allocation8 + $0x710] sm:$0xff]
    %v4990 = vld [vmem:[#allocation8 + $0x718] sm:$0xff]
    %v4991 = vld [vmem:[#allocation8 + $0x720] sm:$0xff]
    %v4992 = vld [vmem:[#allocation8 + $0x728] sm:$0xf]
    %v4993 = vld [vmem:[#allocation8 + $0x72c] sm:$0xff]
    %v4994 = vld [vmem:[#allocation8 + $0x734] sm:$0xff]
    %v4995 = vld [vmem:[#allocation8 + $0x73c] sm:$0xff]
    %v4996 = vld [vmem:[#allocation8 + $0x744] sm:$0xff]
    %v4997 = vld [vmem:[#allocation8 + $0x74c] sm:$0xf]
    %v4998 = vld [vmem:[#allocation8 + $0x750] sm:$0xff]
    %v4999 = vld [vmem:[#allocation8 + $0x758] sm:$0xff]
    %v5000 = vld [vmem:[#allocation8 + $0x760] sm:$0xff]
    %v5001 = vld [vmem:[#allocation8 + $0x768] sm:$0xff]
    %v5002 = vld [vmem:[#allocation8 + $0x770] sm:$0xf]
    %v5003 = vld [vmem:[#allocation8 + $0x774] sm:$0xff]
    %v5004 = vld [vmem:[#allocation8 + $0x77c] sm:$0xff]
    %v5005 = vld [vmem:[#allocation8 + $0x784] sm:$0xff]
    %v5006 = vld [vmem:[#allocation8 + $0x78c] sm:$0xff]
    %v5007 = vld [vmem:[#allocation8 + $0x794] sm:$0xf]
    %v5008 = vld [vmem:[#allocation8 + $0x798] sm:$0xff]
    %v5009 = vld [vmem:[#allocation8 + $0x7a0] sm:$0xff]
    %v5010 = vld [vmem:[#allocation8 + $0x7a8] sm:$0xff]
    %v5011 = vld [vmem:[#allocation8 + $0x7b0] sm:$0xff]
    %v5012 = vld [vmem:[#allocation8 + $0x7b8] sm:$0xf]
    %v5013 = vld [vmem:[#allocation8 + $0x7bc] sm:$0xff]
    %v5014 = vld [vmem:[#allocation8 + $0x7c4] sm:$0xff]
    %v5015 = vld [vmem:[#allocation8 + $0x7cc] sm:$0xff]
    %v5016 = vld [vmem:[#allocation8 + $0x7d4] sm:$0xff]
    %v5017 = vld [vmem:[#allocation8 + $0x7dc] sm:$0xf]
    %v5018 = vld [vmem:[#allocation8 + $0x7e0] sm:$0xff]
    %v5019 = vld [vmem:[#allocation8 + $0x7e8] sm:$0xff]
    %v5020 = vld [vmem:[#allocation8 + $0x7f0] sm:$0xff]
    %v5021 = vld [vmem:[#allocation8 + $0x7f8] sm:$0xff]
    %v5022 = vld [vmem:[#allocation8 + $0x800] sm:$0xf]
    %v5023 = vld [vmem:[#allocation8 + $0x804] sm:$0xff]
    %v5024 = vld [vmem:[#allocation8 + $0x80c] sm:$0xff]
    %v5025 = vld [vmem:[#allocation8 + $0x814] sm:$0xff]
    %v5026 = vld [vmem:[#allocation8 + $0x81c] sm:$0xff]
    %v5027 = vld [vmem:[#allocation8 + $0x824] sm:$0xf]
    %v5028 = vld [vmem:[#allocation8 + $0x828] sm:$0xff]
    %v5029 = vld [vmem:[#allocation8 + $0x830] sm:$0xff]
    %v5030 = vld [vmem:[#allocation8 + $0x838] sm:$0xff]
    %v5031 = vld [vmem:[#allocation8 + $0x840] sm:$0xff]
    %v5032 = vld [vmem:[#allocation8 + $0x848] sm:$0xf]
    %v5033 = vld [vmem:[#allocation8 + $0x84c] sm:$0xff]
    %v5034 = vld [vmem:[#allocation8 + $0x854] sm:$0xff]
    %v5035 = vld [vmem:[#allocation8 + $0x85c] sm:$0xff]
    %v5036 = vld [vmem:[#allocation8 + $0x864] sm:$0xff]
    %v5037 = vld [vmem:[#allocation8 + $0x86c] sm:$0xf]
    %v5038 = vld [vmem:[#allocation8 + $0x870] sm:$0xff]
    %v5039 = vld [vmem:[#allocation8 + $0x878] sm:$0xff]
    %v5040 = vld [vmem:[#allocation8 + $0x880] sm:$0xff]
    %v5041 = vld [vmem:[#allocation8 + $0x888] sm:$0xff]
    %v5042 = vld [vmem:[#allocation8 + $0x890] sm:$0xf]
    %v5043 = vld [vmem:[#allocation8 + $0x894] sm:$0xff]
    %v5044 = vld [vmem:[#allocation8 + $0x89c] sm:$0xff]
    %v5045 = vld [vmem:[#allocation8 + $0x8a4] sm:$0xff]
    %v5046 = vld [vmem:[#allocation8 + $0x8ac] sm:$0xff]
    %v5047 = vld [vmem:[#allocation8 + $0x8b4] sm:$0xf]
    %v5048 = vld [vmem:[#allocation8 + $0x8b8] sm:$0xff]
    %v5049 = vld [vmem:[#allocation8 + $0x8c0] sm:$0xff]
    %v5050 = vld [vmem:[#allocation8 + $0x8c8] sm:$0xff]
    %v5051 = vld [vmem:[#allocation8 + $0x8d0] sm:$0xff]
    %v5052 = vld [vmem:[#allocation8 + $0x8d8] sm:$0xf]
    %v5053 = vld [vmem:[#allocation8 + $0x8dc] sm:$0xff]
    %v5054 = vld [vmem:[#allocation8 + $0x8e4] sm:$0xff]
    %v5055 = vld [vmem:[#allocation8 + $0x8ec] sm:$0xff]
    %v5056 = vld [vmem:[#allocation8 + $0x8f4] sm:$0xff]
    %v5057 = vld [vmem:[#allocation8 + $0x8fc] sm:$0xf]
    %v5058 = vld [vmem:[#allocation8 + $0x900] sm:$0xff]
    %v5059 = vld [vmem:[#allocation8 + $0x908] sm:$0xff]
    %v5060 = vld [vmem:[#allocation8 + $0x910] sm:$0xff]
    %v5061 = vld [vmem:[#allocation8 + $0x918] sm:$0xff]
    %v5062 = vld [vmem:[#allocation8 + $0x920] sm:$0xf]
    %v5063 = vld [vmem:[#allocation8 + $0x924] sm:$0xff]
    %v5064 = vld [vmem:[#allocation8 + $0x92c] sm:$0xff]
    %v5065 = vld [vmem:[#allocation8 + $0x934] sm:$0xff]
    %v5066 = vld [vmem:[#allocation8 + $0x93c] sm:$0xff]
    %v5067 = vld [vmem:[#allocation8 + $0x944] sm:$0xf]
    %v5068 = vld [vmem:[#allocation8 + $0x948] sm:$0xff]
    %v5069 = vld [vmem:[#allocation8 + $0x950] sm:$0xff]
    %v5070 = vld [vmem:[#allocation8 + $0x958] sm:$0xff]
    %v5071 = vld [vmem:[#allocation8 + $0x960] sm:$0xff]
    %v5072 = vld [vmem:[#allocation8 + $0x968] sm:$0xf]
    %v5073 = vld [vmem:[#allocation8 + $0x96c] sm:$0xff]
    %v5074 = vld [vmem:[#allocation8 + $0x974] sm:$0xff]
    %v5075 = vld [vmem:[#allocation8 + $0x97c] sm:$0xff]
    %v5076 = vld [vmem:[#allocation8 + $0x984] sm:$0xff]
    %v5077 = vld [vmem:[#allocation8 + $0x98c] sm:$0xf]
    %v5078 = vld [vmem:[#allocation8 + $0x990] sm:$0xff]
    %v5079 = vld [vmem:[#allocation8 + $0x998] sm:$0xff]
    %v5080 = vld [vmem:[#allocation8 + $0x9a0] sm:$0xff]
    %v5081 = vld [vmem:[#allocation8 + $0x9a8] sm:$0xff]
    %v5082 = vld [vmem:[#allocation8 + $0x9b0] sm:$0xf]
    %v5083 = vld [vmem:[#allocation8 + $0x9b4] sm:$0xff]
    %v5084 = vld [vmem:[#allocation8 + $0x9bc] sm:$0xff]
    %v5085 = vld [vmem:[#allocation8 + $0x9c4] sm:$0xff]
    %v5086 = vld [vmem:[#allocation8 + $0x9cc] sm:$0xff]
    %v5087 = vld [vmem:[#allocation8 + $0x9d4] sm:$0xf]
    %v5088 = vld [vmem:[#allocation8 + $0x9d8] sm:$0xff]
    %v5089 = vld [vmem:[#allocation8 + $0x9e0] sm:$0xff]
    %v5090 = vld [vmem:[#allocation8 + $0x9e8] sm:$0xff]
    %v5091 = vld [vmem:[#allocation8 + $0x9f0] sm:$0xff]
    %v5092 = vld [vmem:[#allocation8 + $0x9f8] sm:$0xf]
    %v5093 = vld [vmem:[#allocation8 + $0x9fc] sm:$0xff]
    %v5094 = vld [vmem:[#allocation8 + $0xa04] sm:$0xff]
    %v5095 = vld [vmem:[#allocation8 + $0xa0c] sm:$0xff]
    %v5096 = vld [vmem:[#allocation8 + $0xa14] sm:$0xff]
    %v5097 = vld [vmem:[#allocation8 + $0xa1c] sm:$0xf]
    %v5098 = vld [vmem:[#allocation8 + $0xa20] sm:$0xff]
    %v5099 = vld [vmem:[#allocation8 + $0xa28] sm:$0xff]
    %v5100 = vld [vmem:[#allocation8 + $0xa30] sm:$0xff]
    %v5101 = vld [vmem:[#allocation8 + $0xa38] sm:$0xff]
    %v5102 = vld [vmem:[#allocation8 + $0xa40] sm:$0xf]
    %v5103 = vld [vmem:[#allocation8 + $0xa44] sm:$0xff]
    %v5104 = vld [vmem:[#allocation8 + $0xa4c] sm:$0xff]
    %v5105 = vld [vmem:[#allocation8 + $0xa54] sm:$0xff]
    %v5106 = vld [vmem:[#allocation8 + $0xa5c] sm:$0xff]
    %v5107 = vld [vmem:[#allocation8 + $0xa64] sm:$0xf]
    %v5108 = vld [vmem:[#allocation8 + $0xa68] sm:$0xff]
    %v5109 = vld [vmem:[#allocation8 + $0xa70] sm:$0xff]
    %v5110 = vld [vmem:[#allocation8 + $0xa78] sm:$0xff]
    %v5111 = vld [vmem:[#allocation8 + $0xa80] sm:$0xff]
    %v5112 = vld [vmem:[#allocation8 + $0xa88] sm:$0xf]
    %v5113 = vld [vmem:[#allocation8 + $0xa8c] sm:$0xff]
    %v5114 = vld [vmem:[#allocation8 + $0xa94] sm:$0xff]
    %v5115 = vld [vmem:[#allocation8 + $0xa9c] sm:$0xff]
    %v5116 = vld [vmem:[#allocation8 + $0xaa4] sm:$0xff]
    %v5117 = vld [vmem:[#allocation8 + $0xaac] sm:$0xf]
    %v5118 = vld [vmem:[#allocation8 + $0xab0] sm:$0xff]
    %v5119 = vld [vmem:[#allocation8 + $0xab8] sm:$0xff]
    %v5120 = vld [vmem:[#allocation8 + $0xac0] sm:$0xff]
    %v5121 = vld [vmem:[#allocation8 + $0xac8] sm:$0xff]
    %v5122 = vld [vmem:[#allocation8 + $0xad0] sm:$0xf]
    %v5123 = vld [vmem:[#allocation8 + $0xad4] sm:$0xff]
    %v5124 = vld [vmem:[#allocation8 + $0xadc] sm:$0xff]
    %v5125 = vld [vmem:[#allocation8 + $0xae4] sm:$0xff]
    %v5126 = vld [vmem:[#allocation8 + $0xaec] sm:$0xff]
    %v5127 = vld [vmem:[#allocation8 + $0xaf4] sm:$0xf]
    %v5128 = vld [vmem:[#allocation8 + $0xaf8] sm:$0xff]
    %v5129 = vld [vmem:[#allocation8 + $0xb00] sm:$0xff]
    %v5130 = vld [vmem:[#allocation8 + $0xb08] sm:$0xff]
    %v5131 = vld [vmem:[#allocation8 + $0xb10] sm:$0xff]
    %v5132 = vld [vmem:[#allocation8 + $0xb18] sm:$0xf]
    %v5133 = vld [vmem:[#allocation8 + $0xb1c] sm:$0xff]
    %v5134 = vld [vmem:[#allocation8 + $0xb24] sm:$0xff]
    %v5135 = vld [vmem:[#allocation8 + $0xb2c] sm:$0xff]
    %v5136 = vld [vmem:[#allocation8 + $0xb34] sm:$0xff]
    %v5137 = vld [vmem:[#allocation8 + $0xb3c] sm:$0xf]
    %v5138 = vld [vmem:[#allocation8 + $0xb40] sm:$0xff]
    %v5139 = vld [vmem:[#allocation8 + $0xb48] sm:$0xff]
    %v5140 = vld [vmem:[#allocation8 + $0xb50] sm:$0xff]
    %v5141 = vld [vmem:[#allocation8 + $0xb58] sm:$0xff]
    %v5142 = vld [vmem:[#allocation8 + $0xb60] sm:$0xf]
    %v5143 = vld [vmem:[#allocation8 + $0xb64] sm:$0xff]
    %v5144 = vld [vmem:[#allocation8 + $0xb6c] sm:$0xff]
    %v5145 = vld [vmem:[#allocation8 + $0xb74] sm:$0xff]
    %v5146 = vld [vmem:[#allocation8 + $0xb7c] sm:$0xff]
    %v5147 = vld [vmem:[#allocation8 + $0xb84] sm:$0xf]
    %v5148 = vld [vmem:[#allocation8 + $0xb88] sm:$0xff]
    %v5149 = vld [vmem:[#allocation8 + $0xb90] sm:$0xff]
    %v5150 = vld [vmem:[#allocation8 + $0xb98] sm:$0xff]
    %v5151 = vld [vmem:[#allocation8 + $0xba0] sm:$0xff]
    %v5152 = vld [vmem:[#allocation8 + $0xba8] sm:$0xf]
    %v5153 = vld [vmem:[#allocation8 + $0xbac] sm:$0xff]
    %v5154 = vld [vmem:[#allocation8 + $0xbb4] sm:$0xff]
    %v5155 = vld [vmem:[#allocation8 + $0xbbc] sm:$0xff]
    %v5156 = vld [vmem:[#allocation8 + $0xbc4] sm:$0xff]
    %v5157 = vld [vmem:[#allocation8 + $0xbcc] sm:$0xf]
    %v5158 = vld [vmem:[#allocation8 + $0xbd0] sm:$0xff]
    %v5159 = vld [vmem:[#allocation8 + $0xbd8] sm:$0xff]
    %v5160 = vld [vmem:[#allocation8 + $0xbe0] sm:$0xff]
    %v5161 = vld [vmem:[#allocation8 + $0xbe8] sm:$0xff]
    %v5162 = vld [vmem:[#allocation8 + $0xbf0] sm:$0xf]
    %v5163 = vld [vmem:[#allocation8 + $0xbf4] sm:$0xff]
    %v5164 = vld [vmem:[#allocation8 + $0xbfc] sm:$0xff]
    %v5165 = vld [vmem:[#allocation8 + $0xc04] sm:$0xff]
    %v5166 = vld [vmem:[#allocation8 + $0xc0c] sm:$0xff]
    %v5167 = vld [vmem:[#allocation8 + $0xc14] sm:$0xf]
    %v5168 = vld [vmem:[#allocation8 + $0xc18] sm:$0xff]
    %v5169 = vld [vmem:[#allocation8 + $0xc20] sm:$0xff]
    %v5170 = vld [vmem:[#allocation8 + $0xc28] sm:$0xff]
    %v5171 = vld [vmem:[#allocation8 + $0xc30] sm:$0xff]
    %v5172 = vld [vmem:[#allocation8 + $0xc38] sm:$0xf]
    %v5173 = vld [vmem:[#allocation8 + $0xc3c] sm:$0xff]
    %v5174 = vld [vmem:[#allocation8 + $0xc44] sm:$0xff]
    %v5175 = vld [vmem:[#allocation8 + $0xc4c] sm:$0xff]
    %v5176 = vld [vmem:[#allocation8 + $0xc54] sm:$0xff]
    %v5177 = vld [vmem:[#allocation8 + $0xc5c] sm:$0xf]
    %v5178 = vld [vmem:[#allocation8 + $0xc60] sm:$0xff]
    %v5179 = vld [vmem:[#allocation8 + $0xc68] sm:$0xff]
    %v5180 = vld [vmem:[#allocation8 + $0xc70] sm:$0xff]
    %v5181 = vld [vmem:[#allocation8 + $0xc78] sm:$0xff]
    %v5182 = vld [vmem:[#allocation8 + $0xc80] sm:$0xf]
    %v5183 = vld [vmem:[#allocation8 + $0xc84] sm:$0xff]
    %v5184 = vld [vmem:[#allocation8 + $0xc8c] sm:$0xff]
    %v5185 = vld [vmem:[#allocation8 + $0xc94] sm:$0xff]
    %v5186 = vld [vmem:[#allocation8 + $0xc9c] sm:$0xff]
    %v5187 = vld [vmem:[#allocation8 + $0xca4] sm:$0xf]
    %v5188 = vld [vmem:[#allocation8 + $0xca8] sm:$0xff]
    %v5189 = vld [vmem:[#allocation8 + $0xcb0] sm:$0xff]
    %v5190 = vld [vmem:[#allocation8 + $0xcb8] sm:$0xff]
    %v5191 = vld [vmem:[#allocation8 + $0xcc0] sm:$0xff]
    %v5192 = vld [vmem:[#allocation8 + $0xcc8] sm:$0xf]
    %v5193 = vld [vmem:[#allocation8 + $0xccc] sm:$0xff]
    %v5194 = vld [vmem:[#allocation8 + $0xcd4] sm:$0xff]
    %v5195 = vld [vmem:[#allocation8 + $0xcdc] sm:$0xff]
    %v5196 = vld [vmem:[#allocation8 + $0xce4] sm:$0xff]
    %v5197 = vld [vmem:[#allocation8 + $0xcec] sm:$0xf]
    %v5198 = vld [vmem:[#allocation8 + $0xcf0] sm:$0xff]
    %v5199 = vld [vmem:[#allocation8 + $0xcf8] sm:$0xff]
    %v5200 = vld [vmem:[#allocation8 + $0xd00] sm:$0xff]
    %v5201 = vld [vmem:[#allocation8 + $0xd08] sm:$0xff]
    %v5202 = vld [vmem:[#allocation8 + $0xd10] sm:$0xf]
    %v5203 = vld [vmem:[#allocation8 + $0xd14] sm:$0xff]
    %v5204 = vld [vmem:[#allocation8 + $0xd1c] sm:$0xff]
    %v5205 = vld [vmem:[#allocation8 + $0xd24] sm:$0xff]
    %v5206 = vld [vmem:[#allocation8 + $0xd2c] sm:$0xff]
    %v5207 = vld [vmem:[#allocation8 + $0xd34] sm:$0xf]
    %v5208 = vld [vmem:[#allocation8 + $0xd38] sm:$0xff]
    %v5209 = vld [vmem:[#allocation8 + $0xd40] sm:$0xff]
    %v5210 = vld [vmem:[#allocation8 + $0xd48] sm:$0xff]
    %v5211 = vld [vmem:[#allocation8 + $0xd50] sm:$0xff]
    %v5212 = vld [vmem:[#allocation8 + $0xd58] sm:$0xf]
    %v5213 = vld [vmem:[#allocation8 + $0xd5c] sm:$0xff]
    %v5214 = vld [vmem:[#allocation8 + $0xd64] sm:$0xff]
    %v5215 = vld [vmem:[#allocation8 + $0xd6c] sm:$0xff]
    %v5216 = vld [vmem:[#allocation8 + $0xd74] sm:$0xff]
    %v5217 = vld [vmem:[#allocation8 + $0xd7c] sm:$0xf]
    %v5218 = vld [vmem:[#allocation8 + $0xd80] sm:$0xff]
    %v5219 = vld [vmem:[#allocation8 + $0xd88] sm:$0xff]
    %v5220 = vld [vmem:[#allocation8 + $0xd90] sm:$0xff]
    %v5221 = vld [vmem:[#allocation8 + $0xd98] sm:$0xff]
    %v5222 = vld [vmem:[#allocation8 + $0xda0] sm:$0xf]
    %v5223 = vld [vmem:[#allocation8 + $0xda4] sm:$0xff]
    %v5224 = vld [vmem:[#allocation8 + $0xdac] sm:$0xff]
    %v5225 = vld [vmem:[#allocation8 + $0xdb4] sm:$0xff]
    %v5226 = vld [vmem:[#allocation8 + $0xdbc] sm:$0xff]
    %v5227 = vld [vmem:[#allocation8 + $0xdc4] sm:$0xf]
    %v5228 = vld [vmem:[#allocation8 + $0xdc8] sm:$0xff]
    %v5229 = vld [vmem:[#allocation8 + $0xdd0] sm:$0xff]
    %v5230 = vld [vmem:[#allocation8 + $0xdd8] sm:$0xff]
    %v5231 = vld [vmem:[#allocation8 + $0xde0] sm:$0xff]
    %v5232 = vld [vmem:[#allocation8 + $0xde8] sm:$0xf]
    %v5233 = vld [vmem:[#allocation8 + $0xdec] sm:$0xff]
    %v5234 = vld [vmem:[#allocation8 + $0xdf4] sm:$0xff]
    %v5235 = vld [vmem:[#allocation8 + $0xdfc] sm:$0xff]
    %v5236 = vld [vmem:[#allocation8 + $0xe04] sm:$0xff]
    %v5237 = vld [vmem:[#allocation8 + $0xe0c] sm:$0xf]
    %v5238 = vld [vmem:[#allocation8 + $0xe10] sm:$0xff]
    %v5239 = vld [vmem:[#allocation8 + $0xe18] sm:$0xff]
    %v5240 = vld [vmem:[#allocation8 + $0xe20] sm:$0xff]
    %v5241 = vld [vmem:[#allocation8 + $0xe28] sm:$0xff]
    %v5242 = vld [vmem:[#allocation8 + $0xe30] sm:$0xf]
    %v5243 = vld [vmem:[#allocation8 + $0xe34] sm:$0xff]
    %v5244 = vld [vmem:[#allocation8 + $0xe3c] sm:$0xff]
    %v5245 = vld [vmem:[#allocation8 + $0xe44] sm:$0xff]
    %v5246 = vld [vmem:[#allocation8 + $0xe4c] sm:$0xff]
    %v5247 = vld [vmem:[#allocation8 + $0xe54] sm:$0xf]
    %v5248 = vld [vmem:[#allocation8 + $0xe58] sm:$0xff]
    %v5249 = vld [vmem:[#allocation8 + $0xe60] sm:$0xff]
    %v5250 = vld [vmem:[#allocation8 + $0xe68] sm:$0xff]
    %v5251 = vld [vmem:[#allocation8 + $0xe70] sm:$0xff]
    %v5252 = vld [vmem:[#allocation8 + $0xe78] sm:$0xf]
    %v5253 = vld [vmem:[#allocation8 + $0xe7c] sm:$0xff]
    %v5254 = vld [vmem:[#allocation8 + $0xe84] sm:$0xff]
    %v5255 = vld [vmem:[#allocation8 + $0xe8c] sm:$0xff]
    %v5256 = vld [vmem:[#allocation8 + $0xe94] sm:$0xff]
    %v5257 = vld [vmem:[#allocation8 + $0xe9c] sm:$0xf]
    %v5258 = vld [vmem:[#allocation8 + $0xea0] sm:$0xff]
    %v5259 = vld [vmem:[#allocation8 + $0xea8] sm:$0xff]
    %v5260 = vld [vmem:[#allocation8 + $0xeb0] sm:$0xff]
    %v5261 = vld [vmem:[#allocation8 + $0xeb8] sm:$0xff]
    %v5262 = vld [vmem:[#allocation8 + $0xec0] sm:$0xf]
    %v5263 = vld [vmem:[#allocation8 + $0xec4] sm:$0xff]
    %v5264 = vld [vmem:[#allocation8 + $0xecc] sm:$0xff]
    %v5265 = vld [vmem:[#allocation8 + $0xed4] sm:$0xff]
    %v5266 = vld [vmem:[#allocation8 + $0xedc] sm:$0xff]
    %v5267 = vld [vmem:[#allocation8 + $0xee4] sm:$0xf]
    %v5268 = vld [vmem:[#allocation8 + $0xee8] sm:$0xff]
    %v5269 = vld [vmem:[#allocation8 + $0xef0] sm:$0xff]
    %v5270 = vld [vmem:[#allocation8 + $0xef8] sm:$0xff]
    %v5271 = vld [vmem:[#allocation8 + $0xf00] sm:$0xff]
    %v5272 = vld [vmem:[#allocation8 + $0xf08] sm:$0xf]
    %v5273 = vld [vmem:[#allocation8 + $0xf0c] sm:$0xff]
    %v5274 = vld [vmem:[#allocation8 + $0xf14] sm:$0xff]
    %v5275 = vld [vmem:[#allocation8 + $0xf1c] sm:$0xff]
    %v5276 = vld [vmem:[#allocation8 + $0xf24] sm:$0xff]
    %v5277 = vld [vmem:[#allocation8 + $0xf2c] sm:$0xf]
    %v5278 = vld [vmem:[#allocation8 + $0xf30] sm:$0xff]
    %v5279 = vld [vmem:[#allocation8 + $0xf38] sm:$0xff]
    %v5280 = vld [vmem:[#allocation8 + $0xf40] sm:$0xff]
    %v5281 = vld [vmem:[#allocation8 + $0xf48] sm:$0xff]
    %v5282 = vld [vmem:[#allocation8 + $0xf50] sm:$0xf]
    %v5283 = vld [vmem:[#allocation8 + $0xf54] sm:$0xff]
    %v5284 = vld [vmem:[#allocation8 + $0xf5c] sm:$0xff]
    %v5285 = vld [vmem:[#allocation8 + $0xf64] sm:$0xff]
    %v5286 = vld [vmem:[#allocation8 + $0xf6c] sm:$0xff]
    %v5287 = vld [vmem:[#allocation8 + $0xf74] sm:$0xf]
    %v5288 = vld [vmem:[#allocation8 + $0xf78] sm:$0xff]
    %v5289 = vld [vmem:[#allocation8 + $0xf80] sm:$0xff]
    %v5290 = vld [vmem:[#allocation8 + $0xf88] sm:$0xff]
    %v5291 = vld [vmem:[#allocation8 + $0xf90] sm:$0xff]
    %v5292 = vld [vmem:[#allocation8 + $0xf98] sm:$0xf]
    %v5293 = vld [vmem:[#allocation8 + $0xf9c] sm:$0xff]
    %v5294 = vld [vmem:[#allocation8 + $0xfa4] sm:$0xff]
    %v5295 = vld [vmem:[#allocation8 + $0xfac] sm:$0xff]
    %v5296 = vld [vmem:[#allocation8 + $0xfb4] sm:$0xff]
    %v5297 = vld [vmem:[#allocation8 + $0xfbc] sm:$0xf]
    %v5298 = vld [vmem:[#allocation8 + $0xfc0] sm:$0xff]
    %v5299 = vld [vmem:[#allocation8 + $0xfc8] sm:$0xff]
    %v5300 = vld [vmem:[#allocation8 + $0xfd0] sm:$0xff]
    %v5301 = vld [vmem:[#allocation8 + $0xfd8] sm:$0xff]
    %v5302 = vld [vmem:[#allocation8 + $0xfe0] sm:$0xf]
    %v5303 = vld [vmem:[#allocation8 + $0xfe4] sm:$0xff]
    %v5304 = vld [vmem:[#allocation8 + $0xfec] sm:$0xff]
    %v5305 = vld [vmem:[#allocation8 + $0xff4] sm:$0xff]
    %v5306 = vld [vmem:[#allocation8 + $0xffc] sm:$0xff]
    %v5307 = vld [vmem:[#allocation8 + $0x1004] sm:$0xf]
    %v5308 = vld [vmem:[#allocation8 + $0x1008] sm:$0xff]
    %v5309 = vld [vmem:[#allocation8 + $0x1010] sm:$0xff]
    %v5310 = vld [vmem:[#allocation8 + $0x1018] sm:$0xff]
    %v5311 = vld [vmem:[#allocation8 + $0x1020] sm:$0xff]
    %v5312 = vld [vmem:[#allocation8 + $0x1028] sm:$0xf]
    %v5313 = vld [vmem:[#allocation8 + $0x102c] sm:$0xff]
    %v5314 = vld [vmem:[#allocation8 + $0x1034] sm:$0xff]
    %v5315 = vld [vmem:[#allocation8 + $0x103c] sm:$0xff]
    %v5316 = vld [vmem:[#allocation8 + $0x1044] sm:$0xff]
    %v5317 = vld [vmem:[#allocation8 + $0x104c] sm:$0xf]
    %v5318 = vld [vmem:[#allocation8 + $0x1050] sm:$0xff]
    %v5319 = vld [vmem:[#allocation8 + $0x1058] sm:$0xff]
    %v5320 = vld [vmem:[#allocation8 + $0x1060] sm:$0xff]
    %v5321 = vld [vmem:[#allocation8 + $0x1068] sm:$0xff]
    %v5322 = vld [vmem:[#allocation8 + $0x1070] sm:$0xf]
    %v5323 = vld [vmem:[#allocation8 + $0x1074] sm:$0xff]
    %v5324 = vld [vmem:[#allocation8 + $0x107c] sm:$0xff]
    %v5325 = vld [vmem:[#allocation8 + $0x1084] sm:$0xff]
    %v5326 = vld [vmem:[#allocation8 + $0x108c] sm:$0xff]
    %v5327 = vld [vmem:[#allocation8 + $0x1094] sm:$0xf]
    %v5328 = vld [vmem:[#allocation8 + $0x1098] sm:$0xff]
    %v5329 = vld [vmem:[#allocation8 + $0x10a0] sm:$0xff]
    %v5330 = vld [vmem:[#allocation8 + $0x10a8] sm:$0xff]
    %v5331 = vld [vmem:[#allocation8 + $0x10b0] sm:$0xff]
    %v5332 = vld [vmem:[#allocation8 + $0x10b8] sm:$0xf]
    %v5333 = vld [vmem:[#allocation8 + $0x10bc] sm:$0xff]
    %v5334 = vld [vmem:[#allocation8 + $0x10c4] sm:$0xff]
    %v5335 = vld [vmem:[#allocation8 + $0x10cc] sm:$0xff]
    %v5336 = vld [vmem:[#allocation8 + $0x10d4] sm:$0xff]
    %v5337 = vld [vmem:[#allocation8 + $0x10dc] sm:$0xf]
    %v5338 = vld [vmem:[#allocation8 + $0x10e0] sm:$0xff]
    %v5339 = vld [vmem:[#allocation8 + $0x10e8] sm:$0xff]
    %v5340 = vld [vmem:[#allocation8 + $0x10f0] sm:$0xff]
    %v5341 = vld [vmem:[#allocation8 + $0x10f8] sm:$0xff]
    %v5342 = vld [vmem:[#allocation8 + $0x1100] sm:$0xf]
    %v5343 = vld [vmem:[#allocation8 + $0x1104] sm:$0xff]
    %v5344 = vld [vmem:[#allocation8 + $0x110c] sm:$0xff]
    %v5345 = vld [vmem:[#allocation8 + $0x1114] sm:$0xff]
    %v5346 = vld [vmem:[#allocation8 + $0x111c] sm:$0xff]
    %v5347 = vld [vmem:[#allocation8 + $0x1124] sm:$0xf]
    %v5348 = vld [vmem:[#allocation8 + $0x1128] sm:$0xff]
    %v5349 = vld [vmem:[#allocation8 + $0x1130] sm:$0xff]
    %v5350 = vld [vmem:[#allocation8 + $0x1138] sm:$0xff]
    %v5351 = vld [vmem:[#allocation8 + $0x1140] sm:$0xff]
    %v5352 = vld [vmem:[#allocation8 + $0x1148] sm:$0xf]
    %v5353 = vld [vmem:[#allocation8 + $0x114c] sm:$0xff]
    %v5354 = vld [vmem:[#allocation8 + $0x1154] sm:$0xff]
    %v5355 = vld [vmem:[#allocation8 + $0x115c] sm:$0xff]
    %v5356 = vld [vmem:[#allocation8 + $0x1164] sm:$0xff]
    %v5357 = vld [vmem:[#allocation8 + $0x116c] sm:$0xf]
    %v5358 = vld [vmem:[#allocation8 + $0x1170] sm:$0xff]
    %v5359 = vld [vmem:[#allocation8 + $0x1178] sm:$0xff]
    %v5360 = vld [vmem:[#allocation8 + $0x1180] sm:$0xff]
    %v5361 = vld [vmem:[#allocation8 + $0x1188] sm:$0xff]
    %v5362 = vld [vmem:[#allocation8 + $0x1190] sm:$0xf]
    %v5363 = vld [vmem:[#allocation8 + $0x1194] sm:$0xff]
    %v5364 = vld [vmem:[#allocation8 + $0x119c] sm:$0xff]
    %v5365 = vld [vmem:[#allocation8 + $0x11a4] sm:$0xff]
    %v5366 = vld [vmem:[#allocation8 + $0x11ac] sm:$0xff]
    %v5367 = vld [vmem:[#allocation8 + $0x11b4] sm:$0xf]
    %v5368 = vld [vmem:[#allocation8 + $0x11b8] sm:$0xff]
    %v5369 = vld [vmem:[#allocation8 + $0x11c0] sm:$0xff]
    %v5370 = vld [vmem:[#allocation8 + $0x11c8] sm:$0xff]
    %v5371 = vld [vmem:[#allocation8 + $0x11d0] sm:$0xff]
    %v5372 = vld [vmem:[#allocation8 + $0x11d8] sm:$0xf]
    %v5373 = vld [vmem:[#allocation8 + $0x11dc] sm:$0xff]
    %v5374 = vld [vmem:[#allocation8 + $0x11e4] sm:$0xff]
    %v5375 = vld [vmem:[#allocation8 + $0x11ec] sm:$0xff]
    %v5376 = vld [vmem:[#allocation8 + $0x11f4] sm:$0xff]
    %v5377 = vld [vmem:[#allocation8 + $0x11fc] sm:$0xf]
    %v5378 = vld [vmem:[#allocation8 + $0x1200] sm:$0xff]
    %v5379 = vld [vmem:[#allocation8 + $0x1208] sm:$0xff]
    %v5380 = vld [vmem:[#allocation8 + $0x1210] sm:$0xff]
    %v5381 = vld [vmem:[#allocation8 + $0x1218] sm:$0xff]
    %v5382 = vld [vmem:[#allocation8 + $0x1220] sm:$0xf]
    %v5383 = vld [vmem:[#allocation8 + $0x1224] sm:$0xff]
    %v5384 = vld [vmem:[#allocation8 + $0x122c] sm:$0xff]
    %v5385 = vld [vmem:[#allocation8 + $0x1234] sm:$0xff]
    %v5386 = vld [vmem:[#allocation8 + $0x123c] sm:$0xff]
    %v5387 = vld [vmem:[#allocation8 + $0x1244] sm:$0xf]
    %v5388 = vld [vmem:[#allocation8 + $0x1248] sm:$0xff]
    %v5389 = vld [vmem:[#allocation8 + $0x1250] sm:$0xff]
    %v5390 = vld [vmem:[#allocation8 + $0x1258] sm:$0xff]
    %v5391 = vld [vmem:[#allocation8 + $0x1260] sm:$0xff]
    %v5392 = vld [vmem:[#allocation8 + $0x1268] sm:$0xf]
    %v5393 = vld [vmem:[#allocation8 + $0x126c] sm:$0xff]
    %v5394 = vld [vmem:[#allocation8 + $0x1274] sm:$0xff]
    %v5395 = vld [vmem:[#allocation8 + $0x127c] sm:$0xff]
    %v5396 = vld [vmem:[#allocation8 + $0x1284] sm:$0xff]
    %v5397 = vld [vmem:[#allocation8 + $0x128c] sm:$0xf]
    %v5398 = vld [vmem:[#allocation8 + $0x1290] sm:$0xff]
    %v5399 = vld [vmem:[#allocation8 + $0x1298] sm:$0xff]
    %v5400 = vld [vmem:[#allocation8 + $0x12a0] sm:$0xff]
    %v5401 = vld [vmem:[#allocation8 + $0x12a8] sm:$0xff]
    %v5402 = vld [vmem:[#allocation8 + $0x12b0] sm:$0xf]
    %v5403 = vld [vmem:[#allocation8 + $0x12b4] sm:$0xff]
    %v5404 = vld [vmem:[#allocation8 + $0x12bc] sm:$0xff]
    %v5405 = vld [vmem:[#allocation8 + $0x12c4] sm:$0xff]
    %v5406 = vld [vmem:[#allocation8 + $0x12cc] sm:$0xff]
    %v5407 = vld [vmem:[#allocation8 + $0x12d4] sm:$0xf]
    %v5408 = vld [vmem:[#allocation8 + $0x12d8] sm:$0xff]
    %v5409 = vld [vmem:[#allocation8 + $0x12e0] sm:$0xff]
    %v5410 = vld [vmem:[#allocation8 + $0x12e8] sm:$0xff]
    %v5411 = vld [vmem:[#allocation8 + $0x12f0] sm:$0xff]
    %v5412 = vld [vmem:[#allocation8 + $0x12f8] sm:$0xf]
    %v5413 = vld [vmem:[#allocation8 + $0x12fc] sm:$0xff]
    %v5414 = vld [vmem:[#allocation8 + $0x1304] sm:$0xff]
    %v5415 = vld [vmem:[#allocation8 + $0x130c] sm:$0xff]
    %v5416 = vld [vmem:[#allocation8 + $0x1314] sm:$0xff]
    %v5417 = vld [vmem:[#allocation8 + $0x131c] sm:$0xf]
    %v5418 = vld [vmem:[#allocation8 + $0x1320] sm:$0xff]
    %v5419 = vld [vmem:[#allocation8 + $0x1328] sm:$0xff]
    %v5420 = vld [vmem:[#allocation8 + $0x1330] sm:$0xff]
    %v5421 = vld [vmem:[#allocation8 + $0x1338] sm:$0xff]
    %v5422 = vld [vmem:[#allocation8 + $0x1340] sm:$0xf]
    %v5423 = vld [vmem:[#allocation8 + $0x1344] sm:$0xff]
    %v5424 = vld [vmem:[#allocation8 + $0x134c] sm:$0xff]
    %v5425 = vld [vmem:[#allocation8 + $0x1354] sm:$0xff]
    %v5426 = vld [vmem:[#allocation8 + $0x135c] sm:$0xff]
    %v5427 = vld [vmem:[#allocation8 + $0x1364] sm:$0xf]
    %v5428 = vld [vmem:[#allocation8 + $0x1368] sm:$0xff]
    %v5429 = vld [vmem:[#allocation8 + $0x1370] sm:$0xff]
    %v5430 = vld [vmem:[#allocation8 + $0x1378] sm:$0xff]
    %v5431 = vld [vmem:[#allocation8 + $0x1380] sm:$0xff]
    %v5432 = vld [vmem:[#allocation8 + $0x1388] sm:$0xf]
    %v5433 = vld [vmem:[#allocation8 + $0x138c] sm:$0xff]
    %v5434 = vld [vmem:[#allocation8 + $0x1394] sm:$0xff]
    %v5435 = vld [vmem:[#allocation8 + $0x139c] sm:$0xff]
    %v5436 = vld [vmem:[#allocation8 + $0x13a4] sm:$0xff]
    %v5437 = vld [vmem:[#allocation8 + $0x13ac] sm:$0xf]
    %v5438 = vld [vmem:[#allocation8 + $0x13b0] sm:$0xff]
    %v5439 = vld [vmem:[#allocation8 + $0x13b8] sm:$0xff]
    %v5440 = vld [vmem:[#allocation8 + $0x13c0] sm:$0xff]
    %v5441 = vld [vmem:[#allocation8 + $0x13c8] sm:$0xff]
    %v5442 = vld [vmem:[#allocation8 + $0x13d0] sm:$0xf]
    %v5443 = vld [vmem:[#allocation8 + $0x13d4] sm:$0xff]
    %v5444 = vld [vmem:[#allocation8 + $0x13dc] sm:$0xff]
    %v5445 = vld [vmem:[#allocation8 + $0x13e4] sm:$0xff]
    %v5446 = vld [vmem:[#allocation8 + $0x13ec] sm:$0xff]
    %v5447 = vld [vmem:[#allocation8 + $0x13f4] sm:$0xf]
    %v5448 = vld [vmem:[#allocation8 + $0x13f8] sm:$0xff]
    %v5449 = vld [vmem:[#allocation8 + $0x1400] sm:$0xff]
    %v5450 = vld [vmem:[#allocation8 + $0x1408] sm:$0xff]
    %v5451 = vld [vmem:[#allocation8 + $0x1410] sm:$0xff]
    %v5452 = vld [vmem:[#allocation8 + $0x1418] sm:$0xf]
    %v5453 = vld [vmem:[#allocation8 + $0x141c] sm:$0xff]
    %v5454 = vld [vmem:[#allocation8 + $0x1424] sm:$0xff]
    %v5455 = vld [vmem:[#allocation8 + $0x142c] sm:$0xff]
    %v5456 = vld [vmem:[#allocation8 + $0x1434] sm:$0xff]
    %v5457 = vld [vmem:[#allocation8 + $0x143c] sm:$0xf]
    %v5458 = vld [vmem:[#allocation10] sm:$0xff]
    %v5459 = vld [vmem:[#allocation10 + $0x8] sm:$0x1]
    %v5462 = vlaneseq
    %v5463 = vshrl.u32 %v5462, 7
    %v5464 = vsub.s32 0, %v5463
    %v5465 = vrot.slane %v5458, %v5464
    %v5466 = vlaneseq
    %v5467 = vshrl.u32 %v5466, 7
    %v5468 = vsub.s32 1, %v5467
    %v5469 = vrot.slane %v5458, %v5468
    %v5470 = vlaneseq
    %v5471 = vshrl.u32 %v5470, 7
    %v5472 = vsub.s32 2, %v5471
    %v5473 = vrot.slane %v5458, %v5472
    %v5474 = vlaneseq
    %v5475 = vshrl.u32 %v5474, 7
    %v5476 = vsub.s32 3, %v5475
    %v5477 = vrot.slane %v5458, %v5476
    %v5478 = vlaneseq
    %v5479 = vshrl.u32 %v5478, 7
    %v5480 = vsub.s32 4, %v5479
    %v5481 = vrot.slane %v5458, %v5480
    %v5482 = vlaneseq
    %v5483 = vshrl.u32 %v5482, 7
    %v5484 = vsub.s32 5, %v5483
    %v5485 = vrot.slane %v5458, %v5484
    %v5486 = vlaneseq
    %v5487 = vshrl.u32 %v5486, 7
    %v5488 = vsub.s32 6, %v5487
    %v5489 = vrot.slane %v5458, %v5488
    %v5490 = vlaneseq
    %v5491 = vshrl.u32 %v5490, 7
    %v5492 = vsub.s32 7, %v5491
    %v5493 = vrot.slane %v5458, %v5492
    %v5494 = vlaneseq
    %v5495 = vshrl.u32 %v5494, 7
    %v5496 = vsub.s32 0, %v5495
    %v5497 = vrot.slane %v5459, %v5496
    %v6227 = vunpack.c.l.b16 %v4738
    %v6228 = vunpack.c.h.b16 %v4738
    %v6229 = vunpack.c.l.b16 %v4739
    %v6230 = vunpack.c.h.b16 %v4739
    %v6231 = vunpack.c.l.b16 %v4740
    %v6232 = vunpack.c.h.b16 %v4740
    %v6233 = vunpack.c.l.b16 %v4741
    %v6234 = vunpack.c.h.b16 %v4741
    %v6235 = vunpack.c.l.b16 %v4742
    %v6236 = vunpack.c.l.b16 %v4743
    %v6237 = vunpack.c.h.b16 %v4743
    %v6238 = vunpack.c.l.b16 %v4744
    %v6239 = vunpack.c.h.b16 %v4744
    %v6240 = vunpack.c.l.b16 %v4745
    %v6241 = vunpack.c.h.b16 %v4745
    %v6242 = vunpack.c.l.b16 %v4746
    %v6243 = vunpack.c.h.b16 %v4746
    %v6244 = vunpack.c.l.b16 %v4747
    %v6245 = vunpack.c.l.b16 %v4748
    %v6246 = vunpack.c.h.b16 %v4748
    %v6247 = vunpack.c.l.b16 %v4749
    %v6248 = vunpack.c.h.b16 %v4749
    %v6249 = vunpack.c.l.b16 %v4750
    %v6250 = vunpack.c.h.b16 %v4750
    %v6251 = vunpack.c.l.b16 %v4751
    %v6252 = vunpack.c.h.b16 %v4751
    %v6253 = vunpack.c.l.b16 %v4752
    %v6254 = vunpack.c.l.b16 %v4753
    %v6255 = vunpack.c.h.b16 %v4753
    %v6256 = vunpack.c.l.b16 %v4754
    %v6257 = vunpack.c.h.b16 %v4754
    %v6258 = vunpack.c.l.b16 %v4755
    %v6259 = vunpack.c.h.b16 %v4755
    %v6260 = vunpack.c.l.b16 %v4756
    %v6261 = vunpack.c.h.b16 %v4756
    %v6262 = vunpack.c.l.b16 %v4757
    %v6263 = vunpack.c.l.b16 %v4758
    %v6264 = vunpack.c.h.b16 %v4758
    %v6265 = vunpack.c.l.b16 %v4759
    %v6266 = vunpack.c.h.b16 %v4759
    %v6267 = vunpack.c.l.b16 %v4760
    %v6268 = vunpack.c.h.b16 %v4760
    %v6269 = vunpack.c.l.b16 %v4761
    %v6270 = vunpack.c.h.b16 %v4761
    %v6271 = vunpack.c.l.b16 %v4762
    %v6272 = vunpack.c.l.b16 %v4763
    %v6273 = vunpack.c.h.b16 %v4763
    %v6274 = vunpack.c.l.b16 %v4764
    %v6275 = vunpack.c.h.b16 %v4764
    %v6276 = vunpack.c.l.b16 %v4765
    %v6277 = vunpack.c.h.b16 %v4765
    %v6278 = vunpack.c.l.b16 %v4766
    %v6279 = vunpack.c.h.b16 %v4766
    %v6280 = vunpack.c.l.b16 %v4767
    %v6281 = vunpack.c.l.b16 %v4768
    %v6282 = vunpack.c.h.b16 %v4768
    %v6283 = vunpack.c.l.b16 %v4769
    %v6284 = vunpack.c.h.b16 %v4769
    %v6285 = vunpack.c.l.b16 %v4770
    %v6286 = vunpack.c.h.b16 %v4770
    %v6287 = vunpack.c.l.b16 %v4771
    %v6288 = vunpack.c.h.b16 %v4771
    %v6289 = vunpack.c.l.b16 %v4772
    %v6290 = vunpack.c.l.b16 %v4773
    %v6291 = vunpack.c.h.b16 %v4773
    %v6292 = vunpack.c.l.b16 %v4774
    %v6293 = vunpack.c.h.b16 %v4774
    %v6294 = vunpack.c.l.b16 %v4775
    %v6295 = vunpack.c.h.b16 %v4775
    %v6296 = vunpack.c.l.b16 %v4776
    %v6297 = vunpack.c.h.b16 %v4776
    %v6298 = vunpack.c.l.b16 %v4777
    %v6299 = vunpack.c.l.b16 %v4778
    %v6300 = vunpack.c.h.b16 %v4778
    %v6301 = vunpack.c.l.b16 %v4779
    %v6302 = vunpack.c.h.b16 %v4779
    %v6303 = vunpack.c.l.b16 %v4780
    %v6304 = vunpack.c.h.b16 %v4780
    %v6305 = vunpack.c.l.b16 %v4781
    %v6306 = vunpack.c.h.b16 %v4781
    %v6307 = vunpack.c.l.b16 %v4782
    %v6308 = vunpack.c.l.b16 %v4783
    %v6309 = vunpack.c.h.b16 %v4783
    %v6310 = vunpack.c.l.b16 %v4784
    %v6311 = vunpack.c.h.b16 %v4784
    %v6312 = vunpack.c.l.b16 %v4785
    %v6313 = vunpack.c.h.b16 %v4785
    %v6314 = vunpack.c.l.b16 %v4786
    %v6315 = vunpack.c.h.b16 %v4786
    %v6316 = vunpack.c.l.b16 %v4787
    %v6317 = vunpack.c.l.b16 %v4788
    %v6318 = vunpack.c.h.b16 %v4788
    %v6319 = vunpack.c.l.b16 %v4789
    %v6320 = vunpack.c.h.b16 %v4789
    %v6321 = vunpack.c.l.b16 %v4790
    %v6322 = vunpack.c.h.b16 %v4790
    %v6323 = vunpack.c.l.b16 %v4791
    %v6324 = vunpack.c.h.b16 %v4791
    %v6325 = vunpack.c.l.b16 %v4792
    %v6326 = vunpack.c.l.b16 %v4793
    %v6327 = vunpack.c.h.b16 %v4793
    %v6328 = vunpack.c.l.b16 %v4794
    %v6329 = vunpack.c.h.b16 %v4794
    %v6330 = vunpack.c.l.b16 %v4795
    %v6331 = vunpack.c.h.b16 %v4795
    %v6332 = vunpack.c.l.b16 %v4796
    %v6333 = vunpack.c.h.b16 %v4796
    %v6334 = vunpack.c.l.b16 %v4797
    %v6335 = vunpack.c.l.b16 %v4798
    %v6336 = vunpack.c.h.b16 %v4798
    %v6337 = vunpack.c.l.b16 %v4799
    %v6338 = vunpack.c.h.b16 %v4799
    %v6339 = vunpack.c.l.b16 %v4800
    %v6340 = vunpack.c.h.b16 %v4800
    %v6341 = vunpack.c.l.b16 %v4801
    %v6342 = vunpack.c.h.b16 %v4801
    %v6343 = vunpack.c.l.b16 %v4802
    %v6344 = vunpack.c.l.b16 %v4803
    %v6345 = vunpack.c.h.b16 %v4803
    %v6346 = vunpack.c.l.b16 %v4804
    %v6347 = vunpack.c.h.b16 %v4804
    %v6348 = vunpack.c.l.b16 %v4805
    %v6349 = vunpack.c.h.b16 %v4805
    %v6350 = vunpack.c.l.b16 %v4806
    %v6351 = vunpack.c.h.b16 %v4806
    %v6352 = vunpack.c.l.b16 %v4807
    %v6353 = vunpack.c.l.b16 %v4808
    %v6354 = vunpack.c.h.b16 %v4808
    %v6355 = vunpack.c.l.b16 %v4809
    %v6356 = vunpack.c.h.b16 %v4809
    %v6357 = vunpack.c.l.b16 %v4810
    %v6358 = vunpack.c.h.b16 %v4810
    %v6359 = vunpack.c.l.b16 %v4811
    %v6360 = vunpack.c.h.b16 %v4811
    %v6361 = vunpack.c.l.b16 %v4812
    %v6362 = vunpack.c.l.b16 %v4813
    %v6363 = vunpack.c.h.b16 %v4813
    %v6364 = vunpack.c.l.b16 %v4814
    %v6365 = vunpack.c.h.b16 %v4814
    %v6366 = vunpack.c.l.b16 %v4815
    %v6367 = vunpack.c.h.b16 %v4815
    %v6368 = vunpack.c.l.b16 %v4816
    %v6369 = vunpack.c.h.b16 %v4816
    %v6370 = vunpack.c.l.b16 %v4817
    %v6371 = vunpack.c.l.b16 %v4818
    %v6372 = vunpack.c.h.b16 %v4818
    %v6373 = vunpack.c.l.b16 %v4819
    %v6374 = vunpack.c.h.b16 %v4819
    %v6375 = vunpack.c.l.b16 %v4820
    %v6376 = vunpack.c.h.b16 %v4820
    %v6377 = vunpack.c.l.b16 %v4821
    %v6378 = vunpack.c.h.b16 %v4821
    %v6379 = vunpack.c.l.b16 %v4822
    %v6380 = vunpack.c.l.b16 %v4823
    %v6381 = vunpack.c.h.b16 %v4823
    %v6382 = vunpack.c.l.b16 %v4824
    %v6383 = vunpack.c.h.b16 %v4824
    %v6384 = vunpack.c.l.b16 %v4825
    %v6385 = vunpack.c.h.b16 %v4825
    %v6386 = vunpack.c.l.b16 %v4826
    %v6387 = vunpack.c.h.b16 %v4826
    %v6388 = vunpack.c.l.b16 %v4827
    %v6389 = vunpack.c.l.b16 %v4828
    %v6390 = vunpack.c.h.b16 %v4828
    %v6391 = vunpack.c.l.b16 %v4829
    %v6392 = vunpack.c.h.b16 %v4829
    %v6393 = vunpack.c.l.b16 %v4830
    %v6394 = vunpack.c.h.b16 %v4830
    %v6395 = vunpack.c.l.b16 %v4831
    %v6396 = vunpack.c.h.b16 %v4831
    %v6397 = vunpack.c.l.b16 %v4832
    %v6398 = vunpack.c.l.b16 %v4833
    %v6399 = vunpack.c.h.b16 %v4833
    %v6400 = vunpack.c.l.b16 %v4834
    %v6401 = vunpack.c.h.b16 %v4834
    %v6402 = vunpack.c.l.b16 %v4835
    %v6403 = vunpack.c.h.b16 %v4835
    %v6404 = vunpack.c.l.b16 %v4836
    %v6405 = vunpack.c.h.b16 %v4836
    %v6406 = vunpack.c.l.b16 %v4837
    %v6407 = vunpack.c.l.b16 %v4838
    %v6408 = vunpack.c.h.b16 %v4838
    %v6409 = vunpack.c.l.b16 %v4839
    %v6410 = vunpack.c.h.b16 %v4839
    %v6411 = vunpack.c.l.b16 %v4840
    %v6412 = vunpack.c.h.b16 %v4840
    %v6413 = vunpack.c.l.b16 %v4841
    %v6414 = vunpack.c.h.b16 %v4841
    %v6415 = vunpack.c.l.b16 %v4842
    %v6416 = vunpack.c.l.b16 %v4843
    %v6417 = vunpack.c.h.b16 %v4843
    %v6418 = vunpack.c.l.b16 %v4844
    %v6419 = vunpack.c.h.b16 %v4844
    %v6420 = vunpack.c.l.b16 %v4845
    %v6421 = vunpack.c.h.b16 %v4845
    %v6422 = vunpack.c.l.b16 %v4846
    %v6423 = vunpack.c.h.b16 %v4846
    %v6424 = vunpack.c.l.b16 %v4847
    %v6425 = vunpack.c.l.b16 %v4848
    %v6426 = vunpack.c.h.b16 %v4848
    %v6427 = vunpack.c.l.b16 %v4849
    %v6428 = vunpack.c.h.b16 %v4849
    %v6429 = vunpack.c.l.b16 %v4850
    %v6430 = vunpack.c.h.b16 %v4850
    %v6431 = vunpack.c.l.b16 %v4851
    %v6432 = vunpack.c.h.b16 %v4851
    %v6433 = vunpack.c.l.b16 %v4852
    %v6434 = vunpack.c.l.b16 %v4853
    %v6435 = vunpack.c.h.b16 %v4853
    %v6436 = vunpack.c.l.b16 %v4854
    %v6437 = vunpack.c.h.b16 %v4854
    %v6438 = vunpack.c.l.b16 %v4855
    %v6439 = vunpack.c.h.b16 %v4855
    %v6440 = vunpack.c.l.b16 %v4856
    %v6441 = vunpack.c.h.b16 %v4856
    %v6442 = vunpack.c.l.b16 %v4857
    %v6443 = vunpack.c.l.b16 %v4858
    %v6444 = vunpack.c.h.b16 %v4858
    %v6445 = vunpack.c.l.b16 %v4859
    %v6446 = vunpack.c.h.b16 %v4859
    %v6447 = vunpack.c.l.b16 %v4860
    %v6448 = vunpack.c.h.b16 %v4860
    %v6449 = vunpack.c.l.b16 %v4861
    %v6450 = vunpack.c.h.b16 %v4861
    %v6451 = vunpack.c.l.b16 %v4862
    %v6452 = vunpack.c.l.b16 %v4863
    %v6453 = vunpack.c.h.b16 %v4863
    %v6454 = vunpack.c.l.b16 %v4864
    %v6455 = vunpack.c.h.b16 %v4864
    %v6456 = vunpack.c.l.b16 %v4865
    %v6457 = vunpack.c.h.b16 %v4865
    %v6458 = vunpack.c.l.b16 %v4866
    %v6459 = vunpack.c.h.b16 %v4866
    %v6460 = vunpack.c.l.b16 %v4867
    %v6461 = vunpack.c.l.b16 %v4868
    %v6462 = vunpack.c.h.b16 %v4868
    %v6463 = vunpack.c.l.b16 %v4869
    %v6464 = vunpack.c.h.b16 %v4869
    %v6465 = vunpack.c.l.b16 %v4870
    %v6466 = vunpack.c.h.b16 %v4870
    %v6467 = vunpack.c.l.b16 %v4871
    %v6468 = vunpack.c.h.b16 %v4871
    %v6469 = vunpack.c.l.b16 %v4872
    %v6470 = vunpack.c.l.b16 %v4873
    %v6471 = vunpack.c.h.b16 %v4873
    %v6472 = vunpack.c.l.b16 %v4874
    %v6473 = vunpack.c.h.b16 %v4874
    %v6474 = vunpack.c.l.b16 %v4875
    %v6475 = vunpack.c.h.b16 %v4875
    %v6476 = vunpack.c.l.b16 %v4876
    %v6477 = vunpack.c.h.b16 %v4876
    %v6478 = vunpack.c.l.b16 %v4877
    %v6479 = vunpack.c.l.b16 %v4878
    %v6480 = vunpack.c.h.b16 %v4878
    %v6481 = vunpack.c.l.b16 %v4879
    %v6482 = vunpack.c.h.b16 %v4879
    %v6483 = vunpack.c.l.b16 %v4880
    %v6484 = vunpack.c.h.b16 %v4880
    %v6485 = vunpack.c.l.b16 %v4881
    %v6486 = vunpack.c.h.b16 %v4881
    %v6487 = vunpack.c.l.b16 %v4882
    %v6488 = vunpack.c.l.b16 %v4883
    %v6489 = vunpack.c.h.b16 %v4883
    %v6490 = vunpack.c.l.b16 %v4884
    %v6491 = vunpack.c.h.b16 %v4884
    %v6492 = vunpack.c.l.b16 %v4885
    %v6493 = vunpack.c.h.b16 %v4885
    %v6494 = vunpack.c.l.b16 %v4886
    %v6495 = vunpack.c.h.b16 %v4886
    %v6496 = vunpack.c.l.b16 %v4887
    %v6497 = vunpack.c.l.b16 %v4888
    %v6498 = vunpack.c.h.b16 %v4888
    %v6499 = vunpack.c.l.b16 %v4889
    %v6500 = vunpack.c.h.b16 %v4889
    %v6501 = vunpack.c.l.b16 %v4890
    %v6502 = vunpack.c.h.b16 %v4890
    %v6503 = vunpack.c.l.b16 %v4891
    %v6504 = vunpack.c.h.b16 %v4891
    %v6505 = vunpack.c.l.b16 %v4892
    %v6506 = vunpack.c.l.b16 %v4893
    %v6507 = vunpack.c.h.b16 %v4893
    %v6508 = vunpack.c.l.b16 %v4894
    %v6509 = vunpack.c.h.b16 %v4894
    %v6510 = vunpack.c.l.b16 %v4895
    %v6511 = vunpack.c.h.b16 %v4895
    %v6512 = vunpack.c.l.b16 %v4896
    %v6513 = vunpack.c.h.b16 %v4896
    %v6514 = vunpack.c.l.b16 %v4897
    %v6515 = vunpack.c.l.b16 %v4898
    %v6516 = vunpack.c.h.b16 %v4898
    %v6517 = vunpack.c.l.b16 %v4899
    %v6518 = vunpack.c.h.b16 %v4899
    %v6519 = vunpack.c.l.b16 %v4900
    %v6520 = vunpack.c.h.b16 %v4900
    %v6521 = vunpack.c.l.b16 %v4901
    %v6522 = vunpack.c.h.b16 %v4901
    %v6523 = vunpack.c.l.b16 %v4902
    %v6524 = vunpack.c.l.b16 %v4903
    %v6525 = vunpack.c.h.b16 %v4903
    %v6526 = vunpack.c.l.b16 %v4904
    %v6527 = vunpack.c.h.b16 %v4904
    %v6528 = vunpack.c.l.b16 %v4905
    %v6529 = vunpack.c.h.b16 %v4905
    %v6530 = vunpack.c.l.b16 %v4906
    %v6531 = vunpack.c.h.b16 %v4906
    %v6532 = vunpack.c.l.b16 %v4907
    %v6533 = vunpack.c.l.b16 %v4908
    %v6534 = vunpack.c.h.b16 %v4908
    %v6535 = vunpack.c.l.b16 %v4909
    %v6536 = vunpack.c.h.b16 %v4909
    %v6537 = vunpack.c.l.b16 %v4910
    %v6538 = vunpack.c.h.b16 %v4910
    %v6539 = vunpack.c.l.b16 %v4911
    %v6540 = vunpack.c.h.b16 %v4911
    %v6541 = vunpack.c.l.b16 %v4912
    %v6542 = vunpack.c.l.b16 %v4913
    %v6543 = vunpack.c.h.b16 %v4913
    %v6544 = vunpack.c.l.b16 %v4914
    %v6545 = vunpack.c.h.b16 %v4914
    %v6546 = vunpack.c.l.b16 %v4915
    %v6547 = vunpack.c.h.b16 %v4915
    %v6548 = vunpack.c.l.b16 %v4916
    %v6549 = vunpack.c.h.b16 %v4916
    %v6550 = vunpack.c.l.b16 %v4917
    %v6551 = vunpack.c.l.b16 %v4918
    %v6552 = vunpack.c.h.b16 %v4918
    %v6553 = vunpack.c.l.b16 %v4919
    %v6554 = vunpack.c.h.b16 %v4919
    %v6555 = vunpack.c.l.b16 %v4920
    %v6556 = vunpack.c.h.b16 %v4920
    %v6557 = vunpack.c.l.b16 %v4921
    %v6558 = vunpack.c.h.b16 %v4921
    %v6559 = vunpack.c.l.b16 %v4922
    %v6560 = vunpack.c.l.b16 %v4923
    %v6561 = vunpack.c.h.b16 %v4923
    %v6562 = vunpack.c.l.b16 %v4924
    %v6563 = vunpack.c.h.b16 %v4924
    %v6564 = vunpack.c.l.b16 %v4925
    %v6565 = vunpack.c.h.b16 %v4925
    %v6566 = vunpack.c.l.b16 %v4926
    %v6567 = vunpack.c.h.b16 %v4926
    %v6568 = vunpack.c.l.b16 %v4927
    %v6569 = vunpack.c.l.b16 %v4928
    %v6570 = vunpack.c.h.b16 %v4928
    %v6571 = vunpack.c.l.b16 %v4929
    %v6572 = vunpack.c.h.b16 %v4929
    %v6573 = vunpack.c.l.b16 %v4930
    %v6574 = vunpack.c.h.b16 %v4930
    %v6575 = vunpack.c.l.b16 %v4931
    %v6576 = vunpack.c.h.b16 %v4931
    %v6577 = vunpack.c.l.b16 %v4932
    %v6578 = vunpack.c.l.b16 %v4933
    %v6579 = vunpack.c.h.b16 %v4933
    %v6580 = vunpack.c.l.b16 %v4934
    %v6581 = vunpack.c.h.b16 %v4934
    %v6582 = vunpack.c.l.b16 %v4935
    %v6583 = vunpack.c.h.b16 %v4935
    %v6584 = vunpack.c.l.b16 %v4936
    %v6585 = vunpack.c.h.b16 %v4936
    %v6586 = vunpack.c.l.b16 %v4937
    %v6587 = vunpack.c.l.b16 %v4938
    %v6588 = vunpack.c.h.b16 %v4938
    %v6589 = vunpack.c.l.b16 %v4939
    %v6590 = vunpack.c.h.b16 %v4939
    %v6591 = vunpack.c.l.b16 %v4940
    %v6592 = vunpack.c.h.b16 %v4940
    %v6593 = vunpack.c.l.b16 %v4941
    %v6594 = vunpack.c.h.b16 %v4941
    %v6595 = vunpack.c.l.b16 %v4942
    %v6596 = vunpack.c.l.b16 %v4943
    %v6597 = vunpack.c.h.b16 %v4943
    %v6598 = vunpack.c.l.b16 %v4944
    %v6599 = vunpack.c.h.b16 %v4944
    %v6600 = vunpack.c.l.b16 %v4945
    %v6601 = vunpack.c.h.b16 %v4945
    %v6602 = vunpack.c.l.b16 %v4946
    %v6603 = vunpack.c.h.b16 %v4946
    %v6604 = vunpack.c.l.b16 %v4947
    %v6605 = vunpack.c.l.b16 %v4948
    %v6606 = vunpack.c.h.b16 %v4948
    %v6607 = vunpack.c.l.b16 %v4949
    %v6608 = vunpack.c.h.b16 %v4949
    %v6609 = vunpack.c.l.b16 %v4950
    %v6610 = vunpack.c.h.b16 %v4950
    %v6611 = vunpack.c.l.b16 %v4951
    %v6612 = vunpack.c.h.b16 %v4951
    %v6613 = vunpack.c.l.b16 %v4952
    %v6614 = vunpack.c.l.b16 %v4953
    %v6615 = vunpack.c.h.b16 %v4953
    %v6616 = vunpack.c.l.b16 %v4954
    %v6617 = vunpack.c.h.b16 %v4954
    %v6618 = vunpack.c.l.b16 %v4955
    %v6619 = vunpack.c.h.b16 %v4955
    %v6620 = vunpack.c.l.b16 %v4956
    %v6621 = vunpack.c.h.b16 %v4956
    %v6622 = vunpack.c.l.b16 %v4957
    %v6623 = vunpack.c.l.b16 %v4958
    %v6624 = vunpack.c.h.b16 %v4958
    %v6625 = vunpack.c.l.b16 %v4959
    %v6626 = vunpack.c.h.b16 %v4959
    %v6627 = vunpack.c.l.b16 %v4960
    %v6628 = vunpack.c.h.b16 %v4960
    %v6629 = vunpack.c.l.b16 %v4961
    %v6630 = vunpack.c.h.b16 %v4961
    %v6631 = vunpack.c.l.b16 %v4962
    %v6632 = vunpack.c.l.b16 %v4963
    %v6633 = vunpack.c.h.b16 %v4963
    %v6634 = vunpack.c.l.b16 %v4964
    %v6635 = vunpack.c.h.b16 %v4964
    %v6636 = vunpack.c.l.b16 %v4965
    %v6637 = vunpack.c.h.b16 %v4965
    %v6638 = vunpack.c.l.b16 %v4966
    %v6639 = vunpack.c.h.b16 %v4966
    %v6640 = vunpack.c.l.b16 %v4967
    %v6641 = vunpack.c.l.b16 %v4968
    %v6642 = vunpack.c.h.b16 %v4968
    %v6643 = vunpack.c.l.b16 %v4969
    %v6644 = vunpack.c.h.b16 %v4969
    %v6645 = vunpack.c.l.b16 %v4970
    %v6646 = vunpack.c.h.b16 %v4970
    %v6647 = vunpack.c.l.b16 %v4971
    %v6648 = vunpack.c.h.b16 %v4971
    %v6649 = vunpack.c.l.b16 %v4972
    %v6650 = vunpack.c.l.b16 %v4973
    %v6651 = vunpack.c.h.b16 %v4973
    %v6652 = vunpack.c.l.b16 %v4974
    %v6653 = vunpack.c.h.b16 %v4974
    %v6654 = vunpack.c.l.b16 %v4975
    %v6655 = vunpack.c.h.b16 %v4975
    %v6656 = vunpack.c.l.b16 %v4976
    %v6657 = vunpack.c.h.b16 %v4976
    %v6658 = vunpack.c.l.b16 %v4977
    %v6659 = vunpack.c.l.b16 %v4978
    %v6660 = vunpack.c.h.b16 %v4978
    %v6661 = vunpack.c.l.b16 %v4979
    %v6662 = vunpack.c.h.b16 %v4979
    %v6663 = vunpack.c.l.b16 %v4980
    %v6664 = vunpack.c.h.b16 %v4980
    %v6665 = vunpack.c.l.b16 %v4981
    %v6666 = vunpack.c.h.b16 %v4981
    %v6667 = vunpack.c.l.b16 %v4982
    %v6668 = vunpack.c.l.b16 %v4983
    %v6669 = vunpack.c.h.b16 %v4983
    %v6670 = vunpack.c.l.b16 %v4984
    %v6671 = vunpack.c.h.b16 %v4984
    %v6672 = vunpack.c.l.b16 %v4985
    %v6673 = vunpack.c.h.b16 %v4985
    %v6674 = vunpack.c.l.b16 %v4986
    %v6675 = vunpack.c.h.b16 %v4986
    %v6676 = vunpack.c.l.b16 %v4987
    %v6677 = vunpack.c.l.b16 %v4988
    %v6678 = vunpack.c.h.b16 %v4988
    %v6679 = vunpack.c.l.b16 %v4989
    %v6680 = vunpack.c.h.b16 %v4989
    %v6681 = vunpack.c.l.b16 %v4990
    %v6682 = vunpack.c.h.b16 %v4990
    %v6683 = vunpack.c.l.b16 %v4991
    %v6684 = vunpack.c.h.b16 %v4991
    %v6685 = vunpack.c.l.b16 %v4992
    %v6686 = vunpack.c.l.b16 %v4993
    %v6687 = vunpack.c.h.b16 %v4993
    %v6688 = vunpack.c.l.b16 %v4994
    %v6689 = vunpack.c.h.b16 %v4994
    %v6690 = vunpack.c.l.b16 %v4995
    %v6691 = vunpack.c.h.b16 %v4995
    %v6692 = vunpack.c.l.b16 %v4996
    %v6693 = vunpack.c.h.b16 %v4996
    %v6694 = vunpack.c.l.b16 %v4997
    %v6695 = vunpack.c.l.b16 %v4998
    %v6696 = vunpack.c.h.b16 %v4998
    %v6697 = vunpack.c.l.b16 %v4999
    %v6698 = vunpack.c.h.b16 %v4999
    %v6699 = vunpack.c.l.b16 %v5000
    %v6700 = vunpack.c.h.b16 %v5000
    %v6701 = vunpack.c.l.b16 %v5001
    %v6702 = vunpack.c.h.b16 %v5001
    %v6703 = vunpack.c.l.b16 %v5002
    %v6704 = vunpack.c.l.b16 %v5003
    %v6705 = vunpack.c.h.b16 %v5003
    %v6706 = vunpack.c.l.b16 %v5004
    %v6707 = vunpack.c.h.b16 %v5004
    %v6708 = vunpack.c.l.b16 %v5005
    %v6709 = vunpack.c.h.b16 %v5005
    %v6710 = vunpack.c.l.b16 %v5006
    %v6711 = vunpack.c.h.b16 %v5006
    %v6712 = vunpack.c.l.b16 %v5007
    %v6713 = vunpack.c.l.b16 %v5008
    %v6714 = vunpack.c.h.b16 %v5008
    %v6715 = vunpack.c.l.b16 %v5009
    %v6716 = vunpack.c.h.b16 %v5009
    %v6717 = vunpack.c.l.b16 %v5010
    %v6718 = vunpack.c.h.b16 %v5010
    %v6719 = vunpack.c.l.b16 %v5011
    %v6720 = vunpack.c.h.b16 %v5011
    %v6721 = vunpack.c.l.b16 %v5012
    %v6722 = vunpack.c.l.b16 %v5013
    %v6723 = vunpack.c.h.b16 %v5013
    %v6724 = vunpack.c.l.b16 %v5014
    %v6725 = vunpack.c.h.b16 %v5014
    %v6726 = vunpack.c.l.b16 %v5015
    %v6727 = vunpack.c.h.b16 %v5015
    %v6728 = vunpack.c.l.b16 %v5016
    %v6729 = vunpack.c.h.b16 %v5016
    %v6730 = vunpack.c.l.b16 %v5017
    %v6731 = vunpack.c.l.b16 %v5018
    %v6732 = vunpack.c.h.b16 %v5018
    %v6733 = vunpack.c.l.b16 %v5019
    %v6734 = vunpack.c.h.b16 %v5019
    %v6735 = vunpack.c.l.b16 %v5020
    %v6736 = vunpack.c.h.b16 %v5020
    %v6737 = vunpack.c.l.b16 %v5021
    %v6738 = vunpack.c.h.b16 %v5021
    %v6739 = vunpack.c.l.b16 %v5022
    %v6740 = vunpack.c.l.b16 %v5023
    %v6741 = vunpack.c.h.b16 %v5023
    %v6742 = vunpack.c.l.b16 %v5024
    %v6743 = vunpack.c.h.b16 %v5024
    %v6744 = vunpack.c.l.b16 %v5025
    %v6745 = vunpack.c.h.b16 %v5025
    %v6746 = vunpack.c.l.b16 %v5026
    %v6747 = vunpack.c.h.b16 %v5026
    %v6748 = vunpack.c.l.b16 %v5027
    %v6749 = vunpack.c.l.b16 %v5028
    %v6750 = vunpack.c.h.b16 %v5028
    %v6751 = vunpack.c.l.b16 %v5029
    %v6752 = vunpack.c.h.b16 %v5029
    %v6753 = vunpack.c.l.b16 %v5030
    %v6754 = vunpack.c.h.b16 %v5030
    %v6755 = vunpack.c.l.b16 %v5031
    %v6756 = vunpack.c.h.b16 %v5031
    %v6757 = vunpack.c.l.b16 %v5032
    %v6758 = vunpack.c.l.b16 %v5033
    %v6759 = vunpack.c.h.b16 %v5033
    %v6760 = vunpack.c.l.b16 %v5034
    %v6761 = vunpack.c.h.b16 %v5034
    %v6762 = vunpack.c.l.b16 %v5035
    %v6763 = vunpack.c.h.b16 %v5035
    %v6764 = vunpack.c.l.b16 %v5036
    %v6765 = vunpack.c.h.b16 %v5036
    %v6766 = vunpack.c.l.b16 %v5037
    %v6767 = vunpack.c.l.b16 %v5038
    %v6768 = vunpack.c.h.b16 %v5038
    %v6769 = vunpack.c.l.b16 %v5039
    %v6770 = vunpack.c.h.b16 %v5039
    %v6771 = vunpack.c.l.b16 %v5040
    %v6772 = vunpack.c.h.b16 %v5040
    %v6773 = vunpack.c.l.b16 %v5041
    %v6774 = vunpack.c.h.b16 %v5041
    %v6775 = vunpack.c.l.b16 %v5042
    %v6776 = vunpack.c.l.b16 %v5043
    %v6777 = vunpack.c.h.b16 %v5043
    %v6778 = vunpack.c.l.b16 %v5044
    %v6779 = vunpack.c.h.b16 %v5044
    %v6780 = vunpack.c.l.b16 %v5045
    %v6781 = vunpack.c.h.b16 %v5045
    %v6782 = vunpack.c.l.b16 %v5046
    %v6783 = vunpack.c.h.b16 %v5046
    %v6784 = vunpack.c.l.b16 %v5047
    %v6785 = vunpack.c.l.b16 %v5048
    %v6786 = vunpack.c.h.b16 %v5048
    %v6787 = vunpack.c.l.b16 %v5049
    %v6788 = vunpack.c.h.b16 %v5049
    %v6789 = vunpack.c.l.b16 %v5050
    %v6790 = vunpack.c.h.b16 %v5050
    %v6791 = vunpack.c.l.b16 %v5051
    %v6792 = vunpack.c.h.b16 %v5051
    %v6793 = vunpack.c.l.b16 %v5052
    %v6794 = vunpack.c.l.b16 %v5053
    %v6795 = vunpack.c.h.b16 %v5053
    %v6796 = vunpack.c.l.b16 %v5054
    %v6797 = vunpack.c.h.b16 %v5054
    %v6798 = vunpack.c.l.b16 %v5055
    %v6799 = vunpack.c.h.b16 %v5055
    %v6800 = vunpack.c.l.b16 %v5056
    %v6801 = vunpack.c.h.b16 %v5056
    %v6802 = vunpack.c.l.b16 %v5057
    %v6803 = vunpack.c.l.b16 %v5058
    %v6804 = vunpack.c.h.b16 %v5058
    %v6805 = vunpack.c.l.b16 %v5059
    %v6806 = vunpack.c.h.b16 %v5059
    %v6807 = vunpack.c.l.b16 %v5060
    %v6808 = vunpack.c.h.b16 %v5060
    %v6809 = vunpack.c.l.b16 %v5061
    %v6810 = vunpack.c.h.b16 %v5061
    %v6811 = vunpack.c.l.b16 %v5062
    %v6812 = vunpack.c.l.b16 %v5063
    %v6813 = vunpack.c.h.b16 %v5063
    %v6814 = vunpack.c.l.b16 %v5064
    %v6815 = vunpack.c.h.b16 %v5064
    %v6816 = vunpack.c.l.b16 %v5065
    %v6817 = vunpack.c.h.b16 %v5065
    %v6818 = vunpack.c.l.b16 %v5066
    %v6819 = vunpack.c.h.b16 %v5066
    %v6820 = vunpack.c.l.b16 %v5067
    %v6821 = vunpack.c.l.b16 %v5068
    %v6822 = vunpack.c.h.b16 %v5068
    %v6823 = vunpack.c.l.b16 %v5069
    %v6824 = vunpack.c.h.b16 %v5069
    %v6825 = vunpack.c.l.b16 %v5070
    %v6826 = vunpack.c.h.b16 %v5070
    %v6827 = vunpack.c.l.b16 %v5071
    %v6828 = vunpack.c.h.b16 %v5071
    %v6829 = vunpack.c.l.b16 %v5072
    %v6830 = vunpack.c.l.b16 %v5073
    %v6831 = vunpack.c.h.b16 %v5073
    %v6832 = vunpack.c.l.b16 %v5074
    %v6833 = vunpack.c.h.b16 %v5074
    %v6834 = vunpack.c.l.b16 %v5075
    %v6835 = vunpack.c.h.b16 %v5075
    %v6836 = vunpack.c.l.b16 %v5076
    %v6837 = vunpack.c.h.b16 %v5076
    %v6838 = vunpack.c.l.b16 %v5077
    %v6839 = vunpack.c.l.b16 %v5078
    %v6840 = vunpack.c.h.b16 %v5078
    %v6841 = vunpack.c.l.b16 %v5079
    %v6842 = vunpack.c.h.b16 %v5079
    %v6843 = vunpack.c.l.b16 %v5080
    %v6844 = vunpack.c.h.b16 %v5080
    %v6845 = vunpack.c.l.b16 %v5081
    %v6846 = vunpack.c.h.b16 %v5081
    %v6847 = vunpack.c.l.b16 %v5082
    %v6848 = vunpack.c.l.b16 %v5083
    %v6849 = vunpack.c.h.b16 %v5083
    %v6850 = vunpack.c.l.b16 %v5084
    %v6851 = vunpack.c.h.b16 %v5084
    %v6852 = vunpack.c.l.b16 %v5085
    %v6853 = vunpack.c.h.b16 %v5085
    %v6854 = vunpack.c.l.b16 %v5086
    %v6855 = vunpack.c.h.b16 %v5086
    %v6856 = vunpack.c.l.b16 %v5087
    %v6857 = vunpack.c.l.b16 %v5088
    %v6858 = vunpack.c.h.b16 %v5088
    %v6859 = vunpack.c.l.b16 %v5089
    %v6860 = vunpack.c.h.b16 %v5089
    %v6861 = vunpack.c.l.b16 %v5090
    %v6862 = vunpack.c.h.b16 %v5090
    %v6863 = vunpack.c.l.b16 %v5091
    %v6864 = vunpack.c.h.b16 %v5091
    %v6865 = vunpack.c.l.b16 %v5092
    %v6866 = vunpack.c.l.b16 %v5093
    %v6867 = vunpack.c.h.b16 %v5093
    %v6868 = vunpack.c.l.b16 %v5094
    %v6869 = vunpack.c.h.b16 %v5094
    %v6870 = vunpack.c.l.b16 %v5095
    %v6871 = vunpack.c.h.b16 %v5095
    %v6872 = vunpack.c.l.b16 %v5096
    %v6873 = vunpack.c.h.b16 %v5096
    %v6874 = vunpack.c.l.b16 %v5097
    %v6875 = vunpack.c.l.b16 %v5098
    %v6876 = vunpack.c.h.b16 %v5098
    %v6877 = vunpack.c.l.b16 %v5099
    %v6878 = vunpack.c.h.b16 %v5099
    %v6879 = vunpack.c.l.b16 %v5100
    %v6880 = vunpack.c.h.b16 %v5100
    %v6881 = vunpack.c.l.b16 %v5101
    %v6882 = vunpack.c.h.b16 %v5101
    %v6883 = vunpack.c.l.b16 %v5102
    %v6884 = vunpack.c.l.b16 %v5103
    %v6885 = vunpack.c.h.b16 %v5103
    %v6886 = vunpack.c.l.b16 %v5104
    %v6887 = vunpack.c.h.b16 %v5104
    %v6888 = vunpack.c.l.b16 %v5105
    %v6889 = vunpack.c.h.b16 %v5105
    %v6890 = vunpack.c.l.b16 %v5106
    %v6891 = vunpack.c.h.b16 %v5106
    %v6892 = vunpack.c.l.b16 %v5107
    %v6893 = vunpack.c.l.b16 %v5108
    %v6894 = vunpack.c.h.b16 %v5108
    %v6895 = vunpack.c.l.b16 %v5109
    %v6896 = vunpack.c.h.b16 %v5109
    %v6897 = vunpack.c.l.b16 %v5110
    %v6898 = vunpack.c.h.b16 %v5110
    %v6899 = vunpack.c.l.b16 %v5111
    %v6900 = vunpack.c.h.b16 %v5111
    %v6901 = vunpack.c.l.b16 %v5112
    %v6902 = vunpack.c.l.b16 %v5113
    %v6903 = vunpack.c.h.b16 %v5113
    %v6904 = vunpack.c.l.b16 %v5114
    %v6905 = vunpack.c.h.b16 %v5114
    %v6906 = vunpack.c.l.b16 %v5115
    %v6907 = vunpack.c.h.b16 %v5115
    %v6908 = vunpack.c.l.b16 %v5116
    %v6909 = vunpack.c.h.b16 %v5116
    %v6910 = vunpack.c.l.b16 %v5117
    %v6911 = vunpack.c.l.b16 %v5118
    %v6912 = vunpack.c.h.b16 %v5118
    %v6913 = vunpack.c.l.b16 %v5119
    %v6914 = vunpack.c.h.b16 %v5119
    %v6915 = vunpack.c.l.b16 %v5120
    %v6916 = vunpack.c.h.b16 %v5120
    %v6917 = vunpack.c.l.b16 %v5121
    %v6918 = vunpack.c.h.b16 %v5121
    %v6919 = vunpack.c.l.b16 %v5122
    %v6920 = vunpack.c.l.b16 %v5123
    %v6921 = vunpack.c.h.b16 %v5123
    %v6922 = vunpack.c.l.b16 %v5124
    %v6923 = vunpack.c.h.b16 %v5124
    %v6924 = vunpack.c.l.b16 %v5125
    %v6925 = vunpack.c.h.b16 %v5125
    %v6926 = vunpack.c.l.b16 %v5126
    %v6927 = vunpack.c.h.b16 %v5126
    %v6928 = vunpack.c.l.b16 %v5127
    %v6929 = vunpack.c.l.b16 %v5128
    %v6930 = vunpack.c.h.b16 %v5128
    %v6931 = vunpack.c.l.b16 %v5129
    %v6932 = vunpack.c.h.b16 %v5129
    %v6933 = vunpack.c.l.b16 %v5130
    %v6934 = vunpack.c.h.b16 %v5130
    %v6935 = vunpack.c.l.b16 %v5131
    %v6936 = vunpack.c.h.b16 %v5131
    %v6937 = vunpack.c.l.b16 %v5132
    %v6938 = vunpack.c.l.b16 %v5133
    %v6939 = vunpack.c.h.b16 %v5133
    %v6940 = vunpack.c.l.b16 %v5134
    %v6941 = vunpack.c.h.b16 %v5134
    %v6942 = vunpack.c.l.b16 %v5135
    %v6943 = vunpack.c.h.b16 %v5135
    %v6944 = vunpack.c.l.b16 %v5136
    %v6945 = vunpack.c.h.b16 %v5136
    %v6946 = vunpack.c.l.b16 %v5137
    %v6947 = vunpack.c.l.b16 %v5138
    %v6948 = vunpack.c.h.b16 %v5138
    %v6949 = vunpack.c.l.b16 %v5139
    %v6950 = vunpack.c.h.b16 %v5139
    %v6951 = vunpack.c.l.b16 %v5140
    %v6952 = vunpack.c.h.b16 %v5140
    %v6953 = vunpack.c.l.b16 %v5141
    %v6954 = vunpack.c.h.b16 %v5141
    %v6955 = vunpack.c.l.b16 %v5142
    %v6956 = vunpack.c.l.b16 %v5143
    %v6957 = vunpack.c.h.b16 %v5143
    %v6958 = vunpack.c.l.b16 %v5144
    %v6959 = vunpack.c.h.b16 %v5144
    %v6960 = vunpack.c.l.b16 %v5145
    %v6961 = vunpack.c.h.b16 %v5145
    %v6962 = vunpack.c.l.b16 %v5146
    %v6963 = vunpack.c.h.b16 %v5146
    %v6964 = vunpack.c.l.b16 %v5147
    %v6965 = vunpack.c.l.b16 %v5148
    %v6966 = vunpack.c.h.b16 %v5148
    %v6967 = vunpack.c.l.b16 %v5149
    %v6968 = vunpack.c.h.b16 %v5149
    %v6969 = vunpack.c.l.b16 %v5150
    %v6970 = vunpack.c.h.b16 %v5150
    %v6971 = vunpack.c.l.b16 %v5151
    %v6972 = vunpack.c.h.b16 %v5151
    %v6973 = vunpack.c.l.b16 %v5152
    %v6974 = vunpack.c.l.b16 %v5153
    %v6975 = vunpack.c.h.b16 %v5153
    %v6976 = vunpack.c.l.b16 %v5154
    %v6977 = vunpack.c.h.b16 %v5154
    %v6978 = vunpack.c.l.b16 %v5155
    %v6979 = vunpack.c.h.b16 %v5155
    %v6980 = vunpack.c.l.b16 %v5156
    %v6981 = vunpack.c.h.b16 %v5156
    %v6982 = vunpack.c.l.b16 %v5157
    %v6983 = vunpack.c.l.b16 %v5158
    %v6984 = vunpack.c.h.b16 %v5158
    %v6985 = vunpack.c.l.b16 %v5159
    %v6986 = vunpack.c.h.b16 %v5159
    %v6987 = vunpack.c.l.b16 %v5160
    %v6988 = vunpack.c.h.b16 %v5160
    %v6989 = vunpack.c.l.b16 %v5161
    %v6990 = vunpack.c.h.b16 %v5161
    %v6991 = vunpack.c.l.b16 %v5162
    %v6992 = vunpack.c.l.b16 %v5163
    %v6993 = vunpack.c.h.b16 %v5163
    %v6994 = vunpack.c.l.b16 %v5164
    %v6995 = vunpack.c.h.b16 %v5164
    %v6996 = vunpack.c.l.b16 %v5165
    %v6997 = vunpack.c.h.b16 %v5165
    %v6998 = vunpack.c.l.b16 %v5166
    %v6999 = vunpack.c.h.b16 %v5166
    %v7000 = vunpack.c.l.b16 %v5167
    %v7001 = vunpack.c.l.b16 %v5168
    %v7002 = vunpack.c.h.b16 %v5168
    %v7003 = vunpack.c.l.b16 %v5169
    %v7004 = vunpack.c.h.b16 %v5169
    %v7005 = vunpack.c.l.b16 %v5170
    %v7006 = vunpack.c.h.b16 %v5170
    %v7007 = vunpack.c.l.b16 %v5171
    %v7008 = vunpack.c.h.b16 %v5171
    %v7009 = vunpack.c.l.b16 %v5172
    %v7010 = vunpack.c.l.b16 %v5173
    %v7011 = vunpack.c.h.b16 %v5173
    %v7012 = vunpack.c.l.b16 %v5174
    %v7013 = vunpack.c.h.b16 %v5174
    %v7014 = vunpack.c.l.b16 %v5175
    %v7015 = vunpack.c.h.b16 %v5175
    %v7016 = vunpack.c.l.b16 %v5176
    %v7017 = vunpack.c.h.b16 %v5176
    %v7018 = vunpack.c.l.b16 %v5177
    %v7019 = vunpack.c.l.b16 %v5178
    %v7020 = vunpack.c.h.b16 %v5178
    %v7021 = vunpack.c.l.b16 %v5179
    %v7022 = vunpack.c.h.b16 %v5179
    %v7023 = vunpack.c.l.b16 %v5180
    %v7024 = vunpack.c.h.b16 %v5180
    %v7025 = vunpack.c.l.b16 %v5181
    %v7026 = vunpack.c.h.b16 %v5181
    %v7027 = vunpack.c.l.b16 %v5182
    %v7028 = vunpack.c.l.b16 %v5183
    %v7029 = vunpack.c.h.b16 %v5183
    %v7030 = vunpack.c.l.b16 %v5184
    %v7031 = vunpack.c.h.b16 %v5184
    %v7032 = vunpack.c.l.b16 %v5185
    %v7033 = vunpack.c.h.b16 %v5185
    %v7034 = vunpack.c.l.b16 %v5186
    %v7035 = vunpack.c.h.b16 %v5186
    %v7036 = vunpack.c.l.b16 %v5187
    %v7037 = vunpack.c.l.b16 %v5188
    %v7038 = vunpack.c.h.b16 %v5188
    %v7039 = vunpack.c.l.b16 %v5189
    %v7040 = vunpack.c.h.b16 %v5189
    %v7041 = vunpack.c.l.b16 %v5190
    %v7042 = vunpack.c.h.b16 %v5190
    %v7043 = vunpack.c.l.b16 %v5191
    %v7044 = vunpack.c.h.b16 %v5191
    %v7045 = vunpack.c.l.b16 %v5192
    %v7046 = vunpack.c.l.b16 %v5193
    %v7047 = vunpack.c.h.b16 %v5193
    %v7048 = vunpack.c.l.b16 %v5194
    %v7049 = vunpack.c.h.b16 %v5194
    %v7050 = vunpack.c.l.b16 %v5195
    %v7051 = vunpack.c.h.b16 %v5195
    %v7052 = vunpack.c.l.b16 %v5196
    %v7053 = vunpack.c.h.b16 %v5196
    %v7054 = vunpack.c.l.b16 %v5197
    %v7055 = vunpack.c.l.b16 %v5198
    %v7056 = vunpack.c.h.b16 %v5198
    %v7057 = vunpack.c.l.b16 %v5199
    %v7058 = vunpack.c.h.b16 %v5199
    %v7059 = vunpack.c.l.b16 %v5200
    %v7060 = vunpack.c.h.b16 %v5200
    %v7061 = vunpack.c.l.b16 %v5201
    %v7062 = vunpack.c.h.b16 %v5201
    %v7063 = vunpack.c.l.b16 %v5202
    %v7064 = vunpack.c.l.b16 %v5203
    %v7065 = vunpack.c.h.b16 %v5203
    %v7066 = vunpack.c.l.b16 %v5204
    %v7067 = vunpack.c.h.b16 %v5204
    %v7068 = vunpack.c.l.b16 %v5205
    %v7069 = vunpack.c.h.b16 %v5205
    %v7070 = vunpack.c.l.b16 %v5206
    %v7071 = vunpack.c.h.b16 %v5206
    %v7072 = vunpack.c.l.b16 %v5207
    %v7073 = vunpack.c.l.b16 %v5208
    %v7074 = vunpack.c.h.b16 %v5208
    %v7075 = vunpack.c.l.b16 %v5209
    %v7076 = vunpack.c.h.b16 %v5209
    %v7077 = vunpack.c.l.b16 %v5210
    %v7078 = vunpack.c.h.b16 %v5210
    %v7079 = vunpack.c.l.b16 %v5211
    %v7080 = vunpack.c.h.b16 %v5211
    %v7081 = vunpack.c.l.b16 %v5212
    %v7082 = vunpack.c.l.b16 %v5213
    %v7083 = vunpack.c.h.b16 %v5213
    %v7084 = vunpack.c.l.b16 %v5214
    %v7085 = vunpack.c.h.b16 %v5214
    %v7086 = vunpack.c.l.b16 %v5215
    %v7087 = vunpack.c.h.b16 %v5215
    %v7088 = vunpack.c.l.b16 %v5216
    %v7089 = vunpack.c.h.b16 %v5216
    %v7090 = vunpack.c.l.b16 %v5217
    %v7091 = vunpack.c.l.b16 %v5218
    %v7092 = vunpack.c.h.b16 %v5218
    %v7093 = vunpack.c.l.b16 %v5219
    %v7094 = vunpack.c.h.b16 %v5219
    %v7095 = vunpack.c.l.b16 %v5220
    %v7096 = vunpack.c.h.b16 %v5220
    %v7097 = vunpack.c.l.b16 %v5221
    %v7098 = vunpack.c.h.b16 %v5221
    %v7099 = vunpack.c.l.b16 %v5222
    %v7100 = vunpack.c.l.b16 %v5223
    %v7101 = vunpack.c.h.b16 %v5223
    %v7102 = vunpack.c.l.b16 %v5224
    %v7103 = vunpack.c.h.b16 %v5224
    %v7104 = vunpack.c.l.b16 %v5225
    %v7105 = vunpack.c.h.b16 %v5225
    %v7106 = vunpack.c.l.b16 %v5226
    %v7107 = vunpack.c.h.b16 %v5226
    %v7108 = vunpack.c.l.b16 %v5227
    %v7109 = vunpack.c.l.b16 %v5228
    %v7110 = vunpack.c.h.b16 %v5228
    %v7111 = vunpack.c.l.b16 %v5229
    %v7112 = vunpack.c.h.b16 %v5229
    %v7113 = vunpack.c.l.b16 %v5230
    %v7114 = vunpack.c.h.b16 %v5230
    %v7115 = vunpack.c.l.b16 %v5231
    %v7116 = vunpack.c.h.b16 %v5231
    %v7117 = vunpack.c.l.b16 %v5232
    %v7118 = vunpack.c.l.b16 %v5233
    %v7119 = vunpack.c.h.b16 %v5233
    %v7120 = vunpack.c.l.b16 %v5234
    %v7121 = vunpack.c.h.b16 %v5234
    %v7122 = vunpack.c.l.b16 %v5235
    %v7123 = vunpack.c.h.b16 %v5235
    %v7124 = vunpack.c.l.b16 %v5236
    %v7125 = vunpack.c.h.b16 %v5236
    %v7126 = vunpack.c.l.b16 %v5237
    %v7127 = vunpack.c.l.b16 %v5238
    %v7128 = vunpack.c.h.b16 %v5238
    %v7129 = vunpack.c.l.b16 %v5239
    %v7130 = vunpack.c.h.b16 %v5239
    %v7131 = vunpack.c.l.b16 %v5240
    %v7132 = vunpack.c.h.b16 %v5240
    %v7133 = vunpack.c.l.b16 %v5241
    %v7134 = vunpack.c.h.b16 %v5241
    %v7135 = vunpack.c.l.b16 %v5242
    %v7136 = vunpack.c.l.b16 %v5243
    %v7137 = vunpack.c.h.b16 %v5243
    %v7138 = vunpack.c.l.b16 %v5244
    %v7139 = vunpack.c.h.b16 %v5244
    %v7140 = vunpack.c.l.b16 %v5245
    %v7141 = vunpack.c.h.b16 %v5245
    %v7142 = vunpack.c.l.b16 %v5246
    %v7143 = vunpack.c.h.b16 %v5246
    %v7144 = vunpack.c.l.b16 %v5247
    %v7145 = vunpack.c.l.b16 %v5248
    %v7146 = vunpack.c.h.b16 %v5248
    %v7147 = vunpack.c.l.b16 %v5249
    %v7148 = vunpack.c.h.b16 %v5249
    %v7149 = vunpack.c.l.b16 %v5250
    %v7150 = vunpack.c.h.b16 %v5250
    %v7151 = vunpack.c.l.b16 %v5251
    %v7152 = vunpack.c.h.b16 %v5251
    %v7153 = vunpack.c.l.b16 %v5252
    %v7154 = vunpack.c.l.b16 %v5253
    %v7155 = vunpack.c.h.b16 %v5253
    %v7156 = vunpack.c.l.b16 %v5254
    %v7157 = vunpack.c.h.b16 %v5254
    %v7158 = vunpack.c.l.b16 %v5255
    %v7159 = vunpack.c.h.b16 %v5255
    %v7160 = vunpack.c.l.b16 %v5256
    %v7161 = vunpack.c.h.b16 %v5256
    %v7162 = vunpack.c.l.b16 %v5257
    %v7163 = vunpack.c.l.b16 %v5258
    %v7164 = vunpack.c.h.b16 %v5258
    %v7165 = vunpack.c.l.b16 %v5259
    %v7166 = vunpack.c.h.b16 %v5259
    %v7167 = vunpack.c.l.b16 %v5260
    %v7168 = vunpack.c.h.b16 %v5260
    %v7169 = vunpack.c.l.b16 %v5261
    %v7170 = vunpack.c.h.b16 %v5261
    %v7171 = vunpack.c.l.b16 %v5262
    %v7172 = vunpack.c.l.b16 %v5263
    %v7173 = vunpack.c.h.b16 %v5263
    %v7174 = vunpack.c.l.b16 %v5264
    %v7175 = vunpack.c.h.b16 %v5264
    %v7176 = vunpack.c.l.b16 %v5265
    %v7177 = vunpack.c.h.b16 %v5265
    %v7178 = vunpack.c.l.b16 %v5266
    %v7179 = vunpack.c.h.b16 %v5266
    %v7180 = vunpack.c.l.b16 %v5267
    %v7181 = vunpack.c.l.b16 %v5268
    %v7182 = vunpack.c.h.b16 %v5268
    %v7183 = vunpack.c.l.b16 %v5269
    %v7184 = vunpack.c.h.b16 %v5269
    %v7185 = vunpack.c.l.b16 %v5270
    %v7186 = vunpack.c.h.b16 %v5270
    %v7187 = vunpack.c.l.b16 %v5271
    %v7188 = vunpack.c.h.b16 %v5271
    %v7189 = vunpack.c.l.b16 %v5272
    %v7190 = vunpack.c.l.b16 %v5273
    %v7191 = vunpack.c.h.b16 %v5273
    %v7192 = vunpack.c.l.b16 %v5274
    %v7193 = vunpack.c.h.b16 %v5274
    %v7194 = vunpack.c.l.b16 %v5275
    %v7195 = vunpack.c.h.b16 %v5275
    %v7196 = vunpack.c.l.b16 %v5276
    %v7197 = vunpack.c.h.b16 %v5276
    %v7198 = vunpack.c.l.b16 %v5277
    %v7199 = vunpack.c.l.b16 %v5278
    %v7200 = vunpack.c.h.b16 %v5278
    %v7201 = vunpack.c.l.b16 %v5279
    %v7202 = vunpack.c.h.b16 %v5279
    %v7203 = vunpack.c.l.b16 %v5280
    %v7204 = vunpack.c.h.b16 %v5280
    %v7205 = vunpack.c.l.b16 %v5281
    %v7206 = vunpack.c.h.b16 %v5281
    %v7207 = vunpack.c.l.b16 %v5282
    %v7208 = vunpack.c.l.b16 %v5283
    %v7209 = vunpack.c.h.b16 %v5283
    %v7210 = vunpack.c.l.b16 %v5284
    %v7211 = vunpack.c.h.b16 %v5284
    %v7212 = vunpack.c.l.b16 %v5285
    %v7213 = vunpack.c.h.b16 %v5285
    %v7214 = vunpack.c.l.b16 %v5286
    %v7215 = vunpack.c.h.b16 %v5286
    %v7216 = vunpack.c.l.b16 %v5287
    %v7217 = vunpack.c.l.b16 %v5288
    %v7218 = vunpack.c.h.b16 %v5288
    %v7219 = vunpack.c.l.b16 %v5289
    %v7220 = vunpack.c.h.b16 %v5289
    %v7221 = vunpack.c.l.b16 %v5290
    %v7222 = vunpack.c.h.b16 %v5290
    %v7223 = vunpack.c.l.b16 %v5291
    %v7224 = vunpack.c.h.b16 %v5291
    %v7225 = vunpack.c.l.b16 %v5292
    %v7226 = vunpack.c.l.b16 %v5293
    %v7227 = vunpack.c.h.b16 %v5293
    %v7228 = vunpack.c.l.b16 %v5294
    %v7229 = vunpack.c.h.b16 %v5294
    %v7230 = vunpack.c.l.b16 %v5295
    %v7231 = vunpack.c.h.b16 %v5295
    %v7232 = vunpack.c.l.b16 %v5296
    %v7233 = vunpack.c.h.b16 %v5296
    %v7234 = vunpack.c.l.b16 %v5297
    %v7235 = vunpack.c.l.b16 %v5298
    %v7236 = vunpack.c.h.b16 %v5298
    %v7237 = vunpack.c.l.b16 %v5299
    %v7238 = vunpack.c.h.b16 %v5299
    %v7239 = vunpack.c.l.b16 %v5300
    %v7240 = vunpack.c.h.b16 %v5300
    %v7241 = vunpack.c.l.b16 %v5301
    %v7242 = vunpack.c.h.b16 %v5301
    %v7243 = vunpack.c.l.b16 %v5302
    %v7244 = vunpack.c.l.b16 %v5303
    %v7245 = vunpack.c.h.b16 %v5303
    %v7246 = vunpack.c.l.b16 %v5304
    %v7247 = vunpack.c.h.b16 %v5304
    %v7248 = vunpack.c.l.b16 %v5305
    %v7249 = vunpack.c.h.b16 %v5305
    %v7250 = vunpack.c.l.b16 %v5306
    %v7251 = vunpack.c.h.b16 %v5306
    %v7252 = vunpack.c.l.b16 %v5307
    %v7253 = vunpack.c.l.b16 %v5308
    %v7254 = vunpack.c.h.b16 %v5308
    %v7255 = vunpack.c.l.b16 %v5309
    %v7256 = vunpack.c.h.b16 %v5309
    %v7257 = vunpack.c.l.b16 %v5310
    %v7258 = vunpack.c.h.b16 %v5310
    %v7259 = vunpack.c.l.b16 %v5311
    %v7260 = vunpack.c.h.b16 %v5311
    %v7261 = vunpack.c.l.b16 %v5312
    %v7262 = vunpack.c.l.b16 %v5313
    %v7263 = vunpack.c.h.b16 %v5313
    %v7264 = vunpack.c.l.b16 %v5314
    %v7265 = vunpack.c.h.b16 %v5314
    %v7266 = vunpack.c.l.b16 %v5315
    %v7267 = vunpack.c.h.b16 %v5315
    %v7268 = vunpack.c.l.b16 %v5316
    %v7269 = vunpack.c.h.b16 %v5316
    %v7270 = vunpack.c.l.b16 %v5317
    %v7271 = vunpack.c.l.b16 %v5318
    %v7272 = vunpack.c.h.b16 %v5318
    %v7273 = vunpack.c.l.b16 %v5319
    %v7274 = vunpack.c.h.b16 %v5319
    %v7275 = vunpack.c.l.b16 %v5320
    %v7276 = vunpack.c.h.b16 %v5320
    %v7277 = vunpack.c.l.b16 %v5321
    %v7278 = vunpack.c.h.b16 %v5321
    %v7279 = vunpack.c.l.b16 %v5322
    %v7280 = vunpack.c.l.b16 %v5323
    %v7281 = vunpack.c.h.b16 %v5323
    %v7282 = vunpack.c.l.b16 %v5324
    %v7283 = vunpack.c.h.b16 %v5324
    %v7284 = vunpack.c.l.b16 %v5325
    %v7285 = vunpack.c.h.b16 %v5325
    %v7286 = vunpack.c.l.b16 %v5326
    %v7287 = vunpack.c.h.b16 %v5326
    %v7288 = vunpack.c.l.b16 %v5327
    %v7289 = vunpack.c.l.b16 %v5328
    %v7290 = vunpack.c.h.b16 %v5328
    %v7291 = vunpack.c.l.b16 %v5329
    %v7292 = vunpack.c.h.b16 %v5329
    %v7293 = vunpack.c.l.b16 %v5330
    %v7294 = vunpack.c.h.b16 %v5330
    %v7295 = vunpack.c.l.b16 %v5331
    %v7296 = vunpack.c.h.b16 %v5331
    %v7297 = vunpack.c.l.b16 %v5332
    %v7298 = vunpack.c.l.b16 %v5333
    %v7299 = vunpack.c.h.b16 %v5333
    %v7300 = vunpack.c.l.b16 %v5334
    %v7301 = vunpack.c.h.b16 %v5334
    %v7302 = vunpack.c.l.b16 %v5335
    %v7303 = vunpack.c.h.b16 %v5335
    %v7304 = vunpack.c.l.b16 %v5336
    %v7305 = vunpack.c.h.b16 %v5336
    %v7306 = vunpack.c.l.b16 %v5337
    %v7307 = vunpack.c.l.b16 %v5338
    %v7308 = vunpack.c.h.b16 %v5338
    %v7309 = vunpack.c.l.b16 %v5339
    %v7310 = vunpack.c.h.b16 %v5339
    %v7311 = vunpack.c.l.b16 %v5340
    %v7312 = vunpack.c.h.b16 %v5340
    %v7313 = vunpack.c.l.b16 %v5341
    %v7314 = vunpack.c.h.b16 %v5341
    %v7315 = vunpack.c.l.b16 %v5342
    %v7316 = vunpack.c.l.b16 %v5343
    %v7317 = vunpack.c.h.b16 %v5343
    %v7318 = vunpack.c.l.b16 %v5344
    %v7319 = vunpack.c.h.b16 %v5344
    %v7320 = vunpack.c.l.b16 %v5345
    %v7321 = vunpack.c.h.b16 %v5345
    %v7322 = vunpack.c.l.b16 %v5346
    %v7323 = vunpack.c.h.b16 %v5346
    %v7324 = vunpack.c.l.b16 %v5347
    %v7325 = vunpack.c.l.b16 %v5348
    %v7326 = vunpack.c.h.b16 %v5348
    %v7327 = vunpack.c.l.b16 %v5349
    %v7328 = vunpack.c.h.b16 %v5349
    %v7329 = vunpack.c.l.b16 %v5350
    %v7330 = vunpack.c.h.b16 %v5350
    %v7331 = vunpack.c.l.b16 %v5351
    %v7332 = vunpack.c.h.b16 %v5351
    %v7333 = vunpack.c.l.b16 %v5352
    %v7334 = vunpack.c.l.b16 %v5353
    %v7335 = vunpack.c.h.b16 %v5353
    %v7336 = vunpack.c.l.b16 %v5354
    %v7337 = vunpack.c.h.b16 %v5354
    %v7338 = vunpack.c.l.b16 %v5355
    %v7339 = vunpack.c.h.b16 %v5355
    %v7340 = vunpack.c.l.b16 %v5356
    %v7341 = vunpack.c.h.b16 %v5356
    %v7342 = vunpack.c.l.b16 %v5357
    %v7343 = vunpack.c.l.b16 %v5358
    %v7344 = vunpack.c.h.b16 %v5358
    %v7345 = vunpack.c.l.b16 %v5359
    %v7346 = vunpack.c.h.b16 %v5359
    %v7347 = vunpack.c.l.b16 %v5360
    %v7348 = vunpack.c.h.b16 %v5360
    %v7349 = vunpack.c.l.b16 %v5361
    %v7350 = vunpack.c.h.b16 %v5361
    %v7351 = vunpack.c.l.b16 %v5362
    %v7352 = vunpack.c.l.b16 %v5363
    %v7353 = vunpack.c.h.b16 %v5363
    %v7354 = vunpack.c.l.b16 %v5364
    %v7355 = vunpack.c.h.b16 %v5364
    %v7356 = vunpack.c.l.b16 %v5365
    %v7357 = vunpack.c.h.b16 %v5365
    %v7358 = vunpack.c.l.b16 %v5366
    %v7359 = vunpack.c.h.b16 %v5366
    %v7360 = vunpack.c.l.b16 %v5367
    %v7361 = vunpack.c.l.b16 %v5368
    %v7362 = vunpack.c.h.b16 %v5368
    %v7363 = vunpack.c.l.b16 %v5369
    %v7364 = vunpack.c.h.b16 %v5369
    %v7365 = vunpack.c.l.b16 %v5370
    %v7366 = vunpack.c.h.b16 %v5370
    %v7367 = vunpack.c.l.b16 %v5371
    %v7368 = vunpack.c.h.b16 %v5371
    %v7369 = vunpack.c.l.b16 %v5372
    %v7370 = vunpack.c.l.b16 %v5373
    %v7371 = vunpack.c.h.b16 %v5373
    %v7372 = vunpack.c.l.b16 %v5374
    %v7373 = vunpack.c.h.b16 %v5374
    %v7374 = vunpack.c.l.b16 %v5375
    %v7375 = vunpack.c.h.b16 %v5375
    %v7376 = vunpack.c.l.b16 %v5376
    %v7377 = vunpack.c.h.b16 %v5376
    %v7378 = vunpack.c.l.b16 %v5377
    %v7379 = vunpack.c.l.b16 %v5378
    %v7380 = vunpack.c.h.b16 %v5378
    %v7381 = vunpack.c.l.b16 %v5379
    %v7382 = vunpack.c.h.b16 %v5379
    %v7383 = vunpack.c.l.b16 %v5380
    %v7384 = vunpack.c.h.b16 %v5380
    %v7385 = vunpack.c.l.b16 %v5381
    %v7386 = vunpack.c.h.b16 %v5381
    %v7387 = vunpack.c.l.b16 %v5382
    %v7388 = vunpack.c.l.b16 %v5383
    %v7389 = vunpack.c.h.b16 %v5383
    %v7390 = vunpack.c.l.b16 %v5384
    %v7391 = vunpack.c.h.b16 %v5384
    %v7392 = vunpack.c.l.b16 %v5385
    %v7393 = vunpack.c.h.b16 %v5385
    %v7394 = vunpack.c.l.b16 %v5386
    %v7395 = vunpack.c.h.b16 %v5386
    %v7396 = vunpack.c.l.b16 %v5387
    %v7397 = vunpack.c.l.b16 %v5388
    %v7398 = vunpack.c.h.b16 %v5388
    %v7399 = vunpack.c.l.b16 %v5389
    %v7400 = vunpack.c.h.b16 %v5389
    %v7401 = vunpack.c.l.b16 %v5390
    %v7402 = vunpack.c.h.b16 %v5390
    %v7403 = vunpack.c.l.b16 %v5391
    %v7404 = vunpack.c.h.b16 %v5391
    %v7405 = vunpack.c.l.b16 %v5392
    %v7406 = vunpack.c.l.b16 %v5393
    %v7407 = vunpack.c.h.b16 %v5393
    %v7408 = vunpack.c.l.b16 %v5394
    %v7409 = vunpack.c.h.b16 %v5394
    %v7410 = vunpack.c.l.b16 %v5395
    %v7411 = vunpack.c.h.b16 %v5395
    %v7412 = vunpack.c.l.b16 %v5396
    %v7413 = vunpack.c.h.b16 %v5396
    %v7414 = vunpack.c.l.b16 %v5397
    %v7415 = vunpack.c.l.b16 %v5398
    %v7416 = vunpack.c.h.b16 %v5398
    %v7417 = vunpack.c.l.b16 %v5399
    %v7418 = vunpack.c.h.b16 %v5399
    %v7419 = vunpack.c.l.b16 %v5400
    %v7420 = vunpack.c.h.b16 %v5400
    %v7421 = vunpack.c.l.b16 %v5401
    %v7422 = vunpack.c.h.b16 %v5401
    %v7423 = vunpack.c.l.b16 %v5402
    %v7424 = vunpack.c.l.b16 %v5403
    %v7425 = vunpack.c.h.b16 %v5403
    %v7426 = vunpack.c.l.b16 %v5404
    %v7427 = vunpack.c.h.b16 %v5404
    %v7428 = vunpack.c.l.b16 %v5405
    %v7429 = vunpack.c.h.b16 %v5405
    %v7430 = vunpack.c.l.b16 %v5406
    %v7431 = vunpack.c.h.b16 %v5406
    %v7432 = vunpack.c.l.b16 %v5407
    %v7433 = vunpack.c.l.b16 %v5408
    %v7434 = vunpack.c.h.b16 %v5408
    %v7435 = vunpack.c.l.b16 %v5409
    %v7436 = vunpack.c.h.b16 %v5409
    %v7437 = vunpack.c.l.b16 %v5410
    %v7438 = vunpack.c.h.b16 %v5410
    %v7439 = vunpack.c.l.b16 %v5411
    %v7440 = vunpack.c.h.b16 %v5411
    %v7441 = vunpack.c.l.b16 %v5412
    %v7442 = vunpack.c.l.b16 %v5413
    %v7443 = vunpack.c.h.b16 %v5413
    %v7444 = vunpack.c.l.b16 %v5414
    %v7445 = vunpack.c.h.b16 %v5414
    %v7446 = vunpack.c.l.b16 %v5415
    %v7447 = vunpack.c.h.b16 %v5415
    %v7448 = vunpack.c.l.b16 %v5416
    %v7449 = vunpack.c.h.b16 %v5416
    %v7450 = vunpack.c.l.b16 %v5417
    %v7451 = vunpack.c.l.b16 %v5418
    %v7452 = vunpack.c.h.b16 %v5418
    %v7453 = vunpack.c.l.b16 %v5419
    %v7454 = vunpack.c.h.b16 %v5419
    %v7455 = vunpack.c.l.b16 %v5420
    %v7456 = vunpack.c.h.b16 %v5420
    %v7457 = vunpack.c.l.b16 %v5421
    %v7458 = vunpack.c.h.b16 %v5421
    %v7459 = vunpack.c.l.b16 %v5422
    %v7460 = vunpack.c.l.b16 %v5423
    %v7461 = vunpack.c.h.b16 %v5423
    %v7462 = vunpack.c.l.b16 %v5424
    %v7463 = vunpack.c.h.b16 %v5424
    %v7464 = vunpack.c.l.b16 %v5425
    %v7465 = vunpack.c.h.b16 %v5425
    %v7466 = vunpack.c.l.b16 %v5426
    %v7467 = vunpack.c.h.b16 %v5426
    %v7468 = vunpack.c.l.b16 %v5427
    %v7469 = vunpack.c.l.b16 %v5428
    %v7470 = vunpack.c.h.b16 %v5428
    %v7471 = vunpack.c.l.b16 %v5429
    %v7472 = vunpack.c.h.b16 %v5429
    %v7473 = vunpack.c.l.b16 %v5430
    %v7474 = vunpack.c.h.b16 %v5430
    %v7475 = vunpack.c.l.b16 %v5431
    %v7476 = vunpack.c.h.b16 %v5431
    %v7477 = vunpack.c.l.b16 %v5432
    %v7478 = vunpack.c.l.b16 %v5433
    %v7479 = vunpack.c.h.b16 %v5433
    %v7480 = vunpack.c.l.b16 %v5434
    %v7481 = vunpack.c.h.b16 %v5434
    %v7482 = vunpack.c.l.b16 %v5435
    %v7483 = vunpack.c.h.b16 %v5435
    %v7484 = vunpack.c.l.b16 %v5436
    %v7485 = vunpack.c.h.b16 %v5436
    %v7486 = vunpack.c.l.b16 %v5437
    %v7487 = vunpack.c.l.b16 %v5438
    %v7488 = vunpack.c.h.b16 %v5438
    %v7489 = vunpack.c.l.b16 %v5439
    %v7490 = vunpack.c.h.b16 %v5439
    %v7491 = vunpack.c.l.b16 %v5440
    %v7492 = vunpack.c.h.b16 %v5440
    %v7493 = vunpack.c.l.b16 %v5441
    %v7494 = vunpack.c.h.b16 %v5441
    %v7495 = vunpack.c.l.b16 %v5442
    %v7496 = vunpack.c.l.b16 %v5443
    %v7497 = vunpack.c.h.b16 %v5443
    %v7498 = vunpack.c.l.b16 %v5444
    %v7499 = vunpack.c.h.b16 %v5444
    %v7500 = vunpack.c.l.b16 %v5445
    %v7501 = vunpack.c.h.b16 %v5445
    %v7502 = vunpack.c.l.b16 %v5446
    %v7503 = vunpack.c.h.b16 %v5446
    %v7504 = vunpack.c.l.b16 %v5447
    %v7505 = vunpack.c.l.b16 %v5448
    %v7506 = vunpack.c.h.b16 %v5448
    %v7507 = vunpack.c.l.b16 %v5449
    %v7508 = vunpack.c.h.b16 %v5449
    %v7509 = vunpack.c.l.b16 %v5450
    %v7510 = vunpack.c.h.b16 %v5450
    %v7511 = vunpack.c.l.b16 %v5451
    %v7512 = vunpack.c.h.b16 %v5451
    %v7513 = vunpack.c.l.b16 %v5452
    %v7514 = vunpack.c.l.b16 %v5453
    %v7515 = vunpack.c.h.b16 %v5453
    %v7516 = vunpack.c.l.b16 %v5454
    %v7517 = vunpack.c.h.b16 %v5454
    %v7518 = vunpack.c.l.b16 %v5455
    %v7519 = vunpack.c.h.b16 %v5455
    %v7520 = vunpack.c.l.b16 %v5456
    %v7521 = vunpack.c.h.b16 %v5456
    %v7522 = vunpack.c.l.b16 %v5457
    %v7523 = vpack.c.b16 %v6236, %v6227
    %v7524 = vpack.c.b16 %v6237, %v6228
    %v7525 = vpack.c.b16 %v6238, %v6229
    %v7526 = vpack.c.b16 %v6239, %v6230
    %v7527 = vpack.c.b16 %v6240, %v6231
    %v7528 = vpack.c.b16 %v6241, %v6232
    %v7529 = vpack.c.b16 %v6242, %v6233
    %v7530 = vpack.c.b16 %v6243, %v6234
    %v7531 = vpack.c.b16 %v6244, %v6235
    %v7532 = vpack.c.b16 %v6254, %v6245
    %v7533 = vpack.c.b16 %v6255, %v6246
    %v7534 = vpack.c.b16 %v6256, %v6247
    %v7535 = vpack.c.b16 %v6257, %v6248
    %v7536 = vpack.c.b16 %v6258, %v6249
    %v7537 = vpack.c.b16 %v6259, %v6250
    %v7538 = vpack.c.b16 %v6260, %v6251
    %v7539 = vpack.c.b16 %v6261, %v6252
    %v7540 = vpack.c.b16 %v6262, %v6253
    %v7541 = vpack.c.b16 %v6272, %v6263
    %v7542 = vpack.c.b16 %v6273, %v6264
    %v7543 = vpack.c.b16 %v6274, %v6265
    %v7544 = vpack.c.b16 %v6275, %v6266
    %v7545 = vpack.c.b16 %v6276, %v6267
    %v7546 = vpack.c.b16 %v6277, %v6268
    %v7547 = vpack.c.b16 %v6278, %v6269
    %v7548 = vpack.c.b16 %v6279, %v6270
    %v7549 = vpack.c.b16 %v6280, %v6271
    %v7550 = vpack.c.b16 %v6290, %v6281
    %v7551 = vpack.c.b16 %v6291, %v6282
    %v7552 = vpack.c.b16 %v6292, %v6283
    %v7553 = vpack.c.b16 %v6293, %v6284
    %v7554 = vpack.c.b16 %v6294, %v6285
    %v7555 = vpack.c.b16 %v6295, %v6286
    %v7556 = vpack.c.b16 %v6296, %v6287
    %v7557 = vpack.c.b16 %v6297, %v6288
    %v7558 = vpack.c.b16 %v6298, %v6289
    %v7559 = vpack.c.b16 %v6308, %v6299
    %v7560 = vpack.c.b16 %v6309, %v6300
    %v7561 = vpack.c.b16 %v6310, %v6301
    %v7562 = vpack.c.b16 %v6311, %v6302
    %v7563 = vpack.c.b16 %v6312, %v6303
    %v7564 = vpack.c.b16 %v6313, %v6304
    %v7565 = vpack.c.b16 %v6314, %v6305
    %v7566 = vpack.c.b16 %v6315, %v6306
    %v7567 = vpack.c.b16 %v6316, %v6307
    %v7568 = vpack.c.b16 %v6326, %v6317
    %v7569 = vpack.c.b16 %v6327, %v6318
    %v7570 = vpack.c.b16 %v6328, %v6319
    %v7571 = vpack.c.b16 %v6329, %v6320
    %v7572 = vpack.c.b16 %v6330, %v6321
    %v7573 = vpack.c.b16 %v6331, %v6322
    %v7574 = vpack.c.b16 %v6332, %v6323
    %v7575 = vpack.c.b16 %v6333, %v6324
    %v7576 = vpack.c.b16 %v6334, %v6325
    %v7577 = vpack.c.b16 %v6344, %v6335
    %v7578 = vpack.c.b16 %v6345, %v6336
    %v7579 = vpack.c.b16 %v6346, %v6337
    %v7580 = vpack.c.b16 %v6347, %v6338
    %v7581 = vpack.c.b16 %v6348, %v6339
    %v7582 = vpack.c.b16 %v6349, %v6340
    %v7583 = vpack.c.b16 %v6350, %v6341
    %v7584 = vpack.c.b16 %v6351, %v6342
    %v7585 = vpack.c.b16 %v6352, %v6343
    %v7586 = vpack.c.b16 %v6362, %v6353
    %v7587 = vpack.c.b16 %v6363, %v6354
    %v7588 = vpack.c.b16 %v6364, %v6355
    %v7589 = vpack.c.b16 %v6365, %v6356
    %v7590 = vpack.c.b16 %v6366, %v6357
    %v7591 = vpack.c.b16 %v6367, %v6358
    %v7592 = vpack.c.b16 %v6368, %v6359
    %v7593 = vpack.c.b16 %v6369, %v6360
    %v7594 = vpack.c.b16 %v6370, %v6361
    %v7595 = vpack.c.b16 %v6380, %v6371
    %v7596 = vpack.c.b16 %v6381, %v6372
    %v7597 = vpack.c.b16 %v6382, %v6373
    %v7598 = vpack.c.b16 %v6383, %v6374
    %v7599 = vpack.c.b16 %v6384, %v6375
    %v7600 = vpack.c.b16 %v6385, %v6376
    %v7601 = vpack.c.b16 %v6386, %v6377
    %v7602 = vpack.c.b16 %v6387, %v6378
    %v7603 = vpack.c.b16 %v6388, %v6379
    %v7604 = vpack.c.b16 %v6398, %v6389
    %v7605 = vpack.c.b16 %v6399, %v6390
    %v7606 = vpack.c.b16 %v6400, %v6391
    %v7607 = vpack.c.b16 %v6401, %v6392
    %v7608 = vpack.c.b16 %v6402, %v6393
    %v7609 = vpack.c.b16 %v6403, %v6394
    %v7610 = vpack.c.b16 %v6404, %v6395
    %v7611 = vpack.c.b16 %v6405, %v6396
    %v7612 = vpack.c.b16 %v6406, %v6397
    %v7613 = vpack.c.b16 %v6416, %v6407
    %v7614 = vpack.c.b16 %v6417, %v6408
    %v7615 = vpack.c.b16 %v6418, %v6409
    %v7616 = vpack.c.b16 %v6419, %v6410
    %v7617 = vpack.c.b16 %v6420, %v6411
    %v7618 = vpack.c.b16 %v6421, %v6412
    %v7619 = vpack.c.b16 %v6422, %v6413
    %v7620 = vpack.c.b16 %v6423, %v6414
    %v7621 = vpack.c.b16 %v6424, %v6415
    %v7622 = vpack.c.b16 %v6434, %v6425
    %v7623 = vpack.c.b16 %v6435, %v6426
    %v7624 = vpack.c.b16 %v6436, %v6427
    %v7625 = vpack.c.b16 %v6437, %v6428
    %v7626 = vpack.c.b16 %v6438, %v6429
    %v7627 = vpack.c.b16 %v6439, %v6430
    %v7628 = vpack.c.b16 %v6440, %v6431
    %v7629 = vpack.c.b16 %v6441, %v6432
    %v7630 = vpack.c.b16 %v6442, %v6433
    %v7631 = vpack.c.b16 %v6452, %v6443
    %v7632 = vpack.c.b16 %v6453, %v6444
    %v7633 = vpack.c.b16 %v6454, %v6445
    %v7634 = vpack.c.b16 %v6455, %v6446
    %v7635 = vpack.c.b16 %v6456, %v6447
    %v7636 = vpack.c.b16 %v6457, %v6448
    %v7637 = vpack.c.b16 %v6458, %v6449
    %v7638 = vpack.c.b16 %v6459, %v6450
    %v7639 = vpack.c.b16 %v6460, %v6451
    %v7640 = vpack.c.b16 %v6470, %v6461
    %v7641 = vpack.c.b16 %v6471, %v6462
    %v7642 = vpack.c.b16 %v6472, %v6463
    %v7643 = vpack.c.b16 %v6473, %v6464
    %v7644 = vpack.c.b16 %v6474, %v6465
    %v7645 = vpack.c.b16 %v6475, %v6466
    %v7646 = vpack.c.b16 %v6476, %v6467
    %v7647 = vpack.c.b16 %v6477, %v6468
    %v7648 = vpack.c.b16 %v6478, %v6469
    %v7649 = vpack.c.b16 %v6488, %v6479
    %v7650 = vpack.c.b16 %v6489, %v6480
    %v7651 = vpack.c.b16 %v6490, %v6481
    %v7652 = vpack.c.b16 %v6491, %v6482
    %v7653 = vpack.c.b16 %v6492, %v6483
    %v7654 = vpack.c.b16 %v6493, %v6484
    %v7655 = vpack.c.b16 %v6494, %v6485
    %v7656 = vpack.c.b16 %v6495, %v6486
    %v7657 = vpack.c.b16 %v6496, %v6487
    %v7658 = vpack.c.b16 %v6506, %v6497
    %v7659 = vpack.c.b16 %v6507, %v6498
    %v7660 = vpack.c.b16 %v6508, %v6499
    %v7661 = vpack.c.b16 %v6509, %v6500
    %v7662 = vpack.c.b16 %v6510, %v6501
    %v7663 = vpack.c.b16 %v6511, %v6502
    %v7664 = vpack.c.b16 %v6512, %v6503
    %v7665 = vpack.c.b16 %v6513, %v6504
    %v7666 = vpack.c.b16 %v6514, %v6505
    %v7667 = vpack.c.b16 %v6524, %v6515
    %v7668 = vpack.c.b16 %v6525, %v6516
    %v7669 = vpack.c.b16 %v6526, %v6517
    %v7670 = vpack.c.b16 %v6527, %v6518
    %v7671 = vpack.c.b16 %v6528, %v6519
    %v7672 = vpack.c.b16 %v6529, %v6520
    %v7673 = vpack.c.b16 %v6530, %v6521
    %v7674 = vpack.c.b16 %v6531, %v6522
    %v7675 = vpack.c.b16 %v6532, %v6523
    %v7676 = vpack.c.b16 %v6542, %v6533
    %v7677 = vpack.c.b16 %v6543, %v6534
    %v7678 = vpack.c.b16 %v6544, %v6535
    %v7679 = vpack.c.b16 %v6545, %v6536
    %v7680 = vpack.c.b16 %v6546, %v6537
    %v7681 = vpack.c.b16 %v6547, %v6538
    %v7682 = vpack.c.b16 %v6548, %v6539
    %v7683 = vpack.c.b16 %v6549, %v6540
    %v7684 = vpack.c.b16 %v6550, %v6541
    %v7685 = vpack.c.b16 %v6560, %v6551
    %v7686 = vpack.c.b16 %v6561, %v6552
    %v7687 = vpack.c.b16 %v6562, %v6553
    %v7688 = vpack.c.b16 %v6563, %v6554
    %v7689 = vpack.c.b16 %v6564, %v6555
    %v7690 = vpack.c.b16 %v6565, %v6556
    %v7691 = vpack.c.b16 %v6566, %v6557
    %v7692 = vpack.c.b16 %v6567, %v6558
    %v7693 = vpack.c.b16 %v6568, %v6559
    %v7694 = vpack.c.b16 %v6578, %v6569
    %v7695 = vpack.c.b16 %v6579, %v6570
    %v7696 = vpack.c.b16 %v6580, %v6571
    %v7697 = vpack.c.b16 %v6581, %v6572
    %v7698 = vpack.c.b16 %v6582, %v6573
    %v7699 = vpack.c.b16 %v6583, %v6574
    %v7700 = vpack.c.b16 %v6584, %v6575
    %v7701 = vpack.c.b16 %v6585, %v6576
    %v7702 = vpack.c.b16 %v6586, %v6577
    %v7703 = vpack.c.b16 %v6596, %v6587
    %v7704 = vpack.c.b16 %v6597, %v6588
    %v7705 = vpack.c.b16 %v6598, %v6589
    %v7706 = vpack.c.b16 %v6599, %v6590
    %v7707 = vpack.c.b16 %v6600, %v6591
    %v7708 = vpack.c.b16 %v6601, %v6592
    %v7709 = vpack.c.b16 %v6602, %v6593
    %v7710 = vpack.c.b16 %v6603, %v6594
    %v7711 = vpack.c.b16 %v6604, %v6595
    %v7712 = vpack.c.b16 %v6614, %v6605
    %v7713 = vpack.c.b16 %v6615, %v6606
    %v7714 = vpack.c.b16 %v6616, %v6607
    %v7715 = vpack.c.b16 %v6617, %v6608
    %v7716 = vpack.c.b16 %v6618, %v6609
    %v7717 = vpack.c.b16 %v6619, %v6610
    %v7718 = vpack.c.b16 %v6620, %v6611
    %v7719 = vpack.c.b16 %v6621, %v6612
    %v7720 = vpack.c.b16 %v6622, %v6613
    %v7721 = vpack.c.b16 %v6632, %v6623
    %v7722 = vpack.c.b16 %v6633, %v6624
    %v7723 = vpack.c.b16 %v6634, %v6625
    %v7724 = vpack.c.b16 %v6635, %v6626
    %v7725 = vpack.c.b16 %v6636, %v6627
    %v7726 = vpack.c.b16 %v6637, %v6628
    %v7727 = vpack.c.b16 %v6638, %v6629
    %v7728 = vpack.c.b16 %v6639, %v6630
    %v7729 = vpack.c.b16 %v6640, %v6631
    %v7730 = vpack.c.b16 %v6650, %v6641
    %v7731 = vpack.c.b16 %v6651, %v6642
    %v7732 = vpack.c.b16 %v6652, %v6643
    %v7733 = vpack.c.b16 %v6653, %v6644
    %v7734 = vpack.c.b16 %v6654, %v6645
    %v7735 = vpack.c.b16 %v6655, %v6646
    %v7736 = vpack.c.b16 %v6656, %v6647
    %v7737 = vpack.c.b16 %v6657, %v6648
    %v7738 = vpack.c.b16 %v6658, %v6649
    %v7739 = vpack.c.b16 %v6668, %v6659
    %v7740 = vpack.c.b16 %v6669, %v6660
    %v7741 = vpack.c.b16 %v6670, %v6661
    %v7742 = vpack.c.b16 %v6671, %v6662
    %v7743 = vpack.c.b16 %v6672, %v6663
    %v7744 = vpack.c.b16 %v6673, %v6664
    %v7745 = vpack.c.b16 %v6674, %v6665
    %v7746 = vpack.c.b16 %v6675, %v6666
    %v7747 = vpack.c.b16 %v6676, %v6667
    %v7748 = vpack.c.b16 %v6686, %v6677
    %v7749 = vpack.c.b16 %v6687, %v6678
    %v7750 = vpack.c.b16 %v6688, %v6679
    %v7751 = vpack.c.b16 %v6689, %v6680
    %v7752 = vpack.c.b16 %v6690, %v6681
    %v7753 = vpack.c.b16 %v6691, %v6682
    %v7754 = vpack.c.b16 %v6692, %v6683
    %v7755 = vpack.c.b16 %v6693, %v6684
    %v7756 = vpack.c.b16 %v6694, %v6685
    %v7757 = vpack.c.b16 %v6704, %v6695
    %v7758 = vpack.c.b16 %v6705, %v6696
    %v7759 = vpack.c.b16 %v6706, %v6697
    %v7760 = vpack.c.b16 %v6707, %v6698
    %v7761 = vpack.c.b16 %v6708, %v6699
    %v7762 = vpack.c.b16 %v6709, %v6700
    %v7763 = vpack.c.b16 %v6710, %v6701
    %v7764 = vpack.c.b16 %v6711, %v6702
    %v7765 = vpack.c.b16 %v6712, %v6703
    %v7766 = vpack.c.b16 %v6722, %v6713
    %v7767 = vpack.c.b16 %v6723, %v6714
    %v7768 = vpack.c.b16 %v6724, %v6715
    %v7769 = vpack.c.b16 %v6725, %v6716
    %v7770 = vpack.c.b16 %v6726, %v6717
    %v7771 = vpack.c.b16 %v6727, %v6718
    %v7772 = vpack.c.b16 %v6728, %v6719
    %v7773 = vpack.c.b16 %v6729, %v6720
    %v7774 = vpack.c.b16 %v6730, %v6721
    %v7775 = vpack.c.b16 %v6740, %v6731
    %v7776 = vpack.c.b16 %v6741, %v6732
    %v7777 = vpack.c.b16 %v6742, %v6733
    %v7778 = vpack.c.b16 %v6743, %v6734
    %v7779 = vpack.c.b16 %v6744, %v6735
    %v7780 = vpack.c.b16 %v6745, %v6736
    %v7781 = vpack.c.b16 %v6746, %v6737
    %v7782 = vpack.c.b16 %v6747, %v6738
    %v7783 = vpack.c.b16 %v6748, %v6739
    %v7784 = vpack.c.b16 %v6758, %v6749
    %v7785 = vpack.c.b16 %v6759, %v6750
    %v7786 = vpack.c.b16 %v6760, %v6751
    %v7787 = vpack.c.b16 %v6761, %v6752
    %v7788 = vpack.c.b16 %v6762, %v6753
    %v7789 = vpack.c.b16 %v6763, %v6754
    %v7790 = vpack.c.b16 %v6764, %v6755
    %v7791 = vpack.c.b16 %v6765, %v6756
    %v7792 = vpack.c.b16 %v6766, %v6757
    %v7793 = vpack.c.b16 %v6776, %v6767
    %v7794 = vpack.c.b16 %v6777, %v6768
    %v7795 = vpack.c.b16 %v6778, %v6769
    %v7796 = vpack.c.b16 %v6779, %v6770
    %v7797 = vpack.c.b16 %v6780, %v6771
    %v7798 = vpack.c.b16 %v6781, %v6772
    %v7799 = vpack.c.b16 %v6782, %v6773
    %v7800 = vpack.c.b16 %v6783, %v6774
    %v7801 = vpack.c.b16 %v6784, %v6775
    %v7802 = vpack.c.b16 %v6794, %v6785
    %v7803 = vpack.c.b16 %v6795, %v6786
    %v7804 = vpack.c.b16 %v6796, %v6787
    %v7805 = vpack.c.b16 %v6797, %v6788
    %v7806 = vpack.c.b16 %v6798, %v6789
    %v7807 = vpack.c.b16 %v6799, %v6790
    %v7808 = vpack.c.b16 %v6800, %v6791
    %v7809 = vpack.c.b16 %v6801, %v6792
    %v7810 = vpack.c.b16 %v6802, %v6793
    %v7811 = vpack.c.b16 %v6812, %v6803
    %v7812 = vpack.c.b16 %v6813, %v6804
    %v7813 = vpack.c.b16 %v6814, %v6805
    %v7814 = vpack.c.b16 %v6815, %v6806
    %v7815 = vpack.c.b16 %v6816, %v6807
    %v7816 = vpack.c.b16 %v6817, %v6808
    %v7817 = vpack.c.b16 %v6818, %v6809
    %v7818 = vpack.c.b16 %v6819, %v6810
    %v7819 = vpack.c.b16 %v6820, %v6811
    %v7820 = vpack.c.b16 %v6830, %v6821
    %v7821 = vpack.c.b16 %v6831, %v6822
    %v7822 = vpack.c.b16 %v6832, %v6823
    %v7823 = vpack.c.b16 %v6833, %v6824
    %v7824 = vpack.c.b16 %v6834, %v6825
    %v7825 = vpack.c.b16 %v6835, %v6826
    %v7826 = vpack.c.b16 %v6836, %v6827
    %v7827 = vpack.c.b16 %v6837, %v6828
    %v7828 = vpack.c.b16 %v6838, %v6829
    %v7829 = vpack.c.b16 %v6848, %v6839
    %v7830 = vpack.c.b16 %v6849, %v6840
    %v7831 = vpack.c.b16 %v6850, %v6841
    %v7832 = vpack.c.b16 %v6851, %v6842
    %v7833 = vpack.c.b16 %v6852, %v6843
    %v7834 = vpack.c.b16 %v6853, %v6844
    %v7835 = vpack.c.b16 %v6854, %v6845
    %v7836 = vpack.c.b16 %v6855, %v6846
    %v7837 = vpack.c.b16 %v6856, %v6847
    %v7838 = vpack.c.b16 %v6866, %v6857
    %v7839 = vpack.c.b16 %v6867, %v6858
    %v7840 = vpack.c.b16 %v6868, %v6859
    %v7841 = vpack.c.b16 %v6869, %v6860
    %v7842 = vpack.c.b16 %v6870, %v6861
    %v7843 = vpack.c.b16 %v6871, %v6862
    %v7844 = vpack.c.b16 %v6872, %v6863
    %v7845 = vpack.c.b16 %v6873, %v6864
    %v7846 = vpack.c.b16 %v6874, %v6865
    %v7847 = vpack.c.b16 %v6884, %v6875
    %v7848 = vpack.c.b16 %v6885, %v6876
    %v7849 = vpack.c.b16 %v6886, %v6877
    %v7850 = vpack.c.b16 %v6887, %v6878
    %v7851 = vpack.c.b16 %v6888, %v6879
    %v7852 = vpack.c.b16 %v6889, %v6880
    %v7853 = vpack.c.b16 %v6890, %v6881
    %v7854 = vpack.c.b16 %v6891, %v6882
    %v7855 = vpack.c.b16 %v6892, %v6883
    %v7856 = vpack.c.b16 %v6902, %v6893
    %v7857 = vpack.c.b16 %v6903, %v6894
    %v7858 = vpack.c.b16 %v6904, %v6895
    %v7859 = vpack.c.b16 %v6905, %v6896
    %v7860 = vpack.c.b16 %v6906, %v6897
    %v7861 = vpack.c.b16 %v6907, %v6898
    %v7862 = vpack.c.b16 %v6908, %v6899
    %v7863 = vpack.c.b16 %v6909, %v6900
    %v7864 = vpack.c.b16 %v6910, %v6901
    %v7865 = vpack.c.b16 %v6920, %v6911
    %v7866 = vpack.c.b16 %v6921, %v6912
    %v7867 = vpack.c.b16 %v6922, %v6913
    %v7868 = vpack.c.b16 %v6923, %v6914
    %v7869 = vpack.c.b16 %v6924, %v6915
    %v7870 = vpack.c.b16 %v6925, %v6916
    %v7871 = vpack.c.b16 %v6926, %v6917
    %v7872 = vpack.c.b16 %v6927, %v6918
    %v7873 = vpack.c.b16 %v6928, %v6919
    %v7874 = vpack.c.b16 %v6938, %v6929
    %v7875 = vpack.c.b16 %v6939, %v6930
    %v7876 = vpack.c.b16 %v6940, %v6931
    %v7877 = vpack.c.b16 %v6941, %v6932
    %v7878 = vpack.c.b16 %v6942, %v6933
    %v7879 = vpack.c.b16 %v6943, %v6934
    %v7880 = vpack.c.b16 %v6944, %v6935
    %v7881 = vpack.c.b16 %v6945, %v6936
    %v7882 = vpack.c.b16 %v6946, %v6937
    %v7883 = vpack.c.b16 %v6956, %v6947
    %v7884 = vpack.c.b16 %v6957, %v6948
    %v7885 = vpack.c.b16 %v6958, %v6949
    %v7886 = vpack.c.b16 %v6959, %v6950
    %v7887 = vpack.c.b16 %v6960, %v6951
    %v7888 = vpack.c.b16 %v6961, %v6952
    %v7889 = vpack.c.b16 %v6962, %v6953
    %v7890 = vpack.c.b16 %v6963, %v6954
    %v7891 = vpack.c.b16 %v6964, %v6955
    %v7892 = vpack.c.b16 %v6974, %v6965
    %v7893 = vpack.c.b16 %v6975, %v6966
    %v7894 = vpack.c.b16 %v6976, %v6967
    %v7895 = vpack.c.b16 %v6977, %v6968
    %v7896 = vpack.c.b16 %v6978, %v6969
    %v7897 = vpack.c.b16 %v6979, %v6970
    %v7898 = vpack.c.b16 %v6980, %v6971
    %v7899 = vpack.c.b16 %v6981, %v6972
    %v7900 = vpack.c.b16 %v6982, %v6973
    %v7901 = vpack.c.b16 %v6992, %v6983
    %v7902 = vpack.c.b16 %v6993, %v6984
    %v7903 = vpack.c.b16 %v6994, %v6985
    %v7904 = vpack.c.b16 %v6995, %v6986
    %v7905 = vpack.c.b16 %v6996, %v6987
    %v7906 = vpack.c.b16 %v6997, %v6988
    %v7907 = vpack.c.b16 %v6998, %v6989
    %v7908 = vpack.c.b16 %v6999, %v6990
    %v7909 = vpack.c.b16 %v7000, %v6991
    %v7910 = vpack.c.b16 %v7010, %v7001
    %v7911 = vpack.c.b16 %v7011, %v7002
    %v7912 = vpack.c.b16 %v7012, %v7003
    %v7913 = vpack.c.b16 %v7013, %v7004
    %v7914 = vpack.c.b16 %v7014, %v7005
    %v7915 = vpack.c.b16 %v7015, %v7006
    %v7916 = vpack.c.b16 %v7016, %v7007
    %v7917 = vpack.c.b16 %v7017, %v7008
    %v7918 = vpack.c.b16 %v7018, %v7009
    %v7919 = vpack.c.b16 %v7028, %v7019
    %v7920 = vpack.c.b16 %v7029, %v7020
    %v7921 = vpack.c.b16 %v7030, %v7021
    %v7922 = vpack.c.b16 %v7031, %v7022
    %v7923 = vpack.c.b16 %v7032, %v7023
    %v7924 = vpack.c.b16 %v7033, %v7024
    %v7925 = vpack.c.b16 %v7034, %v7025
    %v7926 = vpack.c.b16 %v7035, %v7026
    %v7927 = vpack.c.b16 %v7036, %v7027
    %v7928 = vpack.c.b16 %v7046, %v7037
    %v7929 = vpack.c.b16 %v7047, %v7038
    %v7930 = vpack.c.b16 %v7048, %v7039
    %v7931 = vpack.c.b16 %v7049, %v7040
    %v7932 = vpack.c.b16 %v7050, %v7041
    %v7933 = vpack.c.b16 %v7051, %v7042
    %v7934 = vpack.c.b16 %v7052, %v7043
    %v7935 = vpack.c.b16 %v7053, %v7044
    %v7936 = vpack.c.b16 %v7054, %v7045
    %v7937 = vpack.c.b16 %v7064, %v7055
    %v7938 = vpack.c.b16 %v7065, %v7056
    %v7939 = vpack.c.b16 %v7066, %v7057
    %v7940 = vpack.c.b16 %v7067, %v7058
    %v7941 = vpack.c.b16 %v7068, %v7059
    %v7942 = vpack.c.b16 %v7069, %v7060
    %v7943 = vpack.c.b16 %v7070, %v7061
    %v7944 = vpack.c.b16 %v7071, %v7062
    %v7945 = vpack.c.b16 %v7072, %v7063
    %v7946 = vpack.c.b16 %v7082, %v7073
    %v7947 = vpack.c.b16 %v7083, %v7074
    %v7948 = vpack.c.b16 %v7084, %v7075
    %v7949 = vpack.c.b16 %v7085, %v7076
    %v7950 = vpack.c.b16 %v7086, %v7077
    %v7951 = vpack.c.b16 %v7087, %v7078
    %v7952 = vpack.c.b16 %v7088, %v7079
    %v7953 = vpack.c.b16 %v7089, %v7080
    %v7954 = vpack.c.b16 %v7090, %v7081
    %v7955 = vpack.c.b16 %v7100, %v7091
    %v7956 = vpack.c.b16 %v7101, %v7092
    %v7957 = vpack.c.b16 %v7102, %v7093
    %v7958 = vpack.c.b16 %v7103, %v7094
    %v7959 = vpack.c.b16 %v7104, %v7095
    %v7960 = vpack.c.b16 %v7105, %v7096
    %v7961 = vpack.c.b16 %v7106, %v7097
    %v7962 = vpack.c.b16 %v7107, %v7098
    %v7963 = vpack.c.b16 %v7108, %v7099
    %v7964 = vpack.c.b16 %v7118, %v7109
    %v7965 = vpack.c.b16 %v7119, %v7110
    %v7966 = vpack.c.b16 %v7120, %v7111
    %v7967 = vpack.c.b16 %v7121, %v7112
    %v7968 = vpack.c.b16 %v7122, %v7113
    %v7969 = vpack.c.b16 %v7123, %v7114
    %v7970 = vpack.c.b16 %v7124, %v7115
    %v7971 = vpack.c.b16 %v7125, %v7116
    %v7972 = vpack.c.b16 %v7126, %v7117
    %v7973 = vpack.c.b16 %v7136, %v7127
    %v7974 = vpack.c.b16 %v7137, %v7128
    %v7975 = vpack.c.b16 %v7138, %v7129
    %v7976 = vpack.c.b16 %v7139, %v7130
    %v7977 = vpack.c.b16 %v7140, %v7131
    %v7978 = vpack.c.b16 %v7141, %v7132
    %v7979 = vpack.c.b16 %v7142, %v7133
    %v7980 = vpack.c.b16 %v7143, %v7134
    %v7981 = vpack.c.b16 %v7144, %v7135
    %v7982 = vpack.c.b16 %v7154, %v7145
    %v7983 = vpack.c.b16 %v7155, %v7146
    %v7984 = vpack.c.b16 %v7156, %v7147
    %v7985 = vpack.c.b16 %v7157, %v7148
    %v7986 = vpack.c.b16 %v7158, %v7149
    %v7987 = vpack.c.b16 %v7159, %v7150
    %v7988 = vpack.c.b16 %v7160, %v7151
    %v7989 = vpack.c.b16 %v7161, %v7152
    %v7990 = vpack.c.b16 %v7162, %v7153
    %v7991 = vpack.c.b16 %v7172, %v7163
    %v7992 = vpack.c.b16 %v7173, %v7164
    %v7993 = vpack.c.b16 %v7174, %v7165
    %v7994 = vpack.c.b16 %v7175, %v7166
    %v7995 = vpack.c.b16 %v7176, %v7167
    %v7996 = vpack.c.b16 %v7177, %v7168
    %v7997 = vpack.c.b16 %v7178, %v7169
    %v7998 = vpack.c.b16 %v7179, %v7170
    %v7999 = vpack.c.b16 %v7180, %v7171
    %v8000 = vpack.c.b16 %v7190, %v7181
    %v8001 = vpack.c.b16 %v7191, %v7182
    %v8002 = vpack.c.b16 %v7192, %v7183
    %v8003 = vpack.c.b16 %v7193, %v7184
    %v8004 = vpack.c.b16 %v7194, %v7185
    %v8005 = vpack.c.b16 %v7195, %v7186
    %v8006 = vpack.c.b16 %v7196, %v7187
    %v8007 = vpack.c.b16 %v7197, %v7188
    %v8008 = vpack.c.b16 %v7198, %v7189
    %v8009 = vpack.c.b16 %v7208, %v7199
    %v8010 = vpack.c.b16 %v7209, %v7200
    %v8011 = vpack.c.b16 %v7210, %v7201
    %v8012 = vpack.c.b16 %v7211, %v7202
    %v8013 = vpack.c.b16 %v7212, %v7203
    %v8014 = vpack.c.b16 %v7213, %v7204
    %v8015 = vpack.c.b16 %v7214, %v7205
    %v8016 = vpack.c.b16 %v7215, %v7206
    %v8017 = vpack.c.b16 %v7216, %v7207
    %v8018 = vpack.c.b16 %v7226, %v7217
    %v8019 = vpack.c.b16 %v7227, %v7218
    %v8020 = vpack.c.b16 %v7228, %v7219
    %v8021 = vpack.c.b16 %v7229, %v7220
    %v8022 = vpack.c.b16 %v7230, %v7221
    %v8023 = vpack.c.b16 %v7231, %v7222
    %v8024 = vpack.c.b16 %v7232, %v7223
    %v8025 = vpack.c.b16 %v7233, %v7224
    %v8026 = vpack.c.b16 %v7234, %v7225
    %v8027 = vpack.c.b16 %v7244, %v7235
    %v8028 = vpack.c.b16 %v7245, %v7236
    %v8029 = vpack.c.b16 %v7246, %v7237
    %v8030 = vpack.c.b16 %v7247, %v7238
    %v8031 = vpack.c.b16 %v7248, %v7239
    %v8032 = vpack.c.b16 %v7249, %v7240
    %v8033 = vpack.c.b16 %v7250, %v7241
    %v8034 = vpack.c.b16 %v7251, %v7242
    %v8035 = vpack.c.b16 %v7252, %v7243
    %v8036 = vpack.c.b16 %v7262, %v7253
    %v8037 = vpack.c.b16 %v7263, %v7254
    %v8038 = vpack.c.b16 %v7264, %v7255
    %v8039 = vpack.c.b16 %v7265, %v7256
    %v8040 = vpack.c.b16 %v7266, %v7257
    %v8041 = vpack.c.b16 %v7267, %v7258
    %v8042 = vpack.c.b16 %v7268, %v7259
    %v8043 = vpack.c.b16 %v7269, %v7260
    %v8044 = vpack.c.b16 %v7270, %v7261
    %v8045 = vpack.c.b16 %v7280, %v7271
    %v8046 = vpack.c.b16 %v7281, %v7272
    %v8047 = vpack.c.b16 %v7282, %v7273
    %v8048 = vpack.c.b16 %v7283, %v7274
    %v8049 = vpack.c.b16 %v7284, %v7275
    %v8050 = vpack.c.b16 %v7285, %v7276
    %v8051 = vpack.c.b16 %v7286, %v7277
    %v8052 = vpack.c.b16 %v7287, %v7278
    %v8053 = vpack.c.b16 %v7288, %v7279
    %v8054 = vpack.c.b16 %v7298, %v7289
    %v8055 = vpack.c.b16 %v7299, %v7290
    %v8056 = vpack.c.b16 %v7300, %v7291
    %v8057 = vpack.c.b16 %v7301, %v7292
    %v8058 = vpack.c.b16 %v7302, %v7293
    %v8059 = vpack.c.b16 %v7303, %v7294
    %v8060 = vpack.c.b16 %v7304, %v7295
    %v8061 = vpack.c.b16 %v7305, %v7296
    %v8062 = vpack.c.b16 %v7306, %v7297
    %v8063 = vpack.c.b16 %v7316, %v7307
    %v8064 = vpack.c.b16 %v7317, %v7308
    %v8065 = vpack.c.b16 %v7318, %v7309
    %v8066 = vpack.c.b16 %v7319, %v7310
    %v8067 = vpack.c.b16 %v7320, %v7311
    %v8068 = vpack.c.b16 %v7321, %v7312
    %v8069 = vpack.c.b16 %v7322, %v7313
    %v8070 = vpack.c.b16 %v7323, %v7314
    %v8071 = vpack.c.b16 %v7324, %v7315
    %v8072 = vpack.c.b16 %v7334, %v7325
    %v8073 = vpack.c.b16 %v7335, %v7326
    %v8074 = vpack.c.b16 %v7336, %v7327
    %v8075 = vpack.c.b16 %v7337, %v7328
    %v8076 = vpack.c.b16 %v7338, %v7329
    %v8077 = vpack.c.b16 %v7339, %v7330
    %v8078 = vpack.c.b16 %v7340, %v7331
    %v8079 = vpack.c.b16 %v7341, %v7332
    %v8080 = vpack.c.b16 %v7342, %v7333
    %v8081 = vpack.c.b16 %v7352, %v7343
    %v8082 = vpack.c.b16 %v7353, %v7344
    %v8083 = vpack.c.b16 %v7354, %v7345
    %v8084 = vpack.c.b16 %v7355, %v7346
    %v8085 = vpack.c.b16 %v7356, %v7347
    %v8086 = vpack.c.b16 %v7357, %v7348
    %v8087 = vpack.c.b16 %v7358, %v7349
    %v8088 = vpack.c.b16 %v7359, %v7350
    %v8089 = vpack.c.b16 %v7360, %v7351
    %v8090 = vpack.c.b16 %v7370, %v7361
    %v8091 = vpack.c.b16 %v7371, %v7362
    %v8092 = vpack.c.b16 %v7372, %v7363
    %v8093 = vpack.c.b16 %v7373, %v7364
    %v8094 = vpack.c.b16 %v7374, %v7365
    %v8095 = vpack.c.b16 %v7375, %v7366
    %v8096 = vpack.c.b16 %v7376, %v7367
    %v8097 = vpack.c.b16 %v7377, %v7368
    %v8098 = vpack.c.b16 %v7378, %v7369
    %v8099 = vpack.c.b16 %v7388, %v7379
    %v8100 = vpack.c.b16 %v7389, %v7380
    %v8101 = vpack.c.b16 %v7390, %v7381
    %v8102 = vpack.c.b16 %v7391, %v7382
    %v8103 = vpack.c.b16 %v7392, %v7383
    %v8104 = vpack.c.b16 %v7393, %v7384
    %v8105 = vpack.c.b16 %v7394, %v7385
    %v8106 = vpack.c.b16 %v7395, %v7386
    %v8107 = vpack.c.b16 %v7396, %v7387
    %v8108 = vpack.c.b16 %v7406, %v7397
    %v8109 = vpack.c.b16 %v7407, %v7398
    %v8110 = vpack.c.b16 %v7408, %v7399
    %v8111 = vpack.c.b16 %v7409, %v7400
    %v8112 = vpack.c.b16 %v7410, %v7401
    %v8113 = vpack.c.b16 %v7411, %v7402
    %v8114 = vpack.c.b16 %v7412, %v7403
    %v8115 = vpack.c.b16 %v7413, %v7404
    %v8116 = vpack.c.b16 %v7414, %v7405
    %v8117 = vpack.c.b16 %v7424, %v7415
    %v8118 = vpack.c.b16 %v7425, %v7416
    %v8119 = vpack.c.b16 %v7426, %v7417
    %v8120 = vpack.c.b16 %v7427, %v7418
    %v8121 = vpack.c.b16 %v7428, %v7419
    %v8122 = vpack.c.b16 %v7429, %v7420
    %v8123 = vpack.c.b16 %v7430, %v7421
    %v8124 = vpack.c.b16 %v7431, %v7422
    %v8125 = vpack.c.b16 %v7432, %v7423
    %v8126 = vpack.c.b16 %v7442, %v7433
    %v8127 = vpack.c.b16 %v7443, %v7434
    %v8128 = vpack.c.b16 %v7444, %v7435
    %v8129 = vpack.c.b16 %v7445, %v7436
    %v8130 = vpack.c.b16 %v7446, %v7437
    %v8131 = vpack.c.b16 %v7447, %v7438
    %v8132 = vpack.c.b16 %v7448, %v7439
    %v8133 = vpack.c.b16 %v7449, %v7440
    %v8134 = vpack.c.b16 %v7450, %v7441
    %v8135 = vpack.c.b16 %v7460, %v7451
    %v8136 = vpack.c.b16 %v7461, %v7452
    %v8137 = vpack.c.b16 %v7462, %v7453
    %v8138 = vpack.c.b16 %v7463, %v7454
    %v8139 = vpack.c.b16 %v7464, %v7455
    %v8140 = vpack.c.b16 %v7465, %v7456
    %v8141 = vpack.c.b16 %v7466, %v7457
    %v8142 = vpack.c.b16 %v7467, %v7458
    %v8143 = vpack.c.b16 %v7468, %v7459
    %v8144 = vpack.c.b16 %v7478, %v7469
    %v8145 = vpack.c.b16 %v7479, %v7470
    %v8146 = vpack.c.b16 %v7480, %v7471
    %v8147 = vpack.c.b16 %v7481, %v7472
    %v8148 = vpack.c.b16 %v7482, %v7473
    %v8149 = vpack.c.b16 %v7483, %v7474
    %v8150 = vpack.c.b16 %v7484, %v7475
    %v8151 = vpack.c.b16 %v7485, %v7476
    %v8152 = vpack.c.b16 %v7486, %v7477
    %v8153 = vpack.c.b16 %v7496, %v7487
    %v8154 = vpack.c.b16 %v7497, %v7488
    %v8155 = vpack.c.b16 %v7498, %v7489
    %v8156 = vpack.c.b16 %v7499, %v7490
    %v8157 = vpack.c.b16 %v7500, %v7491
    %v8158 = vpack.c.b16 %v7501, %v7492
    %v8159 = vpack.c.b16 %v7502, %v7493
    %v8160 = vpack.c.b16 %v7503, %v7494
    %v8161 = vpack.c.b16 %v7504, %v7495
    %v8162 = vpack.c.b16 %v7514, %v7505
    %v8163 = vpack.c.b16 %v7515, %v7506
    %v8164 = vpack.c.b16 %v7516, %v7507
    %v8165 = vpack.c.b16 %v7517, %v7508
    %v8166 = vpack.c.b16 %v7518, %v7509
    %v8167 = vpack.c.b16 %v7519, %v7510
    %v8168 = vpack.c.b16 %v7520, %v7511
    %v8169 = vpack.c.b16 %v7521, %v7512
    %v8170 = vpack.c.b16 %v7522, %v7513
    %8819 = vmatprep.subr.bf16.mxu0 %v7524
    %8820 = vmatpush1.bf16.msra.mxu0 %v7523
    %8821 = vmatprep.subr.bf16.mxu0 %v7533
    %8822 = vmatpush1.bf16.msra.mxu0 %v7532
    %8823 = vmatprep.subr.bf16.mxu0 %v7542
    %8824 = vmatpush1.bf16.msra.mxu0 %v7541
    %8825 = vmatprep.subr.bf16.mxu0 %v7551
    %8826 = vmatpush1.bf16.msra.mxu0 %v7550
    %8827 = vmatprep.subr.bf16.mxu0 %v7560
    %8828 = vmatpush1.bf16.msra.mxu0 %v7559
    %8829 = vmatprep.subr.bf16.mxu0 %v7569
    %8830 = vmatpush1.bf16.msra.mxu0 %v7568
    %8831 = vmatprep.subr.bf16.mxu0 %v7578
    %8832 = vmatpush1.bf16.msra.mxu0 %v7577
    %8833 = vmatprep.subr.bf16.mxu0 %v7587
    %8834 = vmatpush1.bf16.msra.mxu0 %v7586
    %8835 = vmatprep.subr.bf16.mxu0 %v7596
    %8836 = vmatpush1.bf16.msra.mxu0 %v7595
    %8837 = vmatprep.subr.bf16.mxu0 %v7605
    %8838 = vmatpush1.bf16.msra.mxu0 %v7604
    %8839 = vmatprep.subr.bf16.mxu0 %v7614
    %8840 = vmatpush1.bf16.msra.mxu0 %v7613
    %8841 = vmatprep.subr.bf16.mxu0 %v7623
    %8842 = vmatpush1.bf16.msra.mxu0 %v7622
    %8843 = vmatprep.subr.bf16.mxu0 %v7632
    %8844 = vmatpush1.bf16.msra.mxu0 %v7631
    %8845 = vmatprep.subr.bf16.mxu0 %v7641
    %8846 = vmatpush1.bf16.msra.mxu0 %v7640
    %8847 = vmatprep.subr.bf16.mxu0 %v7650
    %8848 = vmatpush1.bf16.msra.mxu0 %v7649
    %8849 = vmatprep.subr.bf16.mxu0 %v7659
    %8850 = vmatpush1.bf16.msra.mxu0 %v7658
    %8851 = vmatprep.mubr.bf16.mxu0 %v4730
    %8852 = vmatmul.mubr.bf16.gmra.mrb[0].mxu0 %v4729
    %v8853 = vpop.f32.mrb[0].mxu0
    %v8854 = vadd.f32 %v5465, %v8853
    %v8855 = vpop.f32.mrb[0].mxu0
    %v8856 = vadd.f32 %v5469, %v8855
    %v8857 = vpop.f32.mrb[0].mxu0
    %v8858 = vadd.f32 %v5465, %v8857
    %v8859 = vpop.f32.mrb[0].mxu0
    %v8860 = vadd.f32 %v5469, %v8859
    %8861 = vdwg.mxu0
    %8862 = vmatprep.subr.bf16.mxu0 %v7668
    %8863 = vmatpush1.bf16.msra.mxu0 %v7667
    %8864 = vmatprep.subr.bf16.mxu0 %v7677
    %8865 = vmatpush1.bf16.msra.mxu0 %v7676
    %8866 = vmatprep.subr.bf16.mxu0 %v7686
    %8867 = vmatpush1.bf16.msra.mxu0 %v7685
    %8868 = vmatprep.subr.bf16.mxu0 %v7695
    %8869 = vmatpush1.bf16.msra.mxu0 %v7694
    %8870 = vmatprep.subr.bf16.mxu0 %v7704
    %8871 = vmatpush1.bf16.msra.mxu0 %v7703
    %8872 = vmatprep.subr.bf16.mxu0 %v7713
    %8873 = vmatpush1.bf16.msra.mxu0 %v7712
    %8874 = vmatprep.subr.bf16.mxu0 %v7722
    %8875 = vmatpush1.bf16.msra.mxu0 %v7721
    %8876 = vmatprep.subr.bf16.mxu0 %v7731
    %8877 = vmatpush1.bf16.msra.mxu0 %v7730
    %8878 = vmatprep.subr.bf16.mxu0 %v7740
    %8879 = vmatpush1.bf16.msra.mxu0 %v7739
    %8880 = vmatprep.subr.bf16.mxu0 %v7749
    %8881 = vmatpush1.bf16.msra.mxu0 %v7748
    %8882 = vmatprep.subr.bf16.mxu0 %v7758
    %8883 = vmatpush1.bf16.msra.mxu0 %v7757
    %8884 = vmatprep.subr.bf16.mxu0 %v7767
    %8885 = vmatpush1.bf16.msra.mxu0 %v7766
    %8886 = vmatprep.subr.bf16.mxu0 %v7776
    %8887 = vmatpush1.bf16.msra.mxu0 %v7775
    %8888 = vmatprep.subr.bf16.mxu0 %v7785
    %8889 = vmatpush1.bf16.msra.mxu0 %v7784
    %8890 = vmatprep.subr.bf16.mxu0 %v7794
    %8891 = vmatpush1.bf16.msra.mxu0 %v7793
    %8892 = vmatprep.subr.bf16.mxu0 %v7803
    %8893 = vmatpush1.bf16.msra.mxu0 %v7802
    %8894 = vmatprep.mubr.bf16.mxu0 %v4732
    %8895 = vmatmul.mubr.bf16.gmra.mrb[0].mxu0 %v4731
    %v8896 = vpop.f32.mrb[0].mxu0
    %v8897 = vadd.f32 %v8854, %v8896
    %v8898 = vpop.f32.mrb[0].mxu0
    %v8899 = vadd.f32 %v8856, %v8898
    %v8900 = vpop.f32.mrb[0].mxu0
    %v8901 = vadd.f32 %v8858, %v8900
    %v8902 = vpop.f32.mrb[0].mxu0
    %v8903 = vadd.f32 %v8860, %v8902
    %8904 = vdwg.mxu0
    %8905 = vmatprep.subr.bf16.mxu0 %v7812
    %8906 = vmatpush1.bf16.msra.mxu0 %v7811
    %8907 = vmatprep.subr.bf16.mxu0 %v7821
    %8908 = vmatpush1.bf16.msra.mxu0 %v7820
    %8909 = vmatprep.subr.bf16.mxu0 %v7830
    %8910 = vmatpush1.bf16.msra.mxu0 %v7829
    %8911 = vmatprep.subr.bf16.mxu0 %v7839
    %8912 = vmatpush1.bf16.msra.mxu0 %v7838
    %8913 = vmatprep.subr.bf16.mxu0 %v7848
    %8914 = vmatpush1.bf16.msra.mxu0 %v7847
    %8915 = vmatprep.subr.bf16.mxu0 %v7857
    %8916 = vmatpush1.bf16.msra.mxu0 %v7856
    %8917 = vmatprep.subr.bf16.mxu0 %v7866
    %8918 = vmatpush1.bf16.msra.mxu0 %v7865
    %8919 = vmatprep.subr.bf16.mxu0 %v7875
    %8920 = vmatpush1.bf16.msra.mxu0 %v7874
    %8921 = vmatprep.subr.bf16.mxu0 %v7884
    %8922 = vmatpush1.bf16.msra.mxu0 %v7883
    %8923 = vmatprep.subr.bf16.mxu0 %v7893
    %8924 = vmatpush1.bf16.msra.mxu0 %v7892
    %8925 = vmatprep.subr.bf16.mxu0 %v7902
    %8926 = vmatpush1.bf16.msra.mxu0 %v7901
    %8927 = vmatprep.subr.bf16.mxu0 %v7911
    %8928 = vmatpush1.bf16.msra.mxu0 %v7910
    %8929 = vmatprep.subr.bf16.mxu0 %v7920
    %8930 = vmatpush1.bf16.msra.mxu0 %v7919
    %8931 = vmatprep.subr.bf16.mxu0 %v7929
    %8932 = vmatpush1.bf16.msra.mxu0 %v7928
    %8933 = vmatprep.subr.bf16.mxu0 %v7938
    %8934 = vmatpush1.bf16.msra.mxu0 %v7937
    %8935 = vmatprep.subr.bf16.mxu0 %v7947
    %8936 = vmatpush1.bf16.msra.mxu0 %v7946
    %8937 = vmatprep.mubr.bf16.mxu0 %v4734
    %8938 = vmatmul.mubr.bf16.gmra.mrb[0].mxu0 %v4733
    %v8939 = vpop.f32.mrb[0].mxu0
    %v8940 = vadd.f32 %v8897, %v8939
    %v8941 = vpop.f32.mrb[0].mxu0
    %v8942 = vadd.f32 %v8899, %v8941
    %v8943 = vpop.f32.mrb[0].mxu0
    %v8944 = vadd.f32 %v8901, %v8943
    %v8945 = vpop.f32.mrb[0].mxu0
    %v8946 = vadd.f32 %v8903, %v8945
    %8947 = vdwg.mxu0
    %8948 = vmatprep.subr.bf16.mxu0 %v7956
    %8949 = vmatpush1.bf16.msra.mxu0 %v7955
    %8950 = vmatprep.subr.bf16.mxu0 %v7965
    %8951 = vmatpush1.bf16.msra.mxu0 %v7964
    %8952 = vmatprep.subr.bf16.mxu0 %v7974
    %8953 = vmatpush1.bf16.msra.mxu0 %v7973
    %8954 = vmatprep.subr.bf16.mxu0 %v7983
    %8955 = vmatpush1.bf16.msra.mxu0 %v7982
    %8956 = vmatprep.subr.bf16.mxu0 %v7992
    %8957 = vmatpush1.bf16.msra.mxu0 %v7991
    %8958 = vmatprep.subr.bf16.mxu0 %v8001
    %8959 = vmatpush1.bf16.msra.mxu0 %v8000
    %8960 = vmatprep.subr.bf16.mxu0 %v8010
    %8961 = vmatpush1.bf16.msra.mxu0 %v8009
    %8962 = vmatprep.subr.bf16.mxu0 %v8019
    %8963 = vmatpush1.bf16.msra.mxu0 %v8018
    %8964 = vmatprep.subr.bf16.mxu0 %v8028
    %8965 = vmatpush1.bf16.msra.mxu0 %v8027
    %8966 = vmatprep.subr.bf16.mxu0 %v8037
    %8967 = vmatpush1.bf16.msra.mxu0 %v8036
    %8968 = vmatprep.subr.bf16.mxu0 %v8046
    %8969 = vmatpush1.bf16.msra.mxu0 %v8045
    %8970 = vmatprep.subr.bf16.mxu0 %v8055
    %8971 = vmatpush1.bf16.msra.mxu0 %v8054
    %8972 = vmatprep.subr.bf16.mxu0 %v8064
    %8973 = vmatpush1.bf16.msra.mxu0 %v8063
    %8974 = vmatprep.subr.bf16.mxu0 %v8073
    %8975 = vmatpush1.bf16.msra.mxu0 %v8072
    %8976 = vmatprep.subr.bf16.mxu0 %v8082
    %8977 = vmatpush1.bf16.msra.mxu0 %v8081
    %8978 = vmatprep.subr.bf16.mxu0 %v8091
    %8979 = vmatpush1.bf16.msra.mxu0 %v8090
    %8980 = vmatprep.mubr.bf16.mxu0 %v4736
    %8981 = vmatmul.mubr.bf16.gmra.mrb[0].mxu0 %v4735
    %v8982 = vpop.f32.mrb[0].mxu0
    %v8983 = vadd.f32 %v8940, %v8982
    %v8984 = vpop.f32.mrb[0].mxu0
    %v8985 = vadd.f32 %v8942, %v8984
    %v8986 = vpop.f32.mrb[0].mxu0
    %v8987 = vadd.f32 %v8944, %v8986
    %v8988 = vpop.f32.mrb[0].mxu0
    %v8989 = vadd.f32 %v8946, %v8988
    %8990 = vdwg.mxu0
    %8991 = vmatprep.subr.bf16.mxu0 %v8100
    %8992 = vmatpush1.bf16.msra.mxu0 %v8099
    %8993 = vmatprep.subr.bf16.mxu0 %v8109
    %8994 = vmatpush1.bf16.msra.mxu0 %v8108
    %8995 = vmatprep.subr.bf16.mxu0 %v8118
    %8996 = vmatpush1.bf16.msra.mxu0 %v8117
    %8997 = vmatprep.subr.bf16.mxu0 %v8127
    %8998 = vmatpush1.bf16.msra.mxu0 %v8126
    %8999 = vmatprep.subr.bf16.mxu0 %v8136
    %9000 = vmatpush1.bf16.msra.mxu0 %v8135
    %9001 = vmatprep.subr.bf16.mxu0 %v8145
    %9002 = vmatpush1.bf16.msra.mxu0 %v8144
    %9003 = vmatprep.subr.bf16.mxu0 %v8154
    %9004 = vmatpush1.bf16.msra.mxu0 %v8153
    %9005 = vmatprep.subr.bf16.mxu0 %v8163
    %9006 = vmatpush1.bf16.msra.mxu0 %v8162
    %9007 = vmatprep.subr.bf16.mxu0 0
    %9008 = vmatpush1.bf16.msra.mxu0 0
    %9009 = vmatprep.subr.bf16.mxu0 0
    %9010 = vmatpush1.bf16.msra.mxu0 0
    %9011 = vmatprep.subr.bf16.mxu0 0
    %9012 = vmatpush1.bf16.msra.mxu0 0
    %9013 = vmatprep.subr.bf16.mxu0 0
    %9014 = vmatpush1.bf16.msra.mxu0 0
    %9015 = vmatprep.subr.bf16.mxu0 0
    %9016 = vmatpush1.bf16.msra.mxu0 0
    %9017 = vmatprep.subr.bf16.mxu0 0
    %9018 = vmatpush1.bf16.msra.mxu0 0
    %9019 = vmatprep.subr.bf16.mxu0 0
    %9020 = vmatpush1.bf16.msra.mxu0 0
    %9021 = vmatprep.subr.bf16.mxu0 0
    %9022 = vmatpush1.bf16.msra.mxu0 0
    %9023 = vmatprep.mubr.bf16.mxu0 0
    %9024 = vmatmul.mubr.bf16.gmra.mrb[0].mxu0 %v4737
    %v9025 = vpop.f32.mrb[0].mxu0
    %v9026 = vadd.f32 %v8983, %v9025
    %v9027 = vpop.f32.mrb[0].mxu0
    %v9028 = vadd.f32 %v8985, %v9027
    %v9029 = vpop.f32.mrb[0].mxu0
    %v9030 = vadd.f32 %v8987, %v9029
    %v9031 = vpop.f32.mrb[0].mxu0
    %v9032 = vadd.f32 %v8989, %v9031
    %9033 = vdwg.mxu0
    %9034 = vmatprep.subr.bf16.mxu0 %v7526
    %9035 = vmatpush1.bf16.msra.mxu0 %v7525
    %9036 = vmatprep.subr.bf16.mxu0 %v7535
    %9037 = vmatpush1.bf16.msra.mxu0 %v7534
    %9038 = vmatprep.subr.bf16.mxu0 %v7544
    %9039 = vmatpush1.bf16.msra.mxu0 %v7543
    %9040 = vmatprep.subr.bf16.mxu0 %v7553
    %9041 = vmatpush1.bf16.msra.mxu0 %v7552
    %9042 = vmatprep.subr.bf16.mxu0 %v7562
    %9043 = vmatpush1.bf16.msra.mxu0 %v7561
    %9044 = vmatprep.subr.bf16.mxu0 %v7571
    %9045 = vmatpush1.bf16.msra.mxu0 %v7570
    %9046 = vmatprep.subr.bf16.mxu0 %v7580
    %9047 = vmatpush1.bf16.msra.mxu0 %v7579
    %9048 = vmatprep.subr.bf16.mxu0 %v7589
    %9049 = vmatpush1.bf16.msra.mxu0 %v7588
    %9050 = vmatprep.subr.bf16.mxu0 %v7598
    %9051 = vmatpush1.bf16.msra.mxu0 %v7597
    %9052 = vmatprep.subr.bf16.mxu0 %v7607
    %9053 = vmatpush1.bf16.msra.mxu0 %v7606
    %9054 = vmatprep.subr.bf16.mxu0 %v7616
    %9055 = vmatpush1.bf16.msra.mxu0 %v7615
    %9056 = vmatprep.subr.bf16.mxu0 %v7625
    %9057 = vmatpush1.bf16.msra.mxu0 %v7624
    %9058 = vmatprep.subr.bf16.mxu0 %v7634
    %9059 = vmatpush1.bf16.msra.mxu0 %v7633
    %9060 = vmatprep.subr.bf16.mxu0 %v7643
    %9061 = vmatpush1.bf16.msra.mxu0 %v7642
    %9062 = vmatprep.subr.bf16.mxu0 %v7652
    %9063 = vmatpush1.bf16.msra.mxu0 %v7651
    %9064 = vmatprep.subr.bf16.mxu0 %v7661
    %9065 = vmatpush1.bf16.msra.mxu0 %v7660
    %9066 = vmatprep.mubr.bf16.mxu0 %v4730
    %9067 = vmatmul.mubr.bf16.gmra.mrb[0].mxu0 %v4729
    %v9068 = vpop.f32.mrb[0].mxu0
    %v9069 = vadd.f32 %v5473, %v9068
    %v9070 = vpop.f32.mrb[0].mxu0
    %v9071 = vadd.f32 %v5477, %v9070
    %v9072 = vpop.f32.mrb[0].mxu0
    %v9073 = vadd.f32 %v5473, %v9072
    %v9074 = vpop.f32.mrb[0].mxu0
    %v9075 = vadd.f32 %v5477, %v9074
    %9076 = vdwg.mxu0
    %9077 = vmatprep.subr.bf16.mxu0 %v7670
    %9078 = vmatpush1.bf16.msra.mxu0 %v7669
    %9079 = vmatprep.subr.bf16.mxu0 %v7679
    %9080 = vmatpush1.bf16.msra.mxu0 %v7678
    %9081 = vmatprep.subr.bf16.mxu0 %v7688
    %9082 = vmatpush1.bf16.msra.mxu0 %v7687
    %9083 = vmatprep.subr.bf16.mxu0 %v7697
    %9084 = vmatpush1.bf16.msra.mxu0 %v7696
    %9085 = vmatprep.subr.bf16.mxu0 %v7706
    %9086 = vmatpush1.bf16.msra.mxu0 %v7705
    %9087 = vmatprep.subr.bf16.mxu0 %v7715
    %9088 = vmatpush1.bf16.msra.mxu0 %v7714
    %9089 = vmatprep.subr.bf16.mxu0 %v7724
    %9090 = vmatpush1.bf16.msra.mxu0 %v7723
    %9091 = vmatprep.subr.bf16.mxu0 %v7733
    %9092 = vmatpush1.bf16.msra.mxu0 %v7732
    %9093 = vmatprep.subr.bf16.mxu0 %v7742
    %9094 = vmatpush1.bf16.msra.mxu0 %v7741
    %9095 = vmatprep.subr.bf16.mxu0 %v7751
    %9096 = vmatpush1.bf16.msra.mxu0 %v7750
    %9097 = vmatprep.subr.bf16.mxu0 %v7760
    %9098 = vmatpush1.bf16.msra.mxu0 %v7759
    %9099 = vmatprep.subr.bf16.mxu0 %v7769
    %9100 = vmatpush1.bf16.msra.mxu0 %v7768
    %9101 = vmatprep.subr.bf16.mxu0 %v7778
    %9102 = vmatpush1.bf16.msra.mxu0 %v7777
    %9103 = vmatprep.subr.bf16.mxu0 %v7787
    %9104 = vmatpush1.bf16.msra.mxu0 %v7786
    %9105 = vmatprep.subr.bf16.mxu0 %v7796
    %9106 = vmatpush1.bf16.msra.mxu0 %v7795
    %9107 = vmatprep.subr.bf16.mxu0 %v7805
    %9108 = vmatpush1.bf16.msra.mxu0 %v7804
    %9109 = vmatprep.mubr.bf16.mxu0 %v4732
    %9110 = vmatmul.mubr.bf16.gmra.mrb[0].mxu0 %v4731
    %v9111 = vpop.f32.mrb[0].mxu0
    %v9112 = vadd.f32 %v9069, %v9111
    %v9113 = vpop.f32.mrb[0].mxu0
    %v9114 = vadd.f32 %v9071, %v9113
    %v9115 = vpop.f32.mrb[0].mxu0
    %v9116 = vadd.f32 %v9073, %v9115
    %v9117 = vpop.f32.mrb[0].mxu0
    %v9118 = vadd.f32 %v9075, %v9117
    %9119 = vdwg.mxu0
    %9120 = vmatprep.subr.bf16.mxu0 %v7814
    %9121 = vmatpush1.bf16.msra.mxu0 %v7813
    %9122 = vmatprep.subr.bf16.mxu0 %v7823
    %9123 = vmatpush1.bf16.msra.mxu0 %v7822
    %9124 = vmatprep.subr.bf16.mxu0 %v7832
    %9125 = vmatpush1.bf16.msra.mxu0 %v7831
    %9126 = vmatprep.subr.bf16.mxu0 %v7841
    %9127 = vmatpush1.bf16.msra.mxu0 %v7840
    %9128 = vmatprep.subr.bf16.mxu0 %v7850
    %9129 = vmatpush1.bf16.msra.mxu0 %v7849
    %9130 = vmatprep.subr.bf16.mxu0 %v7859
    %9131 = vmatpush1.bf16.msra.mxu0 %v7858
    %9132 = vmatprep.subr.bf16.mxu0 %v7868
    %9133 = vmatpush1.bf16.msra.mxu0 %v7867
    %9134 = vmatprep.subr.bf16.mxu0 %v7877
    %9135 = vmatpush1.bf16.msra.mxu0 %v7876
    %9136 = vmatprep.subr.bf16.mxu0 %v7886
    %9137 = vmatpush1.bf16.msra.mxu0 %v7885
    %9138 = vmatprep.subr.bf16.mxu0 %v7895
    %9139 = vmatpush1.bf16.msra.mxu0 %v7894
    %9140 = vmatprep.subr.bf16.mxu0 %v7904
    %9141 = vmatpush1.bf16.msra.mxu0 %v7903
    %9142 = vmatprep.subr.bf16.mxu0 %v7913
    %9143 = vmatpush1.bf16.msra.mxu0 %v7912
    %9144 = vmatprep.subr.bf16.mxu0 %v7922
    %9145 = vmatpush1.bf16.msra.mxu0 %v7921
    %9146 = vmatprep.subr.bf16.mxu0 %v7931
    %9147 = vmatpush1.bf16.msra.mxu0 %v7930
    %9148 = vmatprep.subr.bf16.mxu0 %v7940
    %9149 = vmatpush1.bf16.msra.mxu0 %v7939
    %9150 = vmatprep.subr.bf16.mxu0 %v7949
    %9151 = vmatpush1.bf16.msra.mxu0 %v7948
    %9152 = vmatprep.mubr.bf16.mxu0 %v4734
    %9153 = vmatmul.mubr.bf16.gmra.mrb[0].mxu0 %v4733
    %v9154 = vpop.f32.mrb[0].mxu0
    %v9155 = vadd.f32 %v9112, %v9154
    %v9156 = vpop.f32.mrb[0].mxu0
    %v9157 = vadd.f32 %v9114, %v9156
    %v9158 = vpop.f32.mrb[0].mxu0
    %v9159 = vadd.f32 %v9116, %v9158
    %v9160 = vpop.f32.mrb[0].mxu0
    %v9161 = vadd.f32 %v9118, %v9160
    %9162 = vdwg.mxu0
    %9163 = vmatprep.subr.bf16.mxu0 %v7958
    %9164 = vmatpush1.bf16.msra.mxu0 %v7957
    %9165 = vmatprep.subr.bf16.mxu0 %v7967
    %9166 = vmatpush1.bf16.msra.mxu0 %v7966
    %9167 = vmatprep.subr.bf16.mxu0 %v7976
    %9168 = vmatpush1.bf16.msra.mxu0 %v7975
    %9169 = vmatprep.subr.bf16.mxu0 %v7985
    %9170 = vmatpush1.bf16.msra.mxu0 %v7984
    %9171 = vmatprep.subr.bf16.mxu0 %v7994
    %9172 = vmatpush1.bf16.msra.mxu0 %v7993
    %9173 = vmatprep.subr.bf16.mxu0 %v8003
    %9174 = vmatpush1.bf16.msra.mxu0 %v8002
    %9175 = vmatprep.subr.bf16.mxu0 %v8012
    %9176 = vmatpush1.bf16.msra.mxu0 %v8011
    %9177 = vmatprep.subr.bf16.mxu0 %v8021
    %9178 = vmatpush1.bf16.msra.mxu0 %v8020
    %9179 = vmatprep.subr.bf16.mxu0 %v8030
    %9180 = vmatpush1.bf16.msra.mxu0 %v8029
    %9181 = vmatprep.subr.bf16.mxu0 %v8039
    %9182 = vmatpush1.bf16.msra.mxu0 %v8038
    %9183 = vmatprep.subr.bf16.mxu0 %v8048
    %9184 = vmatpush1.bf16.msra.mxu0 %v8047
    %9185 = vmatprep.subr.bf16.mxu0 %v8057
    %9186 = vmatpush1.bf16.msra.mxu0 %v8056
    %9187 = vmatprep.subr.bf16.mxu0 %v8066
    %9188 = vmatpush1.bf16.msra.mxu0 %v8065
    %9189 = vmatprep.subr.bf16.mxu0 %v8075
    %9190 = vmatpush1.bf16.msra.mxu0 %v8074
    %9191 = vmatprep.subr.bf16.mxu0 %v8084
    %9192 = vmatpush1.bf16.msra.mxu0 %v8083
    %9193 = vmatprep.subr.bf16.mxu0 %v8093
    %9194 = vmatpush1.bf16.msra.mxu0 %v8092
    %9195 = vmatprep.mubr.bf16.mxu0 %v4736
    %9196 = vmatmul.mubr.bf16.gmra.mrb[0].mxu0 %v4735
    %v9197 = vpop.f32.mrb[0].mxu0
    %v9198 = vadd.f32 %v9155, %v9197
    %v9199 = vpop.f32.mrb[0].mxu0
    %v9200 = vadd.f32 %v9157, %v9199
    %v9201 = vpop.f32.mrb[0].mxu0
    %v9202 = vadd.f32 %v9159, %v9201
    %v9203 = vpop.f32.mrb[0].mxu0
    %v9204 = vadd.f32 %v9161, %v9203
    %9205 = vdwg.mxu0
    %9206 = vmatprep.subr.bf16.mxu0 %v8102
    %9207 = vmatpush1.bf16.msra.mxu0 %v8101
    %9208 = vmatprep.subr.bf16.mxu0 %v8111
    %9209 = vmatpush1.bf16.msra.mxu0 %v8110
    %9210 = vmatprep.subr.bf16.mxu0 %v8120
    %9211 = vmatpush1.bf16.msra.mxu0 %v8119
    %9212 = vmatprep.subr.bf16.mxu0 %v8129
    %9213 = vmatpush1.bf16.msra.mxu0 %v8128
    %9214 = vmatprep.subr.bf16.mxu0 %v8138
    %9215 = vmatpush1.bf16.msra.mxu0 %v8137
    %9216 = vmatprep.subr.bf16.mxu0 %v8147
    %9217 = vmatpush1.bf16.msra.mxu0 %v8146
    %9218 = vmatprep.subr.bf16.mxu0 %v8156
    %9219 = vmatpush1.bf16.msra.mxu0 %v8155
    %9220 = vmatprep.subr.bf16.mxu0 %v8165
    %9221 = vmatpush1.bf16.msra.mxu0 %v8164
    %9222 = vmatprep.subr.bf16.mxu0 0
    %9223 = vmatpush1.bf16.msra.mxu0 0
    %9224 = vmatprep.subr.bf16.mxu0 0
    %9225 = vmatpush1.bf16.msra.mxu0 0
    %9226 = vmatprep.subr.bf16.mxu0 0
    %9227 = vmatpush1.bf16.msra.mxu0 0
    %9228 = vmatprep.subr.bf16.mxu0 0
    %9229 = vmatpush1.bf16.msra.mxu0 0
    %9230 = vmatprep.subr.bf16.mxu0 0
    %9231 = vmatpush1.bf16.msra.mxu0 0
    %9232 = vmatprep.subr.bf16.mxu0 0
    %9233 = vmatpush1.bf16.msra.mxu0 0
    %9234 = vmatprep.subr.bf16.mxu0 0
    %9235 = vmatpush1.bf16.msra.mxu0 0
    %9236 = vmatprep.subr.bf16.mxu0 0
    %9237 = vmatpush1.bf16.msra.mxu0 0
    %9238 = vmatprep.mubr.bf16.mxu0 0
    %9239 = vmatmul.mubr.bf16.gmra.mrb[0].mxu0 %v4737
    %v9240 = vpop.f32.mrb[0].mxu0
    %v9241 = vadd.f32 %v9198, %v9240
    %v9242 = vpop.f32.mrb[0].mxu0
    %v9243 = vadd.f32 %v9200, %v9242
    %v9244 = vpop.f32.mrb[0].mxu0
    %v9245 = vadd.f32 %v9202, %v9244
    %v9246 = vpop.f32.mrb[0].mxu0
    %v9247 = vadd.f32 %v9204, %v9246
    %9248 = vdwg.mxu0
    %9249 = vmatprep.subr.bf16.mxu0 %v7528
    %9250 = vmatpush1.bf16.msra.mxu0 %v7527
    %9251 = vmatprep.subr.bf16.mxu0 %v7537
    %9252 = vmatpush1.bf16.msra.mxu0 %v7536
    %9253 = vmatprep.subr.bf16.mxu0 %v7546
    %9254 = vmatpush1.bf16.msra.mxu0 %v7545
    %9255 = vmatprep.subr.bf16.mxu0 %v7555
    %9256 = vmatpush1.bf16.msra.mxu0 %v7554
    %9257 = vmatprep.subr.bf16.mxu0 %v7564
    %9258 = vmatpush1.bf16.msra.mxu0 %v7563
    %9259 = vmatprep.subr.bf16.mxu0 %v7573
    %9260 = vmatpush1.bf16.msra.mxu0 %v7572
    %9261 = vmatprep.subr.bf16.mxu0 %v7582
    %9262 = vmatpush1.bf16.msra.mxu0 %v7581
    %9263 = vmatprep.subr.bf16.mxu0 %v7591
    %9264 = vmatpush1.bf16.msra.mxu0 %v7590
    %9265 = vmatprep.subr.bf16.mxu0 %v7600
    %9266 = vmatpush1.bf16.msra.mxu0 %v7599
    %9267 = vmatprep.subr.bf16.mxu0 %v7609
    %9268 = vmatpush1.bf16.msra.mxu0 %v7608
    %9269 = vmatprep.subr.bf16.mxu0 %v7618
    %9270 = vmatpush1.bf16.msra.mxu0 %v7617
    %9271 = vmatprep.subr.bf16.mxu0 %v7627
    %9272 = vmatpush1.bf16.msra.mxu0 %v7626
    %9273 = vmatprep.subr.bf16.mxu0 %v7636
    %9274 = vmatpush1.bf16.msra.mxu0 %v7635
    %9275 = vmatprep.subr.bf16.mxu0 %v7645
    %9276 = vmatpush1.bf16.msra.mxu0 %v7644
    %9277 = vmatprep.subr.bf16.mxu0 %v7654
    %9278 = vmatpush1.bf16.msra.mxu0 %v7653
    %9279 = vmatprep.subr.bf16.mxu0 %v7663
    %9280 = vmatpush1.bf16.msra.mxu0 %v7662
    %9281 = vmatprep.mubr.bf16.mxu0 %v4730
    %9282 = vmatmul.mubr.bf16.gmra.mrb[0].mxu0 %v4729
    %v9283 = vpop.f32.mrb[0].mxu0
    %v9284 = vadd.f32 %v5481, %v9283
    %v9285 = vpop.f32.mrb[0].mxu0
    %v9286 = vadd.f32 %v5485, %v9285
    %v9287 = vpop.f32.mrb[0].mxu0
    %v9288 = vadd.f32 %v5481, %v9287
    %v9289 = vpop.f32.mrb[0].mxu0
    %v9290 = vadd.f32 %v5485, %v9289
    %9291 = vdwg.mxu0
    %9292 = vmatprep.subr.bf16.mxu0 %v7672
    %9293 = vmatpush1.bf16.msra.mxu0 %v7671
    %9294 = vmatprep.subr.bf16.mxu0 %v7681
    %9295 = vmatpush1.bf16.msra.mxu0 %v7680
    %9296 = vmatprep.subr.bf16.mxu0 %v7690
    %9297 = vmatpush1.bf16.msra.mxu0 %v7689
    %9298 = vmatprep.subr.bf16.mxu0 %v7699
    %9299 = vmatpush1.bf16.msra.mxu0 %v7698
    %9300 = vmatprep.subr.bf16.mxu0 %v7708
    %9301 = vmatpush1.bf16.msra.mxu0 %v7707
    %9302 = vmatprep.subr.bf16.mxu0 %v7717
    %9303 = vmatpush1.bf16.msra.mxu0 %v7716
    %9304 = vmatprep.subr.bf16.mxu0 %v7726
    %9305 = vmatpush1.bf16.msra.mxu0 %v7725
    %9306 = vmatprep.subr.bf16.mxu0 %v7735
    %9307 = vmatpush1.bf16.msra.mxu0 %v7734
    %9308 = vmatprep.subr.bf16.mxu0 %v7744
    %9309 = vmatpush1.bf16.msra.mxu0 %v7743
    %9310 = vmatprep.subr.bf16.mxu0 %v7753
    %9311 = vmatpush1.bf16.msra.mxu0 %v7752
    %9312 = vmatprep.subr.bf16.mxu0 %v7762
    %9313 = vmatpush1.bf16.msra.mxu0 %v7761
    %9314 = vmatprep.subr.bf16.mxu0 %v7771
    %9315 = vmatpush1.bf16.msra.mxu0 %v7770
    %9316 = vmatprep.subr.bf16.mxu0 %v7780
    %9317 = vmatpush1.bf16.msra.mxu0 %v7779
    %9318 = vmatprep.subr.bf16.mxu0 %v7789
    %9319 = vmatpush1.bf16.msra.mxu0 %v7788
    %9320 = vmatprep.subr.bf16.mxu0 %v7798
    %9321 = vmatpush1.bf16.msra.mxu0 %v7797
    %9322 = vmatprep.subr.bf16.mxu0 %v7807
    %9323 = vmatpush1.bf16.msra.mxu0 %v7806
    %9324 = vmatprep.mubr.bf16.mxu0 %v4732
    %9325 = vmatmul.mubr.bf16.gmra.mrb[0].mxu0 %v4731
    %v9326 = vpop.f32.mrb[0].mxu0
    %v9327 = vadd.f32 %v9284, %v9326
    %v9328 = vpop.f32.mrb[0].mxu0
    %v9329 = vadd.f32 %v9286, %v9328
    %v9330 = vpop.f32.mrb[0].mxu0
    %v9331 = vadd.f32 %v9288, %v9330
    %v9332 = vpop.f32.mrb[0].mxu0
    %v9333 = vadd.f32 %v9290, %v9332
    %9334 = vdwg.mxu0
    %9335 = vmatprep.subr.bf16.mxu0 %v7816
    %9336 = vmatpush1.bf16.msra.mxu0 %v7815
    %9337 = vmatprep.subr.bf16.mxu0 %v7825
    %9338 = vmatpush1.bf16.msra.mxu0 %v7824
    %9339 = vmatprep.subr.bf16.mxu0 %v7834
    %9340 = vmatpush1.bf16.msra.mxu0 %v7833
    %9341 = vmatprep.subr.bf16.mxu0 %v7843
    %9342 = vmatpush1.bf16.msra.mxu0 %v7842
    %9343 = vmatprep.subr.bf16.mxu0 %v7852
    %9344 = vmatpush1.bf16.msra.mxu0 %v7851
    %9345 = vmatprep.subr.bf16.mxu0 %v7861
    %9346 = vmatpush1.bf16.msra.mxu0 %v7860
    %9347 = vmatprep.subr.bf16.mxu0 %v7870
    %9348 = vmatpush1.bf16.msra.mxu0 %v7869
    %9349 = vmatprep.subr.bf16.mxu0 %v7879
    %9350 = vmatpush1.bf16.msra.mxu0 %v7878
    %9351 = vmatprep.subr.bf16.mxu0 %v7888
    %9352 = vmatpush1.bf16.msra.mxu0 %v7887
    %9353 = vmatprep.subr.bf16.mxu0 %v7897
    %9354 = vmatpush1.bf16.msra.mxu0 %v7896
    %9355 = vmatprep.subr.bf16.mxu0 %v7906
    %9356 = vmatpush1.bf16.msra.mxu0 %v7905
    %9357 = vmatprep.subr.bf16.mxu0 %v7915
    %9358 = vmatpush1.bf16.msra.mxu0 %v7914
    %9359 = vmatprep.subr.bf16.mxu0 %v7924
    %9360 = vmatpush1.bf16.msra.mxu0 %v7923
    %9361 = vmatprep.subr.bf16.mxu0 %v7933
    %9362 = vmatpush1.bf16.msra.mxu0 %v7932
    %9363 = vmatprep.subr.bf16.mxu0 %v7942
    %9364 = vmatpush1.bf16.msra.mxu0 %v7941
    %9365 = vmatprep.subr.bf16.mxu0 %v7951
    %9366 = vmatpush1.bf16.msra.mxu0 %v7950
    %9367 = vmatprep.mubr.bf16.mxu0 %v4734
    %9368 = vmatmul.mubr.bf16.gmra.mrb[0].mxu0 %v4733
    %v9369 = vpop.f32.mrb[0].mxu0
    %v9370 = vadd.f32 %v9327, %v9369
    %v9371 = vpop.f32.mrb[0].mxu0
    %v9372 = vadd.f32 %v9329, %v9371
    %v9373 = vpop.f32.mrb[0].mxu0
    %v9374 = vadd.f32 %v9331, %v9373
    %v9375 = vpop.f32.mrb[0].mxu0
    %v9376 = vadd.f32 %v9333, %v9375
    %9377 = vdwg.mxu0
    %9378 = vmatprep.subr.bf16.mxu0 %v7960
    %9379 = vmatpush1.bf16.msra.mxu0 %v7959
    %9380 = vmatprep.subr.bf16.mxu0 %v7969
    %9381 = vmatpush1.bf16.msra.mxu0 %v7968
    %9382 = vmatprep.subr.bf16.mxu0 %v7978
    %9383 = vmatpush1.bf16.msra.mxu0 %v7977
    %9384 = vmatprep.subr.bf16.mxu0 %v7987
    %9385 = vmatpush1.bf16.msra.mxu0 %v7986
    %9386 = vmatprep.subr.bf16.mxu0 %v7996
    %9387 = vmatpush1.bf16.msra.mxu0 %v7995
    %9388 = vmatprep.subr.bf16.mxu0 %v8005
    %9389 = vmatpush1.bf16.msra.mxu0 %v8004
    %9390 = vmatprep.subr.bf16.mxu0 %v8014
    %9391 = vmatpush1.bf16.msra.mxu0 %v8013
    %9392 = vmatprep.subr.bf16.mxu0 %v8023
    %9393 = vmatpush1.bf16.msra.mxu0 %v8022
    %9394 = vmatprep.subr.bf16.mxu0 %v8032
    %9395 = vmatpush1.bf16.msra.mxu0 %v8031
    %9396 = vmatprep.subr.bf16.mxu0 %v8041
    %9397 = vmatpush1.bf16.msra.mxu0 %v8040
    %9398 = vmatprep.subr.bf16.mxu0 %v8050
    %9399 = vmatpush1.bf16.msra.mxu0 %v8049
    %9400 = vmatprep.subr.bf16.mxu0 %v8059
    %9401 = vmatpush1.bf16.msra.mxu0 %v8058
    %9402 = vmatprep.subr.bf16.mxu0 %v8068
    %9403 = vmatpush1.bf16.msra.mxu0 %v8067
    %9404 = vmatprep.subr.bf16.mxu0 %v8077
    %9405 = vmatpush1.bf16.msra.mxu0 %v8076
    %9406 = vmatprep.subr.bf16.mxu0 %v8086
    %9407 = vmatpush1.bf16.msra.mxu0 %v8085
    %9408 = vmatprep.subr.bf16.mxu0 %v8095
    %9409 = vmatpush1.bf16.msra.mxu0 %v8094
    %9410 = vmatprep.mubr.bf16.mxu0 %v4736
    %9411 = vmatmul.mubr.bf16.gmra.mrb[0].mxu0 %v4735
    %v9412 = vpop.f32.mrb[0].mxu0
    %v9413 = vadd.f32 %v9370, %v9412
    %v9414 = vpop.f32.mrb[0].mxu0
    %v9415 = vadd.f32 %v9372, %v9414
    %v9416 = vpop.f32.mrb[0].mxu0
    %v9417 = vadd.f32 %v9374, %v9416
    %v9418 = vpop.f32.mrb[0].mxu0
    %v9419 = vadd.f32 %v9376, %v9418
    %9420 = vdwg.mxu0
    %9421 = vmatprep.subr.bf16.mxu0 %v8104
    %9422 = vmatpush1.bf16.msra.mxu0 %v8103
    %9423 = vmatprep.subr.bf16.mxu0 %v8113
    %9424 = vmatpush1.bf16.msra.mxu0 %v8112
    %9425 = vmatprep.subr.bf16.mxu0 %v8122
    %9426 = vmatpush1.bf16.msra.mxu0 %v8121
    %9427 = vmatprep.subr.bf16.mxu0 %v8131
    %9428 = vmatpush1.bf16.msra.mxu0 %v8130
    %9429 = vmatprep.subr.bf16.mxu0 %v8140
    %9430 = vmatpush1.bf16.msra.mxu0 %v8139
    %9431 = vmatprep.subr.bf16.mxu0 %v8149
    %9432 = vmatpush1.bf16.msra.mxu0 %v8148
    %9433 = vmatprep.subr.bf16.mxu0 %v8158
    %9434 = vmatpush1.bf16.msra.mxu0 %v8157
    %9435 = vmatprep.subr.bf16.mxu0 %v8167
    %9436 = vmatpush1.bf16.msra.mxu0 %v8166
    %9437 = vmatprep.subr.bf16.mxu0 0
    %9438 = vmatpush1.bf16.msra.mxu0 0
    %9439 = vmatprep.subr.bf16.mxu0 0
    %9440 = vmatpush1.bf16.msra.mxu0 0
    %9441 = vmatprep.subr.bf16.mxu0 0
    %9442 = vmatpush1.bf16.msra.mxu0 0
    %9443 = vmatprep.subr.bf16.mxu0 0
    %9444 = vmatpush1.bf16.msra.mxu0 0
    %9445 = vmatprep.subr.bf16.mxu0 0
    %9446 = vmatpush1.bf16.msra.mxu0 0
    %9447 = vmatprep.subr.bf16.mxu0 0
    %9448 = vmatpush1.bf16.msra.mxu0 0
    %9449 = vmatprep.subr.bf16.mxu0 0
    %9450 = vmatpush1.bf16.msra.mxu0 0
    %9451 = vmatprep.subr.bf16.mxu0 0
    %9452 = vmatpush1.bf16.msra.mxu0 0
    %9453 = vmatprep.mubr.bf16.mxu0 0
    %9454 = vmatmul.mubr.bf16.gmra.mrb[0].mxu0 %v4737
    %v9455 = vpop.f32.mrb[0].mxu0
    %v9456 = vadd.f32 %v9413, %v9455
    %v9457 = vpop.f32.mrb[0].mxu0
    %v9458 = vadd.f32 %v9415, %v9457
    %v9459 = vpop.f32.mrb[0].mxu0
    %v9460 = vadd.f32 %v9417, %v9459
    %v9461 = vpop.f32.mrb[0].mxu0
    %v9462 = vadd.f32 %v9419, %v9461
    %9463 = vdwg.mxu0
    %9464 = vmatprep.subr.bf16.mxu0 %v7530
    %9465 = vmatpush1.bf16.msra.mxu0 %v7529
    %9466 = vmatprep.subr.bf16.mxu0 %v7539
    %9467 = vmatpush1.bf16.msra.mxu0 %v7538
    %9468 = vmatprep.subr.bf16.mxu0 %v7548
    %9469 = vmatpush1.bf16.msra.mxu0 %v7547
    %9470 = vmatprep.subr.bf16.mxu0 %v7557
    %9471 = vmatpush1.bf16.msra.mxu0 %v7556
    %9472 = vmatprep.subr.bf16.mxu0 %v7566
    %9473 = vmatpush1.bf16.msra.mxu0 %v7565
    %9474 = vmatprep.subr.bf16.mxu0 %v7575
    %9475 = vmatpush1.bf16.msra.mxu0 %v7574
    %9476 = vmatprep.subr.bf16.mxu0 %v7584
    %9477 = vmatpush1.bf16.msra.mxu0 %v7583
    %9478 = vmatprep.subr.bf16.mxu0 %v7593
    %9479 = vmatpush1.bf16.msra.mxu0 %v7592
    %9480 = vmatprep.subr.bf16.mxu0 %v7602
    %9481 = vmatpush1.bf16.msra.mxu0 %v7601
    %9482 = vmatprep.subr.bf16.mxu0 %v7611
    %9483 = vmatpush1.bf16.msra.mxu0 %v7610
    %9484 = vmatprep.subr.bf16.mxu0 %v7620
    %9485 = vmatpush1.bf16.msra.mxu0 %v7619
    %9486 = vmatprep.subr.bf16.mxu0 %v7629
    %9487 = vmatpush1.bf16.msra.mxu0 %v7628
    %9488 = vmatprep.subr.bf16.mxu0 %v7638
    %9489 = vmatpush1.bf16.msra.mxu0 %v7637
    %9490 = vmatprep.subr.bf16.mxu0 %v7647
    %9491 = vmatpush1.bf16.msra.mxu0 %v7646
    %9492 = vmatprep.subr.bf16.mxu0 %v7656
    %9493 = vmatpush1.bf16.msra.mxu0 %v7655
    %9494 = vmatprep.subr.bf16.mxu0 %v7665
    %9495 = vmatpush1.bf16.msra.mxu0 %v7664
    %9496 = vmatprep.mubr.bf16.mxu0 %v4730
    %9497 = vmatmul.mubr.bf16.gmra.mrb[0].mxu0 %v4729
    %v9498 = vpop.f32.mrb[0].mxu0
    %v9499 = vadd.f32 %v5489, %v9498
    %v9500 = vpop.f32.mrb[0].mxu0
    %v9501 = vadd.f32 %v5493, %v9500
    %v9502 = vpop.f32.mrb[0].mxu0
    %v9503 = vadd.f32 %v5489, %v9502
    %v9504 = vpop.f32.mrb[0].mxu0
    %v9505 = vadd.f32 %v5493, %v9504
    %9506 = vdwg.mxu0
    %9507 = vmatprep.subr.bf16.mxu0 %v7674
    %9508 = vmatpush1.bf16.msra.mxu0 %v7673
    %9509 = vmatprep.subr.bf16.mxu0 %v7683
    %9510 = vmatpush1.bf16.msra.mxu0 %v7682
    %9511 = vmatprep.subr.bf16.mxu0 %v7692
    %9512 = vmatpush1.bf16.msra.mxu0 %v7691
    %9513 = vmatprep.subr.bf16.mxu0 %v7701
    %9514 = vmatpush1.bf16.msra.mxu0 %v7700
    %9515 = vmatprep.subr.bf16.mxu0 %v7710
    %9516 = vmatpush1.bf16.msra.mxu0 %v7709
    %9517 = vmatprep.subr.bf16.mxu0 %v7719
    %9518 = vmatpush1.bf16.msra.mxu0 %v7718
    %9519 = vmatprep.subr.bf16.mxu0 %v7728
    %9520 = vmatpush1.bf16.msra.mxu0 %v7727
    %9521 = vmatprep.subr.bf16.mxu0 %v7737
    %9522 = vmatpush1.bf16.msra.mxu0 %v7736
    %9523 = vmatprep.subr.bf16.mxu0 %v7746
    %9524 = vmatpush1.bf16.msra.mxu0 %v7745
    %9525 = vmatprep.subr.bf16.mxu0 %v7755
    %9526 = vmatpush1.bf16.msra.mxu0 %v7754
    %9527 = vmatprep.subr.bf16.mxu0 %v7764
    %9528 = vmatpush1.bf16.msra.mxu0 %v7763
    %9529 = vmatprep.subr.bf16.mxu0 %v7773
    %9530 = vmatpush1.bf16.msra.mxu0 %v7772
    %9531 = vmatprep.subr.bf16.mxu0 %v7782
    %9532 = vmatpush1.bf16.msra.mxu0 %v7781
    %9533 = vmatprep.subr.bf16.mxu0 %v7791
    %9534 = vmatpush1.bf16.msra.mxu0 %v7790
    %9535 = vmatprep.subr.bf16.mxu0 %v7800
    %9536 = vmatpush1.bf16.msra.mxu0 %v7799
    %9537 = vmatprep.subr.bf16.mxu0 %v7809
    %9538 = vmatpush1.bf16.msra.mxu0 %v7808
    %9539 = vmatprep.mubr.bf16.mxu0 %v4732
    %9540 = vmatmul.mubr.bf16.gmra.mrb[0].mxu0 %v4731
    %v9541 = vpop.f32.mrb[0].mxu0
    %v9542 = vadd.f32 %v9499, %v9541
    %v9543 = vpop.f32.mrb[0].mxu0
    %v9544 = vadd.f32 %v9501, %v9543
    %v9545 = vpop.f32.mrb[0].mxu0
    %v9546 = vadd.f32 %v9503, %v9545
    %v9547 = vpop.f32.mrb[0].mxu0
    %v9548 = vadd.f32 %v9505, %v9547
    %9549 = vdwg.mxu0
    %9550 = vmatprep.subr.bf16.mxu0 %v7818
    %9551 = vmatpush1.bf16.msra.mxu0 %v7817
    %9552 = vmatprep.subr.bf16.mxu0 %v7827
    %9553 = vmatpush1.bf16.msra.mxu0 %v7826
    %9554 = vmatprep.subr.bf16.mxu0 %v7836
    %9555 = vmatpush1.bf16.msra.mxu0 %v7835
    %9556 = vmatprep.subr.bf16.mxu0 %v7845
    %9557 = vmatpush1.bf16.msra.mxu0 %v7844
    %9558 = vmatprep.subr.bf16.mxu0 %v7854
    %9559 = vmatpush1.bf16.msra.mxu0 %v7853
    %9560 = vmatprep.subr.bf16.mxu0 %v7863
    %9561 = vmatpush1.bf16.msra.mxu0 %v7862
    %9562 = vmatprep.subr.bf16.mxu0 %v7872
    %9563 = vmatpush1.bf16.msra.mxu0 %v7871
    %9564 = vmatprep.subr.bf16.mxu0 %v7881
    %9565 = vmatpush1.bf16.msra.mxu0 %v7880
    %9566 = vmatprep.subr.bf16.mxu0 %v7890
    %9567 = vmatpush1.bf16.msra.mxu0 %v7889
    %9568 = vmatprep.subr.bf16.mxu0 %v7899
    %9569 = vmatpush1.bf16.msra.mxu0 %v7898
    %9570 = vmatprep.subr.bf16.mxu0 %v7908
    %9571 = vmatpush1.bf16.msra.mxu0 %v7907
    %9572 = vmatprep.subr.bf16.mxu0 %v7917
    %9573 = vmatpush1.bf16.msra.mxu0 %v7916
    %9574 = vmatprep.subr.bf16.mxu0 %v7926
    %9575 = vmatpush1.bf16.msra.mxu0 %v7925
    %9576 = vmatprep.subr.bf16.mxu0 %v7935
    %9577 = vmatpush1.bf16.msra.mxu0 %v7934
    %9578 = vmatprep.subr.bf16.mxu0 %v7944
    %9579 = vmatpush1.bf16.msra.mxu0 %v7943
    %9580 = vmatprep.subr.bf16.mxu0 %v7953
    %9581 = vmatpush1.bf16.msra.mxu0 %v7952
    %9582 = vmatprep.mubr.bf16.mxu0 %v4734
    %9583 = vmatmul.mubr.bf16.gmra.mrb[0].mxu0 %v4733
    %v9584 = vpop.f32.mrb[0].mxu0
    %v9585 = vadd.f32 %v9542, %v9584
    %v9586 = vpop.f32.mrb[0].mxu0
    %v9587 = vadd.f32 %v9544, %v9586
    %v9588 = vpop.f32.mrb[0].mxu0
    %v9589 = vadd.f32 %v9546, %v9588
    %v9590 = vpop.f32.mrb[0].mxu0
    %v9591 = vadd.f32 %v9548, %v9590
    %9592 = vdwg.mxu0
    %9593 = vmatprep.subr.bf16.mxu0 %v7962
    %9594 = vmatpush1.bf16.msra.mxu0 %v7961
    %9595 = vmatprep.subr.bf16.mxu0 %v7971
    %9596 = vmatpush1.bf16.msra.mxu0 %v7970
    %9597 = vmatprep.subr.bf16.mxu0 %v7980
    %9598 = vmatpush1.bf16.msra.mxu0 %v7979
    %9599 = vmatprep.subr.bf16.mxu0 %v7989
    %9600 = vmatpush1.bf16.msra.mxu0 %v7988
    %9601 = vmatprep.subr.bf16.mxu0 %v7998
    %9602 = vmatpush1.bf16.msra.mxu0 %v7997
    %9603 = vmatprep.subr.bf16.mxu0 %v8007
    %9604 = vmatpush1.bf16.msra.mxu0 %v8006
    %9605 = vmatprep.subr.bf16.mxu0 %v8016
    %9606 = vmatpush1.bf16.msra.mxu0 %v8015
    %9607 = vmatprep.subr.bf16.mxu0 %v8025
    %9608 = vmatpush1.bf16.msra.mxu0 %v8024
    %9609 = vmatprep.subr.bf16.mxu0 %v8034
    %9610 = vmatpush1.bf16.msra.mxu0 %v8033
    %9611 = vmatprep.subr.bf16.mxu0 %v8043
    %9612 = vmatpush1.bf16.msra.mxu0 %v8042
    %9613 = vmatprep.subr.bf16.mxu0 %v8052
    %9614 = vmatpush1.bf16.msra.mxu0 %v8051
    %9615 = vmatprep.subr.bf16.mxu0 %v8061
    %9616 = vmatpush1.bf16.msra.mxu0 %v8060
    %9617 = vmatprep.subr.bf16.mxu0 %v8070
    %9618 = vmatpush1.bf16.msra.mxu0 %v8069
    %9619 = vmatprep.subr.bf16.mxu0 %v8079
    %9620 = vmatpush1.bf16.msra.mxu0 %v8078
    %9621 = vmatprep.subr.bf16.mxu0 %v8088
    %9622 = vmatpush1.bf16.msra.mxu0 %v8087
    %9623 = vmatprep.subr.bf16.mxu0 %v8097
    %9624 = vmatpush1.bf16.msra.mxu0 %v8096
    %9625 = vmatprep.mubr.bf16.mxu0 %v4736
    %9626 = vmatmul.mubr.bf16.gmra.mrb[0].mxu0 %v4735
    %v9627 = vpop.f32.mrb[0].mxu0
    %v9628 = vadd.f32 %v9585, %v9627
    %v9629 = vpop.f32.mrb[0].mxu0
    %v9630 = vadd.f32 %v9587, %v9629
    %v9631 = vpop.f32.mrb[0].mxu0
    %v9632 = vadd.f32 %v9589, %v9631
    %v9633 = vpop.f32.mrb[0].mxu0
    %v9634 = vadd.f32 %v9591, %v9633
    %9635 = vdwg.mxu0
    %9636 = vmatprep.subr.bf16.mxu0 %v8106
    %9637 = vmatpush1.bf16.msra.mxu0 %v8105
    %9638 = vmatprep.subr.bf16.mxu0 %v8115
    %9639 = vmatpush1.bf16.msra.mxu0 %v8114
    %9640 = vmatprep.subr.bf16.mxu0 %v8124
    %9641 = vmatpush1.bf16.msra.mxu0 %v8123
    %9642 = vmatprep.subr.bf16.mxu0 %v8133
    %9643 = vmatpush1.bf16.msra.mxu0 %v8132
    %9644 = vmatprep.subr.bf16.mxu0 %v8142
    %9645 = vmatpush1.bf16.msra.mxu0 %v8141
    %9646 = vmatprep.subr.bf16.mxu0 %v8151
    %9647 = vmatpush1.bf16.msra.mxu0 %v8150
    %9648 = vmatprep.subr.bf16.mxu0 %v8160
    %9649 = vmatpush1.bf16.msra.mxu0 %v8159
    %9650 = vmatprep.subr.bf16.mxu0 %v8169
    %9651 = vmatpush1.bf16.msra.mxu0 %v8168
    %9652 = vmatprep.subr.bf16.mxu0 0
    %9653 = vmatpush1.bf16.msra.mxu0 0
    %9654 = vmatprep.subr.bf16.mxu0 0
    %9655 = vmatpush1.bf16.msra.mxu0 0
    %9656 = vmatprep.subr.bf16.mxu0 0
    %9657 = vmatpush1.bf16.msra.mxu0 0
    %9658 = vmatprep.subr.bf16.mxu0 0
    %9659 = vmatpush1.bf16.msra.mxu0 0
    %9660 = vmatprep.subr.bf16.mxu0 0
    %9661 = vmatpush1.bf16.msra.mxu0 0
    %9662 = vmatprep.subr.bf16.mxu0 0
    %9663 = vmatpush1.bf16.msra.mxu0 0
    %9664 = vmatprep.subr.bf16.mxu0 0
    %9665 = vmatpush1.bf16.msra.mxu0 0
    %9666 = vmatprep.subr.bf16.mxu0 0
    %9667 = vmatpush1.bf16.msra.mxu0 0
    %9668 = vmatprep.mubr.bf16.mxu0 0
    %9669 = vmatmul.mubr.bf16.gmra.mrb[0].mxu0 %v4737
    %v9670 = vpop.f32.mrb[0].mxu0
    %v9671 = vadd.f32 %v9628, %v9670
    %v9672 = vpop.f32.mrb[0].mxu0
    %v9673 = vadd.f32 %v9630, %v9672
    %v9674 = vpop.f32.mrb[0].mxu0
    %v9675 = vadd.f32 %v9632, %v9674
    %v9676 = vpop.f32.mrb[0].mxu0
    %v9677 = vadd.f32 %v9634, %v9676
    %9678 = vdwg.mxu0
    %9679 = vmatprep.subr.bf16.mxu0 0
    %9680 = vmatpush1.bf16.msra.mxu0 %v7531
    %9681 = vmatprep.subr.bf16.mxu0 0
    %9682 = vmatpush1.bf16.msra.mxu0 %v7540
    %9683 = vmatprep.subr.bf16.mxu0 0
    %9684 = vmatpush1.bf16.msra.mxu0 %v7549
    %9685 = vmatprep.subr.bf16.mxu0 0
    %9686 = vmatpush1.bf16.msra.mxu0 %v7558
    %9687 = vmatprep.subr.bf16.mxu0 0
    %9688 = vmatpush1.bf16.msra.mxu0 %v7567
    %9689 = vmatprep.subr.bf16.mxu0 0
    %9690 = vmatpush1.bf16.msra.mxu0 %v7576
    %9691 = vmatprep.subr.bf16.mxu0 0
    %9692 = vmatpush1.bf16.msra.mxu0 %v7585
    %9693 = vmatprep.subr.bf16.mxu0 0
    %9694 = vmatpush1.bf16.msra.mxu0 %v7594
    %9695 = vmatprep.subr.bf16.mxu0 0
    %9696 = vmatpush1.bf16.msra.mxu0 %v7603
    %9697 = vmatprep.subr.bf16.mxu0 0
    %9698 = vmatpush1.bf16.msra.mxu0 %v7612
    %9699 = vmatprep.subr.bf16.mxu0 0
    %9700 = vmatpush1.bf16.msra.mxu0 %v7621
    %9701 = vmatprep.subr.bf16.mxu0 0
    %9702 = vmatpush1.bf16.msra.mxu0 %v7630
    %9703 = vmatprep.subr.bf16.mxu0 0
    %9704 = vmatpush1.bf16.msra.mxu0 %v7639
    %9705 = vmatprep.subr.bf16.mxu0 0
    %9706 = vmatpush1.bf16.msra.mxu0 %v7648
    %9707 = vmatprep.subr.bf16.mxu0 0
    %9708 = vmatpush1.bf16.msra.mxu0 %v7657
    %9709 = vmatprep.subr.bf16.mxu0 0
    %9710 = vmatpush1.bf16.msra.mxu0 %v7666
    %9711 = vmatprep.mubr.bf16.mxu0 %v4730
    %9712 = vmatmul.mubr.bf16.gmra.mrb[0].mxu0 %v4729
    %v9713 = vpop.f32.mrb[0].mxu0
    %v9714 = vadd.f32 %v5497, %v9713
    %v9715 = vpop.f32.mrb[0].mxu0
    %v9716 = vpop.f32.mrb[0].mxu0
    %v9717 = vadd.f32 %v5497, %v9716
    %v9718 = vpop.f32.mrb[0].mxu0
    %9719 = vdwg.mxu0
    %9720 = vmatprep.subr.bf16.mxu0 0
    %9721 = vmatpush1.bf16.msra.mxu0 %v7675
    %9722 = vmatprep.subr.bf16.mxu0 0
    %9723 = vmatpush1.bf16.msra.mxu0 %v7684
    %9724 = vmatprep.subr.bf16.mxu0 0
    %9725 = vmatpush1.bf16.msra.mxu0 %v7693
    %9726 = vmatprep.subr.bf16.mxu0 0
    %9727 = vmatpush1.bf16.msra.mxu0 %v7702
    %9728 = vmatprep.subr.bf16.mxu0 0
    %9729 = vmatpush1.bf16.msra.mxu0 %v7711
    %9730 = vmatprep.subr.bf16.mxu0 0
    %9731 = vmatpush1.bf16.msra.mxu0 %v7720
    %9732 = vmatprep.subr.bf16.mxu0 0
    %9733 = vmatpush1.bf16.msra.mxu0 %v7729
    %9734 = vmatprep.subr.bf16.mxu0 0
    %9735 = vmatpush1.bf16.msra.mxu0 %v7738
    %9736 = vmatprep.subr.bf16.mxu0 0
    %9737 = vmatpush1.bf16.msra.mxu0 %v7747
    %9738 = vmatprep.subr.bf16.mxu0 0
    %9739 = vmatpush1.bf16.msra.mxu0 %v7756
    %9740 = vmatprep.subr.bf16.mxu0 0
    %9741 = vmatpush1.bf16.msra.mxu0 %v7765
    %9742 = vmatprep.subr.bf16.mxu0 0
    %9743 = vmatpush1.bf16.msra.mxu0 %v7774
    %9744 = vmatprep.subr.bf16.mxu0 0
    %9745 = vmatpush1.bf16.msra.mxu0 %v7783
    %9746 = vmatprep.subr.bf16.mxu0 0
    %9747 = vmatpush1.bf16.msra.mxu0 %v7792
    %9748 = vmatprep.subr.bf16.mxu0 0
    %9749 = vmatpush1.bf16.msra.mxu0 %v7801
    %9750 = vmatprep.subr.bf16.mxu0 0
    %9751 = vmatpush1.bf16.msra.mxu0 %v7810
    %9752 = vmatprep.mubr.bf16.mxu0 %v4732
    %9753 = vmatmul.mubr.bf16.gmra.mrb[0].mxu0 %v4731
    %v9754 = vpop.f32.mrb[0].mxu0
    %v9755 = vadd.f32 %v9714, %v9754
    %v9756 = vpop.f32.mrb[0].mxu0
    %v9757 = vpop.f32.mrb[0].mxu0
    %v9758 = vadd.f32 %v9717, %v9757
    %v9759 = vpop.f32.mrb[0].mxu0
    %9760 = vdwg.mxu0
    %9761 = vmatprep.subr.bf16.mxu0 0
    %9762 = vmatpush1.bf16.msra.mxu0 %v7819
    %9763 = vmatprep.subr.bf16.mxu0 0
    %9764 = vmatpush1.bf16.msra.mxu0 %v7828
    %9765 = vmatprep.subr.bf16.mxu0 0
    %9766 = vmatpush1.bf16.msra.mxu0 %v7837
    %9767 = vmatprep.subr.bf16.mxu0 0
    %9768 = vmatpush1.bf16.msra.mxu0 %v7846
    %9769 = vmatprep.subr.bf16.mxu0 0
    %9770 = vmatpush1.bf16.msra.mxu0 %v7855
    %9771 = vmatprep.subr.bf16.mxu0 0
    %9772 = vmatpush1.bf16.msra.mxu0 %v7864
    %9773 = vmatprep.subr.bf16.mxu0 0
    %9774 = vmatpush1.bf16.msra.mxu0 %v7873
    %9775 = vmatprep.subr.bf16.mxu0 0
    %9776 = vmatpush1.bf16.msra.mxu0 %v7882
    %9777 = vmatprep.subr.bf16.mxu0 0
    %9778 = vmatpush1.bf16.msra.mxu0 %v7891
    %9779 = vmatprep.subr.bf16.mxu0 0
    %9780 = vmatpush1.bf16.msra.mxu0 %v7900
    %9781 = vmatprep.subr.bf16.mxu0 0
    %9782 = vmatpush1.bf16.msra.mxu0 %v7909
    %9783 = vmatprep.subr.bf16.mxu0 0
    %9784 = vmatpush1.bf16.msra.mxu0 %v7918
    %9785 = vmatprep.subr.bf16.mxu0 0
    %9786 = vmatpush1.bf16.msra.mxu0 %v7927
    %9787 = vmatprep.subr.bf16.mxu0 0
    %9788 = vmatpush1.bf16.msra.mxu0 %v7936
    %9789 = vmatprep.subr.bf16.mxu0 0
    %9790 = vmatpush1.bf16.msra.mxu0 %v7945
    %9791 = vmatprep.subr.bf16.mxu0 0
    %9792 = vmatpush1.bf16.msra.mxu0 %v7954
    %9793 = vmatprep.mubr.bf16.mxu0 %v4734
    %9794 = vmatmul.mubr.bf16.gmra.mrb[0].mxu0 %v4733
    %v9795 = vpop.f32.mrb[0].mxu0
    %v9796 = vadd.f32 %v9755, %v9795
    %v9797 = vpop.f32.mrb[0].mxu0
    %v9798 = vpop.f32.mrb[0].mxu0
    %v9799 = vadd.f32 %v9758, %v9798
    %v9800 = vpop.f32.mrb[0].mxu0
    %9801 = vdwg.mxu0
    %9802 = vmatprep.subr.bf16.mxu0 0
    %9803 = vmatpush1.bf16.msra.mxu0 %v7963
    %9804 = vmatprep.subr.bf16.mxu0 0
    %9805 = vmatpush1.bf16.msra.mxu0 %v7972
    %9806 = vmatprep.subr.bf16.mxu0 0
    %9807 = vmatpush1.bf16.msra.mxu0 %v7981
    %9808 = vmatprep.subr.bf16.mxu0 0
    %9809 = vmatpush1.bf16.msra.mxu0 %v7990
    %9810 = vmatprep.subr.bf16.mxu0 0
    %9811 = vmatpush1.bf16.msra.mxu0 %v7999
    %9812 = vmatprep.subr.bf16.mxu0 0
    %9813 = vmatpush1.bf16.msra.mxu0 %v8008
    %9814 = vmatprep.subr.bf16.mxu0 0
    %9815 = vmatpush1.bf16.msra.mxu0 %v8017
    %9816 = vmatprep.subr.bf16.mxu0 0
    %9817 = vmatpush1.bf16.msra.mxu0 %v8026
    %9818 = vmatprep.subr.bf16.mxu0 0
    %9819 = vmatpush1.bf16.msra.mxu0 %v8035
    %9820 = vmatprep.subr.bf16.mxu0 0
    %9821 = vmatpush1.bf16.msra.mxu0 %v8044
    %9822 = vmatprep.subr.bf16.mxu0 0
    %9823 = vmatpush1.bf16.msra.mxu0 %v8053
    %9824 = vmatprep.subr.bf16.mxu0 0
    %9825 = vmatpush1.bf16.msra.mxu0 %v8062
    %9826 = vmatprep.subr.bf16.mxu0 0
    %9827 = vmatpush1.bf16.msra.mxu0 %v8071
    %9828 = vmatprep.subr.bf16.mxu0 0
    %9829 = vmatpush1.bf16.msra.mxu0 %v8080
    %9830 = vmatprep.subr.bf16.mxu0 0
    %9831 = vmatpush1.bf16.msra.mxu0 %v8089
    %9832 = vmatprep.subr.bf16.mxu0 0
    %9833 = vmatpush1.bf16.msra.mxu0 %v8098
    %9834 = vmatprep.mubr.bf16.mxu0 %v4736
    %9835 = vmatmul.mubr.bf16.gmra.mrb[0].mxu0 %v4735
    %v9836 = vpop.f32.mrb[0].mxu0
    %v9837 = vadd.f32 %v9796, %v9836
    %v9838 = vpop.f32.mrb[0].mxu0
    %v9839 = vpop.f32.mrb[0].mxu0
    %v9840 = vadd.f32 %v9799, %v9839
    %v9841 = vpop.f32.mrb[0].mxu0
    %9842 = vdwg.mxu0
    %9843 = vmatprep.subr.bf16.mxu0 0
    %9844 = vmatpush1.bf16.msra.mxu0 %v8107
    %9845 = vmatprep.subr.bf16.mxu0 0
    %9846 = vmatpush1.bf16.msra.mxu0 %v8116
    %9847 = vmatprep.subr.bf16.mxu0 0
    %9848 = vmatpush1.bf16.msra.mxu0 %v8125
    %9849 = vmatprep.subr.bf16.mxu0 0
    %9850 = vmatpush1.bf16.msra.mxu0 %v8134
    %9851 = vmatprep.subr.bf16.mxu0 0
    %9852 = vmatpush1.bf16.msra.mxu0 %v8143
    %9853 = vmatprep.subr.bf16.mxu0 0
    %9854 = vmatpush1.bf16.msra.mxu0 %v8152
    %9855 = vmatprep.subr.bf16.mxu0 0
    %9856 = vmatpush1.bf16.msra.mxu0 %v8161
    %9857 = vmatprep.subr.bf16.mxu0 0
    %9858 = vmatpush1.bf16.msra.mxu0 %v8170
    %9859 = vmatprep.subr.bf16.mxu0 0
    %9860 = vmatpush1.bf16.msra.mxu0 0
    %9861 = vmatprep.subr.bf16.mxu0 0
    %9862 = vmatpush1.bf16.msra.mxu0 0
    %9863 = vmatprep.subr.bf16.mxu0 0
    %9864 = vmatpush1.bf16.msra.mxu0 0
    %9865 = vmatprep.subr.bf16.mxu0 0
    %9866 = vmatpush1.bf16.msra.mxu0 0
    %9867 = vmatprep.subr.bf16.mxu0 0
    %9868 = vmatpush1.bf16.msra.mxu0 0
    %9869 = vmatprep.subr.bf16.mxu0 0
    %9870 = vmatpush1.bf16.msra.mxu0 0
    %9871 = vmatprep.subr.bf16.mxu0 0
    %9872 = vmatpush1.bf16.msra.mxu0 0
    %9873 = vmatprep.subr.bf16.mxu0 0
    %9874 = vmatpush1.bf16.msra.mxu0 0
    %9875 = vmatprep.mubr.bf16.mxu0 0
    %9876 = vmatmul.mubr.bf16.gmra.mrb[0].mxu0 %v4737
    %v9877 = vpop.f32.mrb[0].mxu0
    %v9878 = vadd.f32 %v9837, %v9877
    %v9879 = vpop.f32.mrb[0].mxu0
    %v9880 = vpop.f32.mrb[0].mxu0
    %v9881 = vadd.f32 %v9840, %v9880
    %v9882 = vpop.f32.mrb[0].mxu0
    %9883 = vdwg.mxu0
    %v9884 = vmax.f32 %v9026, 0.0
    %v9885 = vmax.f32 %v9028, 0.0
    %v9886 = vmax.f32 %v9241, 0.0
    %v9887 = vmax.f32 %v9243, 0.0
    %v9888 = vmax.f32 %v9456, 0.0
    %v9889 = vmax.f32 %v9458, 0.0
    %v9890 = vmax.f32 %v9671, 0.0
    %v9891 = vmax.f32 %v9673, 0.0
    %v9892 = vmax.f32 %v9878, 0.0
    %v9893 = vmax.f32 %v9030, 0.0
    %v9894 = vmax.f32 %v9032, 0.0
    %v9895 = vmax.f32 %v9245, 0.0
    %v9896 = vmax.f32 %v9247, 0.0
    %v9897 = vmax.f32 %v9460, 0.0
    %v9898 = vmax.f32 %v9462, 0.0
    %v9899 = vmax.f32 %v9675, 0.0
    %v9900 = vmax.f32 %v9677, 0.0
    %v9901 = vmax.f32 %v9881, 0.0
    %v9902 = vld [vmem:[#allocation11] sm:$0xff]
    %v9903 = vld [vmem:[#allocation11 + $0x8] sm:$0x1]
    %v9906 = vlaneseq
    %v9907 = vshrl.u32 %v9906, 7
    %v9908 = vsub.s32 0, %v9907
    %v9909 = vrot.slane %v9902, %v9908
    %v9910 = vlaneseq
    %v9911 = vshrl.u32 %v9910, 7
    %v9912 = vsub.s32 1, %v9911
    %v9913 = vrot.slane %v9902, %v9912
    %v9914 = vlaneseq
    %v9915 = vshrl.u32 %v9914, 7
    %v9916 = vsub.s32 2, %v9915
    %v9917 = vrot.slane %v9902, %v9916
    %v9918 = vlaneseq
    %v9919 = vshrl.u32 %v9918, 7
    %v9920 = vsub.s32 3, %v9919
    %v9921 = vrot.slane %v9902, %v9920
    %v9922 = vlaneseq
    %v9923 = vshrl.u32 %v9922, 7
    %v9924 = vsub.s32 4, %v9923
    %v9925 = vrot.slane %v9902, %v9924
    %v9926 = vlaneseq
    %v9927 = vshrl.u32 %v9926, 7
    %v9928 = vsub.s32 5, %v9927
    %v9929 = vrot.slane %v9902, %v9928
    %v9930 = vlaneseq
    %v9931 = vshrl.u32 %v9930, 7
    %v9932 = vsub.s32 6, %v9931
    %v9933 = vrot.slane %v9902, %v9932
    %v9934 = vlaneseq
    %v9935 = vshrl.u32 %v9934, 7
    %v9936 = vsub.s32 7, %v9935
    %v9937 = vrot.slane %v9902, %v9936
    %v9938 = vlaneseq
    %v9939 = vshrl.u32 %v9938, 7
    %v9940 = vsub.s32 0, %v9939
    %v9941 = vrot.slane %v9903, %v9940
    %v9951 = vmul.f32 %v9884, %v9909
    %v9952 = vmul.f32 %v9885, %v9913
    %v9953 = vmul.f32 %v9886, %v9917
    %v9954 = vmul.f32 %v9887, %v9921
    %v9955 = vmul.f32 %v9888, %v9925
    %v9956 = vmul.f32 %v9889, %v9929
    %v9957 = vmul.f32 %v9890, %v9933
    %v9958 = vmul.f32 %v9891, %v9937
    %v9959 = vmul.f32 %v9892, %v9941
    %v9960 = vmul.f32 %v9893, %v9909
    %v9961 = vmul.f32 %v9894, %v9913
    %v9962 = vmul.f32 %v9895, %v9917
    %v9963 = vmul.f32 %v9896, %v9921
    %v9964 = vmul.f32 %v9897, %v9925
    %v9965 = vmul.f32 %v9898, %v9929
    %v9966 = vmul.f32 %v9899, %v9933
    %v9967 = vmul.f32 %v9900, %v9937
    %v9968 = vmul.f32 %v9901, %v9941
    %v9969 = vadd.f32 %v9951, %v9952
    %v9970 = vadd.f32 %v9969, %v9953
    %v9971 = vadd.f32 %v9970, %v9954
    %v9972 = vadd.f32 %v9971, %v9955
    %v9973 = vadd.f32 %v9972, %v9956
    %v9974 = vadd.f32 %v9973, %v9957
    %v9975 = vadd.f32 %v9974, %v9958
    %v9976 = vadd.f32 %v9975, %v9959
    %9977 = vadd.xlane.f32.xlu0 %v9976
    %v9978 = vpop.xlane.xlu0 %9977
    %v9979 = vadd.f32 %v9960, %v9961
    %v9980 = vadd.f32 %v9979, %v9962
    %v9981 = vadd.f32 %v9980, %v9963
    %v9982 = vadd.f32 %v9981, %v9964
    %v9983 = vadd.f32 %v9982, %v9965
    %v9984 = vadd.f32 %v9983, %v9966
    %v9985 = vadd.f32 %v9984, %v9967
    %v9986 = vadd.f32 %v9985, %v9968
    %9987 = vadd.xlane.f32.xlu0 %v9986
    %v9988 = vpop.xlane.xlu0 %9987
    %s9989 = sld [smem:[#allocation2]]
    %v9990 = vstv %s9989
    %v9991 = vadd.f32 %v9978, %v9990
    %v9992 = vadd.f32 %v9988, %v9990
    %v9993 = vxor.u32 %v9991, 2147483648
    %v9994 = vxor.u32 %v9992, 2147483648
    %v9995 = vmul.f32 %v9993, 1.442695
    %v9996 = vpow.pop %v9995
    %v9997 = vmul.f32 %v9994, 1.442695
    %v9998 = vpow.pop %v9997
    %v9999 = vadd.f32 %v9996, 1.0
    %v10000 = vadd.f32 %v9998, 1.0
    %v10001 = vrcp.pop %v9999
    %v10002 = vmul.f32 1.0, %v10001
    %v10003 = vrcp.pop %v10000
    %v10004 = vmul.f32 1.0, %v10003
    %vm10005 = vcmask 7168
    %10006 = vst.msk [vmem:[%s8] sm:$0xff] %vm10005, %v10002
    %10007 = vst.msk [vmem:[%s8 + $0x8] sm:$0xff] %vm10005, %v10004
    // Predicated region
    $region58: #{invincea_forward.1} parent=1 // pred_check
      _
    $region59: #{invincea_forward.1} parent=1 // pred_check_branch
      %10009 = sbr.rel (0) target = $region61
    $region60: #{invincea_forward.1} parent=1 // pred_region
      _
    $region61: #{invincea_forward.1} parent=1 // pred_fallthru
      _
    // Predicated region
    $region62: #{invincea_forward.1} parent=1 // pred_check
      _
    $region63: #{invincea_forward.1} parent=1 // pred_check_branch
      %10011 = sbr.rel (0) target = $region65
    $region64: #{invincea_forward.1} parent=1 // pred_region
      _
    $region65: #{invincea_forward.1} parent=1 // pred_fallthru
      _
    %10012 = vsyncpa [#allocation4], 1
    %10013 = vsyncpa [#allocation6], 1
    %10014 = vsyncpa [#allocation9], 1
    %10015 = vsyncpa [#allocation12], 1

</llo_original>
